<compile_context>
chip_gen: v7x
topology: tpu7x:2x2x1
jax: 0.10.0
libtpu: 0.0.40
codegen_flags: <defaults>
</compile_context>

<pallas_src>
import functools
import random

import jax
import jax.numpy as jnp
from jax import lax
from jax.experimental import pallas as pl
from jax.experimental.pallas import tpu as pltpu

# Padded tile sizes (TPU-friendly: sublane multiple of 8, lane multiple of 128)
B_PAD = 8
H_PAD = 128
V_PAD = 128


# ----------------------------------------------------------------------------
# Fused Pallas kernel: encoder recurrence + decoder recurrence + fc + feedback
# ----------------------------------------------------------------------------
def seq2seq_kernel(tf_ref, enc_xg_ref, tgt_gate_ref, enc_whh_ref, dec_whh_ref,
                   emb_proj_ref, fcw_ref, fcb_ref, logits_ref,
                   h_sc, c_sc, xg_sc, *, v_real):
    b_pad, h_pad = h_sc.shape
    v_pad = fcw_ref.shape[1]
    S = enc_xg_ref.shape[0]
    n_dec = logits_ref.shape[0]

    def lstm_cell(gates, c_prev):
        i = jax.nn.sigmoid(gates[:, 0 * h_pad:1 * h_pad])
        f = jax.nn.sigmoid(gates[:, 1 * h_pad:2 * h_pad])
        g = jnp.tanh(gates[:, 2 * h_pad:3 * h_pad])
        o = jax.nn.sigmoid(gates[:, 3 * h_pad:4 * h_pad])
        c_new = f * c_prev + i * g
        return o * jnp.tanh(c_new), c_new

    # ---------------- encoder recurrence (h, c live in VMEM scratch) --------
    h_sc[...] = jnp.zeros_like(h_sc)
    c_sc[...] = jnp.zeros_like(c_sc)

    def enc_body(s, carry):
        # Input projection was precomputed per token; only the unavoidable
        # h-dependent matmul stays in the recurrence.
        gates = enc_xg_ref[s] + jnp.dot(
            h_sc[...], enc_whh_ref[...], preferred_element_type=jnp.float32)
        h_new, c_new = lstm_cell(gates, c_sc[...])
        h_sc[...] = h_new
        c_sc[...] = c_new
        return carry

    lax.fori_loop(0, S, enc_body, 0, unroll=True)

    # ---------------- decoder recurrence ------------------------------------
    xg_sc[...] = tgt_gate_ref[0]          # x = target[:, 0] (gate contribution)

    col = lax.broadcasted_iota(jnp.int32, (b_pad, v_pad), 1)
    valid = col < v_real

    def dec_body(j, carry):
        gates = xg_sc[...] + jnp.dot(
            h_sc[...], dec_whh_ref[...], preferred_element_type=jnp.float32)
        h_new, c_new = lstm_cell(gates, c_sc[...])
        h_sc[...] = h_new
        c_sc[...] = c_new

        logits = jnp.dot(h_new, fcw_ref[...],
                         preferred_element_type=jnp.float32) + fcb_ref[...]
        logits_ref[j, :, :] = logits      # output t = j + 1

        t = j + 1
        tf_flag = tf_ref[t]

        # Teacher-forced step: next input is just a precomputed table row;
        # no one-hot matmul, no argmax, no dependence on this step's logits.
        @pl.when(tf_flag > 0)
        def _teacher():
            xg_sc[...] = tgt_gate_ref[t]

        # Greedy step: first-index argmax over real vocab lanes, then gather
        # the embedding-projection row via a one-hot matmul on the MXU.
        @pl.when(tf_flag == 0)
        def _greedy():
            masked = jnp.where(valid, logits, jnp.float32(-1e30))
            rowmax = jnp.max(masked, axis=1, keepdims=True)
            is_max = jnp.logical_and(masked == rowmax, valid)
            idx = jnp.min(jnp.where(is_max, col, v_pad), axis=1, keepdims=True)
            onehot_top1 = (col == idx).astype(jnp.float32)
            xg_sc[...] = jnp.dot(onehot_top1, emb_proj_ref[...],
                                 preferred_element_type=jnp.float32)

        return carry

    lax.fori_loop(0, n_dec, dec_body, 0, unroll=True)


# ----------------------------------------------------------------------------
# pallas_call wrapper (one launch for the whole forward)
# ----------------------------------------------------------------------------
def run_seq2seq(tf_flags, enc_xg, tgt_gate, enc_whh, dec_whh, emb_proj,
                fc_w, fc_b, *, v_real):
    S, b_pad, G = enc_xg.shape
    T = tgt_gate.shape[0]
    h_pad = enc_whh.shape[0]
    v_pad = fc_w.shape[1]
    n_dec = T - 1

    grid_spec = pltpu.PrefetchScalarGridSpec(
        num_scalar_prefetch=1,                                  # tf_flags -> SMEM
        grid=(1,),
        in_specs=[
            pl.BlockSpec((S, b_pad, G), lambda i, tf: (0, 0, 0)),    # enc gate inputs
            pl.BlockSpec((T, b_pad, G), lambda i, tf: (0, 0, 0)),    # teacher gate rows
            pl.BlockSpec((h_pad, G), lambda i, tf: (0, 0)),          # enc W_hh
            pl.BlockSpec((h_pad, G), lambda i, tf: (0, 0)),          # dec W_hh
            pl.BlockSpec((v_pad, G), lambda i, tf: (0, 0)),          # emb @ W_ih + b table
            pl.BlockSpec((h_pad, v_pad), lambda i, tf: (0, 0)),      # fc_w
            pl.BlockSpec((1, v_pad), lambda i, tf: (0, 0)),          # fc_b
        ],
        out_specs=pl.BlockSpec((n_dec, b_pad, v_pad), lambda i, tf: (0, 0, 0)),
        scratch_shapes=[
            pltpu.VMEM((b_pad, h_pad), jnp.float32),   # h carry
            pltpu.VMEM((b_pad, h_pad), jnp.float32),   # c carry
            pltpu.VMEM((b_pad, G), jnp.float32),       # current-token gate contribution
        ],
    )
    kernel = functools.partial(seq2seq_kernel, v_real=v_real)
    return pl.pallas_call(
        kernel,
        out_shape=jax.ShapeDtypeStruct((n_dec, b_pad, v_pad), jnp.float32),
        grid_spec=grid_spec,
        compiler_params=pltpu.CompilerParams(dimension_semantics=("arbitrary",)),
    )(tf_flags, enc_xg, tgt_gate, enc_whh, dec_whh, emb_proj, fc_w, fc_b)


# ----------------------------------------------------------------------------
# One-time parameter preparation (padding + table precompute) — hoisted out of
# the per-call forward.
# ----------------------------------------------------------------------------
def _pad2(a, rows, cols):
    return jnp.pad(a, ((0, rows - a.shape[0]), (0, cols - a.shape[1])))


def _pad_gate_cols(w, h):
    """(in, 4h) -> (in, 4*H_PAD): each gate block gets its own 128-lane block."""
    out = jnp.zeros((w.shape[0], 4 * H_PAD), jnp.float32)
    for k in range(4):
        out = out.at[:, k * H_PAD:k * H_PAD + h].set(w[:, k * h:(k + 1) * h])
    return out


def prepare_params(params):
    H = params["enc_whh"].shape[0]
    hp = lax.Precision.HIGHEST
    # Per-token gate tables (embedding lookup + W_ih projection + bias fused).
    enc_tbl = jnp.dot(params["enc_emb"], params["enc_wih"], precision=hp) + params["enc_b"]
    dec_tbl = jnp.dot(params["dec_emb"], params["dec_wih"], precision=hp) + params["dec_b"]
    return {
        "enc_token_gates": _pad_gate_cols(enc_tbl, H),                    # (src_vocab, 4*H_PAD)
        "emb_proj": _pad2(_pad_gate_cols(dec_tbl, H), V_PAD, 4 * H_PAD),  # (V_PAD, 4*H_PAD)
        "enc_whh": _pad2(_pad_gate_cols(params["enc_whh"], H), H_PAD, 4 * H_PAD),
        "dec_whh": _pad2(_pad_gate_cols(params["dec_whh"], H), H_PAD, 4 * H_PAD),
        "fc_w": _pad2(params["fc_w"], H_PAD, V_PAD),
        "fc_b": _pad2(params["fc_b"], 1, V_PAD),
    }


# ----------------------------------------------------------------------------
# Seq2Seq forward (mirrors the PyTorch module's forward), fully jitted.
# ----------------------------------------------------------------------------
@functools.partial(jax.jit, static_argnames=("trg_vocab",))
def seq2seq_forward(prepared, source, target, tf_flags, *, trg_vocab):
    """
    source:   (B, S) int32
    target:   (B, T) int32
    tf_flags: (T,)  int32 teacher-forcing decisions (index 0 unused)
    returns:  (B, T, trg_vocab) float32 logits; outputs[:, 0] stays zero.
    """
    B, S = source.shape
    _, T = target.shape
    V = trg_vocab

    # Per-token gate-input rows for both recurrences: pure gathers (glue).
    enc_xg = prepared["enc_token_gates"][source]              # (B, S, 4*H_PAD)
    enc_xg = jnp.pad(jnp.transpose(enc_xg, (1, 0, 2)),
                     ((0, 0), (0, B_PAD - B), (0, 0)))        # (S, B_PAD, 4*H_PAD)
    tgt_gate = prepared["emb_proj"][target]                   # (B, T, 4*H_PAD)
    tgt_gate = jnp.pad(jnp.transpose(tgt_gate, (1, 0, 2)),
                       ((0, 0), (0, B_PAD - B), (0, 0)))      # (T, B_PAD, 4*H_PAD)

    logits = run_seq2seq(tf_flags, enc_xg, tgt_gate,
                         prepared["enc_whh"], prepared["dec_whh"],
                         prepared["emb_proj"], prepared["fc_w"],
                         prepared["fc_b"], v_real=V)          # (T-1, B_PAD, V_PAD)

    logits = logits[:, :B, :V]                                # strip padding
    outputs = jnp.concatenate(
        [jnp.zeros((1, B, V), jnp.float32), logits], axis=0)  # t=0 row stays zero
    return jnp.transpose(outputs, (1, 0, 2))                  # (B, T, V)


# ----------------------------------------------------------------------------
# Pure-JAX reference (unpadded), for correctness checking
# ----------------------------------------------------------------------------
def seq2seq_reference(params, source, target, tf_flags):
    B, S = source.shape
    _, T = target.shape
    H = params["enc_whh"].shape[0]
    V = params["fc_w"].shape[1]
    hp = lax.Precision.HIGHEST

    def lstm_step(x, h, c, wih, whh, b):
        gates = jnp.dot(x, wih, precision=hp) + jnp.dot(h, whh, precision=hp) + b
        i = jax.nn.sigmoid(gates[:, 0 * H:1 * H])
        f = jax.nn.sigmoid(gates[:, 1 * H:2 * H])
        g = jnp.tanh(gates[:, 2 * H:3 * H])
        o = jax.nn.sigmoid(gates[:, 3 * H:4 * H])
        c = f * c + i * g
        return o * jnp.tanh(c), c

    h = jnp.zeros((B, H), jnp.float32)
    c = jnp.zeros((B, H), jnp.float32)
    for s in range(S):
        x = params["enc_emb"][source[:, s]]
        h, c = lstm_step(x, h, c, params["enc_wih"], params["enc_whh"], params["enc_b"])

    outputs = [jnp.zeros((B, V), jnp.float32)]
    x_tok = target[:, 0]
    for t in range(1, T):
        x = params["dec_emb"][x_tok]
        h, c = lstm_step(x, h, c, params["dec_wih"], params["dec_whh"], params["dec_b"])
        logits = jnp.dot(h, params["fc_w"], precision=hp) + params["fc_b"]
        outputs.append(logits)
        top1 = jnp.argmax(logits, axis=1).astype(jnp.int32)
        x_tok = jnp.where(tf_flags[t] > 0, target[:, t], top1)
    return jnp.stack(outputs, axis=1)


# ----------------------------------------------------------------------------
# Deterministic parameter construction
# ----------------------------------------------------------------------------
def make_params(key, src_vocab, trg_vocab, emb_dim, hidden_dim):
    ks = jax.random.split(key, 10)
    sc = 0.1

    def rnd(k, shape):
        return (sc * jax.random.normal(k, shape)).astype(jnp.float32)

    return {
        # encoder: Embedding(src_vocab, E) + LSTM(E, H)
        "enc_emb": rnd(ks[0], (src_vocab, emb_dim)),
        "enc_wih": rnd(ks[1], (emb_dim, 4 * hidden_dim)),
        "enc_whh": rnd(ks[2], (hidden_dim, 4 * hidden_dim)),
        "enc_b":   rnd(ks[3], (1, 4 * hidden_dim)),  # b_ih + b_hh combined
        # decoder: Embedding(trg_vocab, E) + LSTM(E, H) + Linear(H, trg_vocab)
        "dec_emb": rnd(ks[4], (trg_vocab, emb_dim)),
        "dec_wih": rnd(ks[5], (emb_dim, 4 * hidden_dim)),
        "dec_whh": rnd(ks[6], (hidden_dim, 4 * hidden_dim)),
        "dec_b":   rnd(ks[7], (1, 4 * hidden_dim)),
        "fc_w":    rnd(ks[8], (hidden_dim, trg_vocab)),
        "fc_b":    rnd(ks[9], (1, trg_vocab)),
    }


if __name__ == "__main__":
    B, SRC_LEN, TRG_LEN = 2, 7, 8
    EMB, HID = 16, 32
    SRC_VOCAB, TRG_VOCAB = 12, 16

    key = jax.random.PRNGKey(0)
    kp, ks, kt = jax.random.split(key, 3)
    params = make_params(kp, SRC_VOCAB, TRG_VOCAB, EMB, HID)
    prepared = prepare_params(params)   # one-time padding + table precompute

    source = jax.random.randint(ks, (B, SRC_LEN), 0, SRC_VOCAB, dtype=jnp.int32)
    target = jax.random.randint(kt, (B, TRG_LEN), 0, TRG_VOCAB, dtype=jnp.int32)

    # Host-side teacher-forcing coin flips (stochastic per-call if re-drawn by
    # the caller); index 0 is unused, matching the PyTorch loop.
    rng = random.Random(0)
    tf_flags = jnp.array(
        [1] + [1 if rng.random() < 0.5 else 0 for _ in range(1, TRG_LEN)],
        dtype=jnp.int32,
    )

    out = seq2seq_forward(prepared, source, target, tf_flags, trg_vocab=TRG_VOCAB)
    out = jax.block_until_ready(out)

    assert out.shape == (B, TRG_LEN, TRG_VOCAB)
    assert bool(jnp.all(out[:, 0] == 0.0))       # t=0 row untouched, as in PyTorch
    assert bool(jnp.all(jnp.isfinite(out)))

    ref = seq2seq_reference(params, source, target, tf_flags)
    max_err = float(jnp.max(jnp.abs(out - ref)))
    assert bool(jnp.allclose(out, ref, atol=1e-3, rtol=1e-3)), max_err

    print("KERNEL_OK")
</pallas_src>

<mosaic_0001>
module attributes {stable_mosaic.version = 11 : i64} {
  func.func @seq2seq_kernel(%arg0: i32, %arg1: memref<8xi32, #tpu.memory_space<smem>>, %arg2: memref<7x8x512xf32, #tpu.memory_space<vmem>>, %arg3: memref<8x8x512xf32, #tpu.memory_space<vmem>>, %arg4: memref<128x512xf32, #tpu.memory_space<vmem>>, %arg5: memref<128x512xf32, #tpu.memory_space<vmem>>, %arg6: memref<128x512xf32, #tpu.memory_space<vmem>>, %arg7: memref<128x128xf32, #tpu.memory_space<vmem>>, %arg8: memref<1x128xf32, #tpu.memory_space<vmem>>, %arg9: memref<7x8x128xf32, #tpu.memory_space<vmem>>, %arg10: memref<8x128xf32, #tpu.memory_space<vmem>>, %arg11: memref<8x128xf32, #tpu.memory_space<vmem>>, %arg12: memref<8x512xf32, #tpu.memory_space<vmem>>) attributes {dimension_semantics = [#tpu.dimension_semantics<arbitrary>], iteration_bounds = array<i64: 1>, scalar_prefetch = 1 : i64, scratch_operands = 3 : i64, tpu.core_type = #tpu.core_type<tc>, window_params = [{pipeline_mode = #tpu.pipeline_mode<synchronous>, transform_indices = @transform_0, window_bounds = array<i64: 7, 8, 512>}, {pipeline_mode = #tpu.pipeline_mode<synchronous>, transform_indices = @transform_1, window_bounds = array<i64: 8, 8, 512>}, {pipeline_mode = #tpu.pipeline_mode<synchronous>, transform_indices = @transform_2, window_bounds = array<i64: 128, 512>}, {pipeline_mode = #tpu.pipeline_mode<synchronous>, transform_indices = @transform_3, window_bounds = array<i64: 128, 512>}, {pipeline_mode = #tpu.pipeline_mode<synchronous>, transform_indices = @transform_4, window_bounds = array<i64: 128, 512>}, {pipeline_mode = #tpu.pipeline_mode<synchronous>, transform_indices = @transform_5, window_bounds = array<i64: 128, 128>}, {pipeline_mode = #tpu.pipeline_mode<synchronous>, transform_indices = @transform_6, window_bounds = array<i64: 1, 128>}, {pipeline_mode = #tpu.pipeline_mode<synchronous>, transform_indices = @transform_7, window_bounds = array<i64: 7, 8, 128>}]} {
    %cst = arith.constant 0.000000e+00 : f32
    %0 = vector.broadcast %cst : f32 to vector<8x128xf32>
    %c0 = arith.constant 0 : index
    %c0_0 = arith.constant 0 : index
    %1 = vector.load %arg10[%c0, %c0_0] : memref<8x128xf32, #tpu.memory_space<vmem>>, vector<8x128xf32>
    tpu.vector_store %arg10[%c0, %c0_0], %0 {strides = array<i32>} : memref<8x128xf32, #tpu.memory_space<vmem>>, vector<8x128xf32>,
    %cst_1 = arith.constant 0.000000e+00 : f32
    %2 = vector.broadcast %cst_1 : f32 to vector<8x128xf32>
    %c0_2 = arith.constant 0 : index
    %c0_3 = arith.constant 0 : index
    %3 = vector.load %arg11[%c0_2, %c0_3] : memref<8x128xf32, #tpu.memory_space<vmem>>, vector<8x128xf32>
    tpu.vector_store %arg11[%c0_2, %c0_3], %2 {strides = array<i32>} : memref<8x128xf32, #tpu.memory_space<vmem>>, vector<8x128xf32>,
    %c0_i32 = arith.constant 0 : i32
    %4 = arith.index_cast %c0_i32 : i32 to index
    %c0_4 = arith.constant 0 : index
    %c0_5 = arith.constant 0 : index
    %5 = vector.load %arg2[%4, %c0_4, %c0_5] : memref<7x8x512xf32, #tpu.memory_space<vmem>>, vector<1x8x512xf32>
    %6 = vector.shape_cast %5 : vector<1x8x512xf32> to vector<8x512xf32>
    %c0_6 = arith.constant 0 : index
    %c0_7 = arith.constant 0 : index
    %7 = vector.load %arg10[%c0_6, %c0_7] : memref<8x128xf32, #tpu.memory_space<vmem>>, vector<8x128xf32>
    %c0_8 = arith.constant 0 : index
    %c0_9 = arith.constant 0 : index
    %8 = vector.load %arg4[%c0_8, %c0_9] : memref<128x512xf32, #tpu.memory_space<vmem>>, vector<128x512xf32>
    %cst_10 = arith.constant dense<0.000000e+00> : vector<8x512xf32>
    %9 = tpu.matmul %7, %8, %cst_10 {dimension_numbers = #tpu.dot_dimension_numbers<[1], [0], [0], [1], [0, 0, 1, 1], [], []>} : vector<8x128xf32>, vector<128x512xf32>, vector<8x512xf32> -> vector<8x512xf32>
    %10 = arith.addf %6, %9 : vector<8x512xf32>
    %c0_11 = arith.constant 0 : index
    %c0_12 = arith.constant 0 : index
    %11 = vector.load %arg11[%c0_11, %c0_12] : memref<8x128xf32, #tpu.memory_space<vmem>>, vector<8x128xf32>
    %12 = vector.extract_strided_slice %10 {offsets = [0, 0], sizes = [8, 128], strides = [1, 1]} : vector<8x512xf32> to vector<8x128xf32>
    %13 = arith.negf %12 : vector<8x128xf32>
    %14 = math.exp %13 : vector<8x128xf32>
    %cst_13 = arith.constant 1.000000e+00 : f32
    %15 = vector.broadcast %cst_13 : f32 to vector<8x128xf32>
    %16 = arith.addf %15, %14 : vector<8x128xf32>
    %17 = arith.divf %15, %16 : vector<8x128xf32>
    %18 = vector.extract_strided_slice %10 {offsets = [0, 128], sizes = [8, 128], strides = [1, 1]} : vector<8x512xf32> to vector<8x128xf32>
    %19 = arith.negf %18 : vector<8x128xf32>
    %20 = math.exp %19 : vector<8x128xf32>
    %cst_14 = arith.constant 1.000000e+00 : f32
    %21 = vector.broadcast %cst_14 : f32 to vector<8x128xf32>
    %22 = arith.addf %21, %20 : vector<8x128xf32>
    %23 = arith.divf %21, %22 : vector<8x128xf32>
    %24 = vector.extract_strided_slice %10 {offsets = [0, 256], sizes = [8, 128], strides = [1, 1]} : vector<8x512xf32> to vector<8x128xf32>
    %25 = math.tanh %24 : vector<8x128xf32>
    %26 = vector.extract_strided_slice %10 {offsets = [0, 384], sizes = [8, 128], strides = [1, 1]} : vector<8x512xf32> to vector<8x128xf32>
    %27 = arith.negf %26 : vector<8x128xf32>
    %28 = math.exp %27 : vector<8x128xf32>
    %cst_15 = arith.constant 1.000000e+00 : f32
    %29 = vector.broadcast %cst_15 : f32 to vector<8x128xf32>
    %30 = arith.addf %29, %28 : vector<8x128xf32>
    %31 = arith.divf %29, %30 : vector<8x128xf32>
    %32 = arith.mulf %23, %11 : vector<8x128xf32>
    %33 = arith.mulf %17, %25 : vector<8x128xf32>
    %34 = arith.addf %32, %33 : vector<8x128xf32>
    %35 = math.tanh %34 : vector<8x128xf32>
    %36 = arith.mulf %31, %35 : vector<8x128xf32>
    %c0_16 = arith.constant 0 : index
    %c0_17 = arith.constant 0 : index
    %37 = vector.load %arg10[%c0_16, %c0_17] : memref<8x128xf32, #tpu.memory_space<vmem>>, vector<8x128xf32>
    tpu.vector_store %arg10[%c0_16, %c0_17], %36 {strides = array<i32>} : memref<8x128xf32, #tpu.memory_space<vmem>>, vector<8x128xf32>,
    %c0_18 = arith.constant 0 : index
    %c0_19 = arith.constant 0 : index
    %38 = vector.load %arg11[%c0_18, %c0_19] : memref<8x128xf32, #tpu.memory_space<vmem>>, vector<8x128xf32>
    tpu.vector_store %arg11[%c0_18, %c0_19], %34 {strides = array<i32>} : memref<8x128xf32, #tpu.memory_space<vmem>>, vector<8x128xf32>,
    %c1_i32 = arith.constant 1 : i32
    %39 = arith.index_cast %c1_i32 : i32 to index
    %c0_20 = arith.constant 0 : index
    %c0_21 = arith.constant 0 : index
    %40 = vector.load %arg2[%39, %c0_20, %c0_21] : memref<7x8x512xf32, #tpu.memory_space<vmem>>, vector<1x8x512xf32>
    %41 = vector.shape_cast %40 : vector<1x8x512xf32> to vector<8x512xf32>
    %c0_22 = arith.constant 0 : index
    %c0_23 = arith.constant 0 : index
    %42 = vector.load %arg10[%c0_22, %c0_23] : memref<8x128xf32, #tpu.memory_space<vmem>>, vector<8x128xf32>
    %c0_24 = arith.constant 0 : index
    %c0_25 = arith.constant 0 : index
    %43 = vector.load %arg4[%c0_24, %c0_25] : memref<128x512xf32, #tpu.memory_space<vmem>>, vector<128x512xf32>
    %cst_26 = arith.constant dense<0.000000e+00> : vector<8x512xf32>
    %44 = tpu.matmul %42, %43, %cst_26 {dimension_numbers = #tpu.dot_dimension_numbers<[1], [0], [0], [1], [0, 0, 1, 1], [], []>} : vector<8x128xf32>, vector<128x512xf32>, vector<8x512xf32> -> vector<8x512xf32>
    %45 = arith.addf %41, %44 : vector<8x512xf32>
    %c0_27 = arith.constant 0 : index
    %c0_28 = arith.constant 0 : index
    %46 = vector.load %arg11[%c0_27, %c0_28] : memref<8x128xf32, #tpu.memory_space<vmem>>, vector<8x128xf32>
    %47 = vector.extract_strided_slice %45 {offsets = [0, 0], sizes = [8, 128], strides = [1, 1]} : vector<8x512xf32> to vector<8x128xf32>
    %48 = arith.negf %47 : vector<8x128xf32>
    %49 = math.exp %48 : vector<8x128xf32>
    %cst_29 = arith.constant 1.000000e+00 : f32
    %50 = vector.broadcast %cst_29 : f32 to vector<8x128xf32>
    %51 = arith.addf %50, %49 : vector<8x128xf32>
    %52 = arith.divf %50, %51 : vector<8x128xf32>
    %53 = vector.extract_strided_slice %45 {offsets = [0, 128], sizes = [8, 128], strides = [1, 1]} : vector<8x512xf32> to vector<8x128xf32>
    %54 = arith.negf %53 : vector<8x128xf32>
    %55 = math.exp %54 : vector<8x128xf32>
    %cst_30 = arith.constant 1.000000e+00 : f32
    %56 = vector.broadcast %cst_30 : f32 to vector<8x128xf32>
    %57 = arith.addf %56, %55 : vector<8x128xf32>
    %58 = arith.divf %56, %57 : vector<8x128xf32>
    %59 = vector.extract_strided_slice %45 {offsets = [0, 256], sizes = [8, 128], strides = [1, 1]} : vector<8x512xf32> to vector<8x128xf32>
    %60 = math.tanh %59 : vector<8x128xf32>
    %61 = vector.extract_strided_slice %45 {offsets = [0, 384], sizes = [8, 128], strides = [1, 1]} : vector<8x512xf32> to vector<8x128xf32>
    %62 = arith.negf %61 : vector<8x128xf32>
    %63 = math.exp %62 : vector<8x128xf32>
    %cst_31 = arith.constant 1.000000e+00 : f32
    %64 = vector.broadcast %cst_31 : f32 to vector<8x128xf32>
    %65 = arith.addf %64, %63 : vector<8x128xf32>
    %66 = arith.divf %64, %65 : vector<8x128xf32>
    %67 = arith.mulf %58, %46 : vector<8x128xf32>
    %68 = arith.mulf %52, %60 : vector<8x128xf32>
    %69 = arith.addf %67, %68 : vector<8x128xf32>
    %70 = math.tanh %69 : vector<8x128xf32>
    %71 = arith.mulf %66, %70 : vector<8x128xf32>
    %c0_32 = arith.constant 0 : index
    %c0_33 = arith.constant 0 : index
    %72 = vector.load %arg10[%c0_32, %c0_33] : memref<8x128xf32, #tpu.memory_space<vmem>>, vector<8x128xf32>
    tpu.vector_store %arg10[%c0_32, %c0_33], %71 {strides = array<i32>} : memref<8x128xf32, #tpu.memory_space<vmem>>, vector<8x128xf32>,
    %c0_34 = arith.constant 0 : index
    %c0_35 = arith.constant 0 : index
    %73 = vector.load %arg11[%c0_34, %c0_35] : memref<8x128xf32, #tpu.memory_space<vmem>>, vector<8x128xf32>
    tpu.vector_store %arg11[%c0_34, %c0_35], %69 {strides = array<i32>} : memref<8x128xf32, #tpu.memory_space<vmem>>, vector<8x128xf32>,
    %c2_i32 = arith.constant 2 : i32
    %74 = arith.index_cast %c2_i32 : i32 to index
    %c0_36 = arith.constant 0 : index
    %c0_37 = arith.constant 0 : index
    %75 = vector.load %arg2[%74, %c0_36, %c0_37] : memref<7x8x512xf32, #tpu.memory_space<vmem>>, vector<1x8x512xf32>
    %76 = vector.shape_cast %75 : vector<1x8x512xf32> to vector<8x512xf32>
    %c0_38 = arith.constant 0 : index
    %c0_39 = arith.constant 0 : index
    %77 = vector.load %arg10[%c0_38, %c0_39] : memref<8x128xf32, #tpu.memory_space<vmem>>, vector<8x128xf32>
    %c0_40 = arith.constant 0 : index
    %c0_41 = arith.constant 0 : index
    %78 = vector.load %arg4[%c0_40, %c0_41] : memref<128x512xf32, #tpu.memory_space<vmem>>, vector<128x512xf32>
    %cst_42 = arith.constant dense<0.000000e+00> : vector<8x512xf32>
    %79 = tpu.matmul %77, %78, %cst_42 {dimension_numbers = #tpu.dot_dimension_numbers<[1], [0], [0], [1], [0, 0, 1, 1], [], []>} : vector<8x128xf32>, vector<128x512xf32>, vector<8x512xf32> -> vector<8x512xf32>
    %80 = arith.addf %76, %79 : vector<8x512xf32>
    %c0_43 = arith.constant 0 : index
    %c0_44 = arith.constant 0 : index
    %81 = vector.load %arg11[%c0_43, %c0_44] : memref<8x128xf32, #tpu.memory_space<vmem>>, vector<8x128xf32>
    %82 = vector.extract_strided_slice %80 {offsets = [0, 0], sizes = [8, 128], strides = [1, 1]} : vector<8x512xf32> to vector<8x128xf32>
    %83 = arith.negf %82 : vector<8x128xf32>
    %84 = math.exp %83 : vector<8x128xf32>
    %cst_45 = arith.constant 1.000000e+00 : f32
    %85 = vector.broadcast %cst_45 : f32 to vector<8x128xf32>
    %86 = arith.addf %85, %84 : vector<8x128xf32>
    %87 = arith.divf %85, %86 : vector<8x128xf32>
    %88 = vector.extract_strided_slice %80 {offsets = [0, 128], sizes = [8, 128], strides = [1, 1]} : vector<8x512xf32> to vector<8x128xf32>
    %89 = arith.negf %88 : vector<8x128xf32>
    %90 = math.exp %89 : vector<8x128xf32>
    %cst_46 = arith.constant 1.000000e+00 : f32
    %91 = vector.broadcast %cst_46 : f32 to vector<8x128xf32>
    %92 = arith.addf %91, %90 : vector<8x128xf32>
    %93 = arith.divf %91, %92 : vector<8x128xf32>
    %94 = vector.extract_strided_slice %80 {offsets = [0, 256], sizes = [8, 128], strides = [1, 1]} : vector<8x512xf32> to vector<8x128xf32>
    %95 = math.tanh %94 : vector<8x128xf32>
    %96 = vector.extract_strided_slice %80 {offsets = [0, 384], sizes = [8, 128], strides = [1, 1]} : vector<8x512xf32> to vector<8x128xf32>
    %97 = arith.negf %96 : vector<8x128xf32>
    %98 = math.exp %97 : vector<8x128xf32>
    %cst_47 = arith.constant 1.000000e+00 : f32
    %99 = vector.broadcast %cst_47 : f32 to vector<8x128xf32>
    %100 = arith.addf %99, %98 : vector<8x128xf32>
    %101 = arith.divf %99, %100 : vector<8x128xf32>
    %102 = arith.mulf %93, %81 : vector<8x128xf32>
    %103 = arith.mulf %87, %95 : vector<8x128xf32>
    %104 = arith.addf %102, %103 : vector<8x128xf32>
    %105 = math.tanh %104 : vector<8x128xf32>
    %106 = arith.mulf %101, %105 : vector<8x128xf32>
    %c0_48 = arith.constant 0 : index
    %c0_49 = arith.constant 0 : index
    %107 = vector.load %arg10[%c0_48, %c0_49] : memref<8x128xf32, #tpu.memory_space<vmem>>, vector<8x128xf32>
    tpu.vector_store %arg10[%c0_48, %c0_49], %106 {strides = array<i32>} : memref<8x128xf32, #tpu.memory_space<vmem>>, vector<8x128xf32>,
    %c0_50 = arith.constant 0 : index
    %c0_51 = arith.constant 0 : index
    %108 = vector.load %arg11[%c0_50, %c0_51] : memref<8x128xf32, #tpu.memory_space<vmem>>, vector<8x128xf32>
    tpu.vector_store %arg11[%c0_50, %c0_51], %104 {strides = array<i32>} : memref<8x128xf32, #tpu.memory_space<vmem>>, vector<8x128xf32>,
    %c3_i32 = arith.constant 3 : i32
    %109 = arith.index_cast %c3_i32 : i32 to index
    %c0_52 = arith.constant 0 : index
    %c0_53 = arith.constant 0 : index
    %110 = vector.load %arg2[%109, %c0_52, %c0_53] : memref<7x8x512xf32, #tpu.memory_space<vmem>>, vector<1x8x512xf32>
    %111 = vector.shape_cast %110 : vector<1x8x512xf32> to vector<8x512xf32>
    %c0_54 = arith.constant 0 : index
    %c0_55 = arith.constant 0 : index
    %112 = vector.load %arg10[%c0_54, %c0_55] : memref<8x128xf32, #tpu.memory_space<vmem>>, vector<8x128xf32>
    %c0_56 = arith.constant 0 : index
    %c0_57 = arith.constant 0 : index
    %113 = vector.load %arg4[%c0_56, %c0_57] : memref<128x512xf32, #tpu.memory_space<vmem>>, vector<128x512xf32>
    %cst_58 = arith.constant dense<0.000000e+00> : vector<8x512xf32>
    %114 = tpu.matmul %112, %113, %cst_58 {dimension_numbers = #tpu.dot_dimension_numbers<[1], [0], [0], [1], [0, 0, 1, 1], [], []>} : vector<8x128xf32>, vector<128x512xf32>, vector<8x512xf32> -> vector<8x512xf32>
    %115 = arith.addf %111, %114 : vector<8x512xf32>
    %c0_59 = arith.constant 0 : index
    %c0_60 = arith.constant 0 : index
    %116 = vector.load %arg11[%c0_59, %c0_60] : memref<8x128xf32, #tpu.memory_space<vmem>>, vector<8x128xf32>
    %117 = vector.extract_strided_slice %115 {offsets = [0, 0], sizes = [8, 128], strides = [1, 1]} : vector<8x512xf32> to vector<8x128xf32>
    %118 = arith.negf %117 : vector<8x128xf32>
    %119 = math.exp %118 : vector<8x128xf32>
    %cst_61 = arith.constant 1.000000e+00 : f32
    %120 = vector.broadcast %cst_61 : f32 to vector<8x128xf32>
    %121 = arith.addf %120, %119 : vector<8x128xf32>
    %122 = arith.divf %120, %121 : vector<8x128xf32>
    %123 = vector.extract_strided_slice %115 {offsets = [0, 128], sizes = [8, 128], strides = [1, 1]} : vector<8x512xf32> to vector<8x128xf32>
    %124 = arith.negf %123 : vector<8x128xf32>
    %125 = math.exp %124 : vector<8x128xf32>
    %cst_62 = arith.constant 1.000000e+00 : f32
    %126 = vector.broadcast %cst_62 : f32 to vector<8x128xf32>
    %127 = arith.addf %126, %125 : vector<8x128xf32>
    %128 = arith.divf %126, %127 : vector<8x128xf32>
    %129 = vector.extract_strided_slice %115 {offsets = [0, 256], sizes = [8, 128], strides = [1, 1]} : vector<8x512xf32> to vector<8x128xf32>
    %130 = math.tanh %129 : vector<8x128xf32>
    %131 = vector.extract_strided_slice %115 {offsets = [0, 384], sizes = [8, 128], strides = [1, 1]} : vector<8x512xf32> to vector<8x128xf32>
    %132 = arith.negf %131 : vector<8x128xf32>
    %133 = math.exp %132 : vector<8x128xf32>
    %cst_63 = arith.constant 1.000000e+00 : f32
    %134 = vector.broadcast %cst_63 : f32 to vector<8x128xf32>
    %135 = arith.addf %134, %133 : vector<8x128xf32>
    %136 = arith.divf %134, %135 : vector<8x128xf32>
    %137 = arith.mulf %128, %116 : vector<8x128xf32>
    %138 = arith.mulf %122, %130 : vector<8x128xf32>
    %139 = arith.addf %137, %138 : vector<8x128xf32>
    %140 = math.tanh %139 : vector<8x128xf32>
    %141 = arith.mulf %136, %140 : vector<8x128xf32>
    %c0_64 = arith.constant 0 : index
    %c0_65 = arith.constant 0 : index
    %142 = vector.load %arg10[%c0_64, %c0_65] : memref<8x128xf32, #tpu.memory_space<vmem>>, vector<8x128xf32>
    tpu.vector_store %arg10[%c0_64, %c0_65], %141 {strides = array<i32>} : memref<8x128xf32, #tpu.memory_space<vmem>>, vector<8x128xf32>,
    %c0_66 = arith.constant 0 : index
    %c0_67 = arith.constant 0 : index
    %143 = vector.load %arg11[%c0_66, %c0_67] : memref<8x128xf32, #tpu.memory_space<vmem>>, vector<8x128xf32>
    tpu.vector_store %arg11[%c0_66, %c0_67], %139 {strides = array<i32>} : memref<8x128xf32, #tpu.memory_space<vmem>>, vector<8x128xf32>,
    %c4_i32 = arith.constant 4 : i32
    %144 = arith.index_cast %c4_i32 : i32 to index
    %c0_68 = arith.constant 0 : index
    %c0_69 = arith.constant 0 : index
    %145 = vector.load %arg2[%144, %c0_68, %c0_69] : memref<7x8x512xf32, #tpu.memory_space<vmem>>, vector<1x8x512xf32>
    %146 = vector.shape_cast %145 : vector<1x8x512xf32> to vector<8x512xf32>
    %c0_70 = arith.constant 0 : index
    %c0_71 = arith.constant 0 : index
    %147 = vector.load %arg10[%c0_70, %c0_71] : memref<8x128xf32, #tpu.memory_space<vmem>>, vector<8x128xf32>
    %c0_72 = arith.constant 0 : index
    %c0_73 = arith.constant 0 : index
    %148 = vector.load %arg4[%c0_72, %c0_73] : memref<128x512xf32, #tpu.memory_space<vmem>>, vector<128x512xf32>
    %cst_74 = arith.constant dense<0.000000e+00> : vector<8x512xf32>
    %149 = tpu.matmul %147, %148, %cst_74 {dimension_numbers = #tpu.dot_dimension_numbers<[1], [0], [0], [1], [0, 0, 1, 1], [], []>} : vector<8x128xf32>, vector<128x512xf32>, vector<8x512xf32> -> vector<8x512xf32>
    %150 = arith.addf %146, %149 : vector<8x512xf32>
    %c0_75 = arith.constant 0 : index
    %c0_76 = arith.constant 0 : index
    %151 = vector.load %arg11[%c0_75, %c0_76] : memref<8x128xf32, #tpu.memory_space<vmem>>, vector<8x128xf32>
    %152 = vector.extract_strided_slice %150 {offsets = [0, 0], sizes = [8, 128], strides = [1, 1]} : vector<8x512xf32> to vector<8x128xf32>
    %153 = arith.negf %152 : vector<8x128xf32>
    %154 = math.exp %153 : vector<8x128xf32>
    %cst_77 = arith.constant 1.000000e+00 : f32
    %155 = vector.broadcast %cst_77 : f32 to vector<8x128xf32>
    %156 = arith.addf %155, %154 : vector<8x128xf32>
    %157 = arith.divf %155, %156 : vector<8x128xf32>
    %158 = vector.extract_strided_slice %150 {offsets = [0, 128], sizes = [8, 128], strides = [1, 1]} : vector<8x512xf32> to vector<8x128xf32>
    %159 = arith.negf %158 : vector<8x128xf32>
    %160 = math.exp %159 : vector<8x128xf32>
    %cst_78 = arith.constant 1.000000e+00 : f32
    %161 = vector.broadcast %cst_78 : f32 to vector<8x128xf32>
    %162 = arith.addf %161, %160 : vector<8x128xf32>
    %163 = arith.divf %161, %162 : vector<8x128xf32>
    %164 = vector.extract_strided_slice %150 {offsets = [0, 256], sizes = [8, 128], strides = [1, 1]} : vector<8x512xf32> to vector<8x128xf32>
    %165 = math.tanh %164 : vector<8x128xf32>
    %166 = vector.extract_strided_slice %150 {offsets = [0, 384], sizes = [8, 128], strides = [1, 1]} : vector<8x512xf32> to vector<8x128xf32>
    %167 = arith.negf %166 : vector<8x128xf32>
    %168 = math.exp %167 : vector<8x128xf32>
    %cst_79 = arith.constant 1.000000e+00 : f32
    %169 = vector.broadcast %cst_79 : f32 to vector<8x128xf32>
    %170 = arith.addf %169, %168 : vector<8x128xf32>
    %171 = arith.divf %169, %170 : vector<8x128xf32>
    %172 = arith.mulf %163, %151 : vector<8x128xf32>
    %173 = arith.mulf %157, %165 : vector<8x128xf32>
    %174 = arith.addf %172, %173 : vector<8x128xf32>
    %175 = math.tanh %174 : vector<8x128xf32>
    %176 = arith.mulf %171, %175 : vector<8x128xf32>
    %c0_80 = arith.constant 0 : index
    %c0_81 = arith.constant 0 : index
    %177 = vector.load %arg10[%c0_80, %c0_81] : memref<8x128xf32, #tpu.memory_space<vmem>>, vector<8x128xf32>
    tpu.vector_store %arg10[%c0_80, %c0_81], %176 {strides = array<i32>} : memref<8x128xf32, #tpu.memory_space<vmem>>, vector<8x128xf32>,
    %c0_82 = arith.constant 0 : index
    %c0_83 = arith.constant 0 : index
    %178 = vector.load %arg11[%c0_82, %c0_83] : memref<8x128xf32, #tpu.memory_space<vmem>>, vector<8x128xf32>
    tpu.vector_store %arg11[%c0_82, %c0_83], %174 {strides = array<i32>} : memref<8x128xf32, #tpu.memory_space<vmem>>, vector<8x128xf32>,
    %c5_i32 = arith.constant 5 : i32
    %179 = arith.index_cast %c5_i32 : i32 to index
    %c0_84 = arith.constant 0 : index
    %c0_85 = arith.constant 0 : index
    %180 = vector.load %arg2[%179, %c0_84, %c0_85] : memref<7x8x512xf32, #tpu.memory_space<vmem>>, vector<1x8x512xf32>
    %181 = vector.shape_cast %180 : vector<1x8x512xf32> to vector<8x512xf32>
    %c0_86 = arith.constant 0 : index
    %c0_87 = arith.constant 0 : index
    %182 = vector.load %arg10[%c0_86, %c0_87] : memref<8x128xf32, #tpu.memory_space<vmem>>, vector<8x128xf32>
    %c0_88 = arith.constant 0 : index
    %c0_89 = arith.constant 0 : index
    %183 = vector.load %arg4[%c0_88, %c0_89] : memref<128x512xf32, #tpu.memory_space<vmem>>, vector<128x512xf32>
    %cst_90 = arith.constant dense<0.000000e+00> : vector<8x512xf32>
    %184 = tpu.matmul %182, %183, %cst_90 {dimension_numbers = #tpu.dot_dimension_numbers<[1], [0], [0], [1], [0, 0, 1, 1], [], []>} : vector<8x128xf32>, vector<128x512xf32>, vector<8x512xf32> -> vector<8x512xf32>
    %185 = arith.addf %181, %184 : vector<8x512xf32>
    %c0_91 = arith.constant 0 : index
    %c0_92 = arith.constant 0 : index
    %186 = vector.load %arg11[%c0_91, %c0_92] : memref<8x128xf32, #tpu.memory_space<vmem>>, vector<8x128xf32>
    %187 = vector.extract_strided_slice %185 {offsets = [0, 0], sizes = [8, 128], strides = [1, 1]} : vector<8x512xf32> to vector<8x128xf32>
    %188 = arith.negf %187 : vector<8x128xf32>
    %189 = math.exp %188 : vector<8x128xf32>
    %cst_93 = arith.constant 1.000000e+00 : f32
    %190 = vector.broadcast %cst_93 : f32 to vector<8x128xf32>
    %191 = arith.addf %190, %189 : vector<8x128xf32>
    %192 = arith.divf %190, %191 : vector<8x128xf32>
    %193 = vector.extract_strided_slice %185 {offsets = [0, 128], sizes = [8, 128], strides = [1, 1]} : vector<8x512xf32> to vector<8x128xf32>
    %194 = arith.negf %193 : vector<8x128xf32>
    %195 = math.exp %194 : vector<8x128xf32>
    %cst_94 = arith.constant 1.000000e+00 : f32
    %196 = vector.broadcast %cst_94 : f32 to vector<8x128xf32>
    %197 = arith.addf %196, %195 : vector<8x128xf32>
    %198 = arith.divf %196, %197 : vector<8x128xf32>
    %199 = vector.extract_strided_slice %185 {offsets = [0, 256], sizes = [8, 128], strides = [1, 1]} : vector<8x512xf32> to vector<8x128xf32>
    %200 = math.tanh %199 : vector<8x128xf32>
    %201 = vector.extract_strided_slice %185 {offsets = [0, 384], sizes = [8, 128], strides = [1, 1]} : vector<8x512xf32> to vector<8x128xf32>
    %202 = arith.negf %201 : vector<8x128xf32>
    %203 = math.exp %202 : vector<8x128xf32>
    %cst_95 = arith.constant 1.000000e+00 : f32
    %204 = vector.broadcast %cst_95 : f32 to vector<8x128xf32>
    %205 = arith.addf %204, %203 : vector<8x128xf32>
    %206 = arith.divf %204, %205 : vector<8x128xf32>
    %207 = arith.mulf %198, %186 : vector<8x128xf32>
    %208 = arith.mulf %192, %200 : vector<8x128xf32>
    %209 = arith.addf %207, %208 : vector<8x128xf32>
    %210 = math.tanh %209 : vector<8x128xf32>
    %211 = arith.mulf %206, %210 : vector<8x128xf32>
    %c0_96 = arith.constant 0 : index
    %c0_97 = arith.constant 0 : index
    %212 = vector.load %arg10[%c0_96, %c0_97] : memref<8x128xf32, #tpu.memory_space<vmem>>, vector<8x128xf32>
    tpu.vector_store %arg10[%c0_96, %c0_97], %211 {strides = array<i32>} : memref<8x128xf32, #tpu.memory_space<vmem>>, vector<8x128xf32>,
    %c0_98 = arith.constant 0 : index
    %c0_99 = arith.constant 0 : index
    %213 = vector.load %arg11[%c0_98, %c0_99] : memref<8x128xf32, #tpu.memory_space<vmem>>, vector<8x128xf32>
    tpu.vector_store %arg11[%c0_98, %c0_99], %209 {strides = array<i32>} : memref<8x128xf32, #tpu.memory_space<vmem>>, vector<8x128xf32>,
    %c6_i32 = arith.constant 6 : i32
    %214 = arith.index_cast %c6_i32 : i32 to index
    %c0_100 = arith.constant 0 : index
    %c0_101 = arith.constant 0 : index
    %215 = vector.load %arg2[%214, %c0_100, %c0_101] : memref<7x8x512xf32, #tpu.memory_space<vmem>>, vector<1x8x512xf32>
    %216 = vector.shape_cast %215 : vector<1x8x512xf32> to vector<8x512xf32>
    %c0_102 = arith.constant 0 : index
    %c0_103 = arith.constant 0 : index
    %217 = vector.load %arg10[%c0_102, %c0_103] : memref<8x128xf32, #tpu.memory_space<vmem>>, vector<8x128xf32>
    %c0_104 = arith.constant 0 : index
    %c0_105 = arith.constant 0 : index
    %218 = vector.load %arg4[%c0_104, %c0_105] : memref<128x512xf32, #tpu.memory_space<vmem>>, vector<128x512xf32>
    %cst_106 = arith.constant dense<0.000000e+00> : vector<8x512xf32>
    %219 = tpu.matmul %217, %218, %cst_106 {dimension_numbers = #tpu.dot_dimension_numbers<[1], [0], [0], [1], [0, 0, 1, 1], [], []>} : vector<8x128xf32>, vector<128x512xf32>, vector<8x512xf32> -> vector<8x512xf32>
    %220 = arith.addf %216, %219 : vector<8x512xf32>
    %c0_107 = arith.constant 0 : index
    %c0_108 = arith.constant 0 : index
    %221 = vector.load %arg11[%c0_107, %c0_108] : memref<8x128xf32, #tpu.memory_space<vmem>>, vector<8x128xf32>
    %222 = vector.extract_strided_slice %220 {offsets = [0, 0], sizes = [8, 128], strides = [1, 1]} : vector<8x512xf32> to vector<8x128xf32>
    %223 = arith.negf %222 : vector<8x128xf32>
    %224 = math.exp %223 : vector<8x128xf32>
    %cst_109 = arith.constant 1.000000e+00 : f32
    %225 = vector.broadcast %cst_109 : f32 to vector<8x128xf32>
    %226 = arith.addf %225, %224 : vector<8x128xf32>
    %227 = arith.divf %225, %226 : vector<8x128xf32>
    %228 = vector.extract_strided_slice %220 {offsets = [0, 128], sizes = [8, 128], strides = [1, 1]} : vector<8x512xf32> to vector<8x128xf32>
    %229 = arith.negf %228 : vector<8x128xf32>
    %230 = math.exp %229 : vector<8x128xf32>
    %cst_110 = arith.constant 1.000000e+00 : f32
    %231 = vector.broadcast %cst_110 : f32 to vector<8x128xf32>
    %232 = arith.addf %231, %230 : vector<8x128xf32>
    %233 = arith.divf %231, %232 : vector<8x128xf32>
    %234 = vector.extract_strided_slice %220 {offsets = [0, 256], sizes = [8, 128], strides = [1, 1]} : vector<8x512xf32> to vector<8x128xf32>
    %235 = math.tanh %234 : vector<8x128xf32>
    %236 = vector.extract_strided_slice %220 {offsets = [0, 384], sizes = [8, 128], strides = [1, 1]} : vector<8x512xf32> to vector<8x128xf32>
    %237 = arith.negf %236 : vector<8x128xf32>
    %238 = math.exp %237 : vector<8x128xf32>
    %cst_111 = arith.constant 1.000000e+00 : f32
    %239 = vector.broadcast %cst_111 : f32 to vector<8x128xf32>
    %240 = arith.addf %239, %238 : vector<8x128xf32>
    %241 = arith.divf %239, %240 : vector<8x128xf32>
    %242 = arith.mulf %233, %221 : vector<8x128xf32>
    %243 = arith.mulf %227, %235 : vector<8x128xf32>
    %244 = arith.addf %242, %243 : vector<8x128xf32>
    %245 = math.tanh %244 : vector<8x128xf32>
    %246 = arith.mulf %241, %245 : vector<8x128xf32>
    %c0_112 = arith.constant 0 : index
    %c0_113 = arith.constant 0 : index
    %247 = vector.load %arg10[%c0_112, %c0_113] : memref<8x128xf32, #tpu.memory_space<vmem>>, vector<8x128xf32>
    tpu.vector_store %arg10[%c0_112, %c0_113], %246 {strides = array<i32>} : memref<8x128xf32, #tpu.memory_space<vmem>>, vector<8x128xf32>,
    %c0_114 = arith.constant 0 : index
    %c0_115 = arith.constant 0 : index
    %248 = vector.load %arg11[%c0_114, %c0_115] : memref<8x128xf32, #tpu.memory_space<vmem>>, vector<8x128xf32>
    tpu.vector_store %arg11[%c0_114, %c0_115], %244 {strides = array<i32>} : memref<8x128xf32, #tpu.memory_space<vmem>>, vector<8x128xf32>,
    %c7_i32 = arith.constant 7 : i32
    %c0_116 = arith.constant 0 : index
    %c0_117 = arith.constant 0 : index
    %c0_118 = arith.constant 0 : index
    %249 = vector.load %arg3[%c0_116, %c0_117, %c0_118] : memref<8x8x512xf32, #tpu.memory_space<vmem>>, vector<1x8x512xf32>
    %250 = vector.shape_cast %249 : vector<1x8x512xf32> to vector<8x512xf32>
    %c0_119 = arith.constant 0 : index
    %c0_120 = arith.constant 0 : index
    %251 = vector.load %arg12[%c0_119, %c0_120] : memref<8x512xf32, #tpu.memory_space<vmem>>, vector<8x512xf32>
    tpu.vector_store %arg12[%c0_119, %c0_120], %250 {strides = array<i32>} : memref<8x512xf32, #tpu.memory_space<vmem>>, vector<8x512xf32>,
    %252 = tpu.iota {dimensions = array<i32: 1>} : vector<8x128xi32>
    %c16_i32 = arith.constant 16 : i32
    %253 = vector.broadcast %c16_i32 : i32 to vector<8x128xi32>
    %254 = arith.cmpi slt, %252, %253 : vector<8x128xi32>
    %c0_i32_121 = arith.constant 0 : i32
    %c0_122 = arith.constant 0 : index
    %c0_123 = arith.constant 0 : index
    %255 = vector.load %arg12[%c0_122, %c0_123] : memref<8x512xf32, #tpu.memory_space<vmem>>, vector<8x512xf32>
    %c0_124 = arith.constant 0 : index
    %c0_125 = arith.constant 0 : index
    %256 = vector.load %arg10[%c0_124, %c0_125] : memref<8x128xf32, #tpu.memory_space<vmem>>, vector<8x128xf32>
    %c0_126 = arith.constant 0 : index
    %c0_127 = arith.constant 0 : index
    %257 = vector.load %arg5[%c0_126, %c0_127] : memref<128x512xf32, #tpu.memory_space<vmem>>, vector<128x512xf32>
    %cst_128 = arith.constant dense<0.000000e+00> : vector<8x512xf32>
    %258 = tpu.matmul %256, %257, %cst_128 {dimension_numbers = #tpu.dot_dimension_numbers<[1], [0], [0], [1], [0, 0, 1, 1], [], []>} : vector<8x128xf32>, vector<128x512xf32>, vector<8x512xf32> -> vector<8x512xf32>
    %259 = arith.addf %255, %258 : vector<8x512xf32>
    %c0_129 = arith.constant 0 : index
    %c0_130 = arith.constant 0 : index
    %260 = vector.load %arg11[%c0_129, %c0_130] : memref<8x128xf32, #tpu.memory_space<vmem>>, vector<8x128xf32>
    %261 = vector.extract_strided_slice %259 {offsets = [0, 0], sizes = [8, 128], strides = [1, 1]} : vector<8x512xf32> to vector<8x128xf32>
    %262 = arith.negf %261 : vector<8x128xf32>
    %263 = math.exp %262 : vector<8x128xf32>
    %cst_131 = arith.constant 1.000000e+00 : f32
    %264 = vector.broadcast %cst_131 : f32 to vector<8x128xf32>
    %265 = arith.addf %264, %263 : vector<8x128xf32>
    %266 = arith.divf %264, %265 : vector<8x128xf32>
    %267 = vector.extract_strided_slice %259 {offsets = [0, 128], sizes = [8, 128], strides = [1, 1]} : vector<8x512xf32> to vector<8x128xf32>
    %268 = arith.negf %267 : vector<8x128xf32>
    %269 = math.exp %268 : vector<8x128xf32>
    %cst_132 = arith.constant 1.000000e+00 : f32
    %270 = vector.broadcast %cst_132 : f32 to vector<8x128xf32>
    %271 = arith.addf %270, %269 : vector<8x128xf32>
    %272 = arith.divf %270, %271 : vector<8x128xf32>
    %273 = vector.extract_strided_slice %259 {offsets = [0, 256], sizes = [8, 128], strides = [1, 1]} : vector<8x512xf32> to vector<8x128xf32>
    %274 = math.tanh %273 : vector<8x128xf32>
    %275 = vector.extract_strided_slice %259 {offsets = [0, 384], sizes = [8, 128], strides = [1, 1]} : vector<8x512xf32> to vector<8x128xf32>
    %276 = arith.negf %275 : vector<8x128xf32>
    %277 = math.exp %276 : vector<8x128xf32>
    %cst_133 = arith.constant 1.000000e+00 : f32
    %278 = vector.broadcast %cst_133 : f32 to vector<8x128xf32>
    %279 = arith.addf %278, %277 : vector<8x128xf32>
    %280 = arith.divf %278, %279 : vector<8x128xf32>
    %281 = arith.mulf %272, %260 : vector<8x128xf32>
    %282 = arith.mulf %266, %274 : vector<8x128xf32>
    %283 = arith.addf %281, %282 : vector<8x128xf32>
    %284 = math.tanh %283 : vector<8x128xf32>
    %285 = arith.mulf %280, %284 : vector<8x128xf32>
    %c0_134 = arith.constant 0 : index
    %c0_135 = arith.constant 0 : index
    %286 = vector.load %arg10[%c0_134, %c0_135] : memref<8x128xf32, #tpu.memory_space<vmem>>, vector<8x128xf32>
    tpu.vector_store %arg10[%c0_134, %c0_135], %285 {strides = array<i32>} : memref<8x128xf32, #tpu.memory_space<vmem>>, vector<8x128xf32>,
    %c0_136 = arith.constant 0 : index
    %c0_137 = arith.constant 0 : index
    %287 = vector.load %arg11[%c0_136, %c0_137] : memref<8x128xf32, #tpu.memory_space<vmem>>, vector<8x128xf32>
    tpu.vector_store %arg11[%c0_136, %c0_137], %283 {strides = array<i32>} : memref<8x128xf32, #tpu.memory_space<vmem>>, vector<8x128xf32>,
    %c0_138 = arith.constant 0 : index
    %c0_139 = arith.constant 0 : index
    %288 = vector.load %arg7[%c0_138, %c0_139] : memref<128x128xf32, #tpu.memory_space<vmem>>, vector<128x128xf32>
    %cst_140 = arith.constant dense<0.000000e+00> : vector<8x128xf32>
    %289 = tpu.matmul %285, %288, %cst_140 {dimension_numbers = #tpu.dot_dimension_numbers<[1], [0], [0], [1], [0, 0, 1, 1], [], []>} : vector<8x128xf32>, vector<128x128xf32>, vector<8x128xf32> -> vector<8x128xf32>
    %c0_141 = arith.constant 0 : index
    %c0_142 = arith.constant 0 : index
    %290 = vector.load %arg8[%c0_141, %c0_142] : memref<1x128xf32, #tpu.memory_space<vmem>>, vector<1x128xf32>
    %291 = vector.broadcast %290 : vector<1x128xf32> to vector<8x128xf32>
    %292 = arith.addf %289, %291 : vector<8x128xf32>
    %293 = arith.index_cast %c0_i32_121 : i32 to index
    %c0_143 = arith.constant 0 : index
    %c0_144 = arith.constant 0 : index
    %294 = vector.load %arg9[%293, %c0_143, %c0_144] : memref<7x8x128xf32, #tpu.memory_space<vmem>>, vector<1x8x128xf32>
    %295 = vector.shape_cast %294 : vector<1x8x128xf32> to vector<8x128xf32>
    %296 = vector.shape_cast %292 : vector<8x128xf32> to vector<1x8x128xf32>
    tpu.vector_store %arg9[%293, %c0_143, %c0_144], %296 {strides = array<i32>} : memref<7x8x128xf32, #tpu.memory_space<vmem>>, vector<1x8x128xf32>,
    %c1_i32_145 = arith.constant 1 : i32
    %297 = arith.addi %c0_i32_121, %c1_i32_145 : i32
    %298 = arith.index_cast %297 : i32 to index
    %299 = memref.load %arg1[%298] : memref<8xi32, #tpu.memory_space<smem>>
    %c0_i32_146 = arith.constant 0 : i32
    %300 = arith.cmpi sgt, %299, %c0_i32_146 : i32
    %301 = arith.extui %300 : i1 to i32
    %c0_i32_147 = arith.constant 0 : i32
    %302 = arith.cmpi ne, %301, %c0_i32_147 : i32
    scf.if %302 {
      %612 = arith.index_cast %297 : i32 to index
      %c0_325 = arith.constant 0 : index
      %c0_326 = arith.constant 0 : index
      %613 = vector.load %arg3[%612, %c0_325, %c0_326] : memref<8x8x512xf32, #tpu.memory_space<vmem>>, vector<1x8x512xf32>
      %614 = vector.shape_cast %613 : vector<1x8x512xf32> to vector<8x512xf32>
      %c0_327 = arith.constant 0 : index
      %c0_328 = arith.constant 0 : index
      %615 = vector.load %arg12[%c0_327, %c0_328] : memref<8x512xf32, #tpu.memory_space<vmem>>, vector<8x512xf32>
      tpu.vector_store %arg12[%c0_327, %c0_328], %614 {strides = array<i32>} : memref<8x512xf32, #tpu.memory_space<vmem>>, vector<8x512xf32>,
    } else {
    }
    %c0_i32_148 = arith.constant 0 : i32
    %303 = arith.cmpi eq, %299, %c0_i32_148 : i32
    %304 = arith.extui %303 : i1 to i32
    %c0_i32_149 = arith.constant 0 : i32
    %305 = arith.cmpi ne, %304, %c0_i32_149 : i32
    scf.if %305 {
      %cst_325 = arith.constant -1.000000e+30 : f32
      %612 = vector.broadcast %cst_325 : f32 to vector<8x128xf32>
      %613 = arith.select %254, %292, %612 : vector<8x128xi1>, vector<8x128xf32>
      %cst_326 = arith.constant dense<0xFF800000> : vector<8xf32>
      %614 = vector.multi_reduction <maximumf>, %613, %cst_326 [1] : vector<8x128xf32> to vector<8xf32>
      %615 = vector.shape_cast %614 : vector<8xf32> to vector<8x1xf32>
      %616 = vector.broadcast %615 : vector<8x1xf32> to vector<8x128xf32>
      %617 = arith.cmpf oeq, %613, %616 : vector<8x128xf32>
      %618 = arith.andi %617, %254 : vector<8x128xi1>
      %c128_i32 = arith.constant 128 : i32
      %619 = vector.broadcast %c128_i32 : i32 to vector<8x128xi32>
      %620 = arith.select %618, %252, %619 : vector<8x128xi1>, vector<8x128xi32>
      %cst_327 = arith.constant dense<2147483647> : vector<8xi32>
      %621 = vector.multi_reduction <minsi>, %620, %cst_327 [1] : vector<8x128xi32> to vector<8xi32>
      %622 = vector.shape_cast %621 : vector<8xi32> to vector<8x1xi32>
      %623 = vector.broadcast %622 : vector<8x1xi32> to vector<8x128xi32>
      %624 = arith.cmpi eq, %252, %623 : vector<8x128xi32>
      %625 = arith.extui %624 : vector<8x128xi1> to vector<8x128xi32>
      %626 = arith.sitofp %625 : vector<8x128xi32> to vector<8x128xf32>
      %c0_328 = arith.constant 0 : index
      %c0_329 = arith.constant 0 : index
      %627 = vector.load %arg6[%c0_328, %c0_329] : memref<128x512xf32, #tpu.memory_space<vmem>>, vector<128x512xf32>
      %cst_330 = arith.constant dense<0.000000e+00> : vector<8x512xf32>
      %628 = tpu.matmul %626, %627, %cst_330 {dimension_numbers = #tpu.dot_dimension_numbers<[1], [0], [0], [1], [0, 0, 1, 1], [], []>} : vector<8x128xf32>, vector<128x512xf32>, vector<8x512xf32> -> vector<8x512xf32>
      %c0_331 = arith.constant 0 : index
      %c0_332 = arith.constant 0 : index
      %629 = vector.load %arg12[%c0_331, %c0_332] : memref<8x512xf32, #tpu.memory_space<vmem>>, vector<8x512xf32>
      tpu.vector_store %arg12[%c0_331, %c0_332], %628 {strides = array<i32>} : memref<8x512xf32, #tpu.memory_space<vmem>>, vector<8x512xf32>,
    } else {
    }
    %c1_i32_150 = arith.constant 1 : i32
    %c0_151 = arith.constant 0 : index
    %c0_152 = arith.constant 0 : index
    %306 = vector.load %arg12[%c0_151, %c0_152] : memref<8x512xf32, #tpu.memory_space<vmem>>, vector<8x512xf32>
    %c0_153 = arith.constant 0 : index
    %c0_154 = arith.constant 0 : index
    %307 = vector.load %arg10[%c0_153, %c0_154] : memref<8x128xf32, #tpu.memory_space<vmem>>, vector<8x128xf32>
    %c0_155 = arith.constant 0 : index
    %c0_156 = arith.constant 0 : index
    %308 = vector.load %arg5[%c0_155, %c0_156] : memref<128x512xf32, #tpu.memory_space<vmem>>, vector<128x512xf32>
    %cst_157 = arith.constant dense<0.000000e+00> : vector<8x512xf32>
    %309 = tpu.matmul %307, %308, %cst_157 {dimension_numbers = #tpu.dot_dimension_numbers<[1], [0], [0], [1], [0, 0, 1, 1], [], []>} : vector<8x128xf32>, vector<128x512xf32>, vector<8x512xf32> -> vector<8x512xf32>
    %310 = arith.addf %306, %309 : vector<8x512xf32>
    %c0_158 = arith.constant 0 : index
    %c0_159 = arith.constant 0 : index
    %311 = vector.load %arg11[%c0_158, %c0_159] : memref<8x128xf32, #tpu.memory_space<vmem>>, vector<8x128xf32>
    %312 = vector.extract_strided_slice %310 {offsets = [0, 0], sizes = [8, 128], strides = [1, 1]} : vector<8x512xf32> to vector<8x128xf32>
    %313 = arith.negf %312 : vector<8x128xf32>
    %314 = math.exp %313 : vector<8x128xf32>
    %cst_160 = arith.constant 1.000000e+00 : f32
    %315 = vector.broadcast %cst_160 : f32 to vector<8x128xf32>
    %316 = arith.addf %315, %314 : vector<8x128xf32>
    %317 = arith.divf %315, %316 : vector<8x128xf32>
    %318 = vector.extract_strided_slice %310 {offsets = [0, 128], sizes = [8, 128], strides = [1, 1]} : vector<8x512xf32> to vector<8x128xf32>
    %319 = arith.negf %318 : vector<8x128xf32>
    %320 = math.exp %319 : vector<8x128xf32>
    %cst_161 = arith.constant 1.000000e+00 : f32
    %321 = vector.broadcast %cst_161 : f32 to vector<8x128xf32>
    %322 = arith.addf %321, %320 : vector<8x128xf32>
    %323 = arith.divf %321, %322 : vector<8x128xf32>
    %324 = vector.extract_strided_slice %310 {offsets = [0, 256], sizes = [8, 128], strides = [1, 1]} : vector<8x512xf32> to vector<8x128xf32>
    %325 = math.tanh %324 : vector<8x128xf32>
    %326 = vector.extract_strided_slice %310 {offsets = [0, 384], sizes = [8, 128], strides = [1, 1]} : vector<8x512xf32> to vector<8x128xf32>
    %327 = arith.negf %326 : vector<8x128xf32>
    %328 = math.exp %327 : vector<8x128xf32>
    %cst_162 = arith.constant 1.000000e+00 : f32
    %329 = vector.broadcast %cst_162 : f32 to vector<8x128xf32>
    %330 = arith.addf %329, %328 : vector<8x128xf32>
    %331 = arith.divf %329, %330 : vector<8x128xf32>
    %332 = arith.mulf %323, %311 : vector<8x128xf32>
    %333 = arith.mulf %317, %325 : vector<8x128xf32>
    %334 = arith.addf %332, %333 : vector<8x128xf32>
    %335 = math.tanh %334 : vector<8x128xf32>
    %336 = arith.mulf %331, %335 : vector<8x128xf32>
    %c0_163 = arith.constant 0 : index
    %c0_164 = arith.constant 0 : index
    %337 = vector.load %arg10[%c0_163, %c0_164] : memref<8x128xf32, #tpu.memory_space<vmem>>, vector<8x128xf32>
    tpu.vector_store %arg10[%c0_163, %c0_164], %336 {strides = array<i32>} : memref<8x128xf32, #tpu.memory_space<vmem>>, vector<8x128xf32>,
    %c0_165 = arith.constant 0 : index
    %c0_166 = arith.constant 0 : index
    %338 = vector.load %arg11[%c0_165, %c0_166] : memref<8x128xf32, #tpu.memory_space<vmem>>, vector<8x128xf32>
    tpu.vector_store %arg11[%c0_165, %c0_166], %334 {strides = array<i32>} : memref<8x128xf32, #tpu.memory_space<vmem>>, vector<8x128xf32>,
    %c0_167 = arith.constant 0 : index
    %c0_168 = arith.constant 0 : index
    %339 = vector.load %arg7[%c0_167, %c0_168] : memref<128x128xf32, #tpu.memory_space<vmem>>, vector<128x128xf32>
    %cst_169 = arith.constant dense<0.000000e+00> : vector<8x128xf32>
    %340 = tpu.matmul %336, %339, %cst_169 {dimension_numbers = #tpu.dot_dimension_numbers<[1], [0], [0], [1], [0, 0, 1, 1], [], []>} : vector<8x128xf32>, vector<128x128xf32>, vector<8x128xf32> -> vector<8x128xf32>
    %c0_170 = arith.constant 0 : index
    %c0_171 = arith.constant 0 : index
    %341 = vector.load %arg8[%c0_170, %c0_171] : memref<1x128xf32, #tpu.memory_space<vmem>>, vector<1x128xf32>
    %342 = vector.broadcast %341 : vector<1x128xf32> to vector<8x128xf32>
    %343 = arith.addf %340, %342 : vector<8x128xf32>
    %344 = arith.index_cast %c1_i32_150 : i32 to index
    %c0_172 = arith.constant 0 : index
    %c0_173 = arith.constant 0 : index
    %345 = vector.load %arg9[%344, %c0_172, %c0_173] : memref<7x8x128xf32, #tpu.memory_space<vmem>>, vector<1x8x128xf32>
    %346 = vector.shape_cast %345 : vector<1x8x128xf32> to vector<8x128xf32>
    %347 = vector.shape_cast %343 : vector<8x128xf32> to vector<1x8x128xf32>
    tpu.vector_store %arg9[%344, %c0_172, %c0_173], %347 {strides = array<i32>} : memref<7x8x128xf32, #tpu.memory_space<vmem>>, vector<1x8x128xf32>,
    %c1_i32_174 = arith.constant 1 : i32
    %348 = arith.addi %c1_i32_150, %c1_i32_174 : i32
    %349 = arith.index_cast %348 : i32 to index
    %350 = memref.load %arg1[%349] : memref<8xi32, #tpu.memory_space<smem>>
    %c0_i32_175 = arith.constant 0 : i32
    %351 = arith.cmpi sgt, %350, %c0_i32_175 : i32
    %352 = arith.extui %351 : i1 to i32
    %c0_i32_176 = arith.constant 0 : i32
    %353 = arith.cmpi ne, %352, %c0_i32_176 : i32
    scf.if %353 {
      %612 = arith.index_cast %348 : i32 to index
      %c0_325 = arith.constant 0 : index
      %c0_326 = arith.constant 0 : index
      %613 = vector.load %arg3[%612, %c0_325, %c0_326] : memref<8x8x512xf32, #tpu.memory_space<vmem>>, vector<1x8x512xf32>
      %614 = vector.shape_cast %613 : vector<1x8x512xf32> to vector<8x512xf32>
      %c0_327 = arith.constant 0 : index
      %c0_328 = arith.constant 0 : index
      %615 = vector.load %arg12[%c0_327, %c0_328] : memref<8x512xf32, #tpu.memory_space<vmem>>, vector<8x512xf32>
      tpu.vector_store %arg12[%c0_327, %c0_328], %614 {strides = array<i32>} : memref<8x512xf32, #tpu.memory_space<vmem>>, vector<8x512xf32>,
    } else {
    }
    %c0_i32_177 = arith.constant 0 : i32
    %354 = arith.cmpi eq, %350, %c0_i32_177 : i32
    %355 = arith.extui %354 : i1 to i32
    %c0_i32_178 = arith.constant 0 : i32
    %356 = arith.cmpi ne, %355, %c0_i32_178 : i32
    scf.if %356 {
      %cst_325 = arith.constant -1.000000e+30 : f32
      %612 = vector.broadcast %cst_325 : f32 to vector<8x128xf32>
      %613 = arith.select %254, %343, %612 : vector<8x128xi1>, vector<8x128xf32>
      %cst_326 = arith.constant dense<0xFF800000> : vector<8xf32>
      %614 = vector.multi_reduction <maximumf>, %613, %cst_326 [1] : vector<8x128xf32> to vector<8xf32>
      %615 = vector.shape_cast %614 : vector<8xf32> to vector<8x1xf32>
      %616 = vector.broadcast %615 : vector<8x1xf32> to vector<8x128xf32>
      %617 = arith.cmpf oeq, %613, %616 : vector<8x128xf32>
      %618 = arith.andi %617, %254 : vector<8x128xi1>
      %c128_i32 = arith.constant 128 : i32
      %619 = vector.broadcast %c128_i32 : i32 to vector<8x128xi32>
      %620 = arith.select %618, %252, %619 : vector<8x128xi1>, vector<8x128xi32>
      %cst_327 = arith.constant dense<2147483647> : vector<8xi32>
      %621 = vector.multi_reduction <minsi>, %620, %cst_327 [1] : vector<8x128xi32> to vector<8xi32>
      %622 = vector.shape_cast %621 : vector<8xi32> to vector<8x1xi32>
      %623 = vector.broadcast %622 : vector<8x1xi32> to vector<8x128xi32>
      %624 = arith.cmpi eq, %252, %623 : vector<8x128xi32>
      %625 = arith.extui %624 : vector<8x128xi1> to vector<8x128xi32>
      %626 = arith.sitofp %625 : vector<8x128xi32> to vector<8x128xf32>
      %c0_328 = arith.constant 0 : index
      %c0_329 = arith.constant 0 : index
      %627 = vector.load %arg6[%c0_328, %c0_329] : memref<128x512xf32, #tpu.memory_space<vmem>>, vector<128x512xf32>
      %cst_330 = arith.constant dense<0.000000e+00> : vector<8x512xf32>
      %628 = tpu.matmul %626, %627, %cst_330 {dimension_numbers = #tpu.dot_dimension_numbers<[1], [0], [0], [1], [0, 0, 1, 1], [], []>} : vector<8x128xf32>, vector<128x512xf32>, vector<8x512xf32> -> vector<8x512xf32>
      %c0_331 = arith.constant 0 : index
      %c0_332 = arith.constant 0 : index
      %629 = vector.load %arg12[%c0_331, %c0_332] : memref<8x512xf32, #tpu.memory_space<vmem>>, vector<8x512xf32>
      tpu.vector_store %arg12[%c0_331, %c0_332], %628 {strides = array<i32>} : memref<8x512xf32, #tpu.memory_space<vmem>>, vector<8x512xf32>,
    } else {
    }
    %c2_i32_179 = arith.constant 2 : i32
    %c0_180 = arith.constant 0 : index
    %c0_181 = arith.constant 0 : index
    %357 = vector.load %arg12[%c0_180, %c0_181] : memref<8x512xf32, #tpu.memory_space<vmem>>, vector<8x512xf32>
    %c0_182 = arith.constant 0 : index
    %c0_183 = arith.constant 0 : index
    %358 = vector.load %arg10[%c0_182, %c0_183] : memref<8x128xf32, #tpu.memory_space<vmem>>, vector<8x128xf32>
    %c0_184 = arith.constant 0 : index
    %c0_185 = arith.constant 0 : index
    %359 = vector.load %arg5[%c0_184, %c0_185] : memref<128x512xf32, #tpu.memory_space<vmem>>, vector<128x512xf32>
    %cst_186 = arith.constant dense<0.000000e+00> : vector<8x512xf32>
    %360 = tpu.matmul %358, %359, %cst_186 {dimension_numbers = #tpu.dot_dimension_numbers<[1], [0], [0], [1], [0, 0, 1, 1], [], []>} : vector<8x128xf32>, vector<128x512xf32>, vector<8x512xf32> -> vector<8x512xf32>
    %361 = arith.addf %357, %360 : vector<8x512xf32>
    %c0_187 = arith.constant 0 : index
    %c0_188 = arith.constant 0 : index
    %362 = vector.load %arg11[%c0_187, %c0_188] : memref<8x128xf32, #tpu.memory_space<vmem>>, vector<8x128xf32>
    %363 = vector.extract_strided_slice %361 {offsets = [0, 0], sizes = [8, 128], strides = [1, 1]} : vector<8x512xf32> to vector<8x128xf32>
    %364 = arith.negf %363 : vector<8x128xf32>
    %365 = math.exp %364 : vector<8x128xf32>
    %cst_189 = arith.constant 1.000000e+00 : f32
    %366 = vector.broadcast %cst_189 : f32 to vector<8x128xf32>
    %367 = arith.addf %366, %365 : vector<8x128xf32>
    %368 = arith.divf %366, %367 : vector<8x128xf32>
    %369 = vector.extract_strided_slice %361 {offsets = [0, 128], sizes = [8, 128], strides = [1, 1]} : vector<8x512xf32> to vector<8x128xf32>
    %370 = arith.negf %369 : vector<8x128xf32>
    %371 = math.exp %370 : vector<8x128xf32>
    %cst_190 = arith.constant 1.000000e+00 : f32
    %372 = vector.broadcast %cst_190 : f32 to vector<8x128xf32>
    %373 = arith.addf %372, %371 : vector<8x128xf32>
    %374 = arith.divf %372, %373 : vector<8x128xf32>
    %375 = vector.extract_strided_slice %361 {offsets = [0, 256], sizes = [8, 128], strides = [1, 1]} : vector<8x512xf32> to vector<8x128xf32>
    %376 = math.tanh %375 : vector<8x128xf32>
    %377 = vector.extract_strided_slice %361 {offsets = [0, 384], sizes = [8, 128], strides = [1, 1]} : vector<8x512xf32> to vector<8x128xf32>
    %378 = arith.negf %377 : vector<8x128xf32>
    %379 = math.exp %378 : vector<8x128xf32>
    %cst_191 = arith.constant 1.000000e+00 : f32
    %380 = vector.broadcast %cst_191 : f32 to vector<8x128xf32>
    %381 = arith.addf %380, %379 : vector<8x128xf32>
    %382 = arith.divf %380, %381 : vector<8x128xf32>
    %383 = arith.mulf %374, %362 : vector<8x128xf32>
    %384 = arith.mulf %368, %376 : vector<8x128xf32>
    %385 = arith.addf %383, %384 : vector<8x128xf32>
    %386 = math.tanh %385 : vector<8x128xf32>
    %387 = arith.mulf %382, %386 : vector<8x128xf32>
    %c0_192 = arith.constant 0 : index
    %c0_193 = arith.constant 0 : index
    %388 = vector.load %arg10[%c0_192, %c0_193] : memref<8x128xf32, #tpu.memory_space<vmem>>, vector<8x128xf32>
    tpu.vector_store %arg10[%c0_192, %c0_193], %387 {strides = array<i32>} : memref<8x128xf32, #tpu.memory_space<vmem>>, vector<8x128xf32>,
    %c0_194 = arith.constant 0 : index
    %c0_195 = arith.constant 0 : index
    %389 = vector.load %arg11[%c0_194, %c0_195] : memref<8x128xf32, #tpu.memory_space<vmem>>, vector<8x128xf32>
    tpu.vector_store %arg11[%c0_194, %c0_195], %385 {strides = array<i32>} : memref<8x128xf32, #tpu.memory_space<vmem>>, vector<8x128xf32>,
    %c0_196 = arith.constant 0 : index
    %c0_197 = arith.constant 0 : index
    %390 = vector.load %arg7[%c0_196, %c0_197] : memref<128x128xf32, #tpu.memory_space<vmem>>, vector<128x128xf32>
    %cst_198 = arith.constant dense<0.000000e+00> : vector<8x128xf32>
    %391 = tpu.matmul %387, %390, %cst_198 {dimension_numbers = #tpu.dot_dimension_numbers<[1], [0], [0], [1], [0, 0, 1, 1], [], []>} : vector<8x128xf32>, vector<128x128xf32>, vector<8x128xf32> -> vector<8x128xf32>
    %c0_199 = arith.constant 0 : index
    %c0_200 = arith.constant 0 : index
    %392 = vector.load %arg8[%c0_199, %c0_200] : memref<1x128xf32, #tpu.memory_space<vmem>>, vector<1x128xf32>
    %393 = vector.broadcast %392 : vector<1x128xf32> to vector<8x128xf32>
    %394 = arith.addf %391, %393 : vector<8x128xf32>
    %395 = arith.index_cast %c2_i32_179 : i32 to index
    %c0_201 = arith.constant 0 : index
    %c0_202 = arith.constant 0 : index
    %396 = vector.load %arg9[%395, %c0_201, %c0_202] : memref<7x8x128xf32, #tpu.memory_space<vmem>>, vector<1x8x128xf32>
    %397 = vector.shape_cast %396 : vector<1x8x128xf32> to vector<8x128xf32>
    %398 = vector.shape_cast %394 : vector<8x128xf32> to vector<1x8x128xf32>
    tpu.vector_store %arg9[%395, %c0_201, %c0_202], %398 {strides = array<i32>} : memref<7x8x128xf32, #tpu.memory_space<vmem>>, vector<1x8x128xf32>,
    %c1_i32_203 = arith.constant 1 : i32
    %399 = arith.addi %c2_i32_179, %c1_i32_203 : i32
    %400 = arith.index_cast %399 : i32 to index
    %401 = memref.load %arg1[%400] : memref<8xi32, #tpu.memory_space<smem>>
    %c0_i32_204 = arith.constant 0 : i32
    %402 = arith.cmpi sgt, %401, %c0_i32_204 : i32
    %403 = arith.extui %402 : i1 to i32
    %c0_i32_205 = arith.constant 0 : i32
    %404 = arith.cmpi ne, %403, %c0_i32_205 : i32
    scf.if %404 {
      %612 = arith.index_cast %399 : i32 to index
      %c0_325 = arith.constant 0 : index
      %c0_326 = arith.constant 0 : index
      %613 = vector.load %arg3[%612, %c0_325, %c0_326] : memref<8x8x512xf32, #tpu.memory_space<vmem>>, vector<1x8x512xf32>
      %614 = vector.shape_cast %613 : vector<1x8x512xf32> to vector<8x512xf32>
      %c0_327 = arith.constant 0 : index
      %c0_328 = arith.constant 0 : index
      %615 = vector.load %arg12[%c0_327, %c0_328] : memref<8x512xf32, #tpu.memory_space<vmem>>, vector<8x512xf32>
      tpu.vector_store %arg12[%c0_327, %c0_328], %614 {strides = array<i32>} : memref<8x512xf32, #tpu.memory_space<vmem>>, vector<8x512xf32>,
    } else {
    }
    %c0_i32_206 = arith.constant 0 : i32
    %405 = arith.cmpi eq, %401, %c0_i32_206 : i32
    %406 = arith.extui %405 : i1 to i32
    %c0_i32_207 = arith.constant 0 : i32
    %407 = arith.cmpi ne, %406, %c0_i32_207 : i32
    scf.if %407 {
      %cst_325 = arith.constant -1.000000e+30 : f32
      %612 = vector.broadcast %cst_325 : f32 to vector<8x128xf32>
      %613 = arith.select %254, %394, %612 : vector<8x128xi1>, vector<8x128xf32>
      %cst_326 = arith.constant dense<0xFF800000> : vector<8xf32>
      %614 = vector.multi_reduction <maximumf>, %613, %cst_326 [1] : vector<8x128xf32> to vector<8xf32>
      %615 = vector.shape_cast %614 : vector<8xf32> to vector<8x1xf32>
      %616 = vector.broadcast %615 : vector<8x1xf32> to vector<8x128xf32>
      %617 = arith.cmpf oeq, %613, %616 : vector<8x128xf32>
      %618 = arith.andi %617, %254 : vector<8x128xi1>
      %c128_i32 = arith.constant 128 : i32
      %619 = vector.broadcast %c128_i32 : i32 to vector<8x128xi32>
      %620 = arith.select %618, %252, %619 : vector<8x128xi1>, vector<8x128xi32>
      %cst_327 = arith.constant dense<2147483647> : vector<8xi32>
      %621 = vector.multi_reduction <minsi>, %620, %cst_327 [1] : vector<8x128xi32> to vector<8xi32>
      %622 = vector.shape_cast %621 : vector<8xi32> to vector<8x1xi32>
      %623 = vector.broadcast %622 : vector<8x1xi32> to vector<8x128xi32>
      %624 = arith.cmpi eq, %252, %623 : vector<8x128xi32>
      %625 = arith.extui %624 : vector<8x128xi1> to vector<8x128xi32>
      %626 = arith.sitofp %625 : vector<8x128xi32> to vector<8x128xf32>
      %c0_328 = arith.constant 0 : index
      %c0_329 = arith.constant 0 : index
      %627 = vector.load %arg6[%c0_328, %c0_329] : memref<128x512xf32, #tpu.memory_space<vmem>>, vector<128x512xf32>
      %cst_330 = arith.constant dense<0.000000e+00> : vector<8x512xf32>
      %628 = tpu.matmul %626, %627, %cst_330 {dimension_numbers = #tpu.dot_dimension_numbers<[1], [0], [0], [1], [0, 0, 1, 1], [], []>} : vector<8x128xf32>, vector<128x512xf32>, vector<8x512xf32> -> vector<8x512xf32>
      %c0_331 = arith.constant 0 : index
      %c0_332 = arith.constant 0 : index
      %629 = vector.load %arg12[%c0_331, %c0_332] : memref<8x512xf32, #tpu.memory_space<vmem>>, vector<8x512xf32>
      tpu.vector_store %arg12[%c0_331, %c0_332], %628 {strides = array<i32>} : memref<8x512xf32, #tpu.memory_space<vmem>>, vector<8x512xf32>,
    } else {
    }
    %c3_i32_208 = arith.constant 3 : i32
    %c0_209 = arith.constant 0 : index
    %c0_210 = arith.constant 0 : index
    %408 = vector.load %arg12[%c0_209, %c0_210] : memref<8x512xf32, #tpu.memory_space<vmem>>, vector<8x512xf32>
    %c0_211 = arith.constant 0 : index
    %c0_212 = arith.constant 0 : index
    %409 = vector.load %arg10[%c0_211, %c0_212] : memref<8x128xf32, #tpu.memory_space<vmem>>, vector<8x128xf32>
    %c0_213 = arith.constant 0 : index
    %c0_214 = arith.constant 0 : index
    %410 = vector.load %arg5[%c0_213, %c0_214] : memref<128x512xf32, #tpu.memory_space<vmem>>, vector<128x512xf32>
    %cst_215 = arith.constant dense<0.000000e+00> : vector<8x512xf32>
    %411 = tpu.matmul %409, %410, %cst_215 {dimension_numbers = #tpu.dot_dimension_numbers<[1], [0], [0], [1], [0, 0, 1, 1], [], []>} : vector<8x128xf32>, vector<128x512xf32>, vector<8x512xf32> -> vector<8x512xf32>
    %412 = arith.addf %408, %411 : vector<8x512xf32>
    %c0_216 = arith.constant 0 : index
    %c0_217 = arith.constant 0 : index
    %413 = vector.load %arg11[%c0_216, %c0_217] : memref<8x128xf32, #tpu.memory_space<vmem>>, vector<8x128xf32>
    %414 = vector.extract_strided_slice %412 {offsets = [0, 0], sizes = [8, 128], strides = [1, 1]} : vector<8x512xf32> to vector<8x128xf32>
    %415 = arith.negf %414 : vector<8x128xf32>
    %416 = math.exp %415 : vector<8x128xf32>
    %cst_218 = arith.constant 1.000000e+00 : f32
    %417 = vector.broadcast %cst_218 : f32 to vector<8x128xf32>
    %418 = arith.addf %417, %416 : vector<8x128xf32>
    %419 = arith.divf %417, %418 : vector<8x128xf32>
    %420 = vector.extract_strided_slice %412 {offsets = [0, 128], sizes = [8, 128], strides = [1, 1]} : vector<8x512xf32> to vector<8x128xf32>
    %421 = arith.negf %420 : vector<8x128xf32>
    %422 = math.exp %421 : vector<8x128xf32>
    %cst_219 = arith.constant 1.000000e+00 : f32
    %423 = vector.broadcast %cst_219 : f32 to vector<8x128xf32>
    %424 = arith.addf %423, %422 : vector<8x128xf32>
    %425 = arith.divf %423, %424 : vector<8x128xf32>
    %426 = vector.extract_strided_slice %412 {offsets = [0, 256], sizes = [8, 128], strides = [1, 1]} : vector<8x512xf32> to vector<8x128xf32>
    %427 = math.tanh %426 : vector<8x128xf32>
    %428 = vector.extract_strided_slice %412 {offsets = [0, 384], sizes = [8, 128], strides = [1, 1]} : vector<8x512xf32> to vector<8x128xf32>
    %429 = arith.negf %428 : vector<8x128xf32>
    %430 = math.exp %429 : vector<8x128xf32>
    %cst_220 = arith.constant 1.000000e+00 : f32
    %431 = vector.broadcast %cst_220 : f32 to vector<8x128xf32>
    %432 = arith.addf %431, %430 : vector<8x128xf32>
    %433 = arith.divf %431, %432 : vector<8x128xf32>
    %434 = arith.mulf %425, %413 : vector<8x128xf32>
    %435 = arith.mulf %419, %427 : vector<8x128xf32>
    %436 = arith.addf %434, %435 : vector<8x128xf32>
    %437 = math.tanh %436 : vector<8x128xf32>
    %438 = arith.mulf %433, %437 : vector<8x128xf32>
    %c0_221 = arith.constant 0 : index
    %c0_222 = arith.constant 0 : index
    %439 = vector.load %arg10[%c0_221, %c0_222] : memref<8x128xf32, #tpu.memory_space<vmem>>, vector<8x128xf32>
    tpu.vector_store %arg10[%c0_221, %c0_222], %438 {strides = array<i32>} : memref<8x128xf32, #tpu.memory_space<vmem>>, vector<8x128xf32>,
    %c0_223 = arith.constant 0 : index
    %c0_224 = arith.constant 0 : index
    %440 = vector.load %arg11[%c0_223, %c0_224] : memref<8x128xf32, #tpu.memory_space<vmem>>, vector<8x128xf32>
    tpu.vector_store %arg11[%c0_223, %c0_224], %436 {strides = array<i32>} : memref<8x128xf32, #tpu.memory_space<vmem>>, vector<8x128xf32>,
    %c0_225 = arith.constant 0 : index
    %c0_226 = arith.constant 0 : index
    %441 = vector.load %arg7[%c0_225, %c0_226] : memref<128x128xf32, #tpu.memory_space<vmem>>, vector<128x128xf32>
    %cst_227 = arith.constant dense<0.000000e+00> : vector<8x128xf32>
    %442 = tpu.matmul %438, %441, %cst_227 {dimension_numbers = #tpu.dot_dimension_numbers<[1], [0], [0], [1], [0, 0, 1, 1], [], []>} : vector<8x128xf32>, vector<128x128xf32>, vector<8x128xf32> -> vector<8x128xf32>
    %c0_228 = arith.constant 0 : index
    %c0_229 = arith.constant 0 : index
    %443 = vector.load %arg8[%c0_228, %c0_229] : memref<1x128xf32, #tpu.memory_space<vmem>>, vector<1x128xf32>
    %444 = vector.broadcast %443 : vector<1x128xf32> to vector<8x128xf32>
    %445 = arith.addf %442, %444 : vector<8x128xf32>
    %446 = arith.index_cast %c3_i32_208 : i32 to index
    %c0_230 = arith.constant 0 : index
    %c0_231 = arith.constant 0 : index
    %447 = vector.load %arg9[%446, %c0_230, %c0_231] : memref<7x8x128xf32, #tpu.memory_space<vmem>>, vector<1x8x128xf32>
    %448 = vector.shape_cast %447 : vector<1x8x128xf32> to vector<8x128xf32>
    %449 = vector.shape_cast %445 : vector<8x128xf32> to vector<1x8x128xf32>
    tpu.vector_store %arg9[%446, %c0_230, %c0_231], %449 {strides = array<i32>} : memref<7x8x128xf32, #tpu.memory_space<vmem>>, vector<1x8x128xf32>,
    %c1_i32_232 = arith.constant 1 : i32
    %450 = arith.addi %c3_i32_208, %c1_i32_232 : i32
    %451 = arith.index_cast %450 : i32 to index
    %452 = memref.load %arg1[%451] : memref<8xi32, #tpu.memory_space<smem>>
    %c0_i32_233 = arith.constant 0 : i32
    %453 = arith.cmpi sgt, %452, %c0_i32_233 : i32
    %454 = arith.extui %453 : i1 to i32
    %c0_i32_234 = arith.constant 0 : i32
    %455 = arith.cmpi ne, %454, %c0_i32_234 : i32
    scf.if %455 {
      %612 = arith.index_cast %450 : i32 to index
      %c0_325 = arith.constant 0 : index
      %c0_326 = arith.constant 0 : index
      %613 = vector.load %arg3[%612, %c0_325, %c0_326] : memref<8x8x512xf32, #tpu.memory_space<vmem>>, vector<1x8x512xf32>
      %614 = vector.shape_cast %613 : vector<1x8x512xf32> to vector<8x512xf32>
      %c0_327 = arith.constant 0 : index
      %c0_328 = arith.constant 0 : index
      %615 = vector.load %arg12[%c0_327, %c0_328] : memref<8x512xf32, #tpu.memory_space<vmem>>, vector<8x512xf32>
      tpu.vector_store %arg12[%c0_327, %c0_328], %614 {strides = array<i32>} : memref<8x512xf32, #tpu.memory_space<vmem>>, vector<8x512xf32>,
    } else {
    }
    %c0_i32_235 = arith.constant 0 : i32
    %456 = arith.cmpi eq, %452, %c0_i32_235 : i32
    %457 = arith.extui %456 : i1 to i32
    %c0_i32_236 = arith.constant 0 : i32
    %458 = arith.cmpi ne, %457, %c0_i32_236 : i32
    scf.if %458 {
      %cst_325 = arith.constant -1.000000e+30 : f32
      %612 = vector.broadcast %cst_325 : f32 to vector<8x128xf32>
      %613 = arith.select %254, %445, %612 : vector<8x128xi1>, vector<8x128xf32>
      %cst_326 = arith.constant dense<0xFF800000> : vector<8xf32>
      %614 = vector.multi_reduction <maximumf>, %613, %cst_326 [1] : vector<8x128xf32> to vector<8xf32>
      %615 = vector.shape_cast %614 : vector<8xf32> to vector<8x1xf32>
      %616 = vector.broadcast %615 : vector<8x1xf32> to vector<8x128xf32>
      %617 = arith.cmpf oeq, %613, %616 : vector<8x128xf32>
      %618 = arith.andi %617, %254 : vector<8x128xi1>
      %c128_i32 = arith.constant 128 : i32
      %619 = vector.broadcast %c128_i32 : i32 to vector<8x128xi32>
      %620 = arith.select %618, %252, %619 : vector<8x128xi1>, vector<8x128xi32>
      %cst_327 = arith.constant dense<2147483647> : vector<8xi32>
      %621 = vector.multi_reduction <minsi>, %620, %cst_327 [1] : vector<8x128xi32> to vector<8xi32>
      %622 = vector.shape_cast %621 : vector<8xi32> to vector<8x1xi32>
      %623 = vector.broadcast %622 : vector<8x1xi32> to vector<8x128xi32>
      %624 = arith.cmpi eq, %252, %623 : vector<8x128xi32>
      %625 = arith.extui %624 : vector<8x128xi1> to vector<8x128xi32>
      %626 = arith.sitofp %625 : vector<8x128xi32> to vector<8x128xf32>
      %c0_328 = arith.constant 0 : index
      %c0_329 = arith.constant 0 : index
      %627 = vector.load %arg6[%c0_328, %c0_329] : memref<128x512xf32, #tpu.memory_space<vmem>>, vector<128x512xf32>
      %cst_330 = arith.constant dense<0.000000e+00> : vector<8x512xf32>
      %628 = tpu.matmul %626, %627, %cst_330 {dimension_numbers = #tpu.dot_dimension_numbers<[1], [0], [0], [1], [0, 0, 1, 1], [], []>} : vector<8x128xf32>, vector<128x512xf32>, vector<8x512xf32> -> vector<8x512xf32>
      %c0_331 = arith.constant 0 : index
      %c0_332 = arith.constant 0 : index
      %629 = vector.load %arg12[%c0_331, %c0_332] : memref<8x512xf32, #tpu.memory_space<vmem>>, vector<8x512xf32>
      tpu.vector_store %arg12[%c0_331, %c0_332], %628 {strides = array<i32>} : memref<8x512xf32, #tpu.memory_space<vmem>>, vector<8x512xf32>,
    } else {
    }
    %c4_i32_237 = arith.constant 4 : i32
    %c0_238 = arith.constant 0 : index
    %c0_239 = arith.constant 0 : index
    %459 = vector.load %arg12[%c0_238, %c0_239] : memref<8x512xf32, #tpu.memory_space<vmem>>, vector<8x512xf32>
    %c0_240 = arith.constant 0 : index
    %c0_241 = arith.constant 0 : index
    %460 = vector.load %arg10[%c0_240, %c0_241] : memref<8x128xf32, #tpu.memory_space<vmem>>, vector<8x128xf32>
    %c0_242 = arith.constant 0 : index
    %c0_243 = arith.constant 0 : index
    %461 = vector.load %arg5[%c0_242, %c0_243] : memref<128x512xf32, #tpu.memory_space<vmem>>, vector<128x512xf32>
    %cst_244 = arith.constant dense<0.000000e+00> : vector<8x512xf32>
    %462 = tpu.matmul %460, %461, %cst_244 {dimension_numbers = #tpu.dot_dimension_numbers<[1], [0], [0], [1], [0, 0, 1, 1], [], []>} : vector<8x128xf32>, vector<128x512xf32>, vector<8x512xf32> -> vector<8x512xf32>
    %463 = arith.addf %459, %462 : vector<8x512xf32>
    %c0_245 = arith.constant 0 : index
    %c0_246 = arith.constant 0 : index
    %464 = vector.load %arg11[%c0_245, %c0_246] : memref<8x128xf32, #tpu.memory_space<vmem>>, vector<8x128xf32>
    %465 = vector.extract_strided_slice %463 {offsets = [0, 0], sizes = [8, 128], strides = [1, 1]} : vector<8x512xf32> to vector<8x128xf32>
    %466 = arith.negf %465 : vector<8x128xf32>
    %467 = math.exp %466 : vector<8x128xf32>
    %cst_247 = arith.constant 1.000000e+00 : f32
    %468 = vector.broadcast %cst_247 : f32 to vector<8x128xf32>
    %469 = arith.addf %468, %467 : vector<8x128xf32>
    %470 = arith.divf %468, %469 : vector<8x128xf32>
    %471 = vector.extract_strided_slice %463 {offsets = [0, 128], sizes = [8, 128], strides = [1, 1]} : vector<8x512xf32> to vector<8x128xf32>
    %472 = arith.negf %471 : vector<8x128xf32>
    %473 = math.exp %472 : vector<8x128xf32>
    %cst_248 = arith.constant 1.000000e+00 : f32
    %474 = vector.broadcast %cst_248 : f32 to vector<8x128xf32>
    %475 = arith.addf %474, %473 : vector<8x128xf32>
    %476 = arith.divf %474, %475 : vector<8x128xf32>
    %477 = vector.extract_strided_slice %463 {offsets = [0, 256], sizes = [8, 128], strides = [1, 1]} : vector<8x512xf32> to vector<8x128xf32>
    %478 = math.tanh %477 : vector<8x128xf32>
    %479 = vector.extract_strided_slice %463 {offsets = [0, 384], sizes = [8, 128], strides = [1, 1]} : vector<8x512xf32> to vector<8x128xf32>
    %480 = arith.negf %479 : vector<8x128xf32>
    %481 = math.exp %480 : vector<8x128xf32>
    %cst_249 = arith.constant 1.000000e+00 : f32
    %482 = vector.broadcast %cst_249 : f32 to vector<8x128xf32>
    %483 = arith.addf %482, %481 : vector<8x128xf32>
    %484 = arith.divf %482, %483 : vector<8x128xf32>
    %485 = arith.mulf %476, %464 : vector<8x128xf32>
    %486 = arith.mulf %470, %478 : vector<8x128xf32>
    %487 = arith.addf %485, %486 : vector<8x128xf32>
    %488 = math.tanh %487 : vector<8x128xf32>
    %489 = arith.mulf %484, %488 : vector<8x128xf32>
    %c0_250 = arith.constant 0 : index
    %c0_251 = arith.constant 0 : index
    %490 = vector.load %arg10[%c0_250, %c0_251] : memref<8x128xf32, #tpu.memory_space<vmem>>, vector<8x128xf32>
    tpu.vector_store %arg10[%c0_250, %c0_251], %489 {strides = array<i32>} : memref<8x128xf32, #tpu.memory_space<vmem>>, vector<8x128xf32>,
    %c0_252 = arith.constant 0 : index
    %c0_253 = arith.constant 0 : index
    %491 = vector.load %arg11[%c0_252, %c0_253] : memref<8x128xf32, #tpu.memory_space<vmem>>, vector<8x128xf32>
    tpu.vector_store %arg11[%c0_252, %c0_253], %487 {strides = array<i32>} : memref<8x128xf32, #tpu.memory_space<vmem>>, vector<8x128xf32>,
    %c0_254 = arith.constant 0 : index
    %c0_255 = arith.constant 0 : index
    %492 = vector.load %arg7[%c0_254, %c0_255] : memref<128x128xf32, #tpu.memory_space<vmem>>, vector<128x128xf32>
    %cst_256 = arith.constant dense<0.000000e+00> : vector<8x128xf32>
    %493 = tpu.matmul %489, %492, %cst_256 {dimension_numbers = #tpu.dot_dimension_numbers<[1], [0], [0], [1], [0, 0, 1, 1], [], []>} : vector<8x128xf32>, vector<128x128xf32>, vector<8x128xf32> -> vector<8x128xf32>
    %c0_257 = arith.constant 0 : index
    %c0_258 = arith.constant 0 : index
    %494 = vector.load %arg8[%c0_257, %c0_258] : memref<1x128xf32, #tpu.memory_space<vmem>>, vector<1x128xf32>
    %495 = vector.broadcast %494 : vector<1x128xf32> to vector<8x128xf32>
    %496 = arith.addf %493, %495 : vector<8x128xf32>
    %497 = arith.index_cast %c4_i32_237 : i32 to index
    %c0_259 = arith.constant 0 : index
    %c0_260 = arith.constant 0 : index
    %498 = vector.load %arg9[%497, %c0_259, %c0_260] : memref<7x8x128xf32, #tpu.memory_space<vmem>>, vector<1x8x128xf32>
    %499 = vector.shape_cast %498 : vector<1x8x128xf32> to vector<8x128xf32>
    %500 = vector.shape_cast %496 : vector<8x128xf32> to vector<1x8x128xf32>
    tpu.vector_store %arg9[%497, %c0_259, %c0_260], %500 {strides = array<i32>} : memref<7x8x128xf32, #tpu.memory_space<vmem>>, vector<1x8x128xf32>,
    %c1_i32_261 = arith.constant 1 : i32
    %501 = arith.addi %c4_i32_237, %c1_i32_261 : i32
    %502 = arith.index_cast %501 : i32 to index
    %503 = memref.load %arg1[%502] : memref<8xi32, #tpu.memory_space<smem>>
    %c0_i32_262 = arith.constant 0 : i32
    %504 = arith.cmpi sgt, %503, %c0_i32_262 : i32
    %505 = arith.extui %504 : i1 to i32
    %c0_i32_263 = arith.constant 0 : i32
    %506 = arith.cmpi ne, %505, %c0_i32_263 : i32
    scf.if %506 {
      %612 = arith.index_cast %501 : i32 to index
      %c0_325 = arith.constant 0 : index
      %c0_326 = arith.constant 0 : index
      %613 = vector.load %arg3[%612, %c0_325, %c0_326] : memref<8x8x512xf32, #tpu.memory_space<vmem>>, vector<1x8x512xf32>
      %614 = vector.shape_cast %613 : vector<1x8x512xf32> to vector<8x512xf32>
      %c0_327 = arith.constant 0 : index
      %c0_328 = arith.constant 0 : index
      %615 = vector.load %arg12[%c0_327, %c0_328] : memref<8x512xf32, #tpu.memory_space<vmem>>, vector<8x512xf32>
      tpu.vector_store %arg12[%c0_327, %c0_328], %614 {strides = array<i32>} : memref<8x512xf32, #tpu.memory_space<vmem>>, vector<8x512xf32>,
    } else {
    }
    %c0_i32_264 = arith.constant 0 : i32
    %507 = arith.cmpi eq, %503, %c0_i32_264 : i32
    %508 = arith.extui %507 : i1 to i32
    %c0_i32_265 = arith.constant 0 : i32
    %509 = arith.cmpi ne, %508, %c0_i32_265 : i32
    scf.if %509 {
      %cst_325 = arith.constant -1.000000e+30 : f32
      %612 = vector.broadcast %cst_325 : f32 to vector<8x128xf32>
      %613 = arith.select %254, %496, %612 : vector<8x128xi1>, vector<8x128xf32>
      %cst_326 = arith.constant dense<0xFF800000> : vector<8xf32>
      %614 = vector.multi_reduction <maximumf>, %613, %cst_326 [1] : vector<8x128xf32> to vector<8xf32>
      %615 = vector.shape_cast %614 : vector<8xf32> to vector<8x1xf32>
      %616 = vector.broadcast %615 : vector<8x1xf32> to vector<8x128xf32>
      %617 = arith.cmpf oeq, %613, %616 : vector<8x128xf32>
      %618 = arith.andi %617, %254 : vector<8x128xi1>
      %c128_i32 = arith.constant 128 : i32
      %619 = vector.broadcast %c128_i32 : i32 to vector<8x128xi32>
      %620 = arith.select %618, %252, %619 : vector<8x128xi1>, vector<8x128xi32>
      %cst_327 = arith.constant dense<2147483647> : vector<8xi32>
      %621 = vector.multi_reduction <minsi>, %620, %cst_327 [1] : vector<8x128xi32> to vector<8xi32>
      %622 = vector.shape_cast %621 : vector<8xi32> to vector<8x1xi32>
      %623 = vector.broadcast %622 : vector<8x1xi32> to vector<8x128xi32>
      %624 = arith.cmpi eq, %252, %623 : vector<8x128xi32>
      %625 = arith.extui %624 : vector<8x128xi1> to vector<8x128xi32>
      %626 = arith.sitofp %625 : vector<8x128xi32> to vector<8x128xf32>
      %c0_328 = arith.constant 0 : index
      %c0_329 = arith.constant 0 : index
      %627 = vector.load %arg6[%c0_328, %c0_329] : memref<128x512xf32, #tpu.memory_space<vmem>>, vector<128x512xf32>
      %cst_330 = arith.constant dense<0.000000e+00> : vector<8x512xf32>
      %628 = tpu.matmul %626, %627, %cst_330 {dimension_numbers = #tpu.dot_dimension_numbers<[1], [0], [0], [1], [0, 0, 1, 1], [], []>} : vector<8x128xf32>, vector<128x512xf32>, vector<8x512xf32> -> vector<8x512xf32>
      %c0_331 = arith.constant 0 : index
      %c0_332 = arith.constant 0 : index
      %629 = vector.load %arg12[%c0_331, %c0_332] : memref<8x512xf32, #tpu.memory_space<vmem>>, vector<8x512xf32>
      tpu.vector_store %arg12[%c0_331, %c0_332], %628 {strides = array<i32>} : memref<8x512xf32, #tpu.memory_space<vmem>>, vector<8x512xf32>,
    } else {
    }
    %c5_i32_266 = arith.constant 5 : i32
    %c0_267 = arith.constant 0 : index
    %c0_268 = arith.constant 0 : index
    %510 = vector.load %arg12[%c0_267, %c0_268] : memref<8x512xf32, #tpu.memory_space<vmem>>, vector<8x512xf32>
    %c0_269 = arith.constant 0 : index
    %c0_270 = arith.constant 0 : index
    %511 = vector.load %arg10[%c0_269, %c0_270] : memref<8x128xf32, #tpu.memory_space<vmem>>, vector<8x128xf32>
    %c0_271 = arith.constant 0 : index
    %c0_272 = arith.constant 0 : index
    %512 = vector.load %arg5[%c0_271, %c0_272] : memref<128x512xf32, #tpu.memory_space<vmem>>, vector<128x512xf32>
    %cst_273 = arith.constant dense<0.000000e+00> : vector<8x512xf32>
    %513 = tpu.matmul %511, %512, %cst_273 {dimension_numbers = #tpu.dot_dimension_numbers<[1], [0], [0], [1], [0, 0, 1, 1], [], []>} : vector<8x128xf32>, vector<128x512xf32>, vector<8x512xf32> -> vector<8x512xf32>
    %514 = arith.addf %510, %513 : vector<8x512xf32>
    %c0_274 = arith.constant 0 : index
    %c0_275 = arith.constant 0 : index
    %515 = vector.load %arg11[%c0_274, %c0_275] : memref<8x128xf32, #tpu.memory_space<vmem>>, vector<8x128xf32>
    %516 = vector.extract_strided_slice %514 {offsets = [0, 0], sizes = [8, 128], strides = [1, 1]} : vector<8x512xf32> to vector<8x128xf32>
    %517 = arith.negf %516 : vector<8x128xf32>
    %518 = math.exp %517 : vector<8x128xf32>
    %cst_276 = arith.constant 1.000000e+00 : f32
    %519 = vector.broadcast %cst_276 : f32 to vector<8x128xf32>
    %520 = arith.addf %519, %518 : vector<8x128xf32>
    %521 = arith.divf %519, %520 : vector<8x128xf32>
    %522 = vector.extract_strided_slice %514 {offsets = [0, 128], sizes = [8, 128], strides = [1, 1]} : vector<8x512xf32> to vector<8x128xf32>
    %523 = arith.negf %522 : vector<8x128xf32>
    %524 = math.exp %523 : vector<8x128xf32>
    %cst_277 = arith.constant 1.000000e+00 : f32
    %525 = vector.broadcast %cst_277 : f32 to vector<8x128xf32>
    %526 = arith.addf %525, %524 : vector<8x128xf32>
    %527 = arith.divf %525, %526 : vector<8x128xf32>
    %528 = vector.extract_strided_slice %514 {offsets = [0, 256], sizes = [8, 128], strides = [1, 1]} : vector<8x512xf32> to vector<8x128xf32>
    %529 = math.tanh %528 : vector<8x128xf32>
    %530 = vector.extract_strided_slice %514 {offsets = [0, 384], sizes = [8, 128], strides = [1, 1]} : vector<8x512xf32> to vector<8x128xf32>
    %531 = arith.negf %530 : vector<8x128xf32>
    %532 = math.exp %531 : vector<8x128xf32>
    %cst_278 = arith.constant 1.000000e+00 : f32
    %533 = vector.broadcast %cst_278 : f32 to vector<8x128xf32>
    %534 = arith.addf %533, %532 : vector<8x128xf32>
    %535 = arith.divf %533, %534 : vector<8x128xf32>
    %536 = arith.mulf %527, %515 : vector<8x128xf32>
    %537 = arith.mulf %521, %529 : vector<8x128xf32>
    %538 = arith.addf %536, %537 : vector<8x128xf32>
    %539 = math.tanh %538 : vector<8x128xf32>
    %540 = arith.mulf %535, %539 : vector<8x128xf32>
    %c0_279 = arith.constant 0 : index
    %c0_280 = arith.constant 0 : index
    %541 = vector.load %arg10[%c0_279, %c0_280] : memref<8x128xf32, #tpu.memory_space<vmem>>, vector<8x128xf32>
    tpu.vector_store %arg10[%c0_279, %c0_280], %540 {strides = array<i32>} : memref<8x128xf32, #tpu.memory_space<vmem>>, vector<8x128xf32>,
    %c0_281 = arith.constant 0 : index
    %c0_282 = arith.constant 0 : index
    %542 = vector.load %arg11[%c0_281, %c0_282] : memref<8x128xf32, #tpu.memory_space<vmem>>, vector<8x128xf32>
    tpu.vector_store %arg11[%c0_281, %c0_282], %538 {strides = array<i32>} : memref<8x128xf32, #tpu.memory_space<vmem>>, vector<8x128xf32>,
    %c0_283 = arith.constant 0 : index
    %c0_284 = arith.constant 0 : index
    %543 = vector.load %arg7[%c0_283, %c0_284] : memref<128x128xf32, #tpu.memory_space<vmem>>, vector<128x128xf32>
    %cst_285 = arith.constant dense<0.000000e+00> : vector<8x128xf32>
    %544 = tpu.matmul %540, %543, %cst_285 {dimension_numbers = #tpu.dot_dimension_numbers<[1], [0], [0], [1], [0, 0, 1, 1], [], []>} : vector<8x128xf32>, vector<128x128xf32>, vector<8x128xf32> -> vector<8x128xf32>
    %c0_286 = arith.constant 0 : index
    %c0_287 = arith.constant 0 : index
    %545 = vector.load %arg8[%c0_286, %c0_287] : memref<1x128xf32, #tpu.memory_space<vmem>>, vector<1x128xf32>
    %546 = vector.broadcast %545 : vector<1x128xf32> to vector<8x128xf32>
    %547 = arith.addf %544, %546 : vector<8x128xf32>
    %548 = arith.index_cast %c5_i32_266 : i32 to index
    %c0_288 = arith.constant 0 : index
    %c0_289 = arith.constant 0 : index
    %549 = vector.load %arg9[%548, %c0_288, %c0_289] : memref<7x8x128xf32, #tpu.memory_space<vmem>>, vector<1x8x128xf32>
    %550 = vector.shape_cast %549 : vector<1x8x128xf32> to vector<8x128xf32>
    %551 = vector.shape_cast %547 : vector<8x128xf32> to vector<1x8x128xf32>
    tpu.vector_store %arg9[%548, %c0_288, %c0_289], %551 {strides = array<i32>} : memref<7x8x128xf32, #tpu.memory_space<vmem>>, vector<1x8x128xf32>,
    %c1_i32_290 = arith.constant 1 : i32
    %552 = arith.addi %c5_i32_266, %c1_i32_290 : i32
    %553 = arith.index_cast %552 : i32 to index
    %554 = memref.load %arg1[%553] : memref<8xi32, #tpu.memory_space<smem>>
    %c0_i32_291 = arith.constant 0 : i32
    %555 = arith.cmpi sgt, %554, %c0_i32_291 : i32
    %556 = arith.extui %555 : i1 to i32
    %c0_i32_292 = arith.constant 0 : i32
    %557 = arith.cmpi ne, %556, %c0_i32_292 : i32
    scf.if %557 {
      %612 = arith.index_cast %552 : i32 to index
      %c0_325 = arith.constant 0 : index
      %c0_326 = arith.constant 0 : index
      %613 = vector.load %arg3[%612, %c0_325, %c0_326] : memref<8x8x512xf32, #tpu.memory_space<vmem>>, vector<1x8x512xf32>
      %614 = vector.shape_cast %613 : vector<1x8x512xf32> to vector<8x512xf32>
      %c0_327 = arith.constant 0 : index
      %c0_328 = arith.constant 0 : index
      %615 = vector.load %arg12[%c0_327, %c0_328] : memref<8x512xf32, #tpu.memory_space<vmem>>, vector<8x512xf32>
      tpu.vector_store %arg12[%c0_327, %c0_328], %614 {strides = array<i32>} : memref<8x512xf32, #tpu.memory_space<vmem>>, vector<8x512xf32>,
    } else {
    }
    %c0_i32_293 = arith.constant 0 : i32
    %558 = arith.cmpi eq, %554, %c0_i32_293 : i32
    %559 = arith.extui %558 : i1 to i32
    %c0_i32_294 = arith.constant 0 : i32
    %560 = arith.cmpi ne, %559, %c0_i32_294 : i32
    scf.if %560 {
      %cst_325 = arith.constant -1.000000e+30 : f32
      %612 = vector.broadcast %cst_325 : f32 to vector<8x128xf32>
      %613 = arith.select %254, %547, %612 : vector<8x128xi1>, vector<8x128xf32>
      %cst_326 = arith.constant dense<0xFF800000> : vector<8xf32>
      %614 = vector.multi_reduction <maximumf>, %613, %cst_326 [1] : vector<8x128xf32> to vector<8xf32>
      %615 = vector.shape_cast %614 : vector<8xf32> to vector<8x1xf32>
      %616 = vector.broadcast %615 : vector<8x1xf32> to vector<8x128xf32>
      %617 = arith.cmpf oeq, %613, %616 : vector<8x128xf32>
      %618 = arith.andi %617, %254 : vector<8x128xi1>
      %c128_i32 = arith.constant 128 : i32
      %619 = vector.broadcast %c128_i32 : i32 to vector<8x128xi32>
      %620 = arith.select %618, %252, %619 : vector<8x128xi1>, vector<8x128xi32>
      %cst_327 = arith.constant dense<2147483647> : vector<8xi32>
      %621 = vector.multi_reduction <minsi>, %620, %cst_327 [1] : vector<8x128xi32> to vector<8xi32>
      %622 = vector.shape_cast %621 : vector<8xi32> to vector<8x1xi32>
      %623 = vector.broadcast %622 : vector<8x1xi32> to vector<8x128xi32>
      %624 = arith.cmpi eq, %252, %623 : vector<8x128xi32>
      %625 = arith.extui %624 : vector<8x128xi1> to vector<8x128xi32>
      %626 = arith.sitofp %625 : vector<8x128xi32> to vector<8x128xf32>
      %c0_328 = arith.constant 0 : index
      %c0_329 = arith.constant 0 : index
      %627 = vector.load %arg6[%c0_328, %c0_329] : memref<128x512xf32, #tpu.memory_space<vmem>>, vector<128x512xf32>
      %cst_330 = arith.constant dense<0.000000e+00> : vector<8x512xf32>
      %628 = tpu.matmul %626, %627, %cst_330 {dimension_numbers = #tpu.dot_dimension_numbers<[1], [0], [0], [1], [0, 0, 1, 1], [], []>} : vector<8x128xf32>, vector<128x512xf32>, vector<8x512xf32> -> vector<8x512xf32>
      %c0_331 = arith.constant 0 : index
      %c0_332 = arith.constant 0 : index
      %629 = vector.load %arg12[%c0_331, %c0_332] : memref<8x512xf32, #tpu.memory_space<vmem>>, vector<8x512xf32>
      tpu.vector_store %arg12[%c0_331, %c0_332], %628 {strides = array<i32>} : memref<8x512xf32, #tpu.memory_space<vmem>>, vector<8x512xf32>,
    } else {
    }
    %c6_i32_295 = arith.constant 6 : i32
    %c0_296 = arith.constant 0 : index
    %c0_297 = arith.constant 0 : index
    %561 = vector.load %arg12[%c0_296, %c0_297] : memref<8x512xf32, #tpu.memory_space<vmem>>, vector<8x512xf32>
    %c0_298 = arith.constant 0 : index
    %c0_299 = arith.constant 0 : index
    %562 = vector.load %arg10[%c0_298, %c0_299] : memref<8x128xf32, #tpu.memory_space<vmem>>, vector<8x128xf32>
    %c0_300 = arith.constant 0 : index
    %c0_301 = arith.constant 0 : index
    %563 = vector.load %arg5[%c0_300, %c0_301] : memref<128x512xf32, #tpu.memory_space<vmem>>, vector<128x512xf32>
    %cst_302 = arith.constant dense<0.000000e+00> : vector<8x512xf32>
    %564 = tpu.matmul %562, %563, %cst_302 {dimension_numbers = #tpu.dot_dimension_numbers<[1], [0], [0], [1], [0, 0, 1, 1], [], []>} : vector<8x128xf32>, vector<128x512xf32>, vector<8x512xf32> -> vector<8x512xf32>
    %565 = arith.addf %561, %564 : vector<8x512xf32>
    %c0_303 = arith.constant 0 : index
    %c0_304 = arith.constant 0 : index
    %566 = vector.load %arg11[%c0_303, %c0_304] : memref<8x128xf32, #tpu.memory_space<vmem>>, vector<8x128xf32>
    %567 = vector.extract_strided_slice %565 {offsets = [0, 0], sizes = [8, 128], strides = [1, 1]} : vector<8x512xf32> to vector<8x128xf32>
    %568 = arith.negf %567 : vector<8x128xf32>
    %569 = math.exp %568 : vector<8x128xf32>
    %cst_305 = arith.constant 1.000000e+00 : f32
    %570 = vector.broadcast %cst_305 : f32 to vector<8x128xf32>
    %571 = arith.addf %570, %569 : vector<8x128xf32>
    %572 = arith.divf %570, %571 : vector<8x128xf32>
    %573 = vector.extract_strided_slice %565 {offsets = [0, 128], sizes = [8, 128], strides = [1, 1]} : vector<8x512xf32> to vector<8x128xf32>
    %574 = arith.negf %573 : vector<8x128xf32>
    %575 = math.exp %574 : vector<8x128xf32>
    %cst_306 = arith.constant 1.000000e+00 : f32
    %576 = vector.broadcast %cst_306 : f32 to vector<8x128xf32>
    %577 = arith.addf %576, %575 : vector<8x128xf32>
    %578 = arith.divf %576, %577 : vector<8x128xf32>
    %579 = vector.extract_strided_slice %565 {offsets = [0, 256], sizes = [8, 128], strides = [1, 1]} : vector<8x512xf32> to vector<8x128xf32>
    %580 = math.tanh %579 : vector<8x128xf32>
    %581 = vector.extract_strided_slice %565 {offsets = [0, 384], sizes = [8, 128], strides = [1, 1]} : vector<8x512xf32> to vector<8x128xf32>
    %582 = arith.negf %581 : vector<8x128xf32>
    %583 = math.exp %582 : vector<8x128xf32>
    %cst_307 = arith.constant 1.000000e+00 : f32
    %584 = vector.broadcast %cst_307 : f32 to vector<8x128xf32>
    %585 = arith.addf %584, %583 : vector<8x128xf32>
    %586 = arith.divf %584, %585 : vector<8x128xf32>
    %587 = arith.mulf %578, %566 : vector<8x128xf32>
    %588 = arith.mulf %572, %580 : vector<8x128xf32>
    %589 = arith.addf %587, %588 : vector<8x128xf32>
    %590 = math.tanh %589 : vector<8x128xf32>
    %591 = arith.mulf %586, %590 : vector<8x128xf32>
    %c0_308 = arith.constant 0 : index
    %c0_309 = arith.constant 0 : index
    %592 = vector.load %arg10[%c0_308, %c0_309] : memref<8x128xf32, #tpu.memory_space<vmem>>, vector<8x128xf32>
    tpu.vector_store %arg10[%c0_308, %c0_309], %591 {strides = array<i32>} : memref<8x128xf32, #tpu.memory_space<vmem>>, vector<8x128xf32>,
    %c0_310 = arith.constant 0 : index
    %c0_311 = arith.constant 0 : index
    %593 = vector.load %arg11[%c0_310, %c0_311] : memref<8x128xf32, #tpu.memory_space<vmem>>, vector<8x128xf32>
    tpu.vector_store %arg11[%c0_310, %c0_311], %589 {strides = array<i32>} : memref<8x128xf32, #tpu.memory_space<vmem>>, vector<8x128xf32>,
    %c0_312 = arith.constant 0 : index
    %c0_313 = arith.constant 0 : index
    %594 = vector.load %arg7[%c0_312, %c0_313] : memref<128x128xf32, #tpu.memory_space<vmem>>, vector<128x128xf32>
    %cst_314 = arith.constant dense<0.000000e+00> : vector<8x128xf32>
    %595 = tpu.matmul %591, %594, %cst_314 {dimension_numbers = #tpu.dot_dimension_numbers<[1], [0], [0], [1], [0, 0, 1, 1], [], []>} : vector<8x128xf32>, vector<128x128xf32>, vector<8x128xf32> -> vector<8x128xf32>
    %c0_315 = arith.constant 0 : index
    %c0_316 = arith.constant 0 : index
    %596 = vector.load %arg8[%c0_315, %c0_316] : memref<1x128xf32, #tpu.memory_space<vmem>>, vector<1x128xf32>
    %597 = vector.broadcast %596 : vector<1x128xf32> to vector<8x128xf32>
    %598 = arith.addf %595, %597 : vector<8x128xf32>
    %599 = arith.index_cast %c6_i32_295 : i32 to index
    %c0_317 = arith.constant 0 : index
    %c0_318 = arith.constant 0 : index
    %600 = vector.load %arg9[%599, %c0_317, %c0_318] : memref<7x8x128xf32, #tpu.memory_space<vmem>>, vector<1x8x128xf32>
    %601 = vector.shape_cast %600 : vector<1x8x128xf32> to vector<8x128xf32>
    %602 = vector.shape_cast %598 : vector<8x128xf32> to vector<1x8x128xf32>
    tpu.vector_store %arg9[%599, %c0_317, %c0_318], %602 {strides = array<i32>} : memref<7x8x128xf32, #tpu.memory_space<vmem>>, vector<1x8x128xf32>,
    %c1_i32_319 = arith.constant 1 : i32
    %603 = arith.addi %c6_i32_295, %c1_i32_319 : i32
    %604 = arith.index_cast %603 : i32 to index
    %605 = memref.load %arg1[%604] : memref<8xi32, #tpu.memory_space<smem>>
    %c0_i32_320 = arith.constant 0 : i32
    %606 = arith.cmpi sgt, %605, %c0_i32_320 : i32
    %607 = arith.extui %606 : i1 to i32
    %c0_i32_321 = arith.constant 0 : i32
    %608 = arith.cmpi ne, %607, %c0_i32_321 : i32
    scf.if %608 {
      %612 = arith.index_cast %603 : i32 to index
      %c0_325 = arith.constant 0 : index
      %c0_326 = arith.constant 0 : index
      %613 = vector.load %arg3[%612, %c0_325, %c0_326] : memref<8x8x512xf32, #tpu.memory_space<vmem>>, vector<1x8x512xf32>
      %614 = vector.shape_cast %613 : vector<1x8x512xf32> to vector<8x512xf32>
      %c0_327 = arith.constant 0 : index
      %c0_328 = arith.constant 0 : index
      %615 = vector.load %arg12[%c0_327, %c0_328] : memref<8x512xf32, #tpu.memory_space<vmem>>, vector<8x512xf32>
      tpu.vector_store %arg12[%c0_327, %c0_328], %614 {strides = array<i32>} : memref<8x512xf32, #tpu.memory_space<vmem>>, vector<8x512xf32>,
    } else {
    }
    %c0_i32_322 = arith.constant 0 : i32
    %609 = arith.cmpi eq, %605, %c0_i32_322 : i32
    %610 = arith.extui %609 : i1 to i32
    %c0_i32_323 = arith.constant 0 : i32
    %611 = arith.cmpi ne, %610, %c0_i32_323 : i32
    scf.if %611 {
      %cst_325 = arith.constant -1.000000e+30 : f32
      %612 = vector.broadcast %cst_325 : f32 to vector<8x128xf32>
      %613 = arith.select %254, %598, %612 : vector<8x128xi1>, vector<8x128xf32>
      %cst_326 = arith.constant dense<0xFF800000> : vector<8xf32>
      %614 = vector.multi_reduction <maximumf>, %613, %cst_326 [1] : vector<8x128xf32> to vector<8xf32>
      %615 = vector.shape_cast %614 : vector<8xf32> to vector<8x1xf32>
      %616 = vector.broadcast %615 : vector<8x1xf32> to vector<8x128xf32>
      %617 = arith.cmpf oeq, %613, %616 : vector<8x128xf32>
      %618 = arith.andi %617, %254 : vector<8x128xi1>
      %c128_i32 = arith.constant 128 : i32
      %619 = vector.broadcast %c128_i32 : i32 to vector<8x128xi32>
      %620 = arith.select %618, %252, %619 : vector<8x128xi1>, vector<8x128xi32>
      %cst_327 = arith.constant dense<2147483647> : vector<8xi32>
      %621 = vector.multi_reduction <minsi>, %620, %cst_327 [1] : vector<8x128xi32> to vector<8xi32>
      %622 = vector.shape_cast %621 : vector<8xi32> to vector<8x1xi32>
      %623 = vector.broadcast %622 : vector<8x1xi32> to vector<8x128xi32>
      %624 = arith.cmpi eq, %252, %623 : vector<8x128xi32>
      %625 = arith.extui %624 : vector<8x128xi1> to vector<8x128xi32>
      %626 = arith.sitofp %625 : vector<8x128xi32> to vector<8x128xf32>
      %c0_328 = arith.constant 0 : index
      %c0_329 = arith.constant 0 : index
      %627 = vector.load %arg6[%c0_328, %c0_329] : memref<128x512xf32, #tpu.memory_space<vmem>>, vector<128x512xf32>
      %cst_330 = arith.constant dense<0.000000e+00> : vector<8x512xf32>
      %628 = tpu.matmul %626, %627, %cst_330 {dimension_numbers = #tpu.dot_dimension_numbers<[1], [0], [0], [1], [0, 0, 1, 1], [], []>} : vector<8x128xf32>, vector<128x512xf32>, vector<8x512xf32> -> vector<8x512xf32>
      %c0_331 = arith.constant 0 : index
      %c0_332 = arith.constant 0 : index
      %629 = vector.load %arg12[%c0_331, %c0_332] : memref<8x512xf32, #tpu.memory_space<vmem>>, vector<8x512xf32>
      tpu.vector_store %arg12[%c0_331, %c0_332], %628 {strides = array<i32>} : memref<8x512xf32, #tpu.memory_space<vmem>>, vector<8x512xf32>,
    } else {
    }
    %c7_i32_324 = arith.constant 7 : i32
    return
  }
  func.func @transform_0(%arg0: i32, %arg1: memref<8xi32, #tpu.memory_space<smem>>) -> (i32, i32, i32) {
    %c0_i32 = arith.constant 0 : i32
    %c0_i32_0 = arith.constant 0 : i32
    %c0_i32_1 = arith.constant 0 : i32
    %c0_i32_2 = arith.constant 0 : i32
    return %c0_i32, %c0_i32_0, %c0_i32_1 : i32, i32, i32
  }
  func.func @transform_1(%arg0: i32, %arg1: memref<8xi32, #tpu.memory_space<smem>>) -> (i32, i32, i32) {
    %c0_i32 = arith.constant 0 : i32
    %c0_i32_0 = arith.constant 0 : i32
    %c0_i32_1 = arith.constant 0 : i32
    %c0_i32_2 = arith.constant 0 : i32
    return %c0_i32, %c0_i32_0, %c0_i32_1 : i32, i32, i32
  }
  func.func @transform_2(%arg0: i32, %arg1: memref<8xi32, #tpu.memory_space<smem>>) -> (i32, i32) {
    %c0_i32 = arith.constant 0 : i32
    %c0_i32_0 = arith.constant 0 : i32
    %c0_i32_1 = arith.constant 0 : i32
    return %c0_i32, %c0_i32_0 : i32, i32
  }
  func.func @transform_3(%arg0: i32, %arg1: memref<8xi32, #tpu.memory_space<smem>>) -> (i32, i32) {
    %c0_i32 = arith.constant 0 : i32
    %c0_i32_0 = arith.constant 0 : i32
    %c0_i32_1 = arith.constant 0 : i32
    return %c0_i32, %c0_i32_0 : i32, i32
  }
  func.func @transform_4(%arg0: i32, %arg1: memref<8xi32, #tpu.memory_space<smem>>) -> (i32, i32) {
    %c0_i32 = arith.constant 0 : i32
    %c0_i32_0 = arith.constant 0 : i32
    %c0_i32_1 = arith.constant 0 : i32
    return %c0_i32, %c0_i32_0 : i32, i32
  }
  func.func @transform_5(%arg0: i32, %arg1: memref<8xi32, #tpu.memory_space<smem>>) -> (i32, i32) {
    %c0_i32 = arith.constant 0 : i32
    %c0_i32_0 = arith.constant 0 : i32
    %c0_i32_1 = arith.constant 0 : i32
    return %c0_i32, %c0_i32_0 : i32, i32
  }
  func.func @transform_6(%arg0: i32, %arg1: memref<8xi32, #tpu.memory_space<smem>>) -> (i32, i32) {
    %c0_i32 = arith.constant 0 : i32
    %c0_i32_0 = arith.constant 0 : i32
    %c0_i32_1 = arith.constant 0 : i32
    return %c0_i32, %c0_i32_0 : i32, i32
  }
  func.func @transform_7(%arg0: i32, %arg1: memref<8xi32, #tpu.memory_space<smem>>) -> (i32, i32, i32) {
    %c0_i32 = arith.constant 0 : i32
    %c0_i32_0 = arith.constant 0 : i32
    %c0_i32_1 = arith.constant 0 : i32
    %c0_i32_2 = arith.constant 0 : i32
    return %c0_i32, %c0_i32_0, %c0_i32_1 : i32, i32, i32
  }
}

</mosaic_0001>

<llo_original>
// kernel: seq2seq_forward.1
$region0: #{seq2seq_forward.1}
  #allocation0 [shape = 'u32[]', space=smem, size = 0x4, offset = 0x4, fixed_abs, tag = 'smem constant byte address 0x4 - core index']
  #allocation1 [shape = 'u32[144,128]{1,0:T(1,128)}', space=vmem, size = 0x12000, scoped, tag = 'internal scratch']
  #allocation2 [shape = 'f32[8,128]{1,0:T(8,128)}', space=vmem, size = 0x1000, scoped, tag = 'scratch operand']
  #allocation3 [shape = 'f32[8,128]{1,0:T(8,128)}', space=vmem, size = 0x1000, scoped, tag = 'scratch operand']
  #allocation4 [shape = 'f32[8,512]{1,0:T(8,128)}', space=vmem, size = 0x4000, scoped, tag = 'scratch operand']
  #allocation5 [shape = 's32[1]{0}', space=sflag, size = 0x4, scoped, tag = 'scoped memory for seq2seq_forward.1']
  #allocation6 [shape = 'u8[512]{0}', space=smem, size = 0x200, scoped, tag = 'prefetched SMEM operand 0']
  %s0 = inlined_call_operand.vmem [shape: s32[8], index: 0, kind: input, shape index: {}]
  %s1 = inlined_call_operand.vmem [shape: f32[7,8,512], index: 1, kind: input, shape index: {}]
  %s2 = inlined_call_operand.vmem [shape: f32[8,8,512], index: 2, kind: input, shape index: {}]
  %s3 = inlined_call_operand.vmem [shape: f32[128,512], index: 3, kind: input, shape index: {}]
  %s4 = inlined_call_operand.vmem [shape: f32[128,512], index: 4, kind: input, shape index: {}]
  %s5 = inlined_call_operand.vmem [shape: f32[128,512], index: 5, kind: input, shape index: {}]
  %s6 = inlined_call_operand.vmem [shape: f32[128,128], index: 6, kind: input, shape index: {}]
  %s7 = inlined_call_operand.vmem [shape: f32[1,128], index: 7, kind: input, shape index: {}]
  %s8 = inlined_call_operand.vmem [shape: f32[7,8,128], index: 8, kind: output, shape index: {}]
  %s9 = sld [smem:[#allocation0]]
  $region94: #{seq2seq_forward.1} parent=0
    _
  %s11 = ssub.s32 1, %s9
  %s12 = scalar_select 0, %s11, %s9
  %s13 = sshll.u32 %s0, 4
  %s14 = int_to_ptr.vmem [resolvable:$true] %s13
  %16 = dma.vmem_to_smem %s14, 16, [#allocation6], [#allocation5]
  %17 = dma.done [#allocation5], 16
  %18 = sfence
  // Predicated region
  $region2: #{seq2seq_forward.1} parent=0 // pred_check
    _
  $region3: #{seq2seq_forward.1} parent=0 // pred_check_branch
    %20 = sbr.rel (0) target = $region5
  $region4: #{seq2seq_forward.1} parent=0 // pred_region
    _
  $region5: #{seq2seq_forward.1} parent=0 // pred_fallthru
    _
  // Predicated region
  $region6: #{seq2seq_forward.1} parent=0 // pred_check
    _
  $region7: #{seq2seq_forward.1} parent=0 // pred_check_branch
    %22 = sbr.rel (0) target = $region9
  $region8: #{seq2seq_forward.1} parent=0 // pred_region
    _
  $region9: #{seq2seq_forward.1} parent=0 // pred_fallthru
    _
  // Predicated region
  $region10: #{seq2seq_forward.1} parent=0 // pred_check
    _
  $region11: #{seq2seq_forward.1} parent=0 // pred_check_branch
    %24 = sbr.rel (0) target = $region13
  $region12: #{seq2seq_forward.1} parent=0 // pred_region
    _
  $region13: #{seq2seq_forward.1} parent=0 // pred_fallthru
    _
  // Predicated region
  $region14: #{seq2seq_forward.1} parent=0 // pred_check
    _
  $region15: #{seq2seq_forward.1} parent=0 // pred_check_branch
    %26 = sbr.rel (0) target = $region17
  $region16: #{seq2seq_forward.1} parent=0 // pred_region
    _
  $region17: #{seq2seq_forward.1} parent=0 // pred_fallthru
    _
  // Predicated region
  $region18: #{seq2seq_forward.1} parent=0 // pred_check
    _
  $region19: #{seq2seq_forward.1} parent=0 // pred_check_branch
    %28 = sbr.rel (0) target = $region21
  $region20: #{seq2seq_forward.1} parent=0 // pred_region
    _
  $region21: #{seq2seq_forward.1} parent=0 // pred_fallthru
    _
  // Predicated region
  $region22: #{seq2seq_forward.1} parent=0 // pred_check
    _
  $region23: #{seq2seq_forward.1} parent=0 // pred_check_branch
    %30 = sbr.rel (0) target = $region25
  $region24: #{seq2seq_forward.1} parent=0 // pred_region
    _
  $region25: #{seq2seq_forward.1} parent=0 // pred_fallthru
    _
  // Predicated region
  $region26: #{seq2seq_forward.1} parent=0 // pred_check
    _
  $region27: #{seq2seq_forward.1} parent=0 // pred_check_branch
    %32 = sbr.rel (0) target = $region29
  $region28: #{seq2seq_forward.1} parent=0 // pred_region
    _
  $region29: #{seq2seq_forward.1} parent=0 // pred_fallthru
    _
  %33 = vst [vmem:[#allocation2] sm:$0xff] 0.0
  %34 = vst [vmem:[#allocation3] sm:$0xff] 0.0
  %v35 = vld [vmem:[%s1] sm:$0xff]
  %v36 = vld [vmem:[%s1 + $0x8] sm:$0xff]
  %v37 = vld [vmem:[%s1 + $0x10] sm:$0xff]
  %v38 = vld [vmem:[%s1 + $0x18] sm:$0xff]
  %v39 = vld [vmem:[#allocation2] sm:$0xff]
  %v40 = vld [vmem:[%s3] sm:$0xff]
  %v41 = vld [vmem:[%s3 + $0x8] sm:$0xff]
  %v42 = vld [vmem:[%s3 + $0x10] sm:$0xff]
  %v43 = vld [vmem:[%s3 + $0x18] sm:$0xff]
  %v44 = vld [vmem:[%s3 + $0x20] sm:$0xff]
  %v45 = vld [vmem:[%s3 + $0x28] sm:$0xff]
  %v46 = vld [vmem:[%s3 + $0x30] sm:$0xff]
  %v47 = vld [vmem:[%s3 + $0x38] sm:$0xff]
  %v48 = vld [vmem:[%s3 + $0x40] sm:$0xff]
  %v49 = vld [vmem:[%s3 + $0x48] sm:$0xff]
  %v50 = vld [vmem:[%s3 + $0x50] sm:$0xff]
  %v51 = vld [vmem:[%s3 + $0x58] sm:$0xff]
  %v52 = vld [vmem:[%s3 + $0x60] sm:$0xff]
  %v53 = vld [vmem:[%s3 + $0x68] sm:$0xff]
  %v54 = vld [vmem:[%s3 + $0x70] sm:$0xff]
  %v55 = vld [vmem:[%s3 + $0x78] sm:$0xff]
  %v56 = vld [vmem:[%s3 + $0x80] sm:$0xff]
  %v57 = vld [vmem:[%s3 + $0x88] sm:$0xff]
  %v58 = vld [vmem:[%s3 + $0x90] sm:$0xff]
  %v59 = vld [vmem:[%s3 + $0x98] sm:$0xff]
  %v60 = vld [vmem:[%s3 + $0xa0] sm:$0xff]
  %v61 = vld [vmem:[%s3 + $0xa8] sm:$0xff]
  %v62 = vld [vmem:[%s3 + $0xb0] sm:$0xff]
  %v63 = vld [vmem:[%s3 + $0xb8] sm:$0xff]
  %v64 = vld [vmem:[%s3 + $0xc0] sm:$0xff]
  %v65 = vld [vmem:[%s3 + $0xc8] sm:$0xff]
  %v66 = vld [vmem:[%s3 + $0xd0] sm:$0xff]
  %v67 = vld [vmem:[%s3 + $0xd8] sm:$0xff]
  %v68 = vld [vmem:[%s3 + $0xe0] sm:$0xff]
  %v69 = vld [vmem:[%s3 + $0xe8] sm:$0xff]
  %v70 = vld [vmem:[%s3 + $0xf0] sm:$0xff]
  %v71 = vld [vmem:[%s3 + $0xf8] sm:$0xff]
  %v72 = vld [vmem:[%s3 + $0x100] sm:$0xff]
  %v73 = vld [vmem:[%s3 + $0x108] sm:$0xff]
  %v74 = vld [vmem:[%s3 + $0x110] sm:$0xff]
  %v75 = vld [vmem:[%s3 + $0x118] sm:$0xff]
  %v76 = vld [vmem:[%s3 + $0x120] sm:$0xff]
  %v77 = vld [vmem:[%s3 + $0x128] sm:$0xff]
  %v78 = vld [vmem:[%s3 + $0x130] sm:$0xff]
  %v79 = vld [vmem:[%s3 + $0x138] sm:$0xff]
  %v80 = vld [vmem:[%s3 + $0x140] sm:$0xff]
  %v81 = vld [vmem:[%s3 + $0x148] sm:$0xff]
  %v82 = vld [vmem:[%s3 + $0x150] sm:$0xff]
  %v83 = vld [vmem:[%s3 + $0x158] sm:$0xff]
  %v84 = vld [vmem:[%s3 + $0x160] sm:$0xff]
  %v85 = vld [vmem:[%s3 + $0x168] sm:$0xff]
  %v86 = vld [vmem:[%s3 + $0x170] sm:$0xff]
  %v87 = vld [vmem:[%s3 + $0x178] sm:$0xff]
  %v88 = vld [vmem:[%s3 + $0x180] sm:$0xff]
  %v89 = vld [vmem:[%s3 + $0x188] sm:$0xff]
  %v90 = vld [vmem:[%s3 + $0x190] sm:$0xff]
  %v91 = vld [vmem:[%s3 + $0x198] sm:$0xff]
  %v92 = vld [vmem:[%s3 + $0x1a0] sm:$0xff]
  %v93 = vld [vmem:[%s3 + $0x1a8] sm:$0xff]
  %v94 = vld [vmem:[%s3 + $0x1b0] sm:$0xff]
  %v95 = vld [vmem:[%s3 + $0x1b8] sm:$0xff]
  %v96 = vld [vmem:[%s3 + $0x1c0] sm:$0xff]
  %v97 = vld [vmem:[%s3 + $0x1c8] sm:$0xff]
  %v98 = vld [vmem:[%s3 + $0x1d0] sm:$0xff]
  %v99 = vld [vmem:[%s3 + $0x1d8] sm:$0xff]
  %v100 = vld [vmem:[%s3 + $0x1e0] sm:$0xff]
  %v101 = vld [vmem:[%s3 + $0x1e8] sm:$0xff]
  %v102 = vld [vmem:[%s3 + $0x1f0] sm:$0xff]
  %v103 = vld [vmem:[%s3 + $0x1f8] sm:$0xff]
  %104 = vmatprep.subr.mxu0 %v41
  %105 = vmatpush1.msra.mxu0 %v40
  %106 = vmatprep.subr.mxu0 %v45
  %107 = vmatpush1.msra.mxu0 %v44
  %108 = vmatprep.subr.mxu0 %v49
  %109 = vmatpush1.msra.mxu0 %v48
  %110 = vmatprep.subr.mxu0 %v53
  %111 = vmatpush1.msra.mxu0 %v52
  %112 = vmatprep.subr.mxu0 %v57
  %113 = vmatpush1.msra.mxu0 %v56
  %114 = vmatprep.subr.mxu0 %v61
  %115 = vmatpush1.msra.mxu0 %v60
  %116 = vmatprep.subr.mxu0 %v65
  %117 = vmatpush1.msra.mxu0 %v64
  %118 = vmatprep.subr.mxu0 %v69
  %119 = vmatpush1.msra.mxu0 %v68
  %120 = vmatprep.subr.mxu0 %v73
  %121 = vmatpush1.msra.mxu0 %v72
  %122 = vmatprep.subr.mxu0 %v77
  %123 = vmatpush1.msra.mxu0 %v76
  %124 = vmatprep.subr.mxu0 %v81
  %125 = vmatpush1.msra.mxu0 %v80
  %126 = vmatprep.subr.mxu0 %v85
  %127 = vmatpush1.msra.mxu0 %v84
  %128 = vmatprep.subr.mxu0 %v89
  %129 = vmatpush1.msra.mxu0 %v88
  %130 = vmatprep.subr.mxu0 %v93
  %131 = vmatpush1.msra.mxu0 %v92
  %132 = vmatprep.subr.mxu0 %v97
  %133 = vmatpush1.msra.mxu0 %v96
  %134 = vmatprep.subr.mxu0 %v101
  %135 = vmatpush1.msra.mxu0 %v100
  %136 = vmatprep.subr.mxu0 0.0
  %137 = vmatpush1.msra.mxu0 0.0
  %138 = vmatprep.subr.mxu0 0.0
  %139 = vmatpush1.msra.mxu0 0.0
  %140 = vmatprep.subr.mxu0 0.0
  %141 = vmatpush1.msra.mxu0 0.0
  %142 = vmatprep.subr.mxu0 0.0
  %143 = vmatpush1.msra.mxu0 0.0
  %144 = vmatprep.subr.mxu0 0.0
  %145 = vmatpush1.msra.mxu0 0.0
  %146 = vmatprep.subr.mxu0 0.0
  %147 = vmatpush1.msra.mxu0 0.0
  %148 = vmatprep.subr.mxu0 0.0
  %149 = vmatpush1.msra.mxu0 0.0
  %150 = vmatprep.subr.mxu0 0.0
  %151 = vmatpush1.msra.mxu0 0.0
  %152 = vmatprep.subr.mxu0 0.0
  %153 = vmatpush1.msra.mxu0 0.0
  %154 = vmatprep.subr.mxu0 0.0
  %155 = vmatpush1.msra.mxu0 0.0
  %156 = vmatprep.subr.mxu0 0.0
  %157 = vmatpush1.msra.mxu0 0.0
  %158 = vmatprep.subr.mxu0 0.0
  %159 = vmatpush1.msra.mxu0 0.0
  %160 = vmatprep.subr.mxu0 0.0
  %161 = vmatpush1.msra.mxu0 0.0
  %162 = vmatprep.subr.mxu0 0.0
  %163 = vmatpush1.msra.mxu0 0.0
  %164 = vmatprep.subr.mxu0 0.0
  %165 = vmatpush1.msra.mxu0 0.0
  %166 = vmatprep.subr.mxu0 0.0
  %167 = vmatpush1.msra.mxu0 0.0
  %168 = vmatprep.mubr.f32.mxu0 0.0
  %169 = vmatmul.mubr.f32.gmra.mrb[0].mxu0 %v39
  %v170 = vpop.f32.mrb[0].mxu0
  %v171 = vadd.f32 0.0, %v170
  %v172 = vpop.f32.mrb[0].mxu0
  %v173 = vadd.f32 0.0, %v172
  %174 = vdwg.mxu0
  %175 = vmatprep.subr.mxu0 %v43
  %176 = vmatpush1.msra.mxu0 %v42
  %177 = vmatprep.subr.mxu0 %v47
  %178 = vmatpush1.msra.mxu0 %v46
  %179 = vmatprep.subr.mxu0 %v51
  %180 = vmatpush1.msra.mxu0 %v50
  %181 = vmatprep.subr.mxu0 %v55
  %182 = vmatpush1.msra.mxu0 %v54
  %183 = vmatprep.subr.mxu0 %v59
  %184 = vmatpush1.msra.mxu0 %v58
  %185 = vmatprep.subr.mxu0 %v63
  %186 = vmatpush1.msra.mxu0 %v62
  %187 = vmatprep.subr.mxu0 %v67
  %188 = vmatpush1.msra.mxu0 %v66
  %189 = vmatprep.subr.mxu0 %v71
  %190 = vmatpush1.msra.mxu0 %v70
  %191 = vmatprep.subr.mxu0 %v75
  %192 = vmatpush1.msra.mxu0 %v74
  %193 = vmatprep.subr.mxu0 %v79
  %194 = vmatpush1.msra.mxu0 %v78
  %195 = vmatprep.subr.mxu0 %v83
  %196 = vmatpush1.msra.mxu0 %v82
  %197 = vmatprep.subr.mxu0 %v87
  %198 = vmatpush1.msra.mxu0 %v86
  %199 = vmatprep.subr.mxu0 %v91
  %200 = vmatpush1.msra.mxu0 %v90
  %201 = vmatprep.subr.mxu0 %v95
  %202 = vmatpush1.msra.mxu0 %v94
  %203 = vmatprep.subr.mxu0 %v99
  %204 = vmatpush1.msra.mxu0 %v98
  %205 = vmatprep.subr.mxu0 %v103
  %206 = vmatpush1.msra.mxu0 %v102
  %207 = vmatprep.subr.mxu0 0.0
  %208 = vmatpush1.msra.mxu0 0.0
  %209 = vmatprep.subr.mxu0 0.0
  %210 = vmatpush1.msra.mxu0 0.0
  %211 = vmatprep.subr.mxu0 0.0
  %212 = vmatpush1.msra.mxu0 0.0
  %213 = vmatprep.subr.mxu0 0.0
  %214 = vmatpush1.msra.mxu0 0.0
  %215 = vmatprep.subr.mxu0 0.0
  %216 = vmatpush1.msra.mxu0 0.0
  %217 = vmatprep.subr.mxu0 0.0
  %218 = vmatpush1.msra.mxu0 0.0
  %219 = vmatprep.subr.mxu0 0.0
  %220 = vmatpush1.msra.mxu0 0.0
  %221 = vmatprep.subr.mxu0 0.0
  %222 = vmatpush1.msra.mxu0 0.0
  %223 = vmatprep.subr.mxu0 0.0
  %224 = vmatpush1.msra.mxu0 0.0
  %225 = vmatprep.subr.mxu0 0.0
  %226 = vmatpush1.msra.mxu0 0.0
  %227 = vmatprep.subr.mxu0 0.0
  %228 = vmatpush1.msra.mxu0 0.0
  %229 = vmatprep.subr.mxu0 0.0
  %230 = vmatpush1.msra.mxu0 0.0
  %231 = vmatprep.subr.mxu0 0.0
  %232 = vmatpush1.msra.mxu0 0.0
  %233 = vmatprep.subr.mxu0 0.0
  %234 = vmatpush1.msra.mxu0 0.0
  %235 = vmatprep.subr.mxu0 0.0
  %236 = vmatpush1.msra.mxu0 0.0
  %237 = vmatprep.subr.mxu0 0.0
  %238 = vmatpush1.msra.mxu0 0.0
  %239 = vmatprep.mubr.f32.mxu0 0.0
  %240 = vmatmul.mubr.f32.gmra.mrb[0].mxu0 %v39
  %v241 = vpop.f32.mrb[0].mxu0
  %v242 = vadd.f32 0.0, %v241
  %v243 = vpop.f32.mrb[0].mxu0
  %v244 = vadd.f32 0.0, %v243
  %245 = vdwg.mxu0
  %v246 = vadd.f32 %v35, %v171
  %v247 = vadd.f32 %v36, %v173
  %v248 = vadd.f32 %v37, %v242
  %v249 = vadd.f32 %v38, %v244
  %v250 = vld [vmem:[#allocation3] sm:$0xff]
  %v251 = vxor.u32 %v246, 2147483648
  %v252 = vmul.f32 %v251, 1.442695
  %v253 = vpow.pop %v252
  %v254 = vadd.f32 %v253, 1.0
  %v255 = vrcp.pop %v254
  %v256 = vmul.f32 1.0, %v255
  %v257 = vxor.u32 %v247, 2147483648
  %v258 = vmul.f32 %v257, 1.442695
  %v259 = vpow.pop %v258
  %v260 = vadd.f32 %v259, 1.0
  %v261 = vrcp.pop %v260
  %v262 = vmul.f32 1.0, %v261
  %v263 = vtanh.pop %v248
  %v264 = vxor.u32 %v249, 2147483648
  %v265 = vmul.f32 %v264, 1.442695
  %v266 = vpow.pop %v265
  %v267 = vadd.f32 %v266, 1.0
  %v268 = vrcp.pop %v267
  %v269 = vmul.f32 1.0, %v268
  %v270 = vmul.f32 %v262, %v250
  %v271 = vmul.f32 %v256, %v263
  %v272 = vadd.f32 %v270, %v271
  %v273 = vtanh.pop %v272
  %v274 = vmul.f32 %v269, %v273
  %275 = vst [vmem:[#allocation2] sm:$0xff] %v274
  %276 = vst [vmem:[#allocation3] sm:$0xff] %v272
  %s277 = scalar_lea.vmem %s1, 32
  %v278 = vld [vmem:[%s277] sm:$0xff]
  %v279 = vld [vmem:[%s277 + $0x8] sm:$0xff]
  %v280 = vld [vmem:[%s277 + $0x10] sm:$0xff]
  %v281 = vld [vmem:[%s277 + $0x18] sm:$0xff]
  %v282 = vld [vmem:[#allocation2] sm:$0xff]
  %v283 = vld [vmem:[%s3] sm:$0xff]
  %v284 = vld [vmem:[%s3 + $0x8] sm:$0xff]
  %v285 = vld [vmem:[%s3 + $0x10] sm:$0xff]
  %v286 = vld [vmem:[%s3 + $0x18] sm:$0xff]
  %v287 = vld [vmem:[%s3 + $0x20] sm:$0xff]
  %v288 = vld [vmem:[%s3 + $0x28] sm:$0xff]
  %v289 = vld [vmem:[%s3 + $0x30] sm:$0xff]
  %v290 = vld [vmem:[%s3 + $0x38] sm:$0xff]
  %v291 = vld [vmem:[%s3 + $0x40] sm:$0xff]
  %v292 = vld [vmem:[%s3 + $0x48] sm:$0xff]
  %v293 = vld [vmem:[%s3 + $0x50] sm:$0xff]
  %v294 = vld [vmem:[%s3 + $0x58] sm:$0xff]
  %v295 = vld [vmem:[%s3 + $0x60] sm:$0xff]
  %v296 = vld [vmem:[%s3 + $0x68] sm:$0xff]
  %v297 = vld [vmem:[%s3 + $0x70] sm:$0xff]
  %v298 = vld [vmem:[%s3 + $0x78] sm:$0xff]
  %v299 = vld [vmem:[%s3 + $0x80] sm:$0xff]
  %v300 = vld [vmem:[%s3 + $0x88] sm:$0xff]
  %v301 = vld [vmem:[%s3 + $0x90] sm:$0xff]
  %v302 = vld [vmem:[%s3 + $0x98] sm:$0xff]
  %v303 = vld [vmem:[%s3 + $0xa0] sm:$0xff]
  %v304 = vld [vmem:[%s3 + $0xa8] sm:$0xff]
  %v305 = vld [vmem:[%s3 + $0xb0] sm:$0xff]
  %v306 = vld [vmem:[%s3 + $0xb8] sm:$0xff]
  %v307 = vld [vmem:[%s3 + $0xc0] sm:$0xff]
  %v308 = vld [vmem:[%s3 + $0xc8] sm:$0xff]
  %v309 = vld [vmem:[%s3 + $0xd0] sm:$0xff]
  %v310 = vld [vmem:[%s3 + $0xd8] sm:$0xff]
  %v311 = vld [vmem:[%s3 + $0xe0] sm:$0xff]
  %v312 = vld [vmem:[%s3 + $0xe8] sm:$0xff]
  %v313 = vld [vmem:[%s3 + $0xf0] sm:$0xff]
  %v314 = vld [vmem:[%s3 + $0xf8] sm:$0xff]
  %v315 = vld [vmem:[%s3 + $0x100] sm:$0xff]
  %v316 = vld [vmem:[%s3 + $0x108] sm:$0xff]
  %v317 = vld [vmem:[%s3 + $0x110] sm:$0xff]
  %v318 = vld [vmem:[%s3 + $0x118] sm:$0xff]
  %v319 = vld [vmem:[%s3 + $0x120] sm:$0xff]
  %v320 = vld [vmem:[%s3 + $0x128] sm:$0xff]
  %v321 = vld [vmem:[%s3 + $0x130] sm:$0xff]
  %v322 = vld [vmem:[%s3 + $0x138] sm:$0xff]
  %v323 = vld [vmem:[%s3 + $0x140] sm:$0xff]
  %v324 = vld [vmem:[%s3 + $0x148] sm:$0xff]
  %v325 = vld [vmem:[%s3 + $0x150] sm:$0xff]
  %v326 = vld [vmem:[%s3 + $0x158] sm:$0xff]
  %v327 = vld [vmem:[%s3 + $0x160] sm:$0xff]
  %v328 = vld [vmem:[%s3 + $0x168] sm:$0xff]
  %v329 = vld [vmem:[%s3 + $0x170] sm:$0xff]
  %v330 = vld [vmem:[%s3 + $0x178] sm:$0xff]
  %v331 = vld [vmem:[%s3 + $0x180] sm:$0xff]
  %v332 = vld [vmem:[%s3 + $0x188] sm:$0xff]
  %v333 = vld [vmem:[%s3 + $0x190] sm:$0xff]
  %v334 = vld [vmem:[%s3 + $0x198] sm:$0xff]
  %v335 = vld [vmem:[%s3 + $0x1a0] sm:$0xff]
  %v336 = vld [vmem:[%s3 + $0x1a8] sm:$0xff]
  %v337 = vld [vmem:[%s3 + $0x1b0] sm:$0xff]
  %v338 = vld [vmem:[%s3 + $0x1b8] sm:$0xff]
  %v339 = vld [vmem:[%s3 + $0x1c0] sm:$0xff]
  %v340 = vld [vmem:[%s3 + $0x1c8] sm:$0xff]
  %v341 = vld [vmem:[%s3 + $0x1d0] sm:$0xff]
  %v342 = vld [vmem:[%s3 + $0x1d8] sm:$0xff]
  %v343 = vld [vmem:[%s3 + $0x1e0] sm:$0xff]
  %v344 = vld [vmem:[%s3 + $0x1e8] sm:$0xff]
  %v345 = vld [vmem:[%s3 + $0x1f0] sm:$0xff]
  %v346 = vld [vmem:[%s3 + $0x1f8] sm:$0xff]
  %347 = vmatprep.subr.mxu0 %v284
  %348 = vmatpush1.msra.mxu0 %v283
  %349 = vmatprep.subr.mxu0 %v288
  %350 = vmatpush1.msra.mxu0 %v287
  %351 = vmatprep.subr.mxu0 %v292
  %352 = vmatpush1.msra.mxu0 %v291
  %353 = vmatprep.subr.mxu0 %v296
  %354 = vmatpush1.msra.mxu0 %v295
  %355 = vmatprep.subr.mxu0 %v300
  %356 = vmatpush1.msra.mxu0 %v299
  %357 = vmatprep.subr.mxu0 %v304
  %358 = vmatpush1.msra.mxu0 %v303
  %359 = vmatprep.subr.mxu0 %v308
  %360 = vmatpush1.msra.mxu0 %v307
  %361 = vmatprep.subr.mxu0 %v312
  %362 = vmatpush1.msra.mxu0 %v311
  %363 = vmatprep.subr.mxu0 %v316
  %364 = vmatpush1.msra.mxu0 %v315
  %365 = vmatprep.subr.mxu0 %v320
  %366 = vmatpush1.msra.mxu0 %v319
  %367 = vmatprep.subr.mxu0 %v324
  %368 = vmatpush1.msra.mxu0 %v323
  %369 = vmatprep.subr.mxu0 %v328
  %370 = vmatpush1.msra.mxu0 %v327
  %371 = vmatprep.subr.mxu0 %v332
  %372 = vmatpush1.msra.mxu0 %v331
  %373 = vmatprep.subr.mxu0 %v336
  %374 = vmatpush1.msra.mxu0 %v335
  %375 = vmatprep.subr.mxu0 %v340
  %376 = vmatpush1.msra.mxu0 %v339
  %377 = vmatprep.subr.mxu0 %v344
  %378 = vmatpush1.msra.mxu0 %v343
  %379 = vmatprep.subr.mxu0 0.0
  %380 = vmatpush1.msra.mxu0 0.0
  %381 = vmatprep.subr.mxu0 0.0
  %382 = vmatpush1.msra.mxu0 0.0
  %383 = vmatprep.subr.mxu0 0.0
  %384 = vmatpush1.msra.mxu0 0.0
  %385 = vmatprep.subr.mxu0 0.0
  %386 = vmatpush1.msra.mxu0 0.0
  %387 = vmatprep.subr.mxu0 0.0
  %388 = vmatpush1.msra.mxu0 0.0
  %389 = vmatprep.subr.mxu0 0.0
  %390 = vmatpush1.msra.mxu0 0.0
  %391 = vmatprep.subr.mxu0 0.0
  %392 = vmatpush1.msra.mxu0 0.0
  %393 = vmatprep.subr.mxu0 0.0
  %394 = vmatpush1.msra.mxu0 0.0
  %395 = vmatprep.subr.mxu0 0.0
  %396 = vmatpush1.msra.mxu0 0.0
  %397 = vmatprep.subr.mxu0 0.0
  %398 = vmatpush1.msra.mxu0 0.0
  %399 = vmatprep.subr.mxu0 0.0
  %400 = vmatpush1.msra.mxu0 0.0
  %401 = vmatprep.subr.mxu0 0.0
  %402 = vmatpush1.msra.mxu0 0.0
  %403 = vmatprep.subr.mxu0 0.0
  %404 = vmatpush1.msra.mxu0 0.0
  %405 = vmatprep.subr.mxu0 0.0
  %406 = vmatpush1.msra.mxu0 0.0
  %407 = vmatprep.subr.mxu0 0.0
  %408 = vmatpush1.msra.mxu0 0.0
  %409 = vmatprep.subr.mxu0 0.0
  %410 = vmatpush1.msra.mxu0 0.0
  %411 = vmatprep.mubr.f32.mxu0 0.0
  %412 = vmatmul.mubr.f32.gmra.mrb[0].mxu0 %v282
  %v413 = vpop.f32.mrb[0].mxu0
  %v414 = vadd.f32 0.0, %v413
  %v415 = vpop.f32.mrb[0].mxu0
  %v416 = vadd.f32 0.0, %v415
  %417 = vdwg.mxu0
  %418 = vmatprep.subr.mxu0 %v286
  %419 = vmatpush1.msra.mxu0 %v285
  %420 = vmatprep.subr.mxu0 %v290
  %421 = vmatpush1.msra.mxu0 %v289
  %422 = vmatprep.subr.mxu0 %v294
  %423 = vmatpush1.msra.mxu0 %v293
  %424 = vmatprep.subr.mxu0 %v298
  %425 = vmatpush1.msra.mxu0 %v297
  %426 = vmatprep.subr.mxu0 %v302
  %427 = vmatpush1.msra.mxu0 %v301
  %428 = vmatprep.subr.mxu0 %v306
  %429 = vmatpush1.msra.mxu0 %v305
  %430 = vmatprep.subr.mxu0 %v310
  %431 = vmatpush1.msra.mxu0 %v309
  %432 = vmatprep.subr.mxu0 %v314
  %433 = vmatpush1.msra.mxu0 %v313
  %434 = vmatprep.subr.mxu0 %v318
  %435 = vmatpush1.msra.mxu0 %v317
  %436 = vmatprep.subr.mxu0 %v322
  %437 = vmatpush1.msra.mxu0 %v321
  %438 = vmatprep.subr.mxu0 %v326
  %439 = vmatpush1.msra.mxu0 %v325
  %440 = vmatprep.subr.mxu0 %v330
  %441 = vmatpush1.msra.mxu0 %v329
  %442 = vmatprep.subr.mxu0 %v334
  %443 = vmatpush1.msra.mxu0 %v333
  %444 = vmatprep.subr.mxu0 %v338
  %445 = vmatpush1.msra.mxu0 %v337
  %446 = vmatprep.subr.mxu0 %v342
  %447 = vmatpush1.msra.mxu0 %v341
  %448 = vmatprep.subr.mxu0 %v346
  %449 = vmatpush1.msra.mxu0 %v345
  %450 = vmatprep.subr.mxu0 0.0
  %451 = vmatpush1.msra.mxu0 0.0
  %452 = vmatprep.subr.mxu0 0.0
  %453 = vmatpush1.msra.mxu0 0.0
  %454 = vmatprep.subr.mxu0 0.0
  %455 = vmatpush1.msra.mxu0 0.0
  %456 = vmatprep.subr.mxu0 0.0
  %457 = vmatpush1.msra.mxu0 0.0
  %458 = vmatprep.subr.mxu0 0.0
  %459 = vmatpush1.msra.mxu0 0.0
  %460 = vmatprep.subr.mxu0 0.0
  %461 = vmatpush1.msra.mxu0 0.0
  %462 = vmatprep.subr.mxu0 0.0
  %463 = vmatpush1.msra.mxu0 0.0
  %464 = vmatprep.subr.mxu0 0.0
  %465 = vmatpush1.msra.mxu0 0.0
  %466 = vmatprep.subr.mxu0 0.0
  %467 = vmatpush1.msra.mxu0 0.0
  %468 = vmatprep.subr.mxu0 0.0
  %469 = vmatpush1.msra.mxu0 0.0
  %470 = vmatprep.subr.mxu0 0.0
  %471 = vmatpush1.msra.mxu0 0.0
  %472 = vmatprep.subr.mxu0 0.0
  %473 = vmatpush1.msra.mxu0 0.0
  %474 = vmatprep.subr.mxu0 0.0
  %475 = vmatpush1.msra.mxu0 0.0
  %476 = vmatprep.subr.mxu0 0.0
  %477 = vmatpush1.msra.mxu0 0.0
  %478 = vmatprep.subr.mxu0 0.0
  %479 = vmatpush1.msra.mxu0 0.0
  %480 = vmatprep.subr.mxu0 0.0
  %481 = vmatpush1.msra.mxu0 0.0
  %482 = vmatprep.mubr.f32.mxu0 0.0
  %483 = vmatmul.mubr.f32.gmra.mrb[0].mxu0 %v282
  %v484 = vpop.f32.mrb[0].mxu0
  %v485 = vadd.f32 0.0, %v484
  %v486 = vpop.f32.mrb[0].mxu0
  %v487 = vadd.f32 0.0, %v486
  %488 = vdwg.mxu0
  %v489 = vadd.f32 %v278, %v414
  %v490 = vadd.f32 %v279, %v416
  %v491 = vadd.f32 %v280, %v485
  %v492 = vadd.f32 %v281, %v487
  %v493 = vld [vmem:[#allocation3] sm:$0xff]
  %v494 = vxor.u32 %v489, 2147483648
  %v495 = vmul.f32 %v494, 1.442695
  %v496 = vpow.pop %v495
  %v497 = vadd.f32 %v496, 1.0
  %v498 = vrcp.pop %v497
  %v499 = vmul.f32 1.0, %v498
  %v500 = vxor.u32 %v490, 2147483648
  %v501 = vmul.f32 %v500, 1.442695
  %v502 = vpow.pop %v501
  %v503 = vadd.f32 %v502, 1.0
  %v504 = vrcp.pop %v503
  %v505 = vmul.f32 1.0, %v504
  %v506 = vtanh.pop %v491
  %v507 = vxor.u32 %v492, 2147483648
  %v508 = vmul.f32 %v507, 1.442695
  %v509 = vpow.pop %v508
  %v510 = vadd.f32 %v509, 1.0
  %v511 = vrcp.pop %v510
  %v512 = vmul.f32 1.0, %v511
  %v513 = vmul.f32 %v505, %v493
  %v514 = vmul.f32 %v499, %v506
  %v515 = vadd.f32 %v513, %v514
  %v516 = vtanh.pop %v515
  %v517 = vmul.f32 %v512, %v516
  %518 = vst [vmem:[#allocation2] sm:$0xff] %v517
  %519 = vst [vmem:[#allocation3] sm:$0xff] %v515
  %s520 = scalar_lea.vmem %s1, 64
  %v521 = vld [vmem:[%s520] sm:$0xff]
  %v522 = vld [vmem:[%s520 + $0x8] sm:$0xff]
  %v523 = vld [vmem:[%s520 + $0x10] sm:$0xff]
  %v524 = vld [vmem:[%s520 + $0x18] sm:$0xff]
  %v525 = vld [vmem:[#allocation2] sm:$0xff]
  %v526 = vld [vmem:[%s3] sm:$0xff]
  %v527 = vld [vmem:[%s3 + $0x8] sm:$0xff]
  %v528 = vld [vmem:[%s3 + $0x10] sm:$0xff]
  %v529 = vld [vmem:[%s3 + $0x18] sm:$0xff]
  %v530 = vld [vmem:[%s3 + $0x20] sm:$0xff]
  %v531 = vld [vmem:[%s3 + $0x28] sm:$0xff]
  %v532 = vld [vmem:[%s3 + $0x30] sm:$0xff]
  %v533 = vld [vmem:[%s3 + $0x38] sm:$0xff]
  %v534 = vld [vmem:[%s3 + $0x40] sm:$0xff]
  %v535 = vld [vmem:[%s3 + $0x48] sm:$0xff]
  %v536 = vld [vmem:[%s3 + $0x50] sm:$0xff]
  %v537 = vld [vmem:[%s3 + $0x58] sm:$0xff]
  %v538 = vld [vmem:[%s3 + $0x60] sm:$0xff]
  %v539 = vld [vmem:[%s3 + $0x68] sm:$0xff]
  %v540 = vld [vmem:[%s3 + $0x70] sm:$0xff]
  %v541 = vld [vmem:[%s3 + $0x78] sm:$0xff]
  %v542 = vld [vmem:[%s3 + $0x80] sm:$0xff]
  %v543 = vld [vmem:[%s3 + $0x88] sm:$0xff]
  %v544 = vld [vmem:[%s3 + $0x90] sm:$0xff]
  %v545 = vld [vmem:[%s3 + $0x98] sm:$0xff]
  %v546 = vld [vmem:[%s3 + $0xa0] sm:$0xff]
  %v547 = vld [vmem:[%s3 + $0xa8] sm:$0xff]
  %v548 = vld [vmem:[%s3 + $0xb0] sm:$0xff]
  %v549 = vld [vmem:[%s3 + $0xb8] sm:$0xff]
  %v550 = vld [vmem:[%s3 + $0xc0] sm:$0xff]
  %v551 = vld [vmem:[%s3 + $0xc8] sm:$0xff]
  %v552 = vld [vmem:[%s3 + $0xd0] sm:$0xff]
  %v553 = vld [vmem:[%s3 + $0xd8] sm:$0xff]
  %v554 = vld [vmem:[%s3 + $0xe0] sm:$0xff]
  %v555 = vld [vmem:[%s3 + $0xe8] sm:$0xff]
  %v556 = vld [vmem:[%s3 + $0xf0] sm:$0xff]
  %v557 = vld [vmem:[%s3 + $0xf8] sm:$0xff]
  %v558 = vld [vmem:[%s3 + $0x100] sm:$0xff]
  %v559 = vld [vmem:[%s3 + $0x108] sm:$0xff]
  %v560 = vld [vmem:[%s3 + $0x110] sm:$0xff]
  %v561 = vld [vmem:[%s3 + $0x118] sm:$0xff]
  %v562 = vld [vmem:[%s3 + $0x120] sm:$0xff]
  %v563 = vld [vmem:[%s3 + $0x128] sm:$0xff]
  %v564 = vld [vmem:[%s3 + $0x130] sm:$0xff]
  %v565 = vld [vmem:[%s3 + $0x138] sm:$0xff]
  %v566 = vld [vmem:[%s3 + $0x140] sm:$0xff]
  %v567 = vld [vmem:[%s3 + $0x148] sm:$0xff]
  %v568 = vld [vmem:[%s3 + $0x150] sm:$0xff]
  %v569 = vld [vmem:[%s3 + $0x158] sm:$0xff]
  %v570 = vld [vmem:[%s3 + $0x160] sm:$0xff]
  %v571 = vld [vmem:[%s3 + $0x168] sm:$0xff]
  %v572 = vld [vmem:[%s3 + $0x170] sm:$0xff]
  %v573 = vld [vmem:[%s3 + $0x178] sm:$0xff]
  %v574 = vld [vmem:[%s3 + $0x180] sm:$0xff]
  %v575 = vld [vmem:[%s3 + $0x188] sm:$0xff]
  %v576 = vld [vmem:[%s3 + $0x190] sm:$0xff]
  %v577 = vld [vmem:[%s3 + $0x198] sm:$0xff]
  %v578 = vld [vmem:[%s3 + $0x1a0] sm:$0xff]
  %v579 = vld [vmem:[%s3 + $0x1a8] sm:$0xff]
  %v580 = vld [vmem:[%s3 + $0x1b0] sm:$0xff]
  %v581 = vld [vmem:[%s3 + $0x1b8] sm:$0xff]
  %v582 = vld [vmem:[%s3 + $0x1c0] sm:$0xff]
  %v583 = vld [vmem:[%s3 + $0x1c8] sm:$0xff]
  %v584 = vld [vmem:[%s3 + $0x1d0] sm:$0xff]
  %v585 = vld [vmem:[%s3 + $0x1d8] sm:$0xff]
  %v586 = vld [vmem:[%s3 + $0x1e0] sm:$0xff]
  %v587 = vld [vmem:[%s3 + $0x1e8] sm:$0xff]
  %v588 = vld [vmem:[%s3 + $0x1f0] sm:$0xff]
  %v589 = vld [vmem:[%s3 + $0x1f8] sm:$0xff]
  %590 = vmatprep.subr.mxu0 %v527
  %591 = vmatpush1.msra.mxu0 %v526
  %592 = vmatprep.subr.mxu0 %v531
  %593 = vmatpush1.msra.mxu0 %v530
  %594 = vmatprep.subr.mxu0 %v535
  %595 = vmatpush1.msra.mxu0 %v534
  %596 = vmatprep.subr.mxu0 %v539
  %597 = vmatpush1.msra.mxu0 %v538
  %598 = vmatprep.subr.mxu0 %v543
  %599 = vmatpush1.msra.mxu0 %v542
  %600 = vmatprep.subr.mxu0 %v547
  %601 = vmatpush1.msra.mxu0 %v546
  %602 = vmatprep.subr.mxu0 %v551
  %603 = vmatpush1.msra.mxu0 %v550
  %604 = vmatprep.subr.mxu0 %v555
  %605 = vmatpush1.msra.mxu0 %v554
  %606 = vmatprep.subr.mxu0 %v559
  %607 = vmatpush1.msra.mxu0 %v558
  %608 = vmatprep.subr.mxu0 %v563
  %609 = vmatpush1.msra.mxu0 %v562
  %610 = vmatprep.subr.mxu0 %v567
  %611 = vmatpush1.msra.mxu0 %v566
  %612 = vmatprep.subr.mxu0 %v571
  %613 = vmatpush1.msra.mxu0 %v570
  %614 = vmatprep.subr.mxu0 %v575
  %615 = vmatpush1.msra.mxu0 %v574
  %616 = vmatprep.subr.mxu0 %v579
  %617 = vmatpush1.msra.mxu0 %v578
  %618 = vmatprep.subr.mxu0 %v583
  %619 = vmatpush1.msra.mxu0 %v582
  %620 = vmatprep.subr.mxu0 %v587
  %621 = vmatpush1.msra.mxu0 %v586
  %622 = vmatprep.subr.mxu0 0.0
  %623 = vmatpush1.msra.mxu0 0.0
  %624 = vmatprep.subr.mxu0 0.0
  %625 = vmatpush1.msra.mxu0 0.0
  %626 = vmatprep.subr.mxu0 0.0
  %627 = vmatpush1.msra.mxu0 0.0
  %628 = vmatprep.subr.mxu0 0.0
  %629 = vmatpush1.msra.mxu0 0.0
  %630 = vmatprep.subr.mxu0 0.0
  %631 = vmatpush1.msra.mxu0 0.0
  %632 = vmatprep.subr.mxu0 0.0
  %633 = vmatpush1.msra.mxu0 0.0
  %634 = vmatprep.subr.mxu0 0.0
  %635 = vmatpush1.msra.mxu0 0.0
  %636 = vmatprep.subr.mxu0 0.0
  %637 = vmatpush1.msra.mxu0 0.0
  %638 = vmatprep.subr.mxu0 0.0
  %639 = vmatpush1.msra.mxu0 0.0
  %640 = vmatprep.subr.mxu0 0.0
  %641 = vmatpush1.msra.mxu0 0.0
  %642 = vmatprep.subr.mxu0 0.0
  %643 = vmatpush1.msra.mxu0 0.0
  %644 = vmatprep.subr.mxu0 0.0
  %645 = vmatpush1.msra.mxu0 0.0
  %646 = vmatprep.subr.mxu0 0.0
  %647 = vmatpush1.msra.mxu0 0.0
  %648 = vmatprep.subr.mxu0 0.0
  %649 = vmatpush1.msra.mxu0 0.0
  %650 = vmatprep.subr.mxu0 0.0
  %651 = vmatpush1.msra.mxu0 0.0
  %652 = vmatprep.subr.mxu0 0.0
  %653 = vmatpush1.msra.mxu0 0.0
  %654 = vmatprep.mubr.f32.mxu0 0.0
  %655 = vmatmul.mubr.f32.gmra.mrb[0].mxu0 %v525
  %v656 = vpop.f32.mrb[0].mxu0
  %v657 = vadd.f32 0.0, %v656
  %v658 = vpop.f32.mrb[0].mxu0
  %v659 = vadd.f32 0.0, %v658
  %660 = vdwg.mxu0
  %661 = vmatprep.subr.mxu0 %v529
  %662 = vmatpush1.msra.mxu0 %v528
  %663 = vmatprep.subr.mxu0 %v533
  %664 = vmatpush1.msra.mxu0 %v532
  %665 = vmatprep.subr.mxu0 %v537
  %666 = vmatpush1.msra.mxu0 %v536
  %667 = vmatprep.subr.mxu0 %v541
  %668 = vmatpush1.msra.mxu0 %v540
  %669 = vmatprep.subr.mxu0 %v545
  %670 = vmatpush1.msra.mxu0 %v544
  %671 = vmatprep.subr.mxu0 %v549
  %672 = vmatpush1.msra.mxu0 %v548
  %673 = vmatprep.subr.mxu0 %v553
  %674 = vmatpush1.msra.mxu0 %v552
  %675 = vmatprep.subr.mxu0 %v557
  %676 = vmatpush1.msra.mxu0 %v556
  %677 = vmatprep.subr.mxu0 %v561
  %678 = vmatpush1.msra.mxu0 %v560
  %679 = vmatprep.subr.mxu0 %v565
  %680 = vmatpush1.msra.mxu0 %v564
  %681 = vmatprep.subr.mxu0 %v569
  %682 = vmatpush1.msra.mxu0 %v568
  %683 = vmatprep.subr.mxu0 %v573
  %684 = vmatpush1.msra.mxu0 %v572
  %685 = vmatprep.subr.mxu0 %v577
  %686 = vmatpush1.msra.mxu0 %v576
  %687 = vmatprep.subr.mxu0 %v581
  %688 = vmatpush1.msra.mxu0 %v580
  %689 = vmatprep.subr.mxu0 %v585
  %690 = vmatpush1.msra.mxu0 %v584
  %691 = vmatprep.subr.mxu0 %v589
  %692 = vmatpush1.msra.mxu0 %v588
  %693 = vmatprep.subr.mxu0 0.0
  %694 = vmatpush1.msra.mxu0 0.0
  %695 = vmatprep.subr.mxu0 0.0
  %696 = vmatpush1.msra.mxu0 0.0
  %697 = vmatprep.subr.mxu0 0.0
  %698 = vmatpush1.msra.mxu0 0.0
  %699 = vmatprep.subr.mxu0 0.0
  %700 = vmatpush1.msra.mxu0 0.0
  %701 = vmatprep.subr.mxu0 0.0
  %702 = vmatpush1.msra.mxu0 0.0
  %703 = vmatprep.subr.mxu0 0.0
  %704 = vmatpush1.msra.mxu0 0.0
  %705 = vmatprep.subr.mxu0 0.0
  %706 = vmatpush1.msra.mxu0 0.0
  %707 = vmatprep.subr.mxu0 0.0
  %708 = vmatpush1.msra.mxu0 0.0
  %709 = vmatprep.subr.mxu0 0.0
  %710 = vmatpush1.msra.mxu0 0.0
  %711 = vmatprep.subr.mxu0 0.0
  %712 = vmatpush1.msra.mxu0 0.0
  %713 = vmatprep.subr.mxu0 0.0
  %714 = vmatpush1.msra.mxu0 0.0
  %715 = vmatprep.subr.mxu0 0.0
  %716 = vmatpush1.msra.mxu0 0.0
  %717 = vmatprep.subr.mxu0 0.0
  %718 = vmatpush1.msra.mxu0 0.0
  %719 = vmatprep.subr.mxu0 0.0
  %720 = vmatpush1.msra.mxu0 0.0
  %721 = vmatprep.subr.mxu0 0.0
  %722 = vmatpush1.msra.mxu0 0.0
  %723 = vmatprep.subr.mxu0 0.0
  %724 = vmatpush1.msra.mxu0 0.0
  %725 = vmatprep.mubr.f32.mxu0 0.0
  %726 = vmatmul.mubr.f32.gmra.mrb[0].mxu0 %v525
  %v727 = vpop.f32.mrb[0].mxu0
  %v728 = vadd.f32 0.0, %v727
  %v729 = vpop.f32.mrb[0].mxu0
  %v730 = vadd.f32 0.0, %v729
  %731 = vdwg.mxu0
  %v732 = vadd.f32 %v521, %v657
  %v733 = vadd.f32 %v522, %v659
  %v734 = vadd.f32 %v523, %v728
  %v735 = vadd.f32 %v524, %v730
  %v736 = vld [vmem:[#allocation3] sm:$0xff]
  %v737 = vxor.u32 %v732, 2147483648
  %v738 = vmul.f32 %v737, 1.442695
  %v739 = vpow.pop %v738
  %v740 = vadd.f32 %v739, 1.0
  %v741 = vrcp.pop %v740
  %v742 = vmul.f32 1.0, %v741
  %v743 = vxor.u32 %v733, 2147483648
  %v744 = vmul.f32 %v743, 1.442695
  %v745 = vpow.pop %v744
  %v746 = vadd.f32 %v745, 1.0
  %v747 = vrcp.pop %v746
  %v748 = vmul.f32 1.0, %v747
  %v749 = vtanh.pop %v734
  %v750 = vxor.u32 %v735, 2147483648
  %v751 = vmul.f32 %v750, 1.442695
  %v752 = vpow.pop %v751
  %v753 = vadd.f32 %v752, 1.0
  %v754 = vrcp.pop %v753
  %v755 = vmul.f32 1.0, %v754
  %v756 = vmul.f32 %v748, %v736
  %v757 = vmul.f32 %v742, %v749
  %v758 = vadd.f32 %v756, %v757
  %v759 = vtanh.pop %v758
  %v760 = vmul.f32 %v755, %v759
  %761 = vst [vmem:[#allocation2] sm:$0xff] %v760
  %762 = vst [vmem:[#allocation3] sm:$0xff] %v758
  %s763 = scalar_lea.vmem %s1, 96
  %v764 = vld [vmem:[%s763] sm:$0xff]
  %v765 = vld [vmem:[%s763 + $0x8] sm:$0xff]
  %v766 = vld [vmem:[%s763 + $0x10] sm:$0xff]
  %v767 = vld [vmem:[%s763 + $0x18] sm:$0xff]
  %v768 = vld [vmem:[#allocation2] sm:$0xff]
  %v769 = vld [vmem:[%s3] sm:$0xff]
  %v770 = vld [vmem:[%s3 + $0x8] sm:$0xff]
  %v771 = vld [vmem:[%s3 + $0x10] sm:$0xff]
  %v772 = vld [vmem:[%s3 + $0x18] sm:$0xff]
  %v773 = vld [vmem:[%s3 + $0x20] sm:$0xff]
  %v774 = vld [vmem:[%s3 + $0x28] sm:$0xff]
  %v775 = vld [vmem:[%s3 + $0x30] sm:$0xff]
  %v776 = vld [vmem:[%s3 + $0x38] sm:$0xff]
  %v777 = vld [vmem:[%s3 + $0x40] sm:$0xff]
  %v778 = vld [vmem:[%s3 + $0x48] sm:$0xff]
  %v779 = vld [vmem:[%s3 + $0x50] sm:$0xff]
  %v780 = vld [vmem:[%s3 + $0x58] sm:$0xff]
  %v781 = vld [vmem:[%s3 + $0x60] sm:$0xff]
  %v782 = vld [vmem:[%s3 + $0x68] sm:$0xff]
  %v783 = vld [vmem:[%s3 + $0x70] sm:$0xff]
  %v784 = vld [vmem:[%s3 + $0x78] sm:$0xff]
  %v785 = vld [vmem:[%s3 + $0x80] sm:$0xff]
  %v786 = vld [vmem:[%s3 + $0x88] sm:$0xff]
  %v787 = vld [vmem:[%s3 + $0x90] sm:$0xff]
  %v788 = vld [vmem:[%s3 + $0x98] sm:$0xff]
  %v789 = vld [vmem:[%s3 + $0xa0] sm:$0xff]
  %v790 = vld [vmem:[%s3 + $0xa8] sm:$0xff]
  %v791 = vld [vmem:[%s3 + $0xb0] sm:$0xff]
  %v792 = vld [vmem:[%s3 + $0xb8] sm:$0xff]
  %v793 = vld [vmem:[%s3 + $0xc0] sm:$0xff]
  %v794 = vld [vmem:[%s3 + $0xc8] sm:$0xff]
  %v795 = vld [vmem:[%s3 + $0xd0] sm:$0xff]
  %v796 = vld [vmem:[%s3 + $0xd8] sm:$0xff]
  %v797 = vld [vmem:[%s3 + $0xe0] sm:$0xff]
  %v798 = vld [vmem:[%s3 + $0xe8] sm:$0xff]
  %v799 = vld [vmem:[%s3 + $0xf0] sm:$0xff]
  %v800 = vld [vmem:[%s3 + $0xf8] sm:$0xff]
  %v801 = vld [vmem:[%s3 + $0x100] sm:$0xff]
  %v802 = vld [vmem:[%s3 + $0x108] sm:$0xff]
  %v803 = vld [vmem:[%s3 + $0x110] sm:$0xff]
  %v804 = vld [vmem:[%s3 + $0x118] sm:$0xff]
  %v805 = vld [vmem:[%s3 + $0x120] sm:$0xff]
  %v806 = vld [vmem:[%s3 + $0x128] sm:$0xff]
  %v807 = vld [vmem:[%s3 + $0x130] sm:$0xff]
  %v808 = vld [vmem:[%s3 + $0x138] sm:$0xff]
  %v809 = vld [vmem:[%s3 + $0x140] sm:$0xff]
  %v810 = vld [vmem:[%s3 + $0x148] sm:$0xff]
  %v811 = vld [vmem:[%s3 + $0x150] sm:$0xff]
  %v812 = vld [vmem:[%s3 + $0x158] sm:$0xff]
  %v813 = vld [vmem:[%s3 + $0x160] sm:$0xff]
  %v814 = vld [vmem:[%s3 + $0x168] sm:$0xff]
  %v815 = vld [vmem:[%s3 + $0x170] sm:$0xff]
  %v816 = vld [vmem:[%s3 + $0x178] sm:$0xff]
  %v817 = vld [vmem:[%s3 + $0x180] sm:$0xff]
  %v818 = vld [vmem:[%s3 + $0x188] sm:$0xff]
  %v819 = vld [vmem:[%s3 + $0x190] sm:$0xff]
  %v820 = vld [vmem:[%s3 + $0x198] sm:$0xff]
  %v821 = vld [vmem:[%s3 + $0x1a0] sm:$0xff]
  %v822 = vld [vmem:[%s3 + $0x1a8] sm:$0xff]
  %v823 = vld [vmem:[%s3 + $0x1b0] sm:$0xff]
  %v824 = vld [vmem:[%s3 + $0x1b8] sm:$0xff]
  %v825 = vld [vmem:[%s3 + $0x1c0] sm:$0xff]
  %v826 = vld [vmem:[%s3 + $0x1c8] sm:$0xff]
  %v827 = vld [vmem:[%s3 + $0x1d0] sm:$0xff]
  %v828 = vld [vmem:[%s3 + $0x1d8] sm:$0xff]
  %v829 = vld [vmem:[%s3 + $0x1e0] sm:$0xff]
  %v830 = vld [vmem:[%s3 + $0x1e8] sm:$0xff]
  %v831 = vld [vmem:[%s3 + $0x1f0] sm:$0xff]
  %v832 = vld [vmem:[%s3 + $0x1f8] sm:$0xff]
  %833 = vmatprep.subr.mxu0 %v770
  %834 = vmatpush1.msra.mxu0 %v769
  %835 = vmatprep.subr.mxu0 %v774
  %836 = vmatpush1.msra.mxu0 %v773
  %837 = vmatprep.subr.mxu0 %v778
  %838 = vmatpush1.msra.mxu0 %v777
  %839 = vmatprep.subr.mxu0 %v782
  %840 = vmatpush1.msra.mxu0 %v781
  %841 = vmatprep.subr.mxu0 %v786
  %842 = vmatpush1.msra.mxu0 %v785
  %843 = vmatprep.subr.mxu0 %v790
  %844 = vmatpush1.msra.mxu0 %v789
  %845 = vmatprep.subr.mxu0 %v794
  %846 = vmatpush1.msra.mxu0 %v793
  %847 = vmatprep.subr.mxu0 %v798
  %848 = vmatpush1.msra.mxu0 %v797
  %849 = vmatprep.subr.mxu0 %v802
  %850 = vmatpush1.msra.mxu0 %v801
  %851 = vmatprep.subr.mxu0 %v806
  %852 = vmatpush1.msra.mxu0 %v805
  %853 = vmatprep.subr.mxu0 %v810
  %854 = vmatpush1.msra.mxu0 %v809
  %855 = vmatprep.subr.mxu0 %v814
  %856 = vmatpush1.msra.mxu0 %v813
  %857 = vmatprep.subr.mxu0 %v818
  %858 = vmatpush1.msra.mxu0 %v817
  %859 = vmatprep.subr.mxu0 %v822
  %860 = vmatpush1.msra.mxu0 %v821
  %861 = vmatprep.subr.mxu0 %v826
  %862 = vmatpush1.msra.mxu0 %v825
  %863 = vmatprep.subr.mxu0 %v830
  %864 = vmatpush1.msra.mxu0 %v829
  %865 = vmatprep.subr.mxu0 0.0
  %866 = vmatpush1.msra.mxu0 0.0
  %867 = vmatprep.subr.mxu0 0.0
  %868 = vmatpush1.msra.mxu0 0.0
  %869 = vmatprep.subr.mxu0 0.0
  %870 = vmatpush1.msra.mxu0 0.0
  %871 = vmatprep.subr.mxu0 0.0
  %872 = vmatpush1.msra.mxu0 0.0
  %873 = vmatprep.subr.mxu0 0.0
  %874 = vmatpush1.msra.mxu0 0.0
  %875 = vmatprep.subr.mxu0 0.0
  %876 = vmatpush1.msra.mxu0 0.0
  %877 = vmatprep.subr.mxu0 0.0
  %878 = vmatpush1.msra.mxu0 0.0
  %879 = vmatprep.subr.mxu0 0.0
  %880 = vmatpush1.msra.mxu0 0.0
  %881 = vmatprep.subr.mxu0 0.0
  %882 = vmatpush1.msra.mxu0 0.0
  %883 = vmatprep.subr.mxu0 0.0
  %884 = vmatpush1.msra.mxu0 0.0
  %885 = vmatprep.subr.mxu0 0.0
  %886 = vmatpush1.msra.mxu0 0.0
  %887 = vmatprep.subr.mxu0 0.0
  %888 = vmatpush1.msra.mxu0 0.0
  %889 = vmatprep.subr.mxu0 0.0
  %890 = vmatpush1.msra.mxu0 0.0
  %891 = vmatprep.subr.mxu0 0.0
  %892 = vmatpush1.msra.mxu0 0.0
  %893 = vmatprep.subr.mxu0 0.0
  %894 = vmatpush1.msra.mxu0 0.0
  %895 = vmatprep.subr.mxu0 0.0
  %896 = vmatpush1.msra.mxu0 0.0
  %897 = vmatprep.mubr.f32.mxu0 0.0
  %898 = vmatmul.mubr.f32.gmra.mrb[0].mxu0 %v768
  %v899 = vpop.f32.mrb[0].mxu0
  %v900 = vadd.f32 0.0, %v899
  %v901 = vpop.f32.mrb[0].mxu0
  %v902 = vadd.f32 0.0, %v901
  %903 = vdwg.mxu0
  %904 = vmatprep.subr.mxu0 %v772
  %905 = vmatpush1.msra.mxu0 %v771
  %906 = vmatprep.subr.mxu0 %v776
  %907 = vmatpush1.msra.mxu0 %v775
  %908 = vmatprep.subr.mxu0 %v780
  %909 = vmatpush1.msra.mxu0 %v779
  %910 = vmatprep.subr.mxu0 %v784
  %911 = vmatpush1.msra.mxu0 %v783
  %912 = vmatprep.subr.mxu0 %v788
  %913 = vmatpush1.msra.mxu0 %v787
  %914 = vmatprep.subr.mxu0 %v792
  %915 = vmatpush1.msra.mxu0 %v791
  %916 = vmatprep.subr.mxu0 %v796
  %917 = vmatpush1.msra.mxu0 %v795
  %918 = vmatprep.subr.mxu0 %v800
  %919 = vmatpush1.msra.mxu0 %v799
  %920 = vmatprep.subr.mxu0 %v804
  %921 = vmatpush1.msra.mxu0 %v803
  %922 = vmatprep.subr.mxu0 %v808
  %923 = vmatpush1.msra.mxu0 %v807
  %924 = vmatprep.subr.mxu0 %v812
  %925 = vmatpush1.msra.mxu0 %v811
  %926 = vmatprep.subr.mxu0 %v816
  %927 = vmatpush1.msra.mxu0 %v815
  %928 = vmatprep.subr.mxu0 %v820
  %929 = vmatpush1.msra.mxu0 %v819
  %930 = vmatprep.subr.mxu0 %v824
  %931 = vmatpush1.msra.mxu0 %v823
  %932 = vmatprep.subr.mxu0 %v828
  %933 = vmatpush1.msra.mxu0 %v827
  %934 = vmatprep.subr.mxu0 %v832
  %935 = vmatpush1.msra.mxu0 %v831
  %936 = vmatprep.subr.mxu0 0.0
  %937 = vmatpush1.msra.mxu0 0.0
  %938 = vmatprep.subr.mxu0 0.0
  %939 = vmatpush1.msra.mxu0 0.0
  %940 = vmatprep.subr.mxu0 0.0
  %941 = vmatpush1.msra.mxu0 0.0
  %942 = vmatprep.subr.mxu0 0.0
  %943 = vmatpush1.msra.mxu0 0.0
  %944 = vmatprep.subr.mxu0 0.0
  %945 = vmatpush1.msra.mxu0 0.0
  %946 = vmatprep.subr.mxu0 0.0
  %947 = vmatpush1.msra.mxu0 0.0
  %948 = vmatprep.subr.mxu0 0.0
  %949 = vmatpush1.msra.mxu0 0.0
  %950 = vmatprep.subr.mxu0 0.0
  %951 = vmatpush1.msra.mxu0 0.0
  %952 = vmatprep.subr.mxu0 0.0
  %953 = vmatpush1.msra.mxu0 0.0
  %954 = vmatprep.subr.mxu0 0.0
  %955 = vmatpush1.msra.mxu0 0.0
  %956 = vmatprep.subr.mxu0 0.0
  %957 = vmatpush1.msra.mxu0 0.0
  %958 = vmatprep.subr.mxu0 0.0
  %959 = vmatpush1.msra.mxu0 0.0
  %960 = vmatprep.subr.mxu0 0.0
  %961 = vmatpush1.msra.mxu0 0.0
  %962 = vmatprep.subr.mxu0 0.0
  %963 = vmatpush1.msra.mxu0 0.0
  %964 = vmatprep.subr.mxu0 0.0
  %965 = vmatpush1.msra.mxu0 0.0
  %966 = vmatprep.subr.mxu0 0.0
  %967 = vmatpush1.msra.mxu0 0.0
  %968 = vmatprep.mubr.f32.mxu0 0.0
  %969 = vmatmul.mubr.f32.gmra.mrb[0].mxu0 %v768
  %v970 = vpop.f32.mrb[0].mxu0
  %v971 = vadd.f32 0.0, %v970
  %v972 = vpop.f32.mrb[0].mxu0
  %v973 = vadd.f32 0.0, %v972
  %974 = vdwg.mxu0
  %v975 = vadd.f32 %v764, %v900
  %v976 = vadd.f32 %v765, %v902
  %v977 = vadd.f32 %v766, %v971
  %v978 = vadd.f32 %v767, %v973
  %v979 = vld [vmem:[#allocation3] sm:$0xff]
  %v980 = vxor.u32 %v975, 2147483648
  %v981 = vmul.f32 %v980, 1.442695
  %v982 = vpow.pop %v981
  %v983 = vadd.f32 %v982, 1.0
  %v984 = vrcp.pop %v983
  %v985 = vmul.f32 1.0, %v984
  %v986 = vxor.u32 %v976, 2147483648
  %v987 = vmul.f32 %v986, 1.442695
  %v988 = vpow.pop %v987
  %v989 = vadd.f32 %v988, 1.0
  %v990 = vrcp.pop %v989
  %v991 = vmul.f32 1.0, %v990
  %v992 = vtanh.pop %v977
  %v993 = vxor.u32 %v978, 2147483648
  %v994 = vmul.f32 %v993, 1.442695
  %v995 = vpow.pop %v994
  %v996 = vadd.f32 %v995, 1.0
  %v997 = vrcp.pop %v996
  %v998 = vmul.f32 1.0, %v997
  %v999 = vmul.f32 %v991, %v979
  %v1000 = vmul.f32 %v985, %v992
  %v1001 = vadd.f32 %v999, %v1000
  %v1002 = vtanh.pop %v1001
  %v1003 = vmul.f32 %v998, %v1002
  %1004 = vst [vmem:[#allocation2] sm:$0xff] %v1003
  %1005 = vst [vmem:[#allocation3] sm:$0xff] %v1001
  %s1006 = scalar_lea.vmem %s1, 128
  %v1007 = vld [vmem:[%s1006] sm:$0xff]
  %v1008 = vld [vmem:[%s1006 + $0x8] sm:$0xff]
  %v1009 = vld [vmem:[%s1006 + $0x10] sm:$0xff]
  %v1010 = vld [vmem:[%s1006 + $0x18] sm:$0xff]
  %v1011 = vld [vmem:[#allocation2] sm:$0xff]
  %v1012 = vld [vmem:[%s3] sm:$0xff]
  %v1013 = vld [vmem:[%s3 + $0x8] sm:$0xff]
  %v1014 = vld [vmem:[%s3 + $0x10] sm:$0xff]
  %v1015 = vld [vmem:[%s3 + $0x18] sm:$0xff]
  %v1016 = vld [vmem:[%s3 + $0x20] sm:$0xff]
  %v1017 = vld [vmem:[%s3 + $0x28] sm:$0xff]
  %v1018 = vld [vmem:[%s3 + $0x30] sm:$0xff]
  %v1019 = vld [vmem:[%s3 + $0x38] sm:$0xff]
  %v1020 = vld [vmem:[%s3 + $0x40] sm:$0xff]
  %v1021 = vld [vmem:[%s3 + $0x48] sm:$0xff]
  %v1022 = vld [vmem:[%s3 + $0x50] sm:$0xff]
  %v1023 = vld [vmem:[%s3 + $0x58] sm:$0xff]
  %v1024 = vld [vmem:[%s3 + $0x60] sm:$0xff]
  %v1025 = vld [vmem:[%s3 + $0x68] sm:$0xff]
  %v1026 = vld [vmem:[%s3 + $0x70] sm:$0xff]
  %v1027 = vld [vmem:[%s3 + $0x78] sm:$0xff]
  %v1028 = vld [vmem:[%s3 + $0x80] sm:$0xff]
  %v1029 = vld [vmem:[%s3 + $0x88] sm:$0xff]
  %v1030 = vld [vmem:[%s3 + $0x90] sm:$0xff]
  %v1031 = vld [vmem:[%s3 + $0x98] sm:$0xff]
  %v1032 = vld [vmem:[%s3 + $0xa0] sm:$0xff]
  %v1033 = vld [vmem:[%s3 + $0xa8] sm:$0xff]
  %v1034 = vld [vmem:[%s3 + $0xb0] sm:$0xff]
  %v1035 = vld [vmem:[%s3 + $0xb8] sm:$0xff]
  %v1036 = vld [vmem:[%s3 + $0xc0] sm:$0xff]
  %v1037 = vld [vmem:[%s3 + $0xc8] sm:$0xff]
  %v1038 = vld [vmem:[%s3 + $0xd0] sm:$0xff]
  %v1039 = vld [vmem:[%s3 + $0xd8] sm:$0xff]
  %v1040 = vld [vmem:[%s3 + $0xe0] sm:$0xff]
  %v1041 = vld [vmem:[%s3 + $0xe8] sm:$0xff]
  %v1042 = vld [vmem:[%s3 + $0xf0] sm:$0xff]
  %v1043 = vld [vmem:[%s3 + $0xf8] sm:$0xff]
  %v1044 = vld [vmem:[%s3 + $0x100] sm:$0xff]
  %v1045 = vld [vmem:[%s3 + $0x108] sm:$0xff]
  %v1046 = vld [vmem:[%s3 + $0x110] sm:$0xff]
  %v1047 = vld [vmem:[%s3 + $0x118] sm:$0xff]
  %v1048 = vld [vmem:[%s3 + $0x120] sm:$0xff]
  %v1049 = vld [vmem:[%s3 + $0x128] sm:$0xff]
  %v1050 = vld [vmem:[%s3 + $0x130] sm:$0xff]
  %v1051 = vld [vmem:[%s3 + $0x138] sm:$0xff]
  %v1052 = vld [vmem:[%s3 + $0x140] sm:$0xff]
  %v1053 = vld [vmem:[%s3 + $0x148] sm:$0xff]
  %v1054 = vld [vmem:[%s3 + $0x150] sm:$0xff]
  %v1055 = vld [vmem:[%s3 + $0x158] sm:$0xff]
  %v1056 = vld [vmem:[%s3 + $0x160] sm:$0xff]
  %v1057 = vld [vmem:[%s3 + $0x168] sm:$0xff]
  %v1058 = vld [vmem:[%s3 + $0x170] sm:$0xff]
  %v1059 = vld [vmem:[%s3 + $0x178] sm:$0xff]
  %v1060 = vld [vmem:[%s3 + $0x180] sm:$0xff]
  %v1061 = vld [vmem:[%s3 + $0x188] sm:$0xff]
  %v1062 = vld [vmem:[%s3 + $0x190] sm:$0xff]
  %v1063 = vld [vmem:[%s3 + $0x198] sm:$0xff]
  %v1064 = vld [vmem:[%s3 + $0x1a0] sm:$0xff]
  %v1065 = vld [vmem:[%s3 + $0x1a8] sm:$0xff]
  %v1066 = vld [vmem:[%s3 + $0x1b0] sm:$0xff]
  %v1067 = vld [vmem:[%s3 + $0x1b8] sm:$0xff]
  %v1068 = vld [vmem:[%s3 + $0x1c0] sm:$0xff]
  %v1069 = vld [vmem:[%s3 + $0x1c8] sm:$0xff]
  %v1070 = vld [vmem:[%s3 + $0x1d0] sm:$0xff]
  %v1071 = vld [vmem:[%s3 + $0x1d8] sm:$0xff]
  %v1072 = vld [vmem:[%s3 + $0x1e0] sm:$0xff]
  %v1073 = vld [vmem:[%s3 + $0x1e8] sm:$0xff]
  %v1074 = vld [vmem:[%s3 + $0x1f0] sm:$0xff]
  %v1075 = vld [vmem:[%s3 + $0x1f8] sm:$0xff]
  %1076 = vmatprep.subr.mxu0 %v1013
  %1077 = vmatpush1.msra.mxu0 %v1012
  %1078 = vmatprep.subr.mxu0 %v1017
  %1079 = vmatpush1.msra.mxu0 %v1016
  %1080 = vmatprep.subr.mxu0 %v1021
  %1081 = vmatpush1.msra.mxu0 %v1020
  %1082 = vmatprep.subr.mxu0 %v1025
  %1083 = vmatpush1.msra.mxu0 %v1024
  %1084 = vmatprep.subr.mxu0 %v1029
  %1085 = vmatpush1.msra.mxu0 %v1028
  %1086 = vmatprep.subr.mxu0 %v1033
  %1087 = vmatpush1.msra.mxu0 %v1032
  %1088 = vmatprep.subr.mxu0 %v1037
  %1089 = vmatpush1.msra.mxu0 %v1036
  %1090 = vmatprep.subr.mxu0 %v1041
  %1091 = vmatpush1.msra.mxu0 %v1040
  %1092 = vmatprep.subr.mxu0 %v1045
  %1093 = vmatpush1.msra.mxu0 %v1044
  %1094 = vmatprep.subr.mxu0 %v1049
  %1095 = vmatpush1.msra.mxu0 %v1048
  %1096 = vmatprep.subr.mxu0 %v1053
  %1097 = vmatpush1.msra.mxu0 %v1052
  %1098 = vmatprep.subr.mxu0 %v1057
  %1099 = vmatpush1.msra.mxu0 %v1056
  %1100 = vmatprep.subr.mxu0 %v1061
  %1101 = vmatpush1.msra.mxu0 %v1060
  %1102 = vmatprep.subr.mxu0 %v1065
  %1103 = vmatpush1.msra.mxu0 %v1064
  %1104 = vmatprep.subr.mxu0 %v1069
  %1105 = vmatpush1.msra.mxu0 %v1068
  %1106 = vmatprep.subr.mxu0 %v1073
  %1107 = vmatpush1.msra.mxu0 %v1072
  %1108 = vmatprep.subr.mxu0 0.0
  %1109 = vmatpush1.msra.mxu0 0.0
  %1110 = vmatprep.subr.mxu0 0.0
  %1111 = vmatpush1.msra.mxu0 0.0
  %1112 = vmatprep.subr.mxu0 0.0
  %1113 = vmatpush1.msra.mxu0 0.0
  %1114 = vmatprep.subr.mxu0 0.0
  %1115 = vmatpush1.msra.mxu0 0.0
  %1116 = vmatprep.subr.mxu0 0.0
  %1117 = vmatpush1.msra.mxu0 0.0
  %1118 = vmatprep.subr.mxu0 0.0
  %1119 = vmatpush1.msra.mxu0 0.0
  %1120 = vmatprep.subr.mxu0 0.0
  %1121 = vmatpush1.msra.mxu0 0.0
  %1122 = vmatprep.subr.mxu0 0.0
  %1123 = vmatpush1.msra.mxu0 0.0
  %1124 = vmatprep.subr.mxu0 0.0
  %1125 = vmatpush1.msra.mxu0 0.0
  %1126 = vmatprep.subr.mxu0 0.0
  %1127 = vmatpush1.msra.mxu0 0.0
  %1128 = vmatprep.subr.mxu0 0.0
  %1129 = vmatpush1.msra.mxu0 0.0
  %1130 = vmatprep.subr.mxu0 0.0
  %1131 = vmatpush1.msra.mxu0 0.0
  %1132 = vmatprep.subr.mxu0 0.0
  %1133 = vmatpush1.msra.mxu0 0.0
  %1134 = vmatprep.subr.mxu0 0.0
  %1135 = vmatpush1.msra.mxu0 0.0
  %1136 = vmatprep.subr.mxu0 0.0
  %1137 = vmatpush1.msra.mxu0 0.0
  %1138 = vmatprep.subr.mxu0 0.0
  %1139 = vmatpush1.msra.mxu0 0.0
  %1140 = vmatprep.mubr.f32.mxu0 0.0
  %1141 = vmatmul.mubr.f32.gmra.mrb[0].mxu0 %v1011
  %v1142 = vpop.f32.mrb[0].mxu0
  %v1143 = vadd.f32 0.0, %v1142
  %v1144 = vpop.f32.mrb[0].mxu0
  %v1145 = vadd.f32 0.0, %v1144
  %1146 = vdwg.mxu0
  %1147 = vmatprep.subr.mxu0 %v1015
  %1148 = vmatpush1.msra.mxu0 %v1014
  %1149 = vmatprep.subr.mxu0 %v1019
  %1150 = vmatpush1.msra.mxu0 %v1018
  %1151 = vmatprep.subr.mxu0 %v1023
  %1152 = vmatpush1.msra.mxu0 %v1022
  %1153 = vmatprep.subr.mxu0 %v1027
  %1154 = vmatpush1.msra.mxu0 %v1026
  %1155 = vmatprep.subr.mxu0 %v1031
  %1156 = vmatpush1.msra.mxu0 %v1030
  %1157 = vmatprep.subr.mxu0 %v1035
  %1158 = vmatpush1.msra.mxu0 %v1034
  %1159 = vmatprep.subr.mxu0 %v1039
  %1160 = vmatpush1.msra.mxu0 %v1038
  %1161 = vmatprep.subr.mxu0 %v1043
  %1162 = vmatpush1.msra.mxu0 %v1042
  %1163 = vmatprep.subr.mxu0 %v1047
  %1164 = vmatpush1.msra.mxu0 %v1046
  %1165 = vmatprep.subr.mxu0 %v1051
  %1166 = vmatpush1.msra.mxu0 %v1050
  %1167 = vmatprep.subr.mxu0 %v1055
  %1168 = vmatpush1.msra.mxu0 %v1054
  %1169 = vmatprep.subr.mxu0 %v1059
  %1170 = vmatpush1.msra.mxu0 %v1058
  %1171 = vmatprep.subr.mxu0 %v1063
  %1172 = vmatpush1.msra.mxu0 %v1062
  %1173 = vmatprep.subr.mxu0 %v1067
  %1174 = vmatpush1.msra.mxu0 %v1066
  %1175 = vmatprep.subr.mxu0 %v1071
  %1176 = vmatpush1.msra.mxu0 %v1070
  %1177 = vmatprep.subr.mxu0 %v1075
  %1178 = vmatpush1.msra.mxu0 %v1074
  %1179 = vmatprep.subr.mxu0 0.0
  %1180 = vmatpush1.msra.mxu0 0.0
  %1181 = vmatprep.subr.mxu0 0.0
  %1182 = vmatpush1.msra.mxu0 0.0
  %1183 = vmatprep.subr.mxu0 0.0
  %1184 = vmatpush1.msra.mxu0 0.0
  %1185 = vmatprep.subr.mxu0 0.0
  %1186 = vmatpush1.msra.mxu0 0.0
  %1187 = vmatprep.subr.mxu0 0.0
  %1188 = vmatpush1.msra.mxu0 0.0
  %1189 = vmatprep.subr.mxu0 0.0
  %1190 = vmatpush1.msra.mxu0 0.0
  %1191 = vmatprep.subr.mxu0 0.0
  %1192 = vmatpush1.msra.mxu0 0.0
  %1193 = vmatprep.subr.mxu0 0.0
  %1194 = vmatpush1.msra.mxu0 0.0
  %1195 = vmatprep.subr.mxu0 0.0
  %1196 = vmatpush1.msra.mxu0 0.0
  %1197 = vmatprep.subr.mxu0 0.0
  %1198 = vmatpush1.msra.mxu0 0.0
  %1199 = vmatprep.subr.mxu0 0.0
  %1200 = vmatpush1.msra.mxu0 0.0
  %1201 = vmatprep.subr.mxu0 0.0
  %1202 = vmatpush1.msra.mxu0 0.0
  %1203 = vmatprep.subr.mxu0 0.0
  %1204 = vmatpush1.msra.mxu0 0.0
  %1205 = vmatprep.subr.mxu0 0.0
  %1206 = vmatpush1.msra.mxu0 0.0
  %1207 = vmatprep.subr.mxu0 0.0
  %1208 = vmatpush1.msra.mxu0 0.0
  %1209 = vmatprep.subr.mxu0 0.0
  %1210 = vmatpush1.msra.mxu0 0.0
  %1211 = vmatprep.mubr.f32.mxu0 0.0
  %1212 = vmatmul.mubr.f32.gmra.mrb[0].mxu0 %v1011
  %v1213 = vpop.f32.mrb[0].mxu0
  %v1214 = vadd.f32 0.0, %v1213
  %v1215 = vpop.f32.mrb[0].mxu0
  %v1216 = vadd.f32 0.0, %v1215
  %1217 = vdwg.mxu0
  %v1218 = vadd.f32 %v1007, %v1143
  %v1219 = vadd.f32 %v1008, %v1145
  %v1220 = vadd.f32 %v1009, %v1214
  %v1221 = vadd.f32 %v1010, %v1216
  %v1222 = vld [vmem:[#allocation3] sm:$0xff]
  %v1223 = vxor.u32 %v1218, 2147483648
  %v1224 = vmul.f32 %v1223, 1.442695
  %v1225 = vpow.pop %v1224
  %v1226 = vadd.f32 %v1225, 1.0
  %v1227 = vrcp.pop %v1226
  %v1228 = vmul.f32 1.0, %v1227
  %v1229 = vxor.u32 %v1219, 2147483648
  %v1230 = vmul.f32 %v1229, 1.442695
  %v1231 = vpow.pop %v1230
  %v1232 = vadd.f32 %v1231, 1.0
  %v1233 = vrcp.pop %v1232
  %v1234 = vmul.f32 1.0, %v1233
  %v1235 = vtanh.pop %v1220
  %v1236 = vxor.u32 %v1221, 2147483648
  %v1237 = vmul.f32 %v1236, 1.442695
  %v1238 = vpow.pop %v1237
  %v1239 = vadd.f32 %v1238, 1.0
  %v1240 = vrcp.pop %v1239
  %v1241 = vmul.f32 1.0, %v1240
  %v1242 = vmul.f32 %v1234, %v1222
  %v1243 = vmul.f32 %v1228, %v1235
  %v1244 = vadd.f32 %v1242, %v1243
  %v1245 = vtanh.pop %v1244
  %v1246 = vmul.f32 %v1241, %v1245
  %1247 = vst [vmem:[#allocation2] sm:$0xff] %v1246
  %1248 = vst [vmem:[#allocation3] sm:$0xff] %v1244
  %s1249 = scalar_lea.vmem %s1, 160
  %v1250 = vld [vmem:[%s1249] sm:$0xff]
  %v1251 = vld [vmem:[%s1249 + $0x8] sm:$0xff]
  %v1252 = vld [vmem:[%s1249 + $0x10] sm:$0xff]
  %v1253 = vld [vmem:[%s1249 + $0x18] sm:$0xff]
  %v1254 = vld [vmem:[#allocation2] sm:$0xff]
  %v1255 = vld [vmem:[%s3] sm:$0xff]
  %v1256 = vld [vmem:[%s3 + $0x8] sm:$0xff]
  %v1257 = vld [vmem:[%s3 + $0x10] sm:$0xff]
  %v1258 = vld [vmem:[%s3 + $0x18] sm:$0xff]
  %v1259 = vld [vmem:[%s3 + $0x20] sm:$0xff]
  %v1260 = vld [vmem:[%s3 + $0x28] sm:$0xff]
  %v1261 = vld [vmem:[%s3 + $0x30] sm:$0xff]
  %v1262 = vld [vmem:[%s3 + $0x38] sm:$0xff]
  %v1263 = vld [vmem:[%s3 + $0x40] sm:$0xff]
  %v1264 = vld [vmem:[%s3 + $0x48] sm:$0xff]
  %v1265 = vld [vmem:[%s3 + $0x50] sm:$0xff]
  %v1266 = vld [vmem:[%s3 + $0x58] sm:$0xff]
  %v1267 = vld [vmem:[%s3 + $0x60] sm:$0xff]
  %v1268 = vld [vmem:[%s3 + $0x68] sm:$0xff]
  %v1269 = vld [vmem:[%s3 + $0x70] sm:$0xff]
  %v1270 = vld [vmem:[%s3 + $0x78] sm:$0xff]
  %v1271 = vld [vmem:[%s3 + $0x80] sm:$0xff]
  %v1272 = vld [vmem:[%s3 + $0x88] sm:$0xff]
  %v1273 = vld [vmem:[%s3 + $0x90] sm:$0xff]
  %v1274 = vld [vmem:[%s3 + $0x98] sm:$0xff]
  %v1275 = vld [vmem:[%s3 + $0xa0] sm:$0xff]
  %v1276 = vld [vmem:[%s3 + $0xa8] sm:$0xff]
  %v1277 = vld [vmem:[%s3 + $0xb0] sm:$0xff]
  %v1278 = vld [vmem:[%s3 + $0xb8] sm:$0xff]
  %v1279 = vld [vmem:[%s3 + $0xc0] sm:$0xff]
  %v1280 = vld [vmem:[%s3 + $0xc8] sm:$0xff]
  %v1281 = vld [vmem:[%s3 + $0xd0] sm:$0xff]
  %v1282 = vld [vmem:[%s3 + $0xd8] sm:$0xff]
  %v1283 = vld [vmem:[%s3 + $0xe0] sm:$0xff]
  %v1284 = vld [vmem:[%s3 + $0xe8] sm:$0xff]
  %v1285 = vld [vmem:[%s3 + $0xf0] sm:$0xff]
  %v1286 = vld [vmem:[%s3 + $0xf8] sm:$0xff]
  %v1287 = vld [vmem:[%s3 + $0x100] sm:$0xff]
  %v1288 = vld [vmem:[%s3 + $0x108] sm:$0xff]
  %v1289 = vld [vmem:[%s3 + $0x110] sm:$0xff]
  %v1290 = vld [vmem:[%s3 + $0x118] sm:$0xff]
  %v1291 = vld [vmem:[%s3 + $0x120] sm:$0xff]
  %v1292 = vld [vmem:[%s3 + $0x128] sm:$0xff]
  %v1293 = vld [vmem:[%s3 + $0x130] sm:$0xff]
  %v1294 = vld [vmem:[%s3 + $0x138] sm:$0xff]
  %v1295 = vld [vmem:[%s3 + $0x140] sm:$0xff]
  %v1296 = vld [vmem:[%s3 + $0x148] sm:$0xff]
  %v1297 = vld [vmem:[%s3 + $0x150] sm:$0xff]
  %v1298 = vld [vmem:[%s3 + $0x158] sm:$0xff]
  %v1299 = vld [vmem:[%s3 + $0x160] sm:$0xff]
  %v1300 = vld [vmem:[%s3 + $0x168] sm:$0xff]
  %v1301 = vld [vmem:[%s3 + $0x170] sm:$0xff]
  %v1302 = vld [vmem:[%s3 + $0x178] sm:$0xff]
  %v1303 = vld [vmem:[%s3 + $0x180] sm:$0xff]
  %v1304 = vld [vmem:[%s3 + $0x188] sm:$0xff]
  %v1305 = vld [vmem:[%s3 + $0x190] sm:$0xff]
  %v1306 = vld [vmem:[%s3 + $0x198] sm:$0xff]
  %v1307 = vld [vmem:[%s3 + $0x1a0] sm:$0xff]
  %v1308 = vld [vmem:[%s3 + $0x1a8] sm:$0xff]
  %v1309 = vld [vmem:[%s3 + $0x1b0] sm:$0xff]
  %v1310 = vld [vmem:[%s3 + $0x1b8] sm:$0xff]
  %v1311 = vld [vmem:[%s3 + $0x1c0] sm:$0xff]
  %v1312 = vld [vmem:[%s3 + $0x1c8] sm:$0xff]
  %v1313 = vld [vmem:[%s3 + $0x1d0] sm:$0xff]
  %v1314 = vld [vmem:[%s3 + $0x1d8] sm:$0xff]
  %v1315 = vld [vmem:[%s3 + $0x1e0] sm:$0xff]
  %v1316 = vld [vmem:[%s3 + $0x1e8] sm:$0xff]
  %v1317 = vld [vmem:[%s3 + $0x1f0] sm:$0xff]
  %v1318 = vld [vmem:[%s3 + $0x1f8] sm:$0xff]
  %1319 = vmatprep.subr.mxu0 %v1256
  %1320 = vmatpush1.msra.mxu0 %v1255
  %1321 = vmatprep.subr.mxu0 %v1260
  %1322 = vmatpush1.msra.mxu0 %v1259
  %1323 = vmatprep.subr.mxu0 %v1264
  %1324 = vmatpush1.msra.mxu0 %v1263
  %1325 = vmatprep.subr.mxu0 %v1268
  %1326 = vmatpush1.msra.mxu0 %v1267
  %1327 = vmatprep.subr.mxu0 %v1272
  %1328 = vmatpush1.msra.mxu0 %v1271
  %1329 = vmatprep.subr.mxu0 %v1276
  %1330 = vmatpush1.msra.mxu0 %v1275
  %1331 = vmatprep.subr.mxu0 %v1280
  %1332 = vmatpush1.msra.mxu0 %v1279
  %1333 = vmatprep.subr.mxu0 %v1284
  %1334 = vmatpush1.msra.mxu0 %v1283
  %1335 = vmatprep.subr.mxu0 %v1288
  %1336 = vmatpush1.msra.mxu0 %v1287
  %1337 = vmatprep.subr.mxu0 %v1292
  %1338 = vmatpush1.msra.mxu0 %v1291
  %1339 = vmatprep.subr.mxu0 %v1296
  %1340 = vmatpush1.msra.mxu0 %v1295
  %1341 = vmatprep.subr.mxu0 %v1300
  %1342 = vmatpush1.msra.mxu0 %v1299
  %1343 = vmatprep.subr.mxu0 %v1304
  %1344 = vmatpush1.msra.mxu0 %v1303
  %1345 = vmatprep.subr.mxu0 %v1308
  %1346 = vmatpush1.msra.mxu0 %v1307
  %1347 = vmatprep.subr.mxu0 %v1312
  %1348 = vmatpush1.msra.mxu0 %v1311
  %1349 = vmatprep.subr.mxu0 %v1316
  %1350 = vmatpush1.msra.mxu0 %v1315
  %1351 = vmatprep.subr.mxu0 0.0
  %1352 = vmatpush1.msra.mxu0 0.0
  %1353 = vmatprep.subr.mxu0 0.0
  %1354 = vmatpush1.msra.mxu0 0.0
  %1355 = vmatprep.subr.mxu0 0.0
  %1356 = vmatpush1.msra.mxu0 0.0
  %1357 = vmatprep.subr.mxu0 0.0
  %1358 = vmatpush1.msra.mxu0 0.0
  %1359 = vmatprep.subr.mxu0 0.0
  %1360 = vmatpush1.msra.mxu0 0.0
  %1361 = vmatprep.subr.mxu0 0.0
  %1362 = vmatpush1.msra.mxu0 0.0
  %1363 = vmatprep.subr.mxu0 0.0
  %1364 = vmatpush1.msra.mxu0 0.0
  %1365 = vmatprep.subr.mxu0 0.0
  %1366 = vmatpush1.msra.mxu0 0.0
  %1367 = vmatprep.subr.mxu0 0.0
  %1368 = vmatpush1.msra.mxu0 0.0
  %1369 = vmatprep.subr.mxu0 0.0
  %1370 = vmatpush1.msra.mxu0 0.0
  %1371 = vmatprep.subr.mxu0 0.0
  %1372 = vmatpush1.msra.mxu0 0.0
  %1373 = vmatprep.subr.mxu0 0.0
  %1374 = vmatpush1.msra.mxu0 0.0
  %1375 = vmatprep.subr.mxu0 0.0
  %1376 = vmatpush1.msra.mxu0 0.0
  %1377 = vmatprep.subr.mxu0 0.0
  %1378 = vmatpush1.msra.mxu0 0.0
  %1379 = vmatprep.subr.mxu0 0.0
  %1380 = vmatpush1.msra.mxu0 0.0
  %1381 = vmatprep.subr.mxu0 0.0
  %1382 = vmatpush1.msra.mxu0 0.0
  %1383 = vmatprep.mubr.f32.mxu0 0.0
  %1384 = vmatmul.mubr.f32.gmra.mrb[0].mxu0 %v1254
  %v1385 = vpop.f32.mrb[0].mxu0
  %v1386 = vadd.f32 0.0, %v1385
  %v1387 = vpop.f32.mrb[0].mxu0
  %v1388 = vadd.f32 0.0, %v1387
  %1389 = vdwg.mxu0
  %1390 = vmatprep.subr.mxu0 %v1258
  %1391 = vmatpush1.msra.mxu0 %v1257
  %1392 = vmatprep.subr.mxu0 %v1262
  %1393 = vmatpush1.msra.mxu0 %v1261
  %1394 = vmatprep.subr.mxu0 %v1266
  %1395 = vmatpush1.msra.mxu0 %v1265
  %1396 = vmatprep.subr.mxu0 %v1270
  %1397 = vmatpush1.msra.mxu0 %v1269
  %1398 = vmatprep.subr.mxu0 %v1274
  %1399 = vmatpush1.msra.mxu0 %v1273
  %1400 = vmatprep.subr.mxu0 %v1278
  %1401 = vmatpush1.msra.mxu0 %v1277
  %1402 = vmatprep.subr.mxu0 %v1282
  %1403 = vmatpush1.msra.mxu0 %v1281
  %1404 = vmatprep.subr.mxu0 %v1286
  %1405 = vmatpush1.msra.mxu0 %v1285
  %1406 = vmatprep.subr.mxu0 %v1290
  %1407 = vmatpush1.msra.mxu0 %v1289
  %1408 = vmatprep.subr.mxu0 %v1294
  %1409 = vmatpush1.msra.mxu0 %v1293
  %1410 = vmatprep.subr.mxu0 %v1298
  %1411 = vmatpush1.msra.mxu0 %v1297
  %1412 = vmatprep.subr.mxu0 %v1302
  %1413 = vmatpush1.msra.mxu0 %v1301
  %1414 = vmatprep.subr.mxu0 %v1306
  %1415 = vmatpush1.msra.mxu0 %v1305
  %1416 = vmatprep.subr.mxu0 %v1310
  %1417 = vmatpush1.msra.mxu0 %v1309
  %1418 = vmatprep.subr.mxu0 %v1314
  %1419 = vmatpush1.msra.mxu0 %v1313
  %1420 = vmatprep.subr.mxu0 %v1318
  %1421 = vmatpush1.msra.mxu0 %v1317
  %1422 = vmatprep.subr.mxu0 0.0
  %1423 = vmatpush1.msra.mxu0 0.0
  %1424 = vmatprep.subr.mxu0 0.0
  %1425 = vmatpush1.msra.mxu0 0.0
  %1426 = vmatprep.subr.mxu0 0.0
  %1427 = vmatpush1.msra.mxu0 0.0
  %1428 = vmatprep.subr.mxu0 0.0
  %1429 = vmatpush1.msra.mxu0 0.0
  %1430 = vmatprep.subr.mxu0 0.0
  %1431 = vmatpush1.msra.mxu0 0.0
  %1432 = vmatprep.subr.mxu0 0.0
  %1433 = vmatpush1.msra.mxu0 0.0
  %1434 = vmatprep.subr.mxu0 0.0
  %1435 = vmatpush1.msra.mxu0 0.0
  %1436 = vmatprep.subr.mxu0 0.0
  %1437 = vmatpush1.msra.mxu0 0.0
  %1438 = vmatprep.subr.mxu0 0.0
  %1439 = vmatpush1.msra.mxu0 0.0
  %1440 = vmatprep.subr.mxu0 0.0
  %1441 = vmatpush1.msra.mxu0 0.0
  %1442 = vmatprep.subr.mxu0 0.0
  %1443 = vmatpush1.msra.mxu0 0.0
  %1444 = vmatprep.subr.mxu0 0.0
  %1445 = vmatpush1.msra.mxu0 0.0
  %1446 = vmatprep.subr.mxu0 0.0
  %1447 = vmatpush1.msra.mxu0 0.0
  %1448 = vmatprep.subr.mxu0 0.0
  %1449 = vmatpush1.msra.mxu0 0.0
  %1450 = vmatprep.subr.mxu0 0.0
  %1451 = vmatpush1.msra.mxu0 0.0
  %1452 = vmatprep.subr.mxu0 0.0
  %1453 = vmatpush1.msra.mxu0 0.0
  %1454 = vmatprep.mubr.f32.mxu0 0.0
  %1455 = vmatmul.mubr.f32.gmra.mrb[0].mxu0 %v1254
  %v1456 = vpop.f32.mrb[0].mxu0
  %v1457 = vadd.f32 0.0, %v1456
  %v1458 = vpop.f32.mrb[0].mxu0
  %v1459 = vadd.f32 0.0, %v1458
  %1460 = vdwg.mxu0
  %v1461 = vadd.f32 %v1250, %v1386
  %v1462 = vadd.f32 %v1251, %v1388
  %v1463 = vadd.f32 %v1252, %v1457
  %v1464 = vadd.f32 %v1253, %v1459
  %v1465 = vld [vmem:[#allocation3] sm:$0xff]
  %v1466 = vxor.u32 %v1461, 2147483648
  %v1467 = vmul.f32 %v1466, 1.442695
  %v1468 = vpow.pop %v1467
  %v1469 = vadd.f32 %v1468, 1.0
  %v1470 = vrcp.pop %v1469
  %v1471 = vmul.f32 1.0, %v1470
  %v1472 = vxor.u32 %v1462, 2147483648
  %v1473 = vmul.f32 %v1472, 1.442695
  %v1474 = vpow.pop %v1473
  %v1475 = vadd.f32 %v1474, 1.0
  %v1476 = vrcp.pop %v1475
  %v1477 = vmul.f32 1.0, %v1476
  %v1478 = vtanh.pop %v1463
  %v1479 = vxor.u32 %v1464, 2147483648
  %v1480 = vmul.f32 %v1479, 1.442695
  %v1481 = vpow.pop %v1480
  %v1482 = vadd.f32 %v1481, 1.0
  %v1483 = vrcp.pop %v1482
  %v1484 = vmul.f32 1.0, %v1483
  %v1485 = vmul.f32 %v1477, %v1465
  %v1486 = vmul.f32 %v1471, %v1478
  %v1487 = vadd.f32 %v1485, %v1486
  %v1488 = vtanh.pop %v1487
  %v1489 = vmul.f32 %v1484, %v1488
  %1490 = vst [vmem:[#allocation2] sm:$0xff] %v1489
  %1491 = vst [vmem:[#allocation3] sm:$0xff] %v1487
  %s1492 = scalar_lea.vmem %s1, 192
  %v1493 = vld [vmem:[%s1492] sm:$0xff]
  %v1494 = vld [vmem:[%s1492 + $0x8] sm:$0xff]
  %v1495 = vld [vmem:[%s1492 + $0x10] sm:$0xff]
  %v1496 = vld [vmem:[%s1492 + $0x18] sm:$0xff]
  %v1497 = vld [vmem:[#allocation2] sm:$0xff]
  %v1498 = vld [vmem:[%s3] sm:$0xff]
  %v1499 = vld [vmem:[%s3 + $0x8] sm:$0xff]
  %v1500 = vld [vmem:[%s3 + $0x10] sm:$0xff]
  %v1501 = vld [vmem:[%s3 + $0x18] sm:$0xff]
  %v1502 = vld [vmem:[%s3 + $0x20] sm:$0xff]
  %v1503 = vld [vmem:[%s3 + $0x28] sm:$0xff]
  %v1504 = vld [vmem:[%s3 + $0x30] sm:$0xff]
  %v1505 = vld [vmem:[%s3 + $0x38] sm:$0xff]
  %v1506 = vld [vmem:[%s3 + $0x40] sm:$0xff]
  %v1507 = vld [vmem:[%s3 + $0x48] sm:$0xff]
  %v1508 = vld [vmem:[%s3 + $0x50] sm:$0xff]
  %v1509 = vld [vmem:[%s3 + $0x58] sm:$0xff]
  %v1510 = vld [vmem:[%s3 + $0x60] sm:$0xff]
  %v1511 = vld [vmem:[%s3 + $0x68] sm:$0xff]
  %v1512 = vld [vmem:[%s3 + $0x70] sm:$0xff]
  %v1513 = vld [vmem:[%s3 + $0x78] sm:$0xff]
  %v1514 = vld [vmem:[%s3 + $0x80] sm:$0xff]
  %v1515 = vld [vmem:[%s3 + $0x88] sm:$0xff]
  %v1516 = vld [vmem:[%s3 + $0x90] sm:$0xff]
  %v1517 = vld [vmem:[%s3 + $0x98] sm:$0xff]
  %v1518 = vld [vmem:[%s3 + $0xa0] sm:$0xff]
  %v1519 = vld [vmem:[%s3 + $0xa8] sm:$0xff]
  %v1520 = vld [vmem:[%s3 + $0xb0] sm:$0xff]
  %v1521 = vld [vmem:[%s3 + $0xb8] sm:$0xff]
  %v1522 = vld [vmem:[%s3 + $0xc0] sm:$0xff]
  %v1523 = vld [vmem:[%s3 + $0xc8] sm:$0xff]
  %v1524 = vld [vmem:[%s3 + $0xd0] sm:$0xff]
  %v1525 = vld [vmem:[%s3 + $0xd8] sm:$0xff]
  %v1526 = vld [vmem:[%s3 + $0xe0] sm:$0xff]
  %v1527 = vld [vmem:[%s3 + $0xe8] sm:$0xff]
  %v1528 = vld [vmem:[%s3 + $0xf0] sm:$0xff]
  %v1529 = vld [vmem:[%s3 + $0xf8] sm:$0xff]
  %v1530 = vld [vmem:[%s3 + $0x100] sm:$0xff]
  %v1531 = vld [vmem:[%s3 + $0x108] sm:$0xff]
  %v1532 = vld [vmem:[%s3 + $0x110] sm:$0xff]
  %v1533 = vld [vmem:[%s3 + $0x118] sm:$0xff]
  %v1534 = vld [vmem:[%s3 + $0x120] sm:$0xff]
  %v1535 = vld [vmem:[%s3 + $0x128] sm:$0xff]
  %v1536 = vld [vmem:[%s3 + $0x130] sm:$0xff]
  %v1537 = vld [vmem:[%s3 + $0x138] sm:$0xff]
  %v1538 = vld [vmem:[%s3 + $0x140] sm:$0xff]
  %v1539 = vld [vmem:[%s3 + $0x148] sm:$0xff]
  %v1540 = vld [vmem:[%s3 + $0x150] sm:$0xff]
  %v1541 = vld [vmem:[%s3 + $0x158] sm:$0xff]
  %v1542 = vld [vmem:[%s3 + $0x160] sm:$0xff]
  %v1543 = vld [vmem:[%s3 + $0x168] sm:$0xff]
  %v1544 = vld [vmem:[%s3 + $0x170] sm:$0xff]
  %v1545 = vld [vmem:[%s3 + $0x178] sm:$0xff]
  %v1546 = vld [vmem:[%s3 + $0x180] sm:$0xff]
  %v1547 = vld [vmem:[%s3 + $0x188] sm:$0xff]
  %v1548 = vld [vmem:[%s3 + $0x190] sm:$0xff]
  %v1549 = vld [vmem:[%s3 + $0x198] sm:$0xff]
  %v1550 = vld [vmem:[%s3 + $0x1a0] sm:$0xff]
  %v1551 = vld [vmem:[%s3 + $0x1a8] sm:$0xff]
  %v1552 = vld [vmem:[%s3 + $0x1b0] sm:$0xff]
  %v1553 = vld [vmem:[%s3 + $0x1b8] sm:$0xff]
  %v1554 = vld [vmem:[%s3 + $0x1c0] sm:$0xff]
  %v1555 = vld [vmem:[%s3 + $0x1c8] sm:$0xff]
  %v1556 = vld [vmem:[%s3 + $0x1d0] sm:$0xff]
  %v1557 = vld [vmem:[%s3 + $0x1d8] sm:$0xff]
  %v1558 = vld [vmem:[%s3 + $0x1e0] sm:$0xff]
  %v1559 = vld [vmem:[%s3 + $0x1e8] sm:$0xff]
  %v1560 = vld [vmem:[%s3 + $0x1f0] sm:$0xff]
  %v1561 = vld [vmem:[%s3 + $0x1f8] sm:$0xff]
  %1562 = vmatprep.subr.mxu0 %v1499
  %1563 = vmatpush1.msra.mxu0 %v1498
  %1564 = vmatprep.subr.mxu0 %v1503
  %1565 = vmatpush1.msra.mxu0 %v1502
  %1566 = vmatprep.subr.mxu0 %v1507
  %1567 = vmatpush1.msra.mxu0 %v1506
  %1568 = vmatprep.subr.mxu0 %v1511
  %1569 = vmatpush1.msra.mxu0 %v1510
  %1570 = vmatprep.subr.mxu0 %v1515
  %1571 = vmatpush1.msra.mxu0 %v1514
  %1572 = vmatprep.subr.mxu0 %v1519
  %1573 = vmatpush1.msra.mxu0 %v1518
  %1574 = vmatprep.subr.mxu0 %v1523
  %1575 = vmatpush1.msra.mxu0 %v1522
  %1576 = vmatprep.subr.mxu0 %v1527
  %1577 = vmatpush1.msra.mxu0 %v1526
  %1578 = vmatprep.subr.mxu0 %v1531
  %1579 = vmatpush1.msra.mxu0 %v1530
  %1580 = vmatprep.subr.mxu0 %v1535
  %1581 = vmatpush1.msra.mxu0 %v1534
  %1582 = vmatprep.subr.mxu0 %v1539
  %1583 = vmatpush1.msra.mxu0 %v1538
  %1584 = vmatprep.subr.mxu0 %v1543
  %1585 = vmatpush1.msra.mxu0 %v1542
  %1586 = vmatprep.subr.mxu0 %v1547
  %1587 = vmatpush1.msra.mxu0 %v1546
  %1588 = vmatprep.subr.mxu0 %v1551
  %1589 = vmatpush1.msra.mxu0 %v1550
  %1590 = vmatprep.subr.mxu0 %v1555
  %1591 = vmatpush1.msra.mxu0 %v1554
  %1592 = vmatprep.subr.mxu0 %v1559
  %1593 = vmatpush1.msra.mxu0 %v1558
  %1594 = vmatprep.subr.mxu0 0.0
  %1595 = vmatpush1.msra.mxu0 0.0
  %1596 = vmatprep.subr.mxu0 0.0
  %1597 = vmatpush1.msra.mxu0 0.0
  %1598 = vmatprep.subr.mxu0 0.0
  %1599 = vmatpush1.msra.mxu0 0.0
  %1600 = vmatprep.subr.mxu0 0.0
  %1601 = vmatpush1.msra.mxu0 0.0
  %1602 = vmatprep.subr.mxu0 0.0
  %1603 = vmatpush1.msra.mxu0 0.0
  %1604 = vmatprep.subr.mxu0 0.0
  %1605 = vmatpush1.msra.mxu0 0.0
  %1606 = vmatprep.subr.mxu0 0.0
  %1607 = vmatpush1.msra.mxu0 0.0
  %1608 = vmatprep.subr.mxu0 0.0
  %1609 = vmatpush1.msra.mxu0 0.0
  %1610 = vmatprep.subr.mxu0 0.0
  %1611 = vmatpush1.msra.mxu0 0.0
  %1612 = vmatprep.subr.mxu0 0.0
  %1613 = vmatpush1.msra.mxu0 0.0
  %1614 = vmatprep.subr.mxu0 0.0
  %1615 = vmatpush1.msra.mxu0 0.0
  %1616 = vmatprep.subr.mxu0 0.0
  %1617 = vmatpush1.msra.mxu0 0.0
  %1618 = vmatprep.subr.mxu0 0.0
  %1619 = vmatpush1.msra.mxu0 0.0
  %1620 = vmatprep.subr.mxu0 0.0
  %1621 = vmatpush1.msra.mxu0 0.0
  %1622 = vmatprep.subr.mxu0 0.0
  %1623 = vmatpush1.msra.mxu0 0.0
  %1624 = vmatprep.subr.mxu0 0.0
  %1625 = vmatpush1.msra.mxu0 0.0
  %1626 = vmatprep.mubr.f32.mxu0 0.0
  %1627 = vmatmul.mubr.f32.gmra.mrb[0].mxu0 %v1497
  %v1628 = vpop.f32.mrb[0].mxu0
  %v1629 = vadd.f32 0.0, %v1628
  %v1630 = vpop.f32.mrb[0].mxu0
  %v1631 = vadd.f32 0.0, %v1630
  %1632 = vdwg.mxu0
  %1633 = vmatprep.subr.mxu0 %v1501
  %1634 = vmatpush1.msra.mxu0 %v1500
  %1635 = vmatprep.subr.mxu0 %v1505
  %1636 = vmatpush1.msra.mxu0 %v1504
  %1637 = vmatprep.subr.mxu0 %v1509
  %1638 = vmatpush1.msra.mxu0 %v1508
  %1639 = vmatprep.subr.mxu0 %v1513
  %1640 = vmatpush1.msra.mxu0 %v1512
  %1641 = vmatprep.subr.mxu0 %v1517
  %1642 = vmatpush1.msra.mxu0 %v1516
  %1643 = vmatprep.subr.mxu0 %v1521
  %1644 = vmatpush1.msra.mxu0 %v1520
  %1645 = vmatprep.subr.mxu0 %v1525
  %1646 = vmatpush1.msra.mxu0 %v1524
  %1647 = vmatprep.subr.mxu0 %v1529
  %1648 = vmatpush1.msra.mxu0 %v1528
  %1649 = vmatprep.subr.mxu0 %v1533
  %1650 = vmatpush1.msra.mxu0 %v1532
  %1651 = vmatprep.subr.mxu0 %v1537
  %1652 = vmatpush1.msra.mxu0 %v1536
  %1653 = vmatprep.subr.mxu0 %v1541
  %1654 = vmatpush1.msra.mxu0 %v1540
  %1655 = vmatprep.subr.mxu0 %v1545
  %1656 = vmatpush1.msra.mxu0 %v1544
  %1657 = vmatprep.subr.mxu0 %v1549
  %1658 = vmatpush1.msra.mxu0 %v1548
  %1659 = vmatprep.subr.mxu0 %v1553
  %1660 = vmatpush1.msra.mxu0 %v1552
  %1661 = vmatprep.subr.mxu0 %v1557
  %1662 = vmatpush1.msra.mxu0 %v1556
  %1663 = vmatprep.subr.mxu0 %v1561
  %1664 = vmatpush1.msra.mxu0 %v1560
  %1665 = vmatprep.subr.mxu0 0.0
  %1666 = vmatpush1.msra.mxu0 0.0
  %1667 = vmatprep.subr.mxu0 0.0
  %1668 = vmatpush1.msra.mxu0 0.0
  %1669 = vmatprep.subr.mxu0 0.0
  %1670 = vmatpush1.msra.mxu0 0.0
  %1671 = vmatprep.subr.mxu0 0.0
  %1672 = vmatpush1.msra.mxu0 0.0
  %1673 = vmatprep.subr.mxu0 0.0
  %1674 = vmatpush1.msra.mxu0 0.0
  %1675 = vmatprep.subr.mxu0 0.0
  %1676 = vmatpush1.msra.mxu0 0.0
  %1677 = vmatprep.subr.mxu0 0.0
  %1678 = vmatpush1.msra.mxu0 0.0
  %1679 = vmatprep.subr.mxu0 0.0
  %1680 = vmatpush1.msra.mxu0 0.0
  %1681 = vmatprep.subr.mxu0 0.0
  %1682 = vmatpush1.msra.mxu0 0.0
  %1683 = vmatprep.subr.mxu0 0.0
  %1684 = vmatpush1.msra.mxu0 0.0
  %1685 = vmatprep.subr.mxu0 0.0
  %1686 = vmatpush1.msra.mxu0 0.0
  %1687 = vmatprep.subr.mxu0 0.0
  %1688 = vmatpush1.msra.mxu0 0.0
  %1689 = vmatprep.subr.mxu0 0.0
  %1690 = vmatpush1.msra.mxu0 0.0
  %1691 = vmatprep.subr.mxu0 0.0
  %1692 = vmatpush1.msra.mxu0 0.0
  %1693 = vmatprep.subr.mxu0 0.0
  %1694 = vmatpush1.msra.mxu0 0.0
  %1695 = vmatprep.subr.mxu0 0.0
  %1696 = vmatpush1.msra.mxu0 0.0
  %1697 = vmatprep.mubr.f32.mxu0 0.0
  %1698 = vmatmul.mubr.f32.gmra.mrb[0].mxu0 %v1497
  %v1699 = vpop.f32.mrb[0].mxu0
  %v1700 = vadd.f32 0.0, %v1699
  %v1701 = vpop.f32.mrb[0].mxu0
  %v1702 = vadd.f32 0.0, %v1701
  %1703 = vdwg.mxu0
  %v1704 = vadd.f32 %v1493, %v1629
  %v1705 = vadd.f32 %v1494, %v1631
  %v1706 = vadd.f32 %v1495, %v1700
  %v1707 = vadd.f32 %v1496, %v1702
  %v1708 = vld [vmem:[#allocation3] sm:$0xff]
  %v1709 = vxor.u32 %v1704, 2147483648
  %v1710 = vmul.f32 %v1709, 1.442695
  %v1711 = vpow.pop %v1710
  %v1712 = vadd.f32 %v1711, 1.0
  %v1713 = vrcp.pop %v1712
  %v1714 = vmul.f32 1.0, %v1713
  %v1715 = vxor.u32 %v1705, 2147483648
  %v1716 = vmul.f32 %v1715, 1.442695
  %v1717 = vpow.pop %v1716
  %v1718 = vadd.f32 %v1717, 1.0
  %v1719 = vrcp.pop %v1718
  %v1720 = vmul.f32 1.0, %v1719
  %v1721 = vtanh.pop %v1706
  %v1722 = vxor.u32 %v1707, 2147483648
  %v1723 = vmul.f32 %v1722, 1.442695
  %v1724 = vpow.pop %v1723
  %v1725 = vadd.f32 %v1724, 1.0
  %v1726 = vrcp.pop %v1725
  %v1727 = vmul.f32 1.0, %v1726
  %v1728 = vmul.f32 %v1720, %v1708
  %v1729 = vmul.f32 %v1714, %v1721
  %v1730 = vadd.f32 %v1728, %v1729
  %v1731 = vtanh.pop %v1730
  %v1732 = vmul.f32 %v1727, %v1731
  %1733 = vst [vmem:[#allocation2] sm:$0xff] %v1732
  %1734 = vst [vmem:[#allocation3] sm:$0xff] %v1730
  %v1735 = vld [vmem:[%s2] sm:$0xff]
  %v1736 = vld [vmem:[%s2 + $0x8] sm:$0xff]
  %v1737 = vld [vmem:[%s2 + $0x10] sm:$0xff]
  %v1738 = vld [vmem:[%s2 + $0x18] sm:$0xff]
  %1739 = vst [vmem:[#allocation4] sm:$0xff] %v1735
  %1740 = vst [vmem:[#allocation4 + $0x8] sm:$0xff] %v1736
  %1741 = vst [vmem:[#allocation4 + $0x10] sm:$0xff] %v1737
  %1742 = vst [vmem:[#allocation4 + $0x18] sm:$0xff] %v1738
  %v1743 = vlaneseq
  %v1744 = vand.u32 %v1743, 127
  %vm1745 = vcmp.lt.s32.totalorder %v1744, 16
  %v1746 = vld [vmem:[#allocation4] sm:$0xff]
  %v1747 = vld [vmem:[#allocation4 + $0x8] sm:$0xff]
  %v1748 = vld [vmem:[#allocation4 + $0x10] sm:$0xff]
  %v1749 = vld [vmem:[#allocation4 + $0x18] sm:$0xff]
  %v1750 = vld [vmem:[#allocation2] sm:$0xff]
  %v1751 = vld [vmem:[%s4] sm:$0xff]
  %v1752 = vld [vmem:[%s4 + $0x8] sm:$0xff]
  %v1753 = vld [vmem:[%s4 + $0x10] sm:$0xff]
  %v1754 = vld [vmem:[%s4 + $0x18] sm:$0xff]
  %v1755 = vld [vmem:[%s4 + $0x20] sm:$0xff]
  %v1756 = vld [vmem:[%s4 + $0x28] sm:$0xff]
  %v1757 = vld [vmem:[%s4 + $0x30] sm:$0xff]
  %v1758 = vld [vmem:[%s4 + $0x38] sm:$0xff]
  %v1759 = vld [vmem:[%s4 + $0x40] sm:$0xff]
  %v1760 = vld [vmem:[%s4 + $0x48] sm:$0xff]
  %v1761 = vld [vmem:[%s4 + $0x50] sm:$0xff]
  %v1762 = vld [vmem:[%s4 + $0x58] sm:$0xff]
  %v1763 = vld [vmem:[%s4 + $0x60] sm:$0xff]
  %v1764 = vld [vmem:[%s4 + $0x68] sm:$0xff]
  %v1765 = vld [vmem:[%s4 + $0x70] sm:$0xff]
  %v1766 = vld [vmem:[%s4 + $0x78] sm:$0xff]
  %v1767 = vld [vmem:[%s4 + $0x80] sm:$0xff]
  %v1768 = vld [vmem:[%s4 + $0x88] sm:$0xff]
  %v1769 = vld [vmem:[%s4 + $0x90] sm:$0xff]
  %v1770 = vld [vmem:[%s4 + $0x98] sm:$0xff]
  %v1771 = vld [vmem:[%s4 + $0xa0] sm:$0xff]
  %v1772 = vld [vmem:[%s4 + $0xa8] sm:$0xff]
  %v1773 = vld [vmem:[%s4 + $0xb0] sm:$0xff]
  %v1774 = vld [vmem:[%s4 + $0xb8] sm:$0xff]
  %v1775 = vld [vmem:[%s4 + $0xc0] sm:$0xff]
  %v1776 = vld [vmem:[%s4 + $0xc8] sm:$0xff]
  %v1777 = vld [vmem:[%s4 + $0xd0] sm:$0xff]
  %v1778 = vld [vmem:[%s4 + $0xd8] sm:$0xff]
  %v1779 = vld [vmem:[%s4 + $0xe0] sm:$0xff]
  %v1780 = vld [vmem:[%s4 + $0xe8] sm:$0xff]
  %v1781 = vld [vmem:[%s4 + $0xf0] sm:$0xff]
  %v1782 = vld [vmem:[%s4 + $0xf8] sm:$0xff]
  %v1783 = vld [vmem:[%s4 + $0x100] sm:$0xff]
  %v1784 = vld [vmem:[%s4 + $0x108] sm:$0xff]
  %v1785 = vld [vmem:[%s4 + $0x110] sm:$0xff]
  %v1786 = vld [vmem:[%s4 + $0x118] sm:$0xff]
  %v1787 = vld [vmem:[%s4 + $0x120] sm:$0xff]
  %v1788 = vld [vmem:[%s4 + $0x128] sm:$0xff]
  %v1789 = vld [vmem:[%s4 + $0x130] sm:$0xff]
  %v1790 = vld [vmem:[%s4 + $0x138] sm:$0xff]
  %v1791 = vld [vmem:[%s4 + $0x140] sm:$0xff]
  %v1792 = vld [vmem:[%s4 + $0x148] sm:$0xff]
  %v1793 = vld [vmem:[%s4 + $0x150] sm:$0xff]
  %v1794 = vld [vmem:[%s4 + $0x158] sm:$0xff]
  %v1795 = vld [vmem:[%s4 + $0x160] sm:$0xff]
  %v1796 = vld [vmem:[%s4 + $0x168] sm:$0xff]
  %v1797 = vld [vmem:[%s4 + $0x170] sm:$0xff]
  %v1798 = vld [vmem:[%s4 + $0x178] sm:$0xff]
  %v1799 = vld [vmem:[%s4 + $0x180] sm:$0xff]
  %v1800 = vld [vmem:[%s4 + $0x188] sm:$0xff]
  %v1801 = vld [vmem:[%s4 + $0x190] sm:$0xff]
  %v1802 = vld [vmem:[%s4 + $0x198] sm:$0xff]
  %v1803 = vld [vmem:[%s4 + $0x1a0] sm:$0xff]
  %v1804 = vld [vmem:[%s4 + $0x1a8] sm:$0xff]
  %v1805 = vld [vmem:[%s4 + $0x1b0] sm:$0xff]
  %v1806 = vld [vmem:[%s4 + $0x1b8] sm:$0xff]
  %v1807 = vld [vmem:[%s4 + $0x1c0] sm:$0xff]
  %v1808 = vld [vmem:[%s4 + $0x1c8] sm:$0xff]
  %v1809 = vld [vmem:[%s4 + $0x1d0] sm:$0xff]
  %v1810 = vld [vmem:[%s4 + $0x1d8] sm:$0xff]
  %v1811 = vld [vmem:[%s4 + $0x1e0] sm:$0xff]
  %v1812 = vld [vmem:[%s4 + $0x1e8] sm:$0xff]
  %v1813 = vld [vmem:[%s4 + $0x1f0] sm:$0xff]
  %v1814 = vld [vmem:[%s4 + $0x1f8] sm:$0xff]
  %1815 = vmatprep.subr.mxu0 %v1752
  %1816 = vmatpush1.msra.mxu0 %v1751
  %1817 = vmatprep.subr.mxu0 %v1756
  %1818 = vmatpush1.msra.mxu0 %v1755
  %1819 = vmatprep.subr.mxu0 %v1760
  %1820 = vmatpush1.msra.mxu0 %v1759
  %1821 = vmatprep.subr.mxu0 %v1764
  %1822 = vmatpush1.msra.mxu0 %v1763
  %1823 = vmatprep.subr.mxu0 %v1768
  %1824 = vmatpush1.msra.mxu0 %v1767
  %1825 = vmatprep.subr.mxu0 %v1772
  %1826 = vmatpush1.msra.mxu0 %v1771
  %1827 = vmatprep.subr.mxu0 %v1776
  %1828 = vmatpush1.msra.mxu0 %v1775
  %1829 = vmatprep.subr.mxu0 %v1780
  %1830 = vmatpush1.msra.mxu0 %v1779
  %1831 = vmatprep.subr.mxu0 %v1784
  %1832 = vmatpush1.msra.mxu0 %v1783
  %1833 = vmatprep.subr.mxu0 %v1788
  %1834 = vmatpush1.msra.mxu0 %v1787
  %1835 = vmatprep.subr.mxu0 %v1792
  %1836 = vmatpush1.msra.mxu0 %v1791
  %1837 = vmatprep.subr.mxu0 %v1796
  %1838 = vmatpush1.msra.mxu0 %v1795
  %1839 = vmatprep.subr.mxu0 %v1800
  %1840 = vmatpush1.msra.mxu0 %v1799
  %1841 = vmatprep.subr.mxu0 %v1804
  %1842 = vmatpush1.msra.mxu0 %v1803
  %1843 = vmatprep.subr.mxu0 %v1808
  %1844 = vmatpush1.msra.mxu0 %v1807
  %1845 = vmatprep.subr.mxu0 %v1812
  %1846 = vmatpush1.msra.mxu0 %v1811
  %1847 = vmatprep.subr.mxu0 0.0
  %1848 = vmatpush1.msra.mxu0 0.0
  %1849 = vmatprep.subr.mxu0 0.0
  %1850 = vmatpush1.msra.mxu0 0.0
  %1851 = vmatprep.subr.mxu0 0.0
  %1852 = vmatpush1.msra.mxu0 0.0
  %1853 = vmatprep.subr.mxu0 0.0
  %1854 = vmatpush1.msra.mxu0 0.0
  %1855 = vmatprep.subr.mxu0 0.0
  %1856 = vmatpush1.msra.mxu0 0.0
  %1857 = vmatprep.subr.mxu0 0.0
  %1858 = vmatpush1.msra.mxu0 0.0
  %1859 = vmatprep.subr.mxu0 0.0
  %1860 = vmatpush1.msra.mxu0 0.0
  %1861 = vmatprep.subr.mxu0 0.0
  %1862 = vmatpush1.msra.mxu0 0.0
  %1863 = vmatprep.subr.mxu0 0.0
  %1864 = vmatpush1.msra.mxu0 0.0
  %1865 = vmatprep.subr.mxu0 0.0
  %1866 = vmatpush1.msra.mxu0 0.0
  %1867 = vmatprep.subr.mxu0 0.0
  %1868 = vmatpush1.msra.mxu0 0.0
  %1869 = vmatprep.subr.mxu0 0.0
  %1870 = vmatpush1.msra.mxu0 0.0
  %1871 = vmatprep.subr.mxu0 0.0
  %1872 = vmatpush1.msra.mxu0 0.0
  %1873 = vmatprep.subr.mxu0 0.0
  %1874 = vmatpush1.msra.mxu0 0.0
  %1875 = vmatprep.subr.mxu0 0.0
  %1876 = vmatpush1.msra.mxu0 0.0
  %1877 = vmatprep.subr.mxu0 0.0
  %1878 = vmatpush1.msra.mxu0 0.0
  %1879 = vmatprep.mubr.f32.mxu0 0.0
  %1880 = vmatmul.mubr.f32.gmra.mrb[0].mxu0 %v1750
  %v1881 = vpop.f32.mrb[0].mxu0
  %v1882 = vadd.f32 0.0, %v1881
  %v1883 = vpop.f32.mrb[0].mxu0
  %v1884 = vadd.f32 0.0, %v1883
  %1885 = vdwg.mxu0
  %1886 = vmatprep.subr.mxu0 %v1754
  %1887 = vmatpush1.msra.mxu0 %v1753
  %1888 = vmatprep.subr.mxu0 %v1758
  %1889 = vmatpush1.msra.mxu0 %v1757
  %1890 = vmatprep.subr.mxu0 %v1762
  %1891 = vmatpush1.msra.mxu0 %v1761
  %1892 = vmatprep.subr.mxu0 %v1766
  %1893 = vmatpush1.msra.mxu0 %v1765
  %1894 = vmatprep.subr.mxu0 %v1770
  %1895 = vmatpush1.msra.mxu0 %v1769
  %1896 = vmatprep.subr.mxu0 %v1774
  %1897 = vmatpush1.msra.mxu0 %v1773
  %1898 = vmatprep.subr.mxu0 %v1778
  %1899 = vmatpush1.msra.mxu0 %v1777
  %1900 = vmatprep.subr.mxu0 %v1782
  %1901 = vmatpush1.msra.mxu0 %v1781
  %1902 = vmatprep.subr.mxu0 %v1786
  %1903 = vmatpush1.msra.mxu0 %v1785
  %1904 = vmatprep.subr.mxu0 %v1790
  %1905 = vmatpush1.msra.mxu0 %v1789
  %1906 = vmatprep.subr.mxu0 %v1794
  %1907 = vmatpush1.msra.mxu0 %v1793
  %1908 = vmatprep.subr.mxu0 %v1798
  %1909 = vmatpush1.msra.mxu0 %v1797
  %1910 = vmatprep.subr.mxu0 %v1802
  %1911 = vmatpush1.msra.mxu0 %v1801
  %1912 = vmatprep.subr.mxu0 %v1806
  %1913 = vmatpush1.msra.mxu0 %v1805
  %1914 = vmatprep.subr.mxu0 %v1810
  %1915 = vmatpush1.msra.mxu0 %v1809
  %1916 = vmatprep.subr.mxu0 %v1814
  %1917 = vmatpush1.msra.mxu0 %v1813
  %1918 = vmatprep.subr.mxu0 0.0
  %1919 = vmatpush1.msra.mxu0 0.0
  %1920 = vmatprep.subr.mxu0 0.0
  %1921 = vmatpush1.msra.mxu0 0.0
  %1922 = vmatprep.subr.mxu0 0.0
  %1923 = vmatpush1.msra.mxu0 0.0
  %1924 = vmatprep.subr.mxu0 0.0
  %1925 = vmatpush1.msra.mxu0 0.0
  %1926 = vmatprep.subr.mxu0 0.0
  %1927 = vmatpush1.msra.mxu0 0.0
  %1928 = vmatprep.subr.mxu0 0.0
  %1929 = vmatpush1.msra.mxu0 0.0
  %1930 = vmatprep.subr.mxu0 0.0
  %1931 = vmatpush1.msra.mxu0 0.0
  %1932 = vmatprep.subr.mxu0 0.0
  %1933 = vmatpush1.msra.mxu0 0.0
  %1934 = vmatprep.subr.mxu0 0.0
  %1935 = vmatpush1.msra.mxu0 0.0
  %1936 = vmatprep.subr.mxu0 0.0
  %1937 = vmatpush1.msra.mxu0 0.0
  %1938 = vmatprep.subr.mxu0 0.0
  %1939 = vmatpush1.msra.mxu0 0.0
  %1940 = vmatprep.subr.mxu0 0.0
  %1941 = vmatpush1.msra.mxu0 0.0
  %1942 = vmatprep.subr.mxu0 0.0
  %1943 = vmatpush1.msra.mxu0 0.0
  %1944 = vmatprep.subr.mxu0 0.0
  %1945 = vmatpush1.msra.mxu0 0.0
  %1946 = vmatprep.subr.mxu0 0.0
  %1947 = vmatpush1.msra.mxu0 0.0
  %1948 = vmatprep.subr.mxu0 0.0
  %1949 = vmatpush1.msra.mxu0 0.0
  %1950 = vmatprep.mubr.f32.mxu0 0.0
  %1951 = vmatmul.mubr.f32.gmra.mrb[0].mxu0 %v1750
  %v1952 = vpop.f32.mrb[0].mxu0
  %v1953 = vadd.f32 0.0, %v1952
  %v1954 = vpop.f32.mrb[0].mxu0
  %v1955 = vadd.f32 0.0, %v1954
  %1956 = vdwg.mxu0
  %v1957 = vadd.f32 %v1746, %v1882
  %v1958 = vadd.f32 %v1747, %v1884
  %v1959 = vadd.f32 %v1748, %v1953
  %v1960 = vadd.f32 %v1749, %v1955
  %v1961 = vld [vmem:[#allocation3] sm:$0xff]
  %v1962 = vxor.u32 %v1957, 2147483648
  %v1963 = vmul.f32 %v1962, 1.442695
  %v1964 = vpow.pop %v1963
  %v1965 = vadd.f32 %v1964, 1.0
  %v1966 = vrcp.pop %v1965
  %v1967 = vmul.f32 1.0, %v1966
  %v1968 = vxor.u32 %v1958, 2147483648
  %v1969 = vmul.f32 %v1968, 1.442695
  %v1970 = vpow.pop %v1969
  %v1971 = vadd.f32 %v1970, 1.0
  %v1972 = vrcp.pop %v1971
  %v1973 = vmul.f32 1.0, %v1972
  %v1974 = vtanh.pop %v1959
  %v1975 = vxor.u32 %v1960, 2147483648
  %v1976 = vmul.f32 %v1975, 1.442695
  %v1977 = vpow.pop %v1976
  %v1978 = vadd.f32 %v1977, 1.0
  %v1979 = vrcp.pop %v1978
  %v1980 = vmul.f32 1.0, %v1979
  %v1981 = vmul.f32 %v1973, %v1961
  %v1982 = vmul.f32 %v1967, %v1974
  %v1983 = vadd.f32 %v1981, %v1982
  %v1984 = vtanh.pop %v1983
  %v1985 = vmul.f32 %v1980, %v1984
  %1986 = vst [vmem:[#allocation2] sm:$0xff] %v1985
  %1987 = vst [vmem:[#allocation3] sm:$0xff] %v1983
  %v1988 = vld [vmem:[%s6] sm:$0xff]
  %v1989 = vld [vmem:[%s6 + $0x8] sm:$0xff]
  %v1990 = vld [vmem:[%s6 + $0x10] sm:$0xff]
  %v1991 = vld [vmem:[%s6 + $0x18] sm:$0xff]
  %v1992 = vld [vmem:[%s6 + $0x20] sm:$0xff]
  %v1993 = vld [vmem:[%s6 + $0x28] sm:$0xff]
  %v1994 = vld [vmem:[%s6 + $0x30] sm:$0xff]
  %v1995 = vld [vmem:[%s6 + $0x38] sm:$0xff]
  %v1996 = vld [vmem:[%s6 + $0x40] sm:$0xff]
  %v1997 = vld [vmem:[%s6 + $0x48] sm:$0xff]
  %v1998 = vld [vmem:[%s6 + $0x50] sm:$0xff]
  %v1999 = vld [vmem:[%s6 + $0x58] sm:$0xff]
  %v2000 = vld [vmem:[%s6 + $0x60] sm:$0xff]
  %v2001 = vld [vmem:[%s6 + $0x68] sm:$0xff]
  %v2002 = vld [vmem:[%s6 + $0x70] sm:$0xff]
  %v2003 = vld [vmem:[%s6 + $0x78] sm:$0xff]
  %v2004 = vld [vmem:[%s7] sm:$0x1]
  %v2006 = vlaneseq
  %v2007 = vshrl.u32 %v2006, 7
  %v2008 = vsub.s32 0, %v2007
  %v2009 = vrot.slane %v2004, %v2008
  %2011 = vmatprep.subr.mxu0 0.0
  %2012 = vmatpush1.msra.mxu0 %v1988
  %2013 = vmatprep.subr.mxu0 0.0
  %2014 = vmatpush1.msra.mxu0 %v1989
  %2015 = vmatprep.subr.mxu0 0.0
  %2016 = vmatpush1.msra.mxu0 %v1990
  %2017 = vmatprep.subr.mxu0 0.0
  %2018 = vmatpush1.msra.mxu0 %v1991
  %2019 = vmatprep.subr.mxu0 0.0
  %2020 = vmatpush1.msra.mxu0 %v1992
  %2021 = vmatprep.subr.mxu0 0.0
  %2022 = vmatpush1.msra.mxu0 %v1993
  %2023 = vmatprep.subr.mxu0 0.0
  %2024 = vmatpush1.msra.mxu0 %v1994
  %2025 = vmatprep.subr.mxu0 0.0
  %2026 = vmatpush1.msra.mxu0 %v1995
  %2027 = vmatprep.subr.mxu0 0.0
  %2028 = vmatpush1.msra.mxu0 %v1996
  %2029 = vmatprep.subr.mxu0 0.0
  %2030 = vmatpush1.msra.mxu0 %v1997
  %2031 = vmatprep.subr.mxu0 0.0
  %2032 = vmatpush1.msra.mxu0 %v1998
  %2033 = vmatprep.subr.mxu0 0.0
  %2034 = vmatpush1.msra.mxu0 %v1999
  %2035 = vmatprep.subr.mxu0 0.0
  %2036 = vmatpush1.msra.mxu0 %v2000
  %2037 = vmatprep.subr.mxu0 0.0
  %2038 = vmatpush1.msra.mxu0 %v2001
  %2039 = vmatprep.subr.mxu0 0.0
  %2040 = vmatpush1.msra.mxu0 %v2002
  %2041 = vmatprep.subr.mxu0 0.0
  %2042 = vmatpush1.msra.mxu0 %v2003
  %2043 = vmatprep.subr.mxu0 0.0
  %2044 = vmatpush1.msra.mxu0 0.0
  %2045 = vmatprep.subr.mxu0 0.0
  %2046 = vmatpush1.msra.mxu0 0.0
  %2047 = vmatprep.subr.mxu0 0.0
  %2048 = vmatpush1.msra.mxu0 0.0
  %2049 = vmatprep.subr.mxu0 0.0
  %2050 = vmatpush1.msra.mxu0 0.0
  %2051 = vmatprep.subr.mxu0 0.0
  %2052 = vmatpush1.msra.mxu0 0.0
  %2053 = vmatprep.subr.mxu0 0.0
  %2054 = vmatpush1.msra.mxu0 0.0
  %2055 = vmatprep.subr.mxu0 0.0
  %2056 = vmatpush1.msra.mxu0 0.0
  %2057 = vmatprep.subr.mxu0 0.0
  %2058 = vmatpush1.msra.mxu0 0.0
  %2059 = vmatprep.subr.mxu0 0.0
  %2060 = vmatpush1.msra.mxu0 0.0
  %2061 = vmatprep.subr.mxu0 0.0
  %2062 = vmatpush1.msra.mxu0 0.0
  %2063 = vmatprep.subr.mxu0 0.0
  %2064 = vmatpush1.msra.mxu0 0.0
  %2065 = vmatprep.subr.mxu0 0.0
  %2066 = vmatpush1.msra.mxu0 0.0
  %2067 = vmatprep.subr.mxu0 0.0
  %2068 = vmatpush1.msra.mxu0 0.0
  %2069 = vmatprep.subr.mxu0 0.0
  %2070 = vmatpush1.msra.mxu0 0.0
  %2071 = vmatprep.subr.mxu0 0.0
  %2072 = vmatpush1.msra.mxu0 0.0
  %2073 = vmatprep.subr.mxu0 0.0
  %2074 = vmatpush1.msra.mxu0 0.0
  %2075 = vmatprep.mubr.f32.mxu0 0.0
  %2076 = vmatmul.mubr.f32.gmra.mrb[0].mxu0 %v1985
  %v2077 = vpop.f32.mrb[0].mxu0
  %v2078 = vadd.f32 %v2009, %v2077
  %v2079 = vpop.f32.mrb[0].mxu0
  %2080 = vdwg.mxu0
  %2081 = vst [vmem:[%s8] sm:$0xff] %v2078
  %s2082 = sld [smem:[#allocation6 + $0x1]]
  %p2083 = scmp.gt.s32.totalorder %s2082, 0
  // Predicated region
  $region30: #{seq2seq_forward.1} parent=0 // pred_check
    %p2084 = pneg %p2083
  $region31: #{seq2seq_forward.1} parent=0 // pred_check_branch
    %2086 = sbr.rel (%p2084) target = $region33
  $region32: #{seq2seq_forward.1} parent=0 // pred_region
    %s2087 = scalar_lea.vmem %s2, 32
    %v2088 = vld [vmem:[%s2087] sm:$0xff]
    %v2089 = vld [vmem:[%s2087 + $0x8] sm:$0xff]
    %v2090 = vld [vmem:[%s2087 + $0x10] sm:$0xff]
    %v2091 = vld [vmem:[%s2087 + $0x18] sm:$0xff]
    %2092 = vst [vmem:[#allocation4] sm:$0xff] %v2088
    %2093 = vst [vmem:[#allocation4 + $0x8] sm:$0xff] %v2089
    %2094 = vst [vmem:[#allocation4 + $0x10] sm:$0xff] %v2090
    %2095 = vst [vmem:[#allocation4 + $0x18] sm:$0xff] %v2091
  $region33: #{seq2seq_forward.1} parent=0 // pred_fallthru
    _
  %p2096 = scmp.eq.s32.totalorder %s2082, 0
  // Predicated region
  $region34: #{seq2seq_forward.1} parent=0 // pred_check
    %p2097 = pneg %p2096
  $region35: #{seq2seq_forward.1} parent=0 // pred_check_branch
    %2099 = sbr.rel (%p2097) target = $region37
  $region36: #{seq2seq_forward.1} parent=0 // pred_region
    %v2100 = vsel %vm1745, %v2078, -1e+30
    %2101 = vmax.xlane.f32.xlu0 %v2100
    %v2102 = vpop.xlane.xlu0 %2101
    %vm2103 = vcmp.eq.f32.partialorder %v2100, %v2102
    %vm2104 = vmand %vm2103, %vm1745
    %v2105 = vsel %vm2104, %v1744, 128
    %v2106 = vand.u32 %v2105, 65535
    %v2107 = vshra.s32 %v2105, 16
    %v2108 = vcvt.s32.f32 %v2106
    %v2109 = vcvt.s32.f32 %v2107
    %2110 = vmin.xlane.f32.xlu0 %v2109
    %v2111 = vpop.xlane.xlu0 %2110
    %vm2112 = vcmp.eq.f32.partialorder %v2109, %v2111
    %v2113 = vsel %vm2112, %v2108, inf
    %2114 = vmin.xlane.f32.xlu0 %v2113
    %v2115 = vpop.xlane.xlu0 %2114
    %v2116 = vcvt.f32.s32 %v2115
    %v2117 = vcvt.f32.s32 %v2111
    %v2118 = vshll.u32 %v2117, 16
    %v2119 = vadd.s32 %v2118, %v2116
    %vm2120 = vcmp.eq.s32.totalorder %v1744, %v2119
    %v2121 = vsel %vm2120, 1, 0
    %v2122 = vcvt.s32.f32 %v2121
    %v2123 = vld [vmem:[%s5] sm:$0xff]
    %v2124 = vld [vmem:[%s5 + $0x8] sm:$0xff]
    %v2125 = vld [vmem:[%s5 + $0x10] sm:$0xff]
    %v2126 = vld [vmem:[%s5 + $0x18] sm:$0xff]
    %v2127 = vld [vmem:[%s5 + $0x20] sm:$0xff]
    %v2128 = vld [vmem:[%s5 + $0x28] sm:$0xff]
    %v2129 = vld [vmem:[%s5 + $0x30] sm:$0xff]
    %v2130 = vld [vmem:[%s5 + $0x38] sm:$0xff]
    %v2131 = vld [vmem:[%s5 + $0x40] sm:$0xff]
    %v2132 = vld [vmem:[%s5 + $0x48] sm:$0xff]
    %v2133 = vld [vmem:[%s5 + $0x50] sm:$0xff]
    %v2134 = vld [vmem:[%s5 + $0x58] sm:$0xff]
    %v2135 = vld [vmem:[%s5 + $0x60] sm:$0xff]
    %v2136 = vld [vmem:[%s5 + $0x68] sm:$0xff]
    %v2137 = vld [vmem:[%s5 + $0x70] sm:$0xff]
    %v2138 = vld [vmem:[%s5 + $0x78] sm:$0xff]
    %v2139 = vld [vmem:[%s5 + $0x80] sm:$0xff]
    %v2140 = vld [vmem:[%s5 + $0x88] sm:$0xff]
    %v2141 = vld [vmem:[%s5 + $0x90] sm:$0xff]
    %v2142 = vld [vmem:[%s5 + $0x98] sm:$0xff]
    %v2143 = vld [vmem:[%s5 + $0xa0] sm:$0xff]
    %v2144 = vld [vmem:[%s5 + $0xa8] sm:$0xff]
    %v2145 = vld [vmem:[%s5 + $0xb0] sm:$0xff]
    %v2146 = vld [vmem:[%s5 + $0xb8] sm:$0xff]
    %v2147 = vld [vmem:[%s5 + $0xc0] sm:$0xff]
    %v2148 = vld [vmem:[%s5 + $0xc8] sm:$0xff]
    %v2149 = vld [vmem:[%s5 + $0xd0] sm:$0xff]
    %v2150 = vld [vmem:[%s5 + $0xd8] sm:$0xff]
    %v2151 = vld [vmem:[%s5 + $0xe0] sm:$0xff]
    %v2152 = vld [vmem:[%s5 + $0xe8] sm:$0xff]
    %v2153 = vld [vmem:[%s5 + $0xf0] sm:$0xff]
    %v2154 = vld [vmem:[%s5 + $0xf8] sm:$0xff]
    %v2155 = vld [vmem:[%s5 + $0x100] sm:$0xff]
    %v2156 = vld [vmem:[%s5 + $0x108] sm:$0xff]
    %v2157 = vld [vmem:[%s5 + $0x110] sm:$0xff]
    %v2158 = vld [vmem:[%s5 + $0x118] sm:$0xff]
    %v2159 = vld [vmem:[%s5 + $0x120] sm:$0xff]
    %v2160 = vld [vmem:[%s5 + $0x128] sm:$0xff]
    %v2161 = vld [vmem:[%s5 + $0x130] sm:$0xff]
    %v2162 = vld [vmem:[%s5 + $0x138] sm:$0xff]
    %v2163 = vld [vmem:[%s5 + $0x140] sm:$0xff]
    %v2164 = vld [vmem:[%s5 + $0x148] sm:$0xff]
    %v2165 = vld [vmem:[%s5 + $0x150] sm:$0xff]
    %v2166 = vld [vmem:[%s5 + $0x158] sm:$0xff]
    %v2167 = vld [vmem:[%s5 + $0x160] sm:$0xff]
    %v2168 = vld [vmem:[%s5 + $0x168] sm:$0xff]
    %v2169 = vld [vmem:[%s5 + $0x170] sm:$0xff]
    %v2170 = vld [vmem:[%s5 + $0x178] sm:$0xff]
    %v2171 = vld [vmem:[%s5 + $0x180] sm:$0xff]
    %v2172 = vld [vmem:[%s5 + $0x188] sm:$0xff]
    %v2173 = vld [vmem:[%s5 + $0x190] sm:$0xff]
    %v2174 = vld [vmem:[%s5 + $0x198] sm:$0xff]
    %v2175 = vld [vmem:[%s5 + $0x1a0] sm:$0xff]
    %v2176 = vld [vmem:[%s5 + $0x1a8] sm:$0xff]
    %v2177 = vld [vmem:[%s5 + $0x1b0] sm:$0xff]
    %v2178 = vld [vmem:[%s5 + $0x1b8] sm:$0xff]
    %v2179 = vld [vmem:[%s5 + $0x1c0] sm:$0xff]
    %v2180 = vld [vmem:[%s5 + $0x1c8] sm:$0xff]
    %v2181 = vld [vmem:[%s5 + $0x1d0] sm:$0xff]
    %v2182 = vld [vmem:[%s5 + $0x1d8] sm:$0xff]
    %v2183 = vld [vmem:[%s5 + $0x1e0] sm:$0xff]
    %v2184 = vld [vmem:[%s5 + $0x1e8] sm:$0xff]
    %v2185 = vld [vmem:[%s5 + $0x1f0] sm:$0xff]
    %v2186 = vld [vmem:[%s5 + $0x1f8] sm:$0xff]
    %2187 = vmatprep.subr.mxu0 %v2124
    %2188 = vmatpush1.msra.mxu0 %v2123
    %2189 = vmatprep.subr.mxu0 %v2128
    %2190 = vmatpush1.msra.mxu0 %v2127
    %2191 = vmatprep.subr.mxu0 %v2132
    %2192 = vmatpush1.msra.mxu0 %v2131
    %2193 = vmatprep.subr.mxu0 %v2136
    %2194 = vmatpush1.msra.mxu0 %v2135
    %2195 = vmatprep.subr.mxu0 %v2140
    %2196 = vmatpush1.msra.mxu0 %v2139
    %2197 = vmatprep.subr.mxu0 %v2144
    %2198 = vmatpush1.msra.mxu0 %v2143
    %2199 = vmatprep.subr.mxu0 %v2148
    %2200 = vmatpush1.msra.mxu0 %v2147
    %2201 = vmatprep.subr.mxu0 %v2152
    %2202 = vmatpush1.msra.mxu0 %v2151
    %2203 = vmatprep.subr.mxu0 %v2156
    %2204 = vmatpush1.msra.mxu0 %v2155
    %2205 = vmatprep.subr.mxu0 %v2160
    %2206 = vmatpush1.msra.mxu0 %v2159
    %2207 = vmatprep.subr.mxu0 %v2164
    %2208 = vmatpush1.msra.mxu0 %v2163
    %2209 = vmatprep.subr.mxu0 %v2168
    %2210 = vmatpush1.msra.mxu0 %v2167
    %2211 = vmatprep.subr.mxu0 %v2172
    %2212 = vmatpush1.msra.mxu0 %v2171
    %2213 = vmatprep.subr.mxu0 %v2176
    %2214 = vmatpush1.msra.mxu0 %v2175
    %2215 = vmatprep.subr.mxu0 %v2180
    %2216 = vmatpush1.msra.mxu0 %v2179
    %2217 = vmatprep.subr.mxu0 %v2184
    %2218 = vmatpush1.msra.mxu0 %v2183
    %2219 = vmatprep.subr.mxu0 0.0
    %2220 = vmatpush1.msra.mxu0 0.0
    %2221 = vmatprep.subr.mxu0 0.0
    %2222 = vmatpush1.msra.mxu0 0.0
    %2223 = vmatprep.subr.mxu0 0.0
    %2224 = vmatpush1.msra.mxu0 0.0
    %2225 = vmatprep.subr.mxu0 0.0
    %2226 = vmatpush1.msra.mxu0 0.0
    %2227 = vmatprep.subr.mxu0 0.0
    %2228 = vmatpush1.msra.mxu0 0.0
    %2229 = vmatprep.subr.mxu0 0.0
    %2230 = vmatpush1.msra.mxu0 0.0
    %2231 = vmatprep.subr.mxu0 0.0
    %2232 = vmatpush1.msra.mxu0 0.0
    %2233 = vmatprep.subr.mxu0 0.0
    %2234 = vmatpush1.msra.mxu0 0.0
    %2235 = vmatprep.subr.mxu0 0.0
    %2236 = vmatpush1.msra.mxu0 0.0
    %2237 = vmatprep.subr.mxu0 0.0
    %2238 = vmatpush1.msra.mxu0 0.0
    %2239 = vmatprep.subr.mxu0 0.0
    %2240 = vmatpush1.msra.mxu0 0.0
    %2241 = vmatprep.subr.mxu0 0.0
    %2242 = vmatpush1.msra.mxu0 0.0
    %2243 = vmatprep.subr.mxu0 0.0
    %2244 = vmatpush1.msra.mxu0 0.0
    %2245 = vmatprep.subr.mxu0 0.0
    %2246 = vmatpush1.msra.mxu0 0.0
    %2247 = vmatprep.subr.mxu0 0.0
    %2248 = vmatpush1.msra.mxu0 0.0
    %2249 = vmatprep.subr.mxu0 0.0
    %2250 = vmatpush1.msra.mxu0 0.0
    %2251 = vmatprep.mubr.f32.mxu0 0.0
    %2252 = vmatmul.mubr.f32.gmra.mrb[0].mxu0 %v2122
    %v2253 = vpop.f32.mrb[0].mxu0
    %v2254 = vadd.f32 0.0, %v2253
    %v2255 = vpop.f32.mrb[0].mxu0
    %v2256 = vadd.f32 0.0, %v2255
    %2257 = vdwg.mxu0
    %2258 = vmatprep.subr.mxu0 %v2126
    %2259 = vmatpush1.msra.mxu0 %v2125
    %2260 = vmatprep.subr.mxu0 %v2130
    %2261 = vmatpush1.msra.mxu0 %v2129
    %2262 = vmatprep.subr.mxu0 %v2134
    %2263 = vmatpush1.msra.mxu0 %v2133
    %2264 = vmatprep.subr.mxu0 %v2138
    %2265 = vmatpush1.msra.mxu0 %v2137
    %2266 = vmatprep.subr.mxu0 %v2142
    %2267 = vmatpush1.msra.mxu0 %v2141
    %2268 = vmatprep.subr.mxu0 %v2146
    %2269 = vmatpush1.msra.mxu0 %v2145
    %2270 = vmatprep.subr.mxu0 %v2150
    %2271 = vmatpush1.msra.mxu0 %v2149
    %2272 = vmatprep.subr.mxu0 %v2154
    %2273 = vmatpush1.msra.mxu0 %v2153
    %2274 = vmatprep.subr.mxu0 %v2158
    %2275 = vmatpush1.msra.mxu0 %v2157
    %2276 = vmatprep.subr.mxu0 %v2162
    %2277 = vmatpush1.msra.mxu0 %v2161
    %2278 = vmatprep.subr.mxu0 %v2166
    %2279 = vmatpush1.msra.mxu0 %v2165
    %2280 = vmatprep.subr.mxu0 %v2170
    %2281 = vmatpush1.msra.mxu0 %v2169
    %2282 = vmatprep.subr.mxu0 %v2174
    %2283 = vmatpush1.msra.mxu0 %v2173
    %2284 = vmatprep.subr.mxu0 %v2178
    %2285 = vmatpush1.msra.mxu0 %v2177
    %2286 = vmatprep.subr.mxu0 %v2182
    %2287 = vmatpush1.msra.mxu0 %v2181
    %2288 = vmatprep.subr.mxu0 %v2186
    %2289 = vmatpush1.msra.mxu0 %v2185
    %2290 = vmatprep.subr.mxu0 0.0
    %2291 = vmatpush1.msra.mxu0 0.0
    %2292 = vmatprep.subr.mxu0 0.0
    %2293 = vmatpush1.msra.mxu0 0.0
    %2294 = vmatprep.subr.mxu0 0.0
    %2295 = vmatpush1.msra.mxu0 0.0
    %2296 = vmatprep.subr.mxu0 0.0
    %2297 = vmatpush1.msra.mxu0 0.0
    %2298 = vmatprep.subr.mxu0 0.0
    %2299 = vmatpush1.msra.mxu0 0.0
    %2300 = vmatprep.subr.mxu0 0.0
    %2301 = vmatpush1.msra.mxu0 0.0
    %2302 = vmatprep.subr.mxu0 0.0
    %2303 = vmatpush1.msra.mxu0 0.0
    %2304 = vmatprep.subr.mxu0 0.0
    %2305 = vmatpush1.msra.mxu0 0.0
    %2306 = vmatprep.subr.mxu0 0.0
    %2307 = vmatpush1.msra.mxu0 0.0
    %2308 = vmatprep.subr.mxu0 0.0
    %2309 = vmatpush1.msra.mxu0 0.0
    %2310 = vmatprep.subr.mxu0 0.0
    %2311 = vmatpush1.msra.mxu0 0.0
    %2312 = vmatprep.subr.mxu0 0.0
    %2313 = vmatpush1.msra.mxu0 0.0
    %2314 = vmatprep.subr.mxu0 0.0
    %2315 = vmatpush1.msra.mxu0 0.0
    %2316 = vmatprep.subr.mxu0 0.0
    %2317 = vmatpush1.msra.mxu0 0.0
    %2318 = vmatprep.subr.mxu0 0.0
    %2319 = vmatpush1.msra.mxu0 0.0
    %2320 = vmatprep.subr.mxu0 0.0
    %2321 = vmatpush1.msra.mxu0 0.0
    %2322 = vmatprep.mubr.f32.mxu0 0.0
    %2323 = vmatmul.mubr.f32.gmra.mrb[0].mxu0 %v2122
    %v2324 = vpop.f32.mrb[0].mxu0
    %v2325 = vadd.f32 0.0, %v2324
    %v2326 = vpop.f32.mrb[0].mxu0
    %v2327 = vadd.f32 0.0, %v2326
    %2328 = vdwg.mxu0
    %2329 = vst [vmem:[#allocation4] sm:$0xff] %v2254
    %2330 = vst [vmem:[#allocation4 + $0x8] sm:$0xff] %v2256
    %2331 = vst [vmem:[#allocation4 + $0x10] sm:$0xff] %v2325
    %2332 = vst [vmem:[#allocation4 + $0x18] sm:$0xff] %v2327
  $region37: #{seq2seq_forward.1} parent=0 // pred_fallthru
    _
  %v2333 = vld [vmem:[#allocation4] sm:$0xff]
  %v2334 = vld [vmem:[#allocation4 + $0x8] sm:$0xff]
  %v2335 = vld [vmem:[#allocation4 + $0x10] sm:$0xff]
  %v2336 = vld [vmem:[#allocation4 + $0x18] sm:$0xff]
  %v2337 = vld [vmem:[#allocation2] sm:$0xff]
  %v2338 = vld [vmem:[%s4] sm:$0xff]
  %v2339 = vld [vmem:[%s4 + $0x8] sm:$0xff]
  %v2340 = vld [vmem:[%s4 + $0x10] sm:$0xff]
  %v2341 = vld [vmem:[%s4 + $0x18] sm:$0xff]
  %v2342 = vld [vmem:[%s4 + $0x20] sm:$0xff]
  %v2343 = vld [vmem:[%s4 + $0x28] sm:$0xff]
  %v2344 = vld [vmem:[%s4 + $0x30] sm:$0xff]
  %v2345 = vld [vmem:[%s4 + $0x38] sm:$0xff]
  %v2346 = vld [vmem:[%s4 + $0x40] sm:$0xff]
  %v2347 = vld [vmem:[%s4 + $0x48] sm:$0xff]
  %v2348 = vld [vmem:[%s4 + $0x50] sm:$0xff]
  %v2349 = vld [vmem:[%s4 + $0x58] sm:$0xff]
  %v2350 = vld [vmem:[%s4 + $0x60] sm:$0xff]
  %v2351 = vld [vmem:[%s4 + $0x68] sm:$0xff]
  %v2352 = vld [vmem:[%s4 + $0x70] sm:$0xff]
  %v2353 = vld [vmem:[%s4 + $0x78] sm:$0xff]
  %v2354 = vld [vmem:[%s4 + $0x80] sm:$0xff]
  %v2355 = vld [vmem:[%s4 + $0x88] sm:$0xff]
  %v2356 = vld [vmem:[%s4 + $0x90] sm:$0xff]
  %v2357 = vld [vmem:[%s4 + $0x98] sm:$0xff]
  %v2358 = vld [vmem:[%s4 + $0xa0] sm:$0xff]
  %v2359 = vld [vmem:[%s4 + $0xa8] sm:$0xff]
  %v2360 = vld [vmem:[%s4 + $0xb0] sm:$0xff]
  %v2361 = vld [vmem:[%s4 + $0xb8] sm:$0xff]
  %v2362 = vld [vmem:[%s4 + $0xc0] sm:$0xff]
  %v2363 = vld [vmem:[%s4 + $0xc8] sm:$0xff]
  %v2364 = vld [vmem:[%s4 + $0xd0] sm:$0xff]
  %v2365 = vld [vmem:[%s4 + $0xd8] sm:$0xff]
  %v2366 = vld [vmem:[%s4 + $0xe0] sm:$0xff]
  %v2367 = vld [vmem:[%s4 + $0xe8] sm:$0xff]
  %v2368 = vld [vmem:[%s4 + $0xf0] sm:$0xff]
  %v2369 = vld [vmem:[%s4 + $0xf8] sm:$0xff]
  %v2370 = vld [vmem:[%s4 + $0x100] sm:$0xff]
  %v2371 = vld [vmem:[%s4 + $0x108] sm:$0xff]
  %v2372 = vld [vmem:[%s4 + $0x110] sm:$0xff]
  %v2373 = vld [vmem:[%s4 + $0x118] sm:$0xff]
  %v2374 = vld [vmem:[%s4 + $0x120] sm:$0xff]
  %v2375 = vld [vmem:[%s4 + $0x128] sm:$0xff]
  %v2376 = vld [vmem:[%s4 + $0x130] sm:$0xff]
  %v2377 = vld [vmem:[%s4 + $0x138] sm:$0xff]
  %v2378 = vld [vmem:[%s4 + $0x140] sm:$0xff]
  %v2379 = vld [vmem:[%s4 + $0x148] sm:$0xff]
  %v2380 = vld [vmem:[%s4 + $0x150] sm:$0xff]
  %v2381 = vld [vmem:[%s4 + $0x158] sm:$0xff]
  %v2382 = vld [vmem:[%s4 + $0x160] sm:$0xff]
  %v2383 = vld [vmem:[%s4 + $0x168] sm:$0xff]
  %v2384 = vld [vmem:[%s4 + $0x170] sm:$0xff]
  %v2385 = vld [vmem:[%s4 + $0x178] sm:$0xff]
  %v2386 = vld [vmem:[%s4 + $0x180] sm:$0xff]
  %v2387 = vld [vmem:[%s4 + $0x188] sm:$0xff]
  %v2388 = vld [vmem:[%s4 + $0x190] sm:$0xff]
  %v2389 = vld [vmem:[%s4 + $0x198] sm:$0xff]
  %v2390 = vld [vmem:[%s4 + $0x1a0] sm:$0xff]
  %v2391 = vld [vmem:[%s4 + $0x1a8] sm:$0xff]
  %v2392 = vld [vmem:[%s4 + $0x1b0] sm:$0xff]
  %v2393 = vld [vmem:[%s4 + $0x1b8] sm:$0xff]
  %v2394 = vld [vmem:[%s4 + $0x1c0] sm:$0xff]
  %v2395 = vld [vmem:[%s4 + $0x1c8] sm:$0xff]
  %v2396 = vld [vmem:[%s4 + $0x1d0] sm:$0xff]
  %v2397 = vld [vmem:[%s4 + $0x1d8] sm:$0xff]
  %v2398 = vld [vmem:[%s4 + $0x1e0] sm:$0xff]
  %v2399 = vld [vmem:[%s4 + $0x1e8] sm:$0xff]
  %v2400 = vld [vmem:[%s4 + $0x1f0] sm:$0xff]
  %v2401 = vld [vmem:[%s4 + $0x1f8] sm:$0xff]
  %2402 = vmatprep.subr.mxu0 %v2339
  %2403 = vmatpush1.msra.mxu0 %v2338
  %2404 = vmatprep.subr.mxu0 %v2343
  %2405 = vmatpush1.msra.mxu0 %v2342
  %2406 = vmatprep.subr.mxu0 %v2347
  %2407 = vmatpush1.msra.mxu0 %v2346
  %2408 = vmatprep.subr.mxu0 %v2351
  %2409 = vmatpush1.msra.mxu0 %v2350
  %2410 = vmatprep.subr.mxu0 %v2355
  %2411 = vmatpush1.msra.mxu0 %v2354
  %2412 = vmatprep.subr.mxu0 %v2359
  %2413 = vmatpush1.msra.mxu0 %v2358
  %2414 = vmatprep.subr.mxu0 %v2363
  %2415 = vmatpush1.msra.mxu0 %v2362
  %2416 = vmatprep.subr.mxu0 %v2367
  %2417 = vmatpush1.msra.mxu0 %v2366
  %2418 = vmatprep.subr.mxu0 %v2371
  %2419 = vmatpush1.msra.mxu0 %v2370
  %2420 = vmatprep.subr.mxu0 %v2375
  %2421 = vmatpush1.msra.mxu0 %v2374
  %2422 = vmatprep.subr.mxu0 %v2379
  %2423 = vmatpush1.msra.mxu0 %v2378
  %2424 = vmatprep.subr.mxu0 %v2383
  %2425 = vmatpush1.msra.mxu0 %v2382
  %2426 = vmatprep.subr.mxu0 %v2387
  %2427 = vmatpush1.msra.mxu0 %v2386
  %2428 = vmatprep.subr.mxu0 %v2391
  %2429 = vmatpush1.msra.mxu0 %v2390
  %2430 = vmatprep.subr.mxu0 %v2395
  %2431 = vmatpush1.msra.mxu0 %v2394
  %2432 = vmatprep.subr.mxu0 %v2399
  %2433 = vmatpush1.msra.mxu0 %v2398
  %2434 = vmatprep.subr.mxu0 0.0
  %2435 = vmatpush1.msra.mxu0 0.0
  %2436 = vmatprep.subr.mxu0 0.0
  %2437 = vmatpush1.msra.mxu0 0.0
  %2438 = vmatprep.subr.mxu0 0.0
  %2439 = vmatpush1.msra.mxu0 0.0
  %2440 = vmatprep.subr.mxu0 0.0
  %2441 = vmatpush1.msra.mxu0 0.0
  %2442 = vmatprep.subr.mxu0 0.0
  %2443 = vmatpush1.msra.mxu0 0.0
  %2444 = vmatprep.subr.mxu0 0.0
  %2445 = vmatpush1.msra.mxu0 0.0
  %2446 = vmatprep.subr.mxu0 0.0
  %2447 = vmatpush1.msra.mxu0 0.0
  %2448 = vmatprep.subr.mxu0 0.0
  %2449 = vmatpush1.msra.mxu0 0.0
  %2450 = vmatprep.subr.mxu0 0.0
  %2451 = vmatpush1.msra.mxu0 0.0
  %2452 = vmatprep.subr.mxu0 0.0
  %2453 = vmatpush1.msra.mxu0 0.0
  %2454 = vmatprep.subr.mxu0 0.0
  %2455 = vmatpush1.msra.mxu0 0.0
  %2456 = vmatprep.subr.mxu0 0.0
  %2457 = vmatpush1.msra.mxu0 0.0
  %2458 = vmatprep.subr.mxu0 0.0
  %2459 = vmatpush1.msra.mxu0 0.0
  %2460 = vmatprep.subr.mxu0 0.0
  %2461 = vmatpush1.msra.mxu0 0.0
  %2462 = vmatprep.subr.mxu0 0.0
  %2463 = vmatpush1.msra.mxu0 0.0
  %2464 = vmatprep.subr.mxu0 0.0
  %2465 = vmatpush1.msra.mxu0 0.0
  %2466 = vmatprep.mubr.f32.mxu0 0.0
  %2467 = vmatmul.mubr.f32.gmra.mrb[0].mxu0 %v2337
  %v2468 = vpop.f32.mrb[0].mxu0
  %v2469 = vadd.f32 0.0, %v2468
  %v2470 = vpop.f32.mrb[0].mxu0
  %v2471 = vadd.f32 0.0, %v2470
  %2472 = vdwg.mxu0
  %2473 = vmatprep.subr.mxu0 %v2341
  %2474 = vmatpush1.msra.mxu0 %v2340
  %2475 = vmatprep.subr.mxu0 %v2345
  %2476 = vmatpush1.msra.mxu0 %v2344
  %2477 = vmatprep.subr.mxu0 %v2349
  %2478 = vmatpush1.msra.mxu0 %v2348
  %2479 = vmatprep.subr.mxu0 %v2353
  %2480 = vmatpush1.msra.mxu0 %v2352
  %2481 = vmatprep.subr.mxu0 %v2357
  %2482 = vmatpush1.msra.mxu0 %v2356
  %2483 = vmatprep.subr.mxu0 %v2361
  %2484 = vmatpush1.msra.mxu0 %v2360
  %2485 = vmatprep.subr.mxu0 %v2365
  %2486 = vmatpush1.msra.mxu0 %v2364
  %2487 = vmatprep.subr.mxu0 %v2369
  %2488 = vmatpush1.msra.mxu0 %v2368
  %2489 = vmatprep.subr.mxu0 %v2373
  %2490 = vmatpush1.msra.mxu0 %v2372
  %2491 = vmatprep.subr.mxu0 %v2377
  %2492 = vmatpush1.msra.mxu0 %v2376
  %2493 = vmatprep.subr.mxu0 %v2381
  %2494 = vmatpush1.msra.mxu0 %v2380
  %2495 = vmatprep.subr.mxu0 %v2385
  %2496 = vmatpush1.msra.mxu0 %v2384
  %2497 = vmatprep.subr.mxu0 %v2389
  %2498 = vmatpush1.msra.mxu0 %v2388
  %2499 = vmatprep.subr.mxu0 %v2393
  %2500 = vmatpush1.msra.mxu0 %v2392
  %2501 = vmatprep.subr.mxu0 %v2397
  %2502 = vmatpush1.msra.mxu0 %v2396
  %2503 = vmatprep.subr.mxu0 %v2401
  %2504 = vmatpush1.msra.mxu0 %v2400
  %2505 = vmatprep.subr.mxu0 0.0
  %2506 = vmatpush1.msra.mxu0 0.0
  %2507 = vmatprep.subr.mxu0 0.0
  %2508 = vmatpush1.msra.mxu0 0.0
  %2509 = vmatprep.subr.mxu0 0.0
  %2510 = vmatpush1.msra.mxu0 0.0
  %2511 = vmatprep.subr.mxu0 0.0
  %2512 = vmatpush1.msra.mxu0 0.0
  %2513 = vmatprep.subr.mxu0 0.0
  %2514 = vmatpush1.msra.mxu0 0.0
  %2515 = vmatprep.subr.mxu0 0.0
  %2516 = vmatpush1.msra.mxu0 0.0
  %2517 = vmatprep.subr.mxu0 0.0
  %2518 = vmatpush1.msra.mxu0 0.0
  %2519 = vmatprep.subr.mxu0 0.0
  %2520 = vmatpush1.msra.mxu0 0.0
  %2521 = vmatprep.subr.mxu0 0.0
  %2522 = vmatpush1.msra.mxu0 0.0
  %2523 = vmatprep.subr.mxu0 0.0
  %2524 = vmatpush1.msra.mxu0 0.0
  %2525 = vmatprep.subr.mxu0 0.0
  %2526 = vmatpush1.msra.mxu0 0.0
  %2527 = vmatprep.subr.mxu0 0.0
  %2528 = vmatpush1.msra.mxu0 0.0
  %2529 = vmatprep.subr.mxu0 0.0
  %2530 = vmatpush1.msra.mxu0 0.0
  %2531 = vmatprep.subr.mxu0 0.0
  %2532 = vmatpush1.msra.mxu0 0.0
  %2533 = vmatprep.subr.mxu0 0.0
  %2534 = vmatpush1.msra.mxu0 0.0
  %2535 = vmatprep.subr.mxu0 0.0
  %2536 = vmatpush1.msra.mxu0 0.0
  %2537 = vmatprep.mubr.f32.mxu0 0.0
  %2538 = vmatmul.mubr.f32.gmra.mrb[0].mxu0 %v2337
  %v2539 = vpop.f32.mrb[0].mxu0
  %v2540 = vadd.f32 0.0, %v2539
  %v2541 = vpop.f32.mrb[0].mxu0
  %v2542 = vadd.f32 0.0, %v2541
  %2543 = vdwg.mxu0
  %v2544 = vadd.f32 %v2333, %v2469
  %v2545 = vadd.f32 %v2334, %v2471
  %v2546 = vadd.f32 %v2335, %v2540
  %v2547 = vadd.f32 %v2336, %v2542
  %v2548 = vld [vmem:[#allocation3] sm:$0xff]
  %v2549 = vxor.u32 %v2544, 2147483648
  %v2550 = vmul.f32 %v2549, 1.442695
  %v2551 = vpow.pop %v2550
  %v2552 = vadd.f32 %v2551, 1.0
  %v2553 = vrcp.pop %v2552
  %v2554 = vmul.f32 1.0, %v2553
  %v2555 = vxor.u32 %v2545, 2147483648
  %v2556 = vmul.f32 %v2555, 1.442695
  %v2557 = vpow.pop %v2556
  %v2558 = vadd.f32 %v2557, 1.0
  %v2559 = vrcp.pop %v2558
  %v2560 = vmul.f32 1.0, %v2559
  %v2561 = vtanh.pop %v2546
  %v2562 = vxor.u32 %v2547, 2147483648
  %v2563 = vmul.f32 %v2562, 1.442695
  %v2564 = vpow.pop %v2563
  %v2565 = vadd.f32 %v2564, 1.0
  %v2566 = vrcp.pop %v2565
  %v2567 = vmul.f32 1.0, %v2566
  %v2568 = vmul.f32 %v2560, %v2548
  %v2569 = vmul.f32 %v2554, %v2561
  %v2570 = vadd.f32 %v2568, %v2569
  %v2571 = vtanh.pop %v2570
  %v2572 = vmul.f32 %v2567, %v2571
  %2573 = vst [vmem:[#allocation2] sm:$0xff] %v2572
  %2574 = vst [vmem:[#allocation3] sm:$0xff] %v2570
  %v2575 = vld [vmem:[%s6] sm:$0xff]
  %v2576 = vld [vmem:[%s6 + $0x8] sm:$0xff]
  %v2577 = vld [vmem:[%s6 + $0x10] sm:$0xff]
  %v2578 = vld [vmem:[%s6 + $0x18] sm:$0xff]
  %v2579 = vld [vmem:[%s6 + $0x20] sm:$0xff]
  %v2580 = vld [vmem:[%s6 + $0x28] sm:$0xff]
  %v2581 = vld [vmem:[%s6 + $0x30] sm:$0xff]
  %v2582 = vld [vmem:[%s6 + $0x38] sm:$0xff]
  %v2583 = vld [vmem:[%s6 + $0x40] sm:$0xff]
  %v2584 = vld [vmem:[%s6 + $0x48] sm:$0xff]
  %v2585 = vld [vmem:[%s6 + $0x50] sm:$0xff]
  %v2586 = vld [vmem:[%s6 + $0x58] sm:$0xff]
  %v2587 = vld [vmem:[%s6 + $0x60] sm:$0xff]
  %v2588 = vld [vmem:[%s6 + $0x68] sm:$0xff]
  %v2589 = vld [vmem:[%s6 + $0x70] sm:$0xff]
  %v2590 = vld [vmem:[%s6 + $0x78] sm:$0xff]
  %v2591 = vld [vmem:[%s7] sm:$0x1]
  %v2593 = vlaneseq
  %v2594 = vshrl.u32 %v2593, 7
  %v2595 = vsub.s32 0, %v2594
  %v2596 = vrot.slane %v2591, %v2595
  %2598 = vmatprep.subr.mxu0 0.0
  %2599 = vmatpush1.msra.mxu0 %v2575
  %2600 = vmatprep.subr.mxu0 0.0
  %2601 = vmatpush1.msra.mxu0 %v2576
  %2602 = vmatprep.subr.mxu0 0.0
  %2603 = vmatpush1.msra.mxu0 %v2577
  %2604 = vmatprep.subr.mxu0 0.0
  %2605 = vmatpush1.msra.mxu0 %v2578
  %2606 = vmatprep.subr.mxu0 0.0
  %2607 = vmatpush1.msra.mxu0 %v2579
  %2608 = vmatprep.subr.mxu0 0.0
  %2609 = vmatpush1.msra.mxu0 %v2580
  %2610 = vmatprep.subr.mxu0 0.0
  %2611 = vmatpush1.msra.mxu0 %v2581
  %2612 = vmatprep.subr.mxu0 0.0
  %2613 = vmatpush1.msra.mxu0 %v2582
  %2614 = vmatprep.subr.mxu0 0.0
  %2615 = vmatpush1.msra.mxu0 %v2583
  %2616 = vmatprep.subr.mxu0 0.0
  %2617 = vmatpush1.msra.mxu0 %v2584
  %2618 = vmatprep.subr.mxu0 0.0
  %2619 = vmatpush1.msra.mxu0 %v2585
  %2620 = vmatprep.subr.mxu0 0.0
  %2621 = vmatpush1.msra.mxu0 %v2586
  %2622 = vmatprep.subr.mxu0 0.0
  %2623 = vmatpush1.msra.mxu0 %v2587
  %2624 = vmatprep.subr.mxu0 0.0
  %2625 = vmatpush1.msra.mxu0 %v2588
  %2626 = vmatprep.subr.mxu0 0.0
  %2627 = vmatpush1.msra.mxu0 %v2589
  %2628 = vmatprep.subr.mxu0 0.0
  %2629 = vmatpush1.msra.mxu0 %v2590
  %2630 = vmatprep.subr.mxu0 0.0
  %2631 = vmatpush1.msra.mxu0 0.0
  %2632 = vmatprep.subr.mxu0 0.0
  %2633 = vmatpush1.msra.mxu0 0.0
  %2634 = vmatprep.subr.mxu0 0.0
  %2635 = vmatpush1.msra.mxu0 0.0
  %2636 = vmatprep.subr.mxu0 0.0
  %2637 = vmatpush1.msra.mxu0 0.0
  %2638 = vmatprep.subr.mxu0 0.0
  %2639 = vmatpush1.msra.mxu0 0.0
  %2640 = vmatprep.subr.mxu0 0.0
  %2641 = vmatpush1.msra.mxu0 0.0
  %2642 = vmatprep.subr.mxu0 0.0
  %2643 = vmatpush1.msra.mxu0 0.0
  %2644 = vmatprep.subr.mxu0 0.0
  %2645 = vmatpush1.msra.mxu0 0.0
  %2646 = vmatprep.subr.mxu0 0.0
  %2647 = vmatpush1.msra.mxu0 0.0
  %2648 = vmatprep.subr.mxu0 0.0
  %2649 = vmatpush1.msra.mxu0 0.0
  %2650 = vmatprep.subr.mxu0 0.0
  %2651 = vmatpush1.msra.mxu0 0.0
  %2652 = vmatprep.subr.mxu0 0.0
  %2653 = vmatpush1.msra.mxu0 0.0
  %2654 = vmatprep.subr.mxu0 0.0
  %2655 = vmatpush1.msra.mxu0 0.0
  %2656 = vmatprep.subr.mxu0 0.0
  %2657 = vmatpush1.msra.mxu0 0.0
  %2658 = vmatprep.subr.mxu0 0.0
  %2659 = vmatpush1.msra.mxu0 0.0
  %2660 = vmatprep.subr.mxu0 0.0
  %2661 = vmatpush1.msra.mxu0 0.0
  %2662 = vmatprep.mubr.f32.mxu0 0.0
  %2663 = vmatmul.mubr.f32.gmra.mrb[0].mxu0 %v2572
  %v2664 = vpop.f32.mrb[0].mxu0
  %v2665 = vadd.f32 %v2596, %v2664
  %v2666 = vpop.f32.mrb[0].mxu0
  %2667 = vdwg.mxu0
  %s2668 = scalar_lea.vmem %s8, 8
  %2669 = vst [vmem:[%s2668] sm:$0xff] %v2665
  %s2670 = sld [smem:[#allocation6 + $0x2]]
  %p2671 = scmp.gt.s32.totalorder %s2670, 0
  // Predicated region
  $region38: #{seq2seq_forward.1} parent=0 // pred_check
    %p2672 = pneg %p2671
  $region39: #{seq2seq_forward.1} parent=0 // pred_check_branch
    %2674 = sbr.rel (%p2672) target = $region41
  $region40: #{seq2seq_forward.1} parent=0 // pred_region
    %s2675 = scalar_lea.vmem %s2, 64
    %v2676 = vld [vmem:[%s2675] sm:$0xff]
    %v2677 = vld [vmem:[%s2675 + $0x8] sm:$0xff]
    %v2678 = vld [vmem:[%s2675 + $0x10] sm:$0xff]
    %v2679 = vld [vmem:[%s2675 + $0x18] sm:$0xff]
    %2680 = vst [vmem:[#allocation4] sm:$0xff] %v2676
    %2681 = vst [vmem:[#allocation4 + $0x8] sm:$0xff] %v2677
    %2682 = vst [vmem:[#allocation4 + $0x10] sm:$0xff] %v2678
    %2683 = vst [vmem:[#allocation4 + $0x18] sm:$0xff] %v2679
  $region41: #{seq2seq_forward.1} parent=0 // pred_fallthru
    _
  %p2684 = scmp.eq.s32.totalorder %s2670, 0
  // Predicated region
  $region42: #{seq2seq_forward.1} parent=0 // pred_check
    %p2685 = pneg %p2684
  $region43: #{seq2seq_forward.1} parent=0 // pred_check_branch
    %2687 = sbr.rel (%p2685) target = $region45
  $region44: #{seq2seq_forward.1} parent=0 // pred_region
    %v2688 = vsel %vm1745, %v2665, -1e+30
    %2689 = vmax.xlane.f32.xlu0 %v2688
    %v2690 = vpop.xlane.xlu0 %2689
    %vm2691 = vcmp.eq.f32.partialorder %v2688, %v2690
    %vm2692 = vmand %vm2691, %vm1745
    %v2693 = vsel %vm2692, %v1744, 128
    %v2694 = vand.u32 %v2693, 65535
    %v2695 = vshra.s32 %v2693, 16
    %v2696 = vcvt.s32.f32 %v2694
    %v2697 = vcvt.s32.f32 %v2695
    %2698 = vmin.xlane.f32.xlu0 %v2697
    %v2699 = vpop.xlane.xlu0 %2698
    %vm2700 = vcmp.eq.f32.partialorder %v2697, %v2699
    %v2701 = vsel %vm2700, %v2696, inf
    %2702 = vmin.xlane.f32.xlu0 %v2701
    %v2703 = vpop.xlane.xlu0 %2702
    %v2704 = vcvt.f32.s32 %v2703
    %v2705 = vcvt.f32.s32 %v2699
    %v2706 = vshll.u32 %v2705, 16
    %v2707 = vadd.s32 %v2706, %v2704
    %vm2708 = vcmp.eq.s32.totalorder %v1744, %v2707
    %v2709 = vsel %vm2708, 1, 0
    %v2710 = vcvt.s32.f32 %v2709
    %v2711 = vld [vmem:[%s5] sm:$0xff]
    %v2712 = vld [vmem:[%s5 + $0x8] sm:$0xff]
    %v2713 = vld [vmem:[%s5 + $0x10] sm:$0xff]
    %v2714 = vld [vmem:[%s5 + $0x18] sm:$0xff]
    %v2715 = vld [vmem:[%s5 + $0x20] sm:$0xff]
    %v2716 = vld [vmem:[%s5 + $0x28] sm:$0xff]
    %v2717 = vld [vmem:[%s5 + $0x30] sm:$0xff]
    %v2718 = vld [vmem:[%s5 + $0x38] sm:$0xff]
    %v2719 = vld [vmem:[%s5 + $0x40] sm:$0xff]
    %v2720 = vld [vmem:[%s5 + $0x48] sm:$0xff]
    %v2721 = vld [vmem:[%s5 + $0x50] sm:$0xff]
    %v2722 = vld [vmem:[%s5 + $0x58] sm:$0xff]
    %v2723 = vld [vmem:[%s5 + $0x60] sm:$0xff]
    %v2724 = vld [vmem:[%s5 + $0x68] sm:$0xff]
    %v2725 = vld [vmem:[%s5 + $0x70] sm:$0xff]
    %v2726 = vld [vmem:[%s5 + $0x78] sm:$0xff]
    %v2727 = vld [vmem:[%s5 + $0x80] sm:$0xff]
    %v2728 = vld [vmem:[%s5 + $0x88] sm:$0xff]
    %v2729 = vld [vmem:[%s5 + $0x90] sm:$0xff]
    %v2730 = vld [vmem:[%s5 + $0x98] sm:$0xff]
    %v2731 = vld [vmem:[%s5 + $0xa0] sm:$0xff]
    %v2732 = vld [vmem:[%s5 + $0xa8] sm:$0xff]
    %v2733 = vld [vmem:[%s5 + $0xb0] sm:$0xff]
    %v2734 = vld [vmem:[%s5 + $0xb8] sm:$0xff]
    %v2735 = vld [vmem:[%s5 + $0xc0] sm:$0xff]
    %v2736 = vld [vmem:[%s5 + $0xc8] sm:$0xff]
    %v2737 = vld [vmem:[%s5 + $0xd0] sm:$0xff]
    %v2738 = vld [vmem:[%s5 + $0xd8] sm:$0xff]
    %v2739 = vld [vmem:[%s5 + $0xe0] sm:$0xff]
    %v2740 = vld [vmem:[%s5 + $0xe8] sm:$0xff]
    %v2741 = vld [vmem:[%s5 + $0xf0] sm:$0xff]
    %v2742 = vld [vmem:[%s5 + $0xf8] sm:$0xff]
    %v2743 = vld [vmem:[%s5 + $0x100] sm:$0xff]
    %v2744 = vld [vmem:[%s5 + $0x108] sm:$0xff]
    %v2745 = vld [vmem:[%s5 + $0x110] sm:$0xff]
    %v2746 = vld [vmem:[%s5 + $0x118] sm:$0xff]
    %v2747 = vld [vmem:[%s5 + $0x120] sm:$0xff]
    %v2748 = vld [vmem:[%s5 + $0x128] sm:$0xff]
    %v2749 = vld [vmem:[%s5 + $0x130] sm:$0xff]
    %v2750 = vld [vmem:[%s5 + $0x138] sm:$0xff]
    %v2751 = vld [vmem:[%s5 + $0x140] sm:$0xff]
    %v2752 = vld [vmem:[%s5 + $0x148] sm:$0xff]
    %v2753 = vld [vmem:[%s5 + $0x150] sm:$0xff]
    %v2754 = vld [vmem:[%s5 + $0x158] sm:$0xff]
    %v2755 = vld [vmem:[%s5 + $0x160] sm:$0xff]
    %v2756 = vld [vmem:[%s5 + $0x168] sm:$0xff]
    %v2757 = vld [vmem:[%s5 + $0x170] sm:$0xff]
    %v2758 = vld [vmem:[%s5 + $0x178] sm:$0xff]
    %v2759 = vld [vmem:[%s5 + $0x180] sm:$0xff]
    %v2760 = vld [vmem:[%s5 + $0x188] sm:$0xff]
    %v2761 = vld [vmem:[%s5 + $0x190] sm:$0xff]
    %v2762 = vld [vmem:[%s5 + $0x198] sm:$0xff]
    %v2763 = vld [vmem:[%s5 + $0x1a0] sm:$0xff]
    %v2764 = vld [vmem:[%s5 + $0x1a8] sm:$0xff]
    %v2765 = vld [vmem:[%s5 + $0x1b0] sm:$0xff]
    %v2766 = vld [vmem:[%s5 + $0x1b8] sm:$0xff]
    %v2767 = vld [vmem:[%s5 + $0x1c0] sm:$0xff]
    %v2768 = vld [vmem:[%s5 + $0x1c8] sm:$0xff]
    %v2769 = vld [vmem:[%s5 + $0x1d0] sm:$0xff]
    %v2770 = vld [vmem:[%s5 + $0x1d8] sm:$0xff]
    %v2771 = vld [vmem:[%s5 + $0x1e0] sm:$0xff]
    %v2772 = vld [vmem:[%s5 + $0x1e8] sm:$0xff]
    %v2773 = vld [vmem:[%s5 + $0x1f0] sm:$0xff]
    %v2774 = vld [vmem:[%s5 + $0x1f8] sm:$0xff]
    %2775 = vmatprep.subr.mxu0 %v2712
    %2776 = vmatpush1.msra.mxu0 %v2711
    %2777 = vmatprep.subr.mxu0 %v2716
    %2778 = vmatpush1.msra.mxu0 %v2715
    %2779 = vmatprep.subr.mxu0 %v2720
    %2780 = vmatpush1.msra.mxu0 %v2719
    %2781 = vmatprep.subr.mxu0 %v2724
    %2782 = vmatpush1.msra.mxu0 %v2723
    %2783 = vmatprep.subr.mxu0 %v2728
    %2784 = vmatpush1.msra.mxu0 %v2727
    %2785 = vmatprep.subr.mxu0 %v2732
    %2786 = vmatpush1.msra.mxu0 %v2731
    %2787 = vmatprep.subr.mxu0 %v2736
    %2788 = vmatpush1.msra.mxu0 %v2735
    %2789 = vmatprep.subr.mxu0 %v2740
    %2790 = vmatpush1.msra.mxu0 %v2739
    %2791 = vmatprep.subr.mxu0 %v2744
    %2792 = vmatpush1.msra.mxu0 %v2743
    %2793 = vmatprep.subr.mxu0 %v2748
    %2794 = vmatpush1.msra.mxu0 %v2747
    %2795 = vmatprep.subr.mxu0 %v2752
    %2796 = vmatpush1.msra.mxu0 %v2751
    %2797 = vmatprep.subr.mxu0 %v2756
    %2798 = vmatpush1.msra.mxu0 %v2755
    %2799 = vmatprep.subr.mxu0 %v2760
    %2800 = vmatpush1.msra.mxu0 %v2759
    %2801 = vmatprep.subr.mxu0 %v2764
    %2802 = vmatpush1.msra.mxu0 %v2763
    %2803 = vmatprep.subr.mxu0 %v2768
    %2804 = vmatpush1.msra.mxu0 %v2767
    %2805 = vmatprep.subr.mxu0 %v2772
    %2806 = vmatpush1.msra.mxu0 %v2771
    %2807 = vmatprep.subr.mxu0 0.0
    %2808 = vmatpush1.msra.mxu0 0.0
    %2809 = vmatprep.subr.mxu0 0.0
    %2810 = vmatpush1.msra.mxu0 0.0
    %2811 = vmatprep.subr.mxu0 0.0
    %2812 = vmatpush1.msra.mxu0 0.0
    %2813 = vmatprep.subr.mxu0 0.0
    %2814 = vmatpush1.msra.mxu0 0.0
    %2815 = vmatprep.subr.mxu0 0.0
    %2816 = vmatpush1.msra.mxu0 0.0
    %2817 = vmatprep.subr.mxu0 0.0
    %2818 = vmatpush1.msra.mxu0 0.0
    %2819 = vmatprep.subr.mxu0 0.0
    %2820 = vmatpush1.msra.mxu0 0.0
    %2821 = vmatprep.subr.mxu0 0.0
    %2822 = vmatpush1.msra.mxu0 0.0
    %2823 = vmatprep.subr.mxu0 0.0
    %2824 = vmatpush1.msra.mxu0 0.0
    %2825 = vmatprep.subr.mxu0 0.0
    %2826 = vmatpush1.msra.mxu0 0.0
    %2827 = vmatprep.subr.mxu0 0.0
    %2828 = vmatpush1.msra.mxu0 0.0
    %2829 = vmatprep.subr.mxu0 0.0
    %2830 = vmatpush1.msra.mxu0 0.0
    %2831 = vmatprep.subr.mxu0 0.0
    %2832 = vmatpush1.msra.mxu0 0.0
    %2833 = vmatprep.subr.mxu0 0.0
    %2834 = vmatpush1.msra.mxu0 0.0
    %2835 = vmatprep.subr.mxu0 0.0
    %2836 = vmatpush1.msra.mxu0 0.0
    %2837 = vmatprep.subr.mxu0 0.0
    %2838 = vmatpush1.msra.mxu0 0.0
    %2839 = vmatprep.mubr.f32.mxu0 0.0
    %2840 = vmatmul.mubr.f32.gmra.mrb[0].mxu0 %v2710
    %v2841 = vpop.f32.mrb[0].mxu0
    %v2842 = vadd.f32 0.0, %v2841
    %v2843 = vpop.f32.mrb[0].mxu0
    %v2844 = vadd.f32 0.0, %v2843
    %2845 = vdwg.mxu0
    %2846 = vmatprep.subr.mxu0 %v2714
    %2847 = vmatpush1.msra.mxu0 %v2713
    %2848 = vmatprep.subr.mxu0 %v2718
    %2849 = vmatpush1.msra.mxu0 %v2717
    %2850 = vmatprep.subr.mxu0 %v2722
    %2851 = vmatpush1.msra.mxu0 %v2721
    %2852 = vmatprep.subr.mxu0 %v2726
    %2853 = vmatpush1.msra.mxu0 %v2725
    %2854 = vmatprep.subr.mxu0 %v2730
    %2855 = vmatpush1.msra.mxu0 %v2729
    %2856 = vmatprep.subr.mxu0 %v2734
    %2857 = vmatpush1.msra.mxu0 %v2733
    %2858 = vmatprep.subr.mxu0 %v2738
    %2859 = vmatpush1.msra.mxu0 %v2737
    %2860 = vmatprep.subr.mxu0 %v2742
    %2861 = vmatpush1.msra.mxu0 %v2741
    %2862 = vmatprep.subr.mxu0 %v2746
    %2863 = vmatpush1.msra.mxu0 %v2745
    %2864 = vmatprep.subr.mxu0 %v2750
    %2865 = vmatpush1.msra.mxu0 %v2749
    %2866 = vmatprep.subr.mxu0 %v2754
    %2867 = vmatpush1.msra.mxu0 %v2753
    %2868 = vmatprep.subr.mxu0 %v2758
    %2869 = vmatpush1.msra.mxu0 %v2757
    %2870 = vmatprep.subr.mxu0 %v2762
    %2871 = vmatpush1.msra.mxu0 %v2761
    %2872 = vmatprep.subr.mxu0 %v2766
    %2873 = vmatpush1.msra.mxu0 %v2765
    %2874 = vmatprep.subr.mxu0 %v2770
    %2875 = vmatpush1.msra.mxu0 %v2769
    %2876 = vmatprep.subr.mxu0 %v2774
    %2877 = vmatpush1.msra.mxu0 %v2773
    %2878 = vmatprep.subr.mxu0 0.0
    %2879 = vmatpush1.msra.mxu0 0.0
    %2880 = vmatprep.subr.mxu0 0.0
    %2881 = vmatpush1.msra.mxu0 0.0
    %2882 = vmatprep.subr.mxu0 0.0
    %2883 = vmatpush1.msra.mxu0 0.0
    %2884 = vmatprep.subr.mxu0 0.0
    %2885 = vmatpush1.msra.mxu0 0.0
    %2886 = vmatprep.subr.mxu0 0.0
    %2887 = vmatpush1.msra.mxu0 0.0
    %2888 = vmatprep.subr.mxu0 0.0
    %2889 = vmatpush1.msra.mxu0 0.0
    %2890 = vmatprep.subr.mxu0 0.0
    %2891 = vmatpush1.msra.mxu0 0.0
    %2892 = vmatprep.subr.mxu0 0.0
    %2893 = vmatpush1.msra.mxu0 0.0
    %2894 = vmatprep.subr.mxu0 0.0
    %2895 = vmatpush1.msra.mxu0 0.0
    %2896 = vmatprep.subr.mxu0 0.0
    %2897 = vmatpush1.msra.mxu0 0.0
    %2898 = vmatprep.subr.mxu0 0.0
    %2899 = vmatpush1.msra.mxu0 0.0
    %2900 = vmatprep.subr.mxu0 0.0
    %2901 = vmatpush1.msra.mxu0 0.0
    %2902 = vmatprep.subr.mxu0 0.0
    %2903 = vmatpush1.msra.mxu0 0.0
    %2904 = vmatprep.subr.mxu0 0.0
    %2905 = vmatpush1.msra.mxu0 0.0
    %2906 = vmatprep.subr.mxu0 0.0
    %2907 = vmatpush1.msra.mxu0 0.0
    %2908 = vmatprep.subr.mxu0 0.0
    %2909 = vmatpush1.msra.mxu0 0.0
    %2910 = vmatprep.mubr.f32.mxu0 0.0
    %2911 = vmatmul.mubr.f32.gmra.mrb[0].mxu0 %v2710
    %v2912 = vpop.f32.mrb[0].mxu0
    %v2913 = vadd.f32 0.0, %v2912
    %v2914 = vpop.f32.mrb[0].mxu0
    %v2915 = vadd.f32 0.0, %v2914
    %2916 = vdwg.mxu0
    %2917 = vst [vmem:[#allocation4] sm:$0xff] %v2842
    %2918 = vst [vmem:[#allocation4 + $0x8] sm:$0xff] %v2844
    %2919 = vst [vmem:[#allocation4 + $0x10] sm:$0xff] %v2913
    %2920 = vst [vmem:[#allocation4 + $0x18] sm:$0xff] %v2915
  $region45: #{seq2seq_forward.1} parent=0 // pred_fallthru
    _
  %v2921 = vld [vmem:[#allocation4] sm:$0xff]
  %v2922 = vld [vmem:[#allocation4 + $0x8] sm:$0xff]
  %v2923 = vld [vmem:[#allocation4 + $0x10] sm:$0xff]
  %v2924 = vld [vmem:[#allocation4 + $0x18] sm:$0xff]
  %v2925 = vld [vmem:[#allocation2] sm:$0xff]
  %v2926 = vld [vmem:[%s4] sm:$0xff]
  %v2927 = vld [vmem:[%s4 + $0x8] sm:$0xff]
  %v2928 = vld [vmem:[%s4 + $0x10] sm:$0xff]
  %v2929 = vld [vmem:[%s4 + $0x18] sm:$0xff]
  %v2930 = vld [vmem:[%s4 + $0x20] sm:$0xff]
  %v2931 = vld [vmem:[%s4 + $0x28] sm:$0xff]
  %v2932 = vld [vmem:[%s4 + $0x30] sm:$0xff]
  %v2933 = vld [vmem:[%s4 + $0x38] sm:$0xff]
  %v2934 = vld [vmem:[%s4 + $0x40] sm:$0xff]
  %v2935 = vld [vmem:[%s4 + $0x48] sm:$0xff]
  %v2936 = vld [vmem:[%s4 + $0x50] sm:$0xff]
  %v2937 = vld [vmem:[%s4 + $0x58] sm:$0xff]
  %v2938 = vld [vmem:[%s4 + $0x60] sm:$0xff]
  %v2939 = vld [vmem:[%s4 + $0x68] sm:$0xff]
  %v2940 = vld [vmem:[%s4 + $0x70] sm:$0xff]
  %v2941 = vld [vmem:[%s4 + $0x78] sm:$0xff]
  %v2942 = vld [vmem:[%s4 + $0x80] sm:$0xff]
  %v2943 = vld [vmem:[%s4 + $0x88] sm:$0xff]
  %v2944 = vld [vmem:[%s4 + $0x90] sm:$0xff]
  %v2945 = vld [vmem:[%s4 + $0x98] sm:$0xff]
  %v2946 = vld [vmem:[%s4 + $0xa0] sm:$0xff]
  %v2947 = vld [vmem:[%s4 + $0xa8] sm:$0xff]
  %v2948 = vld [vmem:[%s4 + $0xb0] sm:$0xff]
  %v2949 = vld [vmem:[%s4 + $0xb8] sm:$0xff]
  %v2950 = vld [vmem:[%s4 + $0xc0] sm:$0xff]
  %v2951 = vld [vmem:[%s4 + $0xc8] sm:$0xff]
  %v2952 = vld [vmem:[%s4 + $0xd0] sm:$0xff]
  %v2953 = vld [vmem:[%s4 + $0xd8] sm:$0xff]
  %v2954 = vld [vmem:[%s4 + $0xe0] sm:$0xff]
  %v2955 = vld [vmem:[%s4 + $0xe8] sm:$0xff]
  %v2956 = vld [vmem:[%s4 + $0xf0] sm:$0xff]
  %v2957 = vld [vmem:[%s4 + $0xf8] sm:$0xff]
  %v2958 = vld [vmem:[%s4 + $0x100] sm:$0xff]
  %v2959 = vld [vmem:[%s4 + $0x108] sm:$0xff]
  %v2960 = vld [vmem:[%s4 + $0x110] sm:$0xff]
  %v2961 = vld [vmem:[%s4 + $0x118] sm:$0xff]
  %v2962 = vld [vmem:[%s4 + $0x120] sm:$0xff]
  %v2963 = vld [vmem:[%s4 + $0x128] sm:$0xff]
  %v2964 = vld [vmem:[%s4 + $0x130] sm:$0xff]
  %v2965 = vld [vmem:[%s4 + $0x138] sm:$0xff]
  %v2966 = vld [vmem:[%s4 + $0x140] sm:$0xff]
  %v2967 = vld [vmem:[%s4 + $0x148] sm:$0xff]
  %v2968 = vld [vmem:[%s4 + $0x150] sm:$0xff]
  %v2969 = vld [vmem:[%s4 + $0x158] sm:$0xff]
  %v2970 = vld [vmem:[%s4 + $0x160] sm:$0xff]
  %v2971 = vld [vmem:[%s4 + $0x168] sm:$0xff]
  %v2972 = vld [vmem:[%s4 + $0x170] sm:$0xff]
  %v2973 = vld [vmem:[%s4 + $0x178] sm:$0xff]
  %v2974 = vld [vmem:[%s4 + $0x180] sm:$0xff]
  %v2975 = vld [vmem:[%s4 + $0x188] sm:$0xff]
  %v2976 = vld [vmem:[%s4 + $0x190] sm:$0xff]
  %v2977 = vld [vmem:[%s4 + $0x198] sm:$0xff]
  %v2978 = vld [vmem:[%s4 + $0x1a0] sm:$0xff]
  %v2979 = vld [vmem:[%s4 + $0x1a8] sm:$0xff]
  %v2980 = vld [vmem:[%s4 + $0x1b0] sm:$0xff]
  %v2981 = vld [vmem:[%s4 + $0x1b8] sm:$0xff]
  %v2982 = vld [vmem:[%s4 + $0x1c0] sm:$0xff]
  %v2983 = vld [vmem:[%s4 + $0x1c8] sm:$0xff]
  %v2984 = vld [vmem:[%s4 + $0x1d0] sm:$0xff]
  %v2985 = vld [vmem:[%s4 + $0x1d8] sm:$0xff]
  %v2986 = vld [vmem:[%s4 + $0x1e0] sm:$0xff]
  %v2987 = vld [vmem:[%s4 + $0x1e8] sm:$0xff]
  %v2988 = vld [vmem:[%s4 + $0x1f0] sm:$0xff]
  %v2989 = vld [vmem:[%s4 + $0x1f8] sm:$0xff]
  %2990 = vmatprep.subr.mxu0 %v2927
  %2991 = vmatpush1.msra.mxu0 %v2926
  %2992 = vmatprep.subr.mxu0 %v2931
  %2993 = vmatpush1.msra.mxu0 %v2930
  %2994 = vmatprep.subr.mxu0 %v2935
  %2995 = vmatpush1.msra.mxu0 %v2934
  %2996 = vmatprep.subr.mxu0 %v2939
  %2997 = vmatpush1.msra.mxu0 %v2938
  %2998 = vmatprep.subr.mxu0 %v2943
  %2999 = vmatpush1.msra.mxu0 %v2942
  %3000 = vmatprep.subr.mxu0 %v2947
  %3001 = vmatpush1.msra.mxu0 %v2946
  %3002 = vmatprep.subr.mxu0 %v2951
  %3003 = vmatpush1.msra.mxu0 %v2950
  %3004 = vmatprep.subr.mxu0 %v2955
  %3005 = vmatpush1.msra.mxu0 %v2954
  %3006 = vmatprep.subr.mxu0 %v2959
  %3007 = vmatpush1.msra.mxu0 %v2958
  %3008 = vmatprep.subr.mxu0 %v2963
  %3009 = vmatpush1.msra.mxu0 %v2962
  %3010 = vmatprep.subr.mxu0 %v2967
  %3011 = vmatpush1.msra.mxu0 %v2966
  %3012 = vmatprep.subr.mxu0 %v2971
  %3013 = vmatpush1.msra.mxu0 %v2970
  %3014 = vmatprep.subr.mxu0 %v2975
  %3015 = vmatpush1.msra.mxu0 %v2974
  %3016 = vmatprep.subr.mxu0 %v2979
  %3017 = vmatpush1.msra.mxu0 %v2978
  %3018 = vmatprep.subr.mxu0 %v2983
  %3019 = vmatpush1.msra.mxu0 %v2982
  %3020 = vmatprep.subr.mxu0 %v2987
  %3021 = vmatpush1.msra.mxu0 %v2986
  %3022 = vmatprep.subr.mxu0 0.0
  %3023 = vmatpush1.msra.mxu0 0.0
  %3024 = vmatprep.subr.mxu0 0.0
  %3025 = vmatpush1.msra.mxu0 0.0
  %3026 = vmatprep.subr.mxu0 0.0
  %3027 = vmatpush1.msra.mxu0 0.0
  %3028 = vmatprep.subr.mxu0 0.0
  %3029 = vmatpush1.msra.mxu0 0.0
  %3030 = vmatprep.subr.mxu0 0.0
  %3031 = vmatpush1.msra.mxu0 0.0
  %3032 = vmatprep.subr.mxu0 0.0
  %3033 = vmatpush1.msra.mxu0 0.0
  %3034 = vmatprep.subr.mxu0 0.0
  %3035 = vmatpush1.msra.mxu0 0.0
  %3036 = vmatprep.subr.mxu0 0.0
  %3037 = vmatpush1.msra.mxu0 0.0
  %3038 = vmatprep.subr.mxu0 0.0
  %3039 = vmatpush1.msra.mxu0 0.0
  %3040 = vmatprep.subr.mxu0 0.0
  %3041 = vmatpush1.msra.mxu0 0.0
  %3042 = vmatprep.subr.mxu0 0.0
  %3043 = vmatpush1.msra.mxu0 0.0
  %3044 = vmatprep.subr.mxu0 0.0
  %3045 = vmatpush1.msra.mxu0 0.0
  %3046 = vmatprep.subr.mxu0 0.0
  %3047 = vmatpush1.msra.mxu0 0.0
  %3048 = vmatprep.subr.mxu0 0.0
  %3049 = vmatpush1.msra.mxu0 0.0
  %3050 = vmatprep.subr.mxu0 0.0
  %3051 = vmatpush1.msra.mxu0 0.0
  %3052 = vmatprep.subr.mxu0 0.0
  %3053 = vmatpush1.msra.mxu0 0.0
  %3054 = vmatprep.mubr.f32.mxu0 0.0
  %3055 = vmatmul.mubr.f32.gmra.mrb[0].mxu0 %v2925
  %v3056 = vpop.f32.mrb[0].mxu0
  %v3057 = vadd.f32 0.0, %v3056
  %v3058 = vpop.f32.mrb[0].mxu0
  %v3059 = vadd.f32 0.0, %v3058
  %3060 = vdwg.mxu0
  %3061 = vmatprep.subr.mxu0 %v2929
  %3062 = vmatpush1.msra.mxu0 %v2928
  %3063 = vmatprep.subr.mxu0 %v2933
  %3064 = vmatpush1.msra.mxu0 %v2932
  %3065 = vmatprep.subr.mxu0 %v2937
  %3066 = vmatpush1.msra.mxu0 %v2936
  %3067 = vmatprep.subr.mxu0 %v2941
  %3068 = vmatpush1.msra.mxu0 %v2940
  %3069 = vmatprep.subr.mxu0 %v2945
  %3070 = vmatpush1.msra.mxu0 %v2944
  %3071 = vmatprep.subr.mxu0 %v2949
  %3072 = vmatpush1.msra.mxu0 %v2948
  %3073 = vmatprep.subr.mxu0 %v2953
  %3074 = vmatpush1.msra.mxu0 %v2952
  %3075 = vmatprep.subr.mxu0 %v2957
  %3076 = vmatpush1.msra.mxu0 %v2956
  %3077 = vmatprep.subr.mxu0 %v2961
  %3078 = vmatpush1.msra.mxu0 %v2960
  %3079 = vmatprep.subr.mxu0 %v2965
  %3080 = vmatpush1.msra.mxu0 %v2964
  %3081 = vmatprep.subr.mxu0 %v2969
  %3082 = vmatpush1.msra.mxu0 %v2968
  %3083 = vmatprep.subr.mxu0 %v2973
  %3084 = vmatpush1.msra.mxu0 %v2972
  %3085 = vmatprep.subr.mxu0 %v2977
  %3086 = vmatpush1.msra.mxu0 %v2976
  %3087 = vmatprep.subr.mxu0 %v2981
  %3088 = vmatpush1.msra.mxu0 %v2980
  %3089 = vmatprep.subr.mxu0 %v2985
  %3090 = vmatpush1.msra.mxu0 %v2984
  %3091 = vmatprep.subr.mxu0 %v2989
  %3092 = vmatpush1.msra.mxu0 %v2988
  %3093 = vmatprep.subr.mxu0 0.0
  %3094 = vmatpush1.msra.mxu0 0.0
  %3095 = vmatprep.subr.mxu0 0.0
  %3096 = vmatpush1.msra.mxu0 0.0
  %3097 = vmatprep.subr.mxu0 0.0
  %3098 = vmatpush1.msra.mxu0 0.0
  %3099 = vmatprep.subr.mxu0 0.0
  %3100 = vmatpush1.msra.mxu0 0.0
  %3101 = vmatprep.subr.mxu0 0.0
  %3102 = vmatpush1.msra.mxu0 0.0
  %3103 = vmatprep.subr.mxu0 0.0
  %3104 = vmatpush1.msra.mxu0 0.0
  %3105 = vmatprep.subr.mxu0 0.0
  %3106 = vmatpush1.msra.mxu0 0.0
  %3107 = vmatprep.subr.mxu0 0.0
  %3108 = vmatpush1.msra.mxu0 0.0
  %3109 = vmatprep.subr.mxu0 0.0
  %3110 = vmatpush1.msra.mxu0 0.0
  %3111 = vmatprep.subr.mxu0 0.0
  %3112 = vmatpush1.msra.mxu0 0.0
  %3113 = vmatprep.subr.mxu0 0.0
  %3114 = vmatpush1.msra.mxu0 0.0
  %3115 = vmatprep.subr.mxu0 0.0
  %3116 = vmatpush1.msra.mxu0 0.0
  %3117 = vmatprep.subr.mxu0 0.0
  %3118 = vmatpush1.msra.mxu0 0.0
  %3119 = vmatprep.subr.mxu0 0.0
  %3120 = vmatpush1.msra.mxu0 0.0
  %3121 = vmatprep.subr.mxu0 0.0
  %3122 = vmatpush1.msra.mxu0 0.0
  %3123 = vmatprep.subr.mxu0 0.0
  %3124 = vmatpush1.msra.mxu0 0.0
  %3125 = vmatprep.mubr.f32.mxu0 0.0
  %3126 = vmatmul.mubr.f32.gmra.mrb[0].mxu0 %v2925
  %v3127 = vpop.f32.mrb[0].mxu0
  %v3128 = vadd.f32 0.0, %v3127
  %v3129 = vpop.f32.mrb[0].mxu0
  %v3130 = vadd.f32 0.0, %v3129
  %3131 = vdwg.mxu0
  %v3132 = vadd.f32 %v2921, %v3057
  %v3133 = vadd.f32 %v2922, %v3059
  %v3134 = vadd.f32 %v2923, %v3128
  %v3135 = vadd.f32 %v2924, %v3130
  %v3136 = vld [vmem:[#allocation3] sm:$0xff]
  %v3137 = vxor.u32 %v3132, 2147483648
  %v3138 = vmul.f32 %v3137, 1.442695
  %v3139 = vpow.pop %v3138
  %v3140 = vadd.f32 %v3139, 1.0
  %v3141 = vrcp.pop %v3140
  %v3142 = vmul.f32 1.0, %v3141
  %v3143 = vxor.u32 %v3133, 2147483648
  %v3144 = vmul.f32 %v3143, 1.442695
  %v3145 = vpow.pop %v3144
  %v3146 = vadd.f32 %v3145, 1.0
  %v3147 = vrcp.pop %v3146
  %v3148 = vmul.f32 1.0, %v3147
  %v3149 = vtanh.pop %v3134
  %v3150 = vxor.u32 %v3135, 2147483648
  %v3151 = vmul.f32 %v3150, 1.442695
  %v3152 = vpow.pop %v3151
  %v3153 = vadd.f32 %v3152, 1.0
  %v3154 = vrcp.pop %v3153
  %v3155 = vmul.f32 1.0, %v3154
  %v3156 = vmul.f32 %v3148, %v3136
  %v3157 = vmul.f32 %v3142, %v3149
  %v3158 = vadd.f32 %v3156, %v3157
  %v3159 = vtanh.pop %v3158
  %v3160 = vmul.f32 %v3155, %v3159
  %3161 = vst [vmem:[#allocation2] sm:$0xff] %v3160
  %3162 = vst [vmem:[#allocation3] sm:$0xff] %v3158
  %v3163 = vld [vmem:[%s6] sm:$0xff]
  %v3164 = vld [vmem:[%s6 + $0x8] sm:$0xff]
  %v3165 = vld [vmem:[%s6 + $0x10] sm:$0xff]
  %v3166 = vld [vmem:[%s6 + $0x18] sm:$0xff]
  %v3167 = vld [vmem:[%s6 + $0x20] sm:$0xff]
  %v3168 = vld [vmem:[%s6 + $0x28] sm:$0xff]
  %v3169 = vld [vmem:[%s6 + $0x30] sm:$0xff]
  %v3170 = vld [vmem:[%s6 + $0x38] sm:$0xff]
  %v3171 = vld [vmem:[%s6 + $0x40] sm:$0xff]
  %v3172 = vld [vmem:[%s6 + $0x48] sm:$0xff]
  %v3173 = vld [vmem:[%s6 + $0x50] sm:$0xff]
  %v3174 = vld [vmem:[%s6 + $0x58] sm:$0xff]
  %v3175 = vld [vmem:[%s6 + $0x60] sm:$0xff]
  %v3176 = vld [vmem:[%s6 + $0x68] sm:$0xff]
  %v3177 = vld [vmem:[%s6 + $0x70] sm:$0xff]
  %v3178 = vld [vmem:[%s6 + $0x78] sm:$0xff]
  %v3179 = vld [vmem:[%s7] sm:$0x1]
  %v3181 = vlaneseq
  %v3182 = vshrl.u32 %v3181, 7
  %v3183 = vsub.s32 0, %v3182
  %v3184 = vrot.slane %v3179, %v3183
  %3186 = vmatprep.subr.mxu0 0.0
  %3187 = vmatpush1.msra.mxu0 %v3163
  %3188 = vmatprep.subr.mxu0 0.0
  %3189 = vmatpush1.msra.mxu0 %v3164
  %3190 = vmatprep.subr.mxu0 0.0
  %3191 = vmatpush1.msra.mxu0 %v3165
  %3192 = vmatprep.subr.mxu0 0.0
  %3193 = vmatpush1.msra.mxu0 %v3166
  %3194 = vmatprep.subr.mxu0 0.0
  %3195 = vmatpush1.msra.mxu0 %v3167
  %3196 = vmatprep.subr.mxu0 0.0
  %3197 = vmatpush1.msra.mxu0 %v3168
  %3198 = vmatprep.subr.mxu0 0.0
  %3199 = vmatpush1.msra.mxu0 %v3169
  %3200 = vmatprep.subr.mxu0 0.0
  %3201 = vmatpush1.msra.mxu0 %v3170
  %3202 = vmatprep.subr.mxu0 0.0
  %3203 = vmatpush1.msra.mxu0 %v3171
  %3204 = vmatprep.subr.mxu0 0.0
  %3205 = vmatpush1.msra.mxu0 %v3172
  %3206 = vmatprep.subr.mxu0 0.0
  %3207 = vmatpush1.msra.mxu0 %v3173
  %3208 = vmatprep.subr.mxu0 0.0
  %3209 = vmatpush1.msra.mxu0 %v3174
  %3210 = vmatprep.subr.mxu0 0.0
  %3211 = vmatpush1.msra.mxu0 %v3175
  %3212 = vmatprep.subr.mxu0 0.0
  %3213 = vmatpush1.msra.mxu0 %v3176
  %3214 = vmatprep.subr.mxu0 0.0
  %3215 = vmatpush1.msra.mxu0 %v3177
  %3216 = vmatprep.subr.mxu0 0.0
  %3217 = vmatpush1.msra.mxu0 %v3178
  %3218 = vmatprep.subr.mxu0 0.0
  %3219 = vmatpush1.msra.mxu0 0.0
  %3220 = vmatprep.subr.mxu0 0.0
  %3221 = vmatpush1.msra.mxu0 0.0
  %3222 = vmatprep.subr.mxu0 0.0
  %3223 = vmatpush1.msra.mxu0 0.0
  %3224 = vmatprep.subr.mxu0 0.0
  %3225 = vmatpush1.msra.mxu0 0.0
  %3226 = vmatprep.subr.mxu0 0.0
  %3227 = vmatpush1.msra.mxu0 0.0
  %3228 = vmatprep.subr.mxu0 0.0
  %3229 = vmatpush1.msra.mxu0 0.0
  %3230 = vmatprep.subr.mxu0 0.0
  %3231 = vmatpush1.msra.mxu0 0.0
  %3232 = vmatprep.subr.mxu0 0.0
  %3233 = vmatpush1.msra.mxu0 0.0
  %3234 = vmatprep.subr.mxu0 0.0
  %3235 = vmatpush1.msra.mxu0 0.0
  %3236 = vmatprep.subr.mxu0 0.0
  %3237 = vmatpush1.msra.mxu0 0.0
  %3238 = vmatprep.subr.mxu0 0.0
  %3239 = vmatpush1.msra.mxu0 0.0
  %3240 = vmatprep.subr.mxu0 0.0
  %3241 = vmatpush1.msra.mxu0 0.0
  %3242 = vmatprep.subr.mxu0 0.0
  %3243 = vmatpush1.msra.mxu0 0.0
  %3244 = vmatprep.subr.mxu0 0.0
  %3245 = vmatpush1.msra.mxu0 0.0
  %3246 = vmatprep.subr.mxu0 0.0
  %3247 = vmatpush1.msra.mxu0 0.0
  %3248 = vmatprep.subr.mxu0 0.0
  %3249 = vmatpush1.msra.mxu0 0.0
  %3250 = vmatprep.mubr.f32.mxu0 0.0
  %3251 = vmatmul.mubr.f32.gmra.mrb[0].mxu0 %v3160
  %v3252 = vpop.f32.mrb[0].mxu0
  %v3253 = vadd.f32 %v3184, %v3252
  %v3254 = vpop.f32.mrb[0].mxu0
  %3255 = vdwg.mxu0
  %s3256 = scalar_lea.vmem %s8, 16
  %3257 = vst [vmem:[%s3256] sm:$0xff] %v3253
  %s3258 = sld [smem:[#allocation6 + $0x3]]
  %p3259 = scmp.gt.s32.totalorder %s3258, 0
  // Predicated region
  $region46: #{seq2seq_forward.1} parent=0 // pred_check
    %p3260 = pneg %p3259
  $region47: #{seq2seq_forward.1} parent=0 // pred_check_branch
    %3262 = sbr.rel (%p3260) target = $region49
  $region48: #{seq2seq_forward.1} parent=0 // pred_region
    %s3263 = scalar_lea.vmem %s2, 96
    %v3264 = vld [vmem:[%s3263] sm:$0xff]
    %v3265 = vld [vmem:[%s3263 + $0x8] sm:$0xff]
    %v3266 = vld [vmem:[%s3263 + $0x10] sm:$0xff]
    %v3267 = vld [vmem:[%s3263 + $0x18] sm:$0xff]
    %3268 = vst [vmem:[#allocation4] sm:$0xff] %v3264
    %3269 = vst [vmem:[#allocation4 + $0x8] sm:$0xff] %v3265
    %3270 = vst [vmem:[#allocation4 + $0x10] sm:$0xff] %v3266
    %3271 = vst [vmem:[#allocation4 + $0x18] sm:$0xff] %v3267
  $region49: #{seq2seq_forward.1} parent=0 // pred_fallthru
    _
  %p3272 = scmp.eq.s32.totalorder %s3258, 0
  // Predicated region
  $region50: #{seq2seq_forward.1} parent=0 // pred_check
    %p3273 = pneg %p3272
  $region51: #{seq2seq_forward.1} parent=0 // pred_check_branch
    %3275 = sbr.rel (%p3273) target = $region53
  $region52: #{seq2seq_forward.1} parent=0 // pred_region
    %v3276 = vsel %vm1745, %v3253, -1e+30
    %3277 = vmax.xlane.f32.xlu0 %v3276
    %v3278 = vpop.xlane.xlu0 %3277
    %vm3279 = vcmp.eq.f32.partialorder %v3276, %v3278
    %vm3280 = vmand %vm3279, %vm1745
    %v3281 = vsel %vm3280, %v1744, 128
    %v3282 = vand.u32 %v3281, 65535
    %v3283 = vshra.s32 %v3281, 16
    %v3284 = vcvt.s32.f32 %v3282
    %v3285 = vcvt.s32.f32 %v3283
    %3286 = vmin.xlane.f32.xlu0 %v3285
    %v3287 = vpop.xlane.xlu0 %3286
    %vm3288 = vcmp.eq.f32.partialorder %v3285, %v3287
    %v3289 = vsel %vm3288, %v3284, inf
    %3290 = vmin.xlane.f32.xlu0 %v3289
    %v3291 = vpop.xlane.xlu0 %3290
    %v3292 = vcvt.f32.s32 %v3291
    %v3293 = vcvt.f32.s32 %v3287
    %v3294 = vshll.u32 %v3293, 16
    %v3295 = vadd.s32 %v3294, %v3292
    %vm3296 = vcmp.eq.s32.totalorder %v1744, %v3295
    %v3297 = vsel %vm3296, 1, 0
    %v3298 = vcvt.s32.f32 %v3297
    %v3299 = vld [vmem:[%s5] sm:$0xff]
    %v3300 = vld [vmem:[%s5 + $0x8] sm:$0xff]
    %v3301 = vld [vmem:[%s5 + $0x10] sm:$0xff]
    %v3302 = vld [vmem:[%s5 + $0x18] sm:$0xff]
    %v3303 = vld [vmem:[%s5 + $0x20] sm:$0xff]
    %v3304 = vld [vmem:[%s5 + $0x28] sm:$0xff]
    %v3305 = vld [vmem:[%s5 + $0x30] sm:$0xff]
    %v3306 = vld [vmem:[%s5 + $0x38] sm:$0xff]
    %v3307 = vld [vmem:[%s5 + $0x40] sm:$0xff]
    %v3308 = vld [vmem:[%s5 + $0x48] sm:$0xff]
    %v3309 = vld [vmem:[%s5 + $0x50] sm:$0xff]
    %v3310 = vld [vmem:[%s5 + $0x58] sm:$0xff]
    %v3311 = vld [vmem:[%s5 + $0x60] sm:$0xff]
    %v3312 = vld [vmem:[%s5 + $0x68] sm:$0xff]
    %v3313 = vld [vmem:[%s5 + $0x70] sm:$0xff]
    %v3314 = vld [vmem:[%s5 + $0x78] sm:$0xff]
    %v3315 = vld [vmem:[%s5 + $0x80] sm:$0xff]
    %v3316 = vld [vmem:[%s5 + $0x88] sm:$0xff]
    %v3317 = vld [vmem:[%s5 + $0x90] sm:$0xff]
    %v3318 = vld [vmem:[%s5 + $0x98] sm:$0xff]
    %v3319 = vld [vmem:[%s5 + $0xa0] sm:$0xff]
    %v3320 = vld [vmem:[%s5 + $0xa8] sm:$0xff]
    %v3321 = vld [vmem:[%s5 + $0xb0] sm:$0xff]
    %v3322 = vld [vmem:[%s5 + $0xb8] sm:$0xff]
    %v3323 = vld [vmem:[%s5 + $0xc0] sm:$0xff]
    %v3324 = vld [vmem:[%s5 + $0xc8] sm:$0xff]
    %v3325 = vld [vmem:[%s5 + $0xd0] sm:$0xff]
    %v3326 = vld [vmem:[%s5 + $0xd8] sm:$0xff]
    %v3327 = vld [vmem:[%s5 + $0xe0] sm:$0xff]
    %v3328 = vld [vmem:[%s5 + $0xe8] sm:$0xff]
    %v3329 = vld [vmem:[%s5 + $0xf0] sm:$0xff]
    %v3330 = vld [vmem:[%s5 + $0xf8] sm:$0xff]
    %v3331 = vld [vmem:[%s5 + $0x100] sm:$0xff]
    %v3332 = vld [vmem:[%s5 + $0x108] sm:$0xff]
    %v3333 = vld [vmem:[%s5 + $0x110] sm:$0xff]
    %v3334 = vld [vmem:[%s5 + $0x118] sm:$0xff]
    %v3335 = vld [vmem:[%s5 + $0x120] sm:$0xff]
    %v3336 = vld [vmem:[%s5 + $0x128] sm:$0xff]
    %v3337 = vld [vmem:[%s5 + $0x130] sm:$0xff]
    %v3338 = vld [vmem:[%s5 + $0x138] sm:$0xff]
    %v3339 = vld [vmem:[%s5 + $0x140] sm:$0xff]
    %v3340 = vld [vmem:[%s5 + $0x148] sm:$0xff]
    %v3341 = vld [vmem:[%s5 + $0x150] sm:$0xff]
    %v3342 = vld [vmem:[%s5 + $0x158] sm:$0xff]
    %v3343 = vld [vmem:[%s5 + $0x160] sm:$0xff]
    %v3344 = vld [vmem:[%s5 + $0x168] sm:$0xff]
    %v3345 = vld [vmem:[%s5 + $0x170] sm:$0xff]
    %v3346 = vld [vmem:[%s5 + $0x178] sm:$0xff]
    %v3347 = vld [vmem:[%s5 + $0x180] sm:$0xff]
    %v3348 = vld [vmem:[%s5 + $0x188] sm:$0xff]
    %v3349 = vld [vmem:[%s5 + $0x190] sm:$0xff]
    %v3350 = vld [vmem:[%s5 + $0x198] sm:$0xff]
    %v3351 = vld [vmem:[%s5 + $0x1a0] sm:$0xff]
    %v3352 = vld [vmem:[%s5 + $0x1a8] sm:$0xff]
    %v3353 = vld [vmem:[%s5 + $0x1b0] sm:$0xff]
    %v3354 = vld [vmem:[%s5 + $0x1b8] sm:$0xff]
    %v3355 = vld [vmem:[%s5 + $0x1c0] sm:$0xff]
    %v3356 = vld [vmem:[%s5 + $0x1c8] sm:$0xff]
    %v3357 = vld [vmem:[%s5 + $0x1d0] sm:$0xff]
    %v3358 = vld [vmem:[%s5 + $0x1d8] sm:$0xff]
    %v3359 = vld [vmem:[%s5 + $0x1e0] sm:$0xff]
    %v3360 = vld [vmem:[%s5 + $0x1e8] sm:$0xff]
    %v3361 = vld [vmem:[%s5 + $0x1f0] sm:$0xff]
    %v3362 = vld [vmem:[%s5 + $0x1f8] sm:$0xff]
    %3363 = vmatprep.subr.mxu0 %v3300
    %3364 = vmatpush1.msra.mxu0 %v3299
    %3365 = vmatprep.subr.mxu0 %v3304
    %3366 = vmatpush1.msra.mxu0 %v3303
    %3367 = vmatprep.subr.mxu0 %v3308
    %3368 = vmatpush1.msra.mxu0 %v3307
    %3369 = vmatprep.subr.mxu0 %v3312
    %3370 = vmatpush1.msra.mxu0 %v3311
    %3371 = vmatprep.subr.mxu0 %v3316
    %3372 = vmatpush1.msra.mxu0 %v3315
    %3373 = vmatprep.subr.mxu0 %v3320
    %3374 = vmatpush1.msra.mxu0 %v3319
    %3375 = vmatprep.subr.mxu0 %v3324
    %3376 = vmatpush1.msra.mxu0 %v3323
    %3377 = vmatprep.subr.mxu0 %v3328
    %3378 = vmatpush1.msra.mxu0 %v3327
    %3379 = vmatprep.subr.mxu0 %v3332
    %3380 = vmatpush1.msra.mxu0 %v3331
    %3381 = vmatprep.subr.mxu0 %v3336
    %3382 = vmatpush1.msra.mxu0 %v3335
    %3383 = vmatprep.subr.mxu0 %v3340
    %3384 = vmatpush1.msra.mxu0 %v3339
    %3385 = vmatprep.subr.mxu0 %v3344
    %3386 = vmatpush1.msra.mxu0 %v3343
    %3387 = vmatprep.subr.mxu0 %v3348
    %3388 = vmatpush1.msra.mxu0 %v3347
    %3389 = vmatprep.subr.mxu0 %v3352
    %3390 = vmatpush1.msra.mxu0 %v3351
    %3391 = vmatprep.subr.mxu0 %v3356
    %3392 = vmatpush1.msra.mxu0 %v3355
    %3393 = vmatprep.subr.mxu0 %v3360
    %3394 = vmatpush1.msra.mxu0 %v3359
    %3395 = vmatprep.subr.mxu0 0.0
    %3396 = vmatpush1.msra.mxu0 0.0
    %3397 = vmatprep.subr.mxu0 0.0
    %3398 = vmatpush1.msra.mxu0 0.0
    %3399 = vmatprep.subr.mxu0 0.0
    %3400 = vmatpush1.msra.mxu0 0.0
    %3401 = vmatprep.subr.mxu0 0.0
    %3402 = vmatpush1.msra.mxu0 0.0
    %3403 = vmatprep.subr.mxu0 0.0
    %3404 = vmatpush1.msra.mxu0 0.0
    %3405 = vmatprep.subr.mxu0 0.0
    %3406 = vmatpush1.msra.mxu0 0.0
    %3407 = vmatprep.subr.mxu0 0.0
    %3408 = vmatpush1.msra.mxu0 0.0
    %3409 = vmatprep.subr.mxu0 0.0
    %3410 = vmatpush1.msra.mxu0 0.0
    %3411 = vmatprep.subr.mxu0 0.0
    %3412 = vmatpush1.msra.mxu0 0.0
    %3413 = vmatprep.subr.mxu0 0.0
    %3414 = vmatpush1.msra.mxu0 0.0
    %3415 = vmatprep.subr.mxu0 0.0
    %3416 = vmatpush1.msra.mxu0 0.0
    %3417 = vmatprep.subr.mxu0 0.0
    %3418 = vmatpush1.msra.mxu0 0.0
    %3419 = vmatprep.subr.mxu0 0.0
    %3420 = vmatpush1.msra.mxu0 0.0
    %3421 = vmatprep.subr.mxu0 0.0
    %3422 = vmatpush1.msra.mxu0 0.0
    %3423 = vmatprep.subr.mxu0 0.0
    %3424 = vmatpush1.msra.mxu0 0.0
    %3425 = vmatprep.subr.mxu0 0.0
    %3426 = vmatpush1.msra.mxu0 0.0
    %3427 = vmatprep.mubr.f32.mxu0 0.0
    %3428 = vmatmul.mubr.f32.gmra.mrb[0].mxu0 %v3298
    %v3429 = vpop.f32.mrb[0].mxu0
    %v3430 = vadd.f32 0.0, %v3429
    %v3431 = vpop.f32.mrb[0].mxu0
    %v3432 = vadd.f32 0.0, %v3431
    %3433 = vdwg.mxu0
    %3434 = vmatprep.subr.mxu0 %v3302
    %3435 = vmatpush1.msra.mxu0 %v3301
    %3436 = vmatprep.subr.mxu0 %v3306
    %3437 = vmatpush1.msra.mxu0 %v3305
    %3438 = vmatprep.subr.mxu0 %v3310
    %3439 = vmatpush1.msra.mxu0 %v3309
    %3440 = vmatprep.subr.mxu0 %v3314
    %3441 = vmatpush1.msra.mxu0 %v3313
    %3442 = vmatprep.subr.mxu0 %v3318
    %3443 = vmatpush1.msra.mxu0 %v3317
    %3444 = vmatprep.subr.mxu0 %v3322
    %3445 = vmatpush1.msra.mxu0 %v3321
    %3446 = vmatprep.subr.mxu0 %v3326
    %3447 = vmatpush1.msra.mxu0 %v3325
    %3448 = vmatprep.subr.mxu0 %v3330
    %3449 = vmatpush1.msra.mxu0 %v3329
    %3450 = vmatprep.subr.mxu0 %v3334
    %3451 = vmatpush1.msra.mxu0 %v3333
    %3452 = vmatprep.subr.mxu0 %v3338
    %3453 = vmatpush1.msra.mxu0 %v3337
    %3454 = vmatprep.subr.mxu0 %v3342
    %3455 = vmatpush1.msra.mxu0 %v3341
    %3456 = vmatprep.subr.mxu0 %v3346
    %3457 = vmatpush1.msra.mxu0 %v3345
    %3458 = vmatprep.subr.mxu0 %v3350
    %3459 = vmatpush1.msra.mxu0 %v3349
    %3460 = vmatprep.subr.mxu0 %v3354
    %3461 = vmatpush1.msra.mxu0 %v3353
    %3462 = vmatprep.subr.mxu0 %v3358
    %3463 = vmatpush1.msra.mxu0 %v3357
    %3464 = vmatprep.subr.mxu0 %v3362
    %3465 = vmatpush1.msra.mxu0 %v3361
    %3466 = vmatprep.subr.mxu0 0.0
    %3467 = vmatpush1.msra.mxu0 0.0
    %3468 = vmatprep.subr.mxu0 0.0
    %3469 = vmatpush1.msra.mxu0 0.0
    %3470 = vmatprep.subr.mxu0 0.0
    %3471 = vmatpush1.msra.mxu0 0.0
    %3472 = vmatprep.subr.mxu0 0.0
    %3473 = vmatpush1.msra.mxu0 0.0
    %3474 = vmatprep.subr.mxu0 0.0
    %3475 = vmatpush1.msra.mxu0 0.0
    %3476 = vmatprep.subr.mxu0 0.0
    %3477 = vmatpush1.msra.mxu0 0.0
    %3478 = vmatprep.subr.mxu0 0.0
    %3479 = vmatpush1.msra.mxu0 0.0
    %3480 = vmatprep.subr.mxu0 0.0
    %3481 = vmatpush1.msra.mxu0 0.0
    %3482 = vmatprep.subr.mxu0 0.0
    %3483 = vmatpush1.msra.mxu0 0.0
    %3484 = vmatprep.subr.mxu0 0.0
    %3485 = vmatpush1.msra.mxu0 0.0
    %3486 = vmatprep.subr.mxu0 0.0
    %3487 = vmatpush1.msra.mxu0 0.0
    %3488 = vmatprep.subr.mxu0 0.0
    %3489 = vmatpush1.msra.mxu0 0.0
    %3490 = vmatprep.subr.mxu0 0.0
    %3491 = vmatpush1.msra.mxu0 0.0
    %3492 = vmatprep.subr.mxu0 0.0
    %3493 = vmatpush1.msra.mxu0 0.0
    %3494 = vmatprep.subr.mxu0 0.0
    %3495 = vmatpush1.msra.mxu0 0.0
    %3496 = vmatprep.subr.mxu0 0.0
    %3497 = vmatpush1.msra.mxu0 0.0
    %3498 = vmatprep.mubr.f32.mxu0 0.0
    %3499 = vmatmul.mubr.f32.gmra.mrb[0].mxu0 %v3298
    %v3500 = vpop.f32.mrb[0].mxu0
    %v3501 = vadd.f32 0.0, %v3500
    %v3502 = vpop.f32.mrb[0].mxu0
    %v3503 = vadd.f32 0.0, %v3502
    %3504 = vdwg.mxu0
    %3505 = vst [vmem:[#allocation4] sm:$0xff] %v3430
    %3506 = vst [vmem:[#allocation4 + $0x8] sm:$0xff] %v3432
    %3507 = vst [vmem:[#allocation4 + $0x10] sm:$0xff] %v3501
    %3508 = vst [vmem:[#allocation4 + $0x18] sm:$0xff] %v3503
  $region53: #{seq2seq_forward.1} parent=0 // pred_fallthru
    _
  %v3509 = vld [vmem:[#allocation4] sm:$0xff]
  %v3510 = vld [vmem:[#allocation4 + $0x8] sm:$0xff]
  %v3511 = vld [vmem:[#allocation4 + $0x10] sm:$0xff]
  %v3512 = vld [vmem:[#allocation4 + $0x18] sm:$0xff]
  %v3513 = vld [vmem:[#allocation2] sm:$0xff]
  %v3514 = vld [vmem:[%s4] sm:$0xff]
  %v3515 = vld [vmem:[%s4 + $0x8] sm:$0xff]
  %v3516 = vld [vmem:[%s4 + $0x10] sm:$0xff]
  %v3517 = vld [vmem:[%s4 + $0x18] sm:$0xff]
  %v3518 = vld [vmem:[%s4 + $0x20] sm:$0xff]
  %v3519 = vld [vmem:[%s4 + $0x28] sm:$0xff]
  %v3520 = vld [vmem:[%s4 + $0x30] sm:$0xff]
  %v3521 = vld [vmem:[%s4 + $0x38] sm:$0xff]
  %v3522 = vld [vmem:[%s4 + $0x40] sm:$0xff]
  %v3523 = vld [vmem:[%s4 + $0x48] sm:$0xff]
  %v3524 = vld [vmem:[%s4 + $0x50] sm:$0xff]
  %v3525 = vld [vmem:[%s4 + $0x58] sm:$0xff]
  %v3526 = vld [vmem:[%s4 + $0x60] sm:$0xff]
  %v3527 = vld [vmem:[%s4 + $0x68] sm:$0xff]
  %v3528 = vld [vmem:[%s4 + $0x70] sm:$0xff]
  %v3529 = vld [vmem:[%s4 + $0x78] sm:$0xff]
  %v3530 = vld [vmem:[%s4 + $0x80] sm:$0xff]
  %v3531 = vld [vmem:[%s4 + $0x88] sm:$0xff]
  %v3532 = vld [vmem:[%s4 + $0x90] sm:$0xff]
  %v3533 = vld [vmem:[%s4 + $0x98] sm:$0xff]
  %v3534 = vld [vmem:[%s4 + $0xa0] sm:$0xff]
  %v3535 = vld [vmem:[%s4 + $0xa8] sm:$0xff]
  %v3536 = vld [vmem:[%s4 + $0xb0] sm:$0xff]
  %v3537 = vld [vmem:[%s4 + $0xb8] sm:$0xff]
  %v3538 = vld [vmem:[%s4 + $0xc0] sm:$0xff]
  %v3539 = vld [vmem:[%s4 + $0xc8] sm:$0xff]
  %v3540 = vld [vmem:[%s4 + $0xd0] sm:$0xff]
  %v3541 = vld [vmem:[%s4 + $0xd8] sm:$0xff]
  %v3542 = vld [vmem:[%s4 + $0xe0] sm:$0xff]
  %v3543 = vld [vmem:[%s4 + $0xe8] sm:$0xff]
  %v3544 = vld [vmem:[%s4 + $0xf0] sm:$0xff]
  %v3545 = vld [vmem:[%s4 + $0xf8] sm:$0xff]
  %v3546 = vld [vmem:[%s4 + $0x100] sm:$0xff]
  %v3547 = vld [vmem:[%s4 + $0x108] sm:$0xff]
  %v3548 = vld [vmem:[%s4 + $0x110] sm:$0xff]
  %v3549 = vld [vmem:[%s4 + $0x118] sm:$0xff]
  %v3550 = vld [vmem:[%s4 + $0x120] sm:$0xff]
  %v3551 = vld [vmem:[%s4 + $0x128] sm:$0xff]
  %v3552 = vld [vmem:[%s4 + $0x130] sm:$0xff]
  %v3553 = vld [vmem:[%s4 + $0x138] sm:$0xff]
  %v3554 = vld [vmem:[%s4 + $0x140] sm:$0xff]
  %v3555 = vld [vmem:[%s4 + $0x148] sm:$0xff]
  %v3556 = vld [vmem:[%s4 + $0x150] sm:$0xff]
  %v3557 = vld [vmem:[%s4 + $0x158] sm:$0xff]
  %v3558 = vld [vmem:[%s4 + $0x160] sm:$0xff]
  %v3559 = vld [vmem:[%s4 + $0x168] sm:$0xff]
  %v3560 = vld [vmem:[%s4 + $0x170] sm:$0xff]
  %v3561 = vld [vmem:[%s4 + $0x178] sm:$0xff]
  %v3562 = vld [vmem:[%s4 + $0x180] sm:$0xff]
  %v3563 = vld [vmem:[%s4 + $0x188] sm:$0xff]
  %v3564 = vld [vmem:[%s4 + $0x190] sm:$0xff]
  %v3565 = vld [vmem:[%s4 + $0x198] sm:$0xff]
  %v3566 = vld [vmem:[%s4 + $0x1a0] sm:$0xff]
  %v3567 = vld [vmem:[%s4 + $0x1a8] sm:$0xff]
  %v3568 = vld [vmem:[%s4 + $0x1b0] sm:$0xff]
  %v3569 = vld [vmem:[%s4 + $0x1b8] sm:$0xff]
  %v3570 = vld [vmem:[%s4 + $0x1c0] sm:$0xff]
  %v3571 = vld [vmem:[%s4 + $0x1c8] sm:$0xff]
  %v3572 = vld [vmem:[%s4 + $0x1d0] sm:$0xff]
  %v3573 = vld [vmem:[%s4 + $0x1d8] sm:$0xff]
  %v3574 = vld [vmem:[%s4 + $0x1e0] sm:$0xff]
  %v3575 = vld [vmem:[%s4 + $0x1e8] sm:$0xff]
  %v3576 = vld [vmem:[%s4 + $0x1f0] sm:$0xff]
  %v3577 = vld [vmem:[%s4 + $0x1f8] sm:$0xff]
  %3578 = vmatprep.subr.mxu0 %v3515
  %3579 = vmatpush1.msra.mxu0 %v3514
  %3580 = vmatprep.subr.mxu0 %v3519
  %3581 = vmatpush1.msra.mxu0 %v3518
  %3582 = vmatprep.subr.mxu0 %v3523
  %3583 = vmatpush1.msra.mxu0 %v3522
  %3584 = vmatprep.subr.mxu0 %v3527
  %3585 = vmatpush1.msra.mxu0 %v3526
  %3586 = vmatprep.subr.mxu0 %v3531
  %3587 = vmatpush1.msra.mxu0 %v3530
  %3588 = vmatprep.subr.mxu0 %v3535
  %3589 = vmatpush1.msra.mxu0 %v3534
  %3590 = vmatprep.subr.mxu0 %v3539
  %3591 = vmatpush1.msra.mxu0 %v3538
  %3592 = vmatprep.subr.mxu0 %v3543
  %3593 = vmatpush1.msra.mxu0 %v3542
  %3594 = vmatprep.subr.mxu0 %v3547
  %3595 = vmatpush1.msra.mxu0 %v3546
  %3596 = vmatprep.subr.mxu0 %v3551
  %3597 = vmatpush1.msra.mxu0 %v3550
  %3598 = vmatprep.subr.mxu0 %v3555
  %3599 = vmatpush1.msra.mxu0 %v3554
  %3600 = vmatprep.subr.mxu0 %v3559
  %3601 = vmatpush1.msra.mxu0 %v3558
  %3602 = vmatprep.subr.mxu0 %v3563
  %3603 = vmatpush1.msra.mxu0 %v3562
  %3604 = vmatprep.subr.mxu0 %v3567
  %3605 = vmatpush1.msra.mxu0 %v3566
  %3606 = vmatprep.subr.mxu0 %v3571
  %3607 = vmatpush1.msra.mxu0 %v3570
  %3608 = vmatprep.subr.mxu0 %v3575
  %3609 = vmatpush1.msra.mxu0 %v3574
  %3610 = vmatprep.subr.mxu0 0.0
  %3611 = vmatpush1.msra.mxu0 0.0
  %3612 = vmatprep.subr.mxu0 0.0
  %3613 = vmatpush1.msra.mxu0 0.0
  %3614 = vmatprep.subr.mxu0 0.0
  %3615 = vmatpush1.msra.mxu0 0.0
  %3616 = vmatprep.subr.mxu0 0.0
  %3617 = vmatpush1.msra.mxu0 0.0
  %3618 = vmatprep.subr.mxu0 0.0
  %3619 = vmatpush1.msra.mxu0 0.0
  %3620 = vmatprep.subr.mxu0 0.0
  %3621 = vmatpush1.msra.mxu0 0.0
  %3622 = vmatprep.subr.mxu0 0.0
  %3623 = vmatpush1.msra.mxu0 0.0
  %3624 = vmatprep.subr.mxu0 0.0
  %3625 = vmatpush1.msra.mxu0 0.0
  %3626 = vmatprep.subr.mxu0 0.0
  %3627 = vmatpush1.msra.mxu0 0.0
  %3628 = vmatprep.subr.mxu0 0.0
  %3629 = vmatpush1.msra.mxu0 0.0
  %3630 = vmatprep.subr.mxu0 0.0
  %3631 = vmatpush1.msra.mxu0 0.0
  %3632 = vmatprep.subr.mxu0 0.0
  %3633 = vmatpush1.msra.mxu0 0.0
  %3634 = vmatprep.subr.mxu0 0.0
  %3635 = vmatpush1.msra.mxu0 0.0
  %3636 = vmatprep.subr.mxu0 0.0
  %3637 = vmatpush1.msra.mxu0 0.0
  %3638 = vmatprep.subr.mxu0 0.0
  %3639 = vmatpush1.msra.mxu0 0.0
  %3640 = vmatprep.subr.mxu0 0.0
  %3641 = vmatpush1.msra.mxu0 0.0
  %3642 = vmatprep.mubr.f32.mxu0 0.0
  %3643 = vmatmul.mubr.f32.gmra.mrb[0].mxu0 %v3513
  %v3644 = vpop.f32.mrb[0].mxu0
  %v3645 = vadd.f32 0.0, %v3644
  %v3646 = vpop.f32.mrb[0].mxu0
  %v3647 = vadd.f32 0.0, %v3646
  %3648 = vdwg.mxu0
  %3649 = vmatprep.subr.mxu0 %v3517
  %3650 = vmatpush1.msra.mxu0 %v3516
  %3651 = vmatprep.subr.mxu0 %v3521
  %3652 = vmatpush1.msra.mxu0 %v3520
  %3653 = vmatprep.subr.mxu0 %v3525
  %3654 = vmatpush1.msra.mxu0 %v3524
  %3655 = vmatprep.subr.mxu0 %v3529
  %3656 = vmatpush1.msra.mxu0 %v3528
  %3657 = vmatprep.subr.mxu0 %v3533
  %3658 = vmatpush1.msra.mxu0 %v3532
  %3659 = vmatprep.subr.mxu0 %v3537
  %3660 = vmatpush1.msra.mxu0 %v3536
  %3661 = vmatprep.subr.mxu0 %v3541
  %3662 = vmatpush1.msra.mxu0 %v3540
  %3663 = vmatprep.subr.mxu0 %v3545
  %3664 = vmatpush1.msra.mxu0 %v3544
  %3665 = vmatprep.subr.mxu0 %v3549
  %3666 = vmatpush1.msra.mxu0 %v3548
  %3667 = vmatprep.subr.mxu0 %v3553
  %3668 = vmatpush1.msra.mxu0 %v3552
  %3669 = vmatprep.subr.mxu0 %v3557
  %3670 = vmatpush1.msra.mxu0 %v3556
  %3671 = vmatprep.subr.mxu0 %v3561
  %3672 = vmatpush1.msra.mxu0 %v3560
  %3673 = vmatprep.subr.mxu0 %v3565
  %3674 = vmatpush1.msra.mxu0 %v3564
  %3675 = vmatprep.subr.mxu0 %v3569
  %3676 = vmatpush1.msra.mxu0 %v3568
  %3677 = vmatprep.subr.mxu0 %v3573
  %3678 = vmatpush1.msra.mxu0 %v3572
  %3679 = vmatprep.subr.mxu0 %v3577
  %3680 = vmatpush1.msra.mxu0 %v3576
  %3681 = vmatprep.subr.mxu0 0.0
  %3682 = vmatpush1.msra.mxu0 0.0
  %3683 = vmatprep.subr.mxu0 0.0
  %3684 = vmatpush1.msra.mxu0 0.0
  %3685 = vmatprep.subr.mxu0 0.0
  %3686 = vmatpush1.msra.mxu0 0.0
  %3687 = vmatprep.subr.mxu0 0.0
  %3688 = vmatpush1.msra.mxu0 0.0
  %3689 = vmatprep.subr.mxu0 0.0
  %3690 = vmatpush1.msra.mxu0 0.0
  %3691 = vmatprep.subr.mxu0 0.0
  %3692 = vmatpush1.msra.mxu0 0.0
  %3693 = vmatprep.subr.mxu0 0.0
  %3694 = vmatpush1.msra.mxu0 0.0
  %3695 = vmatprep.subr.mxu0 0.0
  %3696 = vmatpush1.msra.mxu0 0.0
  %3697 = vmatprep.subr.mxu0 0.0
  %3698 = vmatpush1.msra.mxu0 0.0
  %3699 = vmatprep.subr.mxu0 0.0
  %3700 = vmatpush1.msra.mxu0 0.0
  %3701 = vmatprep.subr.mxu0 0.0
  %3702 = vmatpush1.msra.mxu0 0.0
  %3703 = vmatprep.subr.mxu0 0.0
  %3704 = vmatpush1.msra.mxu0 0.0
  %3705 = vmatprep.subr.mxu0 0.0
  %3706 = vmatpush1.msra.mxu0 0.0
  %3707 = vmatprep.subr.mxu0 0.0
  %3708 = vmatpush1.msra.mxu0 0.0
  %3709 = vmatprep.subr.mxu0 0.0
  %3710 = vmatpush1.msra.mxu0 0.0
  %3711 = vmatprep.subr.mxu0 0.0
  %3712 = vmatpush1.msra.mxu0 0.0
  %3713 = vmatprep.mubr.f32.mxu0 0.0
  %3714 = vmatmul.mubr.f32.gmra.mrb[0].mxu0 %v3513
  %v3715 = vpop.f32.mrb[0].mxu0
  %v3716 = vadd.f32 0.0, %v3715
  %v3717 = vpop.f32.mrb[0].mxu0
  %v3718 = vadd.f32 0.0, %v3717
  %3719 = vdwg.mxu0
  %v3720 = vadd.f32 %v3509, %v3645
  %v3721 = vadd.f32 %v3510, %v3647
  %v3722 = vadd.f32 %v3511, %v3716
  %v3723 = vadd.f32 %v3512, %v3718
  %v3724 = vld [vmem:[#allocation3] sm:$0xff]
  %v3725 = vxor.u32 %v3720, 2147483648
  %v3726 = vmul.f32 %v3725, 1.442695
  %v3727 = vpow.pop %v3726
  %v3728 = vadd.f32 %v3727, 1.0
  %v3729 = vrcp.pop %v3728
  %v3730 = vmul.f32 1.0, %v3729
  %v3731 = vxor.u32 %v3721, 2147483648
  %v3732 = vmul.f32 %v3731, 1.442695
  %v3733 = vpow.pop %v3732
  %v3734 = vadd.f32 %v3733, 1.0
  %v3735 = vrcp.pop %v3734
  %v3736 = vmul.f32 1.0, %v3735
  %v3737 = vtanh.pop %v3722
  %v3738 = vxor.u32 %v3723, 2147483648
  %v3739 = vmul.f32 %v3738, 1.442695
  %v3740 = vpow.pop %v3739
  %v3741 = vadd.f32 %v3740, 1.0
  %v3742 = vrcp.pop %v3741
  %v3743 = vmul.f32 1.0, %v3742
  %v3744 = vmul.f32 %v3736, %v3724
  %v3745 = vmul.f32 %v3730, %v3737
  %v3746 = vadd.f32 %v3744, %v3745
  %v3747 = vtanh.pop %v3746
  %v3748 = vmul.f32 %v3743, %v3747
  %3749 = vst [vmem:[#allocation2] sm:$0xff] %v3748
  %3750 = vst [vmem:[#allocation3] sm:$0xff] %v3746
  %v3751 = vld [vmem:[%s6] sm:$0xff]
  %v3752 = vld [vmem:[%s6 + $0x8] sm:$0xff]
  %v3753 = vld [vmem:[%s6 + $0x10] sm:$0xff]
  %v3754 = vld [vmem:[%s6 + $0x18] sm:$0xff]
  %v3755 = vld [vmem:[%s6 + $0x20] sm:$0xff]
  %v3756 = vld [vmem:[%s6 + $0x28] sm:$0xff]
  %v3757 = vld [vmem:[%s6 + $0x30] sm:$0xff]
  %v3758 = vld [vmem:[%s6 + $0x38] sm:$0xff]
  %v3759 = vld [vmem:[%s6 + $0x40] sm:$0xff]
  %v3760 = vld [vmem:[%s6 + $0x48] sm:$0xff]
  %v3761 = vld [vmem:[%s6 + $0x50] sm:$0xff]
  %v3762 = vld [vmem:[%s6 + $0x58] sm:$0xff]
  %v3763 = vld [vmem:[%s6 + $0x60] sm:$0xff]
  %v3764 = vld [vmem:[%s6 + $0x68] sm:$0xff]
  %v3765 = vld [vmem:[%s6 + $0x70] sm:$0xff]
  %v3766 = vld [vmem:[%s6 + $0x78] sm:$0xff]
  %v3767 = vld [vmem:[%s7] sm:$0x1]
  %v3769 = vlaneseq
  %v3770 = vshrl.u32 %v3769, 7
  %v3771 = vsub.s32 0, %v3770
  %v3772 = vrot.slane %v3767, %v3771
  %3774 = vmatprep.subr.mxu0 0.0
  %3775 = vmatpush1.msra.mxu0 %v3751
  %3776 = vmatprep.subr.mxu0 0.0
  %3777 = vmatpush1.msra.mxu0 %v3752
  %3778 = vmatprep.subr.mxu0 0.0
  %3779 = vmatpush1.msra.mxu0 %v3753
  %3780 = vmatprep.subr.mxu0 0.0
  %3781 = vmatpush1.msra.mxu0 %v3754
  %3782 = vmatprep.subr.mxu0 0.0
  %3783 = vmatpush1.msra.mxu0 %v3755
  %3784 = vmatprep.subr.mxu0 0.0
  %3785 = vmatpush1.msra.mxu0 %v3756
  %3786 = vmatprep.subr.mxu0 0.0
  %3787 = vmatpush1.msra.mxu0 %v3757
  %3788 = vmatprep.subr.mxu0 0.0
  %3789 = vmatpush1.msra.mxu0 %v3758
  %3790 = vmatprep.subr.mxu0 0.0
  %3791 = vmatpush1.msra.mxu0 %v3759
  %3792 = vmatprep.subr.mxu0 0.0
  %3793 = vmatpush1.msra.mxu0 %v3760
  %3794 = vmatprep.subr.mxu0 0.0
  %3795 = vmatpush1.msra.mxu0 %v3761
  %3796 = vmatprep.subr.mxu0 0.0
  %3797 = vmatpush1.msra.mxu0 %v3762
  %3798 = vmatprep.subr.mxu0 0.0
  %3799 = vmatpush1.msra.mxu0 %v3763
  %3800 = vmatprep.subr.mxu0 0.0
  %3801 = vmatpush1.msra.mxu0 %v3764
  %3802 = vmatprep.subr.mxu0 0.0
  %3803 = vmatpush1.msra.mxu0 %v3765
  %3804 = vmatprep.subr.mxu0 0.0
  %3805 = vmatpush1.msra.mxu0 %v3766
  %3806 = vmatprep.subr.mxu0 0.0
  %3807 = vmatpush1.msra.mxu0 0.0
  %3808 = vmatprep.subr.mxu0 0.0
  %3809 = vmatpush1.msra.mxu0 0.0
  %3810 = vmatprep.subr.mxu0 0.0
  %3811 = vmatpush1.msra.mxu0 0.0
  %3812 = vmatprep.subr.mxu0 0.0
  %3813 = vmatpush1.msra.mxu0 0.0
  %3814 = vmatprep.subr.mxu0 0.0
  %3815 = vmatpush1.msra.mxu0 0.0
  %3816 = vmatprep.subr.mxu0 0.0
  %3817 = vmatpush1.msra.mxu0 0.0
  %3818 = vmatprep.subr.mxu0 0.0
  %3819 = vmatpush1.msra.mxu0 0.0
  %3820 = vmatprep.subr.mxu0 0.0
  %3821 = vmatpush1.msra.mxu0 0.0
  %3822 = vmatprep.subr.mxu0 0.0
  %3823 = vmatpush1.msra.mxu0 0.0
  %3824 = vmatprep.subr.mxu0 0.0
  %3825 = vmatpush1.msra.mxu0 0.0
  %3826 = vmatprep.subr.mxu0 0.0
  %3827 = vmatpush1.msra.mxu0 0.0
  %3828 = vmatprep.subr.mxu0 0.0
  %3829 = vmatpush1.msra.mxu0 0.0
  %3830 = vmatprep.subr.mxu0 0.0
  %3831 = vmatpush1.msra.mxu0 0.0
  %3832 = vmatprep.subr.mxu0 0.0
  %3833 = vmatpush1.msra.mxu0 0.0
  %3834 = vmatprep.subr.mxu0 0.0
  %3835 = vmatpush1.msra.mxu0 0.0
  %3836 = vmatprep.subr.mxu0 0.0
  %3837 = vmatpush1.msra.mxu0 0.0
  %3838 = vmatprep.mubr.f32.mxu0 0.0
  %3839 = vmatmul.mubr.f32.gmra.mrb[0].mxu0 %v3748
  %v3840 = vpop.f32.mrb[0].mxu0
  %v3841 = vadd.f32 %v3772, %v3840
  %v3842 = vpop.f32.mrb[0].mxu0
  %3843 = vdwg.mxu0
  %s3844 = scalar_lea.vmem %s8, 24
  %3845 = vst [vmem:[%s3844] sm:$0xff] %v3841
  %s3846 = sld [smem:[#allocation6 + $0x4]]
  %p3847 = scmp.gt.s32.totalorder %s3846, 0
  // Predicated region
  $region54: #{seq2seq_forward.1} parent=0 // pred_check
    %p3848 = pneg %p3847
  $region55: #{seq2seq_forward.1} parent=0 // pred_check_branch
    %3850 = sbr.rel (%p3848) target = $region57
  $region56: #{seq2seq_forward.1} parent=0 // pred_region
    %s3851 = scalar_lea.vmem %s2, 128
    %v3852 = vld [vmem:[%s3851] sm:$0xff]
    %v3853 = vld [vmem:[%s3851 + $0x8] sm:$0xff]
    %v3854 = vld [vmem:[%s3851 + $0x10] sm:$0xff]
    %v3855 = vld [vmem:[%s3851 + $0x18] sm:$0xff]
    %3856 = vst [vmem:[#allocation4] sm:$0xff] %v3852
    %3857 = vst [vmem:[#allocation4 + $0x8] sm:$0xff] %v3853
    %3858 = vst [vmem:[#allocation4 + $0x10] sm:$0xff] %v3854
    %3859 = vst [vmem:[#allocation4 + $0x18] sm:$0xff] %v3855
  $region57: #{seq2seq_forward.1} parent=0 // pred_fallthru
    _
  %p3860 = scmp.eq.s32.totalorder %s3846, 0
  // Predicated region
  $region58: #{seq2seq_forward.1} parent=0 // pred_check
    %p3861 = pneg %p3860
  $region59: #{seq2seq_forward.1} parent=0 // pred_check_branch
    %3863 = sbr.rel (%p3861) target = $region61
  $region60: #{seq2seq_forward.1} parent=0 // pred_region
    %v3864 = vsel %vm1745, %v3841, -1e+30
    %3865 = vmax.xlane.f32.xlu0 %v3864
    %v3866 = vpop.xlane.xlu0 %3865
    %vm3867 = vcmp.eq.f32.partialorder %v3864, %v3866
    %vm3868 = vmand %vm3867, %vm1745
    %v3869 = vsel %vm3868, %v1744, 128
    %v3870 = vand.u32 %v3869, 65535
    %v3871 = vshra.s32 %v3869, 16
    %v3872 = vcvt.s32.f32 %v3870
    %v3873 = vcvt.s32.f32 %v3871
    %3874 = vmin.xlane.f32.xlu0 %v3873
    %v3875 = vpop.xlane.xlu0 %3874
    %vm3876 = vcmp.eq.f32.partialorder %v3873, %v3875
    %v3877 = vsel %vm3876, %v3872, inf
    %3878 = vmin.xlane.f32.xlu0 %v3877
    %v3879 = vpop.xlane.xlu0 %3878
    %v3880 = vcvt.f32.s32 %v3879
    %v3881 = vcvt.f32.s32 %v3875
    %v3882 = vshll.u32 %v3881, 16
    %v3883 = vadd.s32 %v3882, %v3880
    %vm3884 = vcmp.eq.s32.totalorder %v1744, %v3883
    %v3885 = vsel %vm3884, 1, 0
    %v3886 = vcvt.s32.f32 %v3885
    %v3887 = vld [vmem:[%s5] sm:$0xff]
    %v3888 = vld [vmem:[%s5 + $0x8] sm:$0xff]
    %v3889 = vld [vmem:[%s5 + $0x10] sm:$0xff]
    %v3890 = vld [vmem:[%s5 + $0x18] sm:$0xff]
    %v3891 = vld [vmem:[%s5 + $0x20] sm:$0xff]
    %v3892 = vld [vmem:[%s5 + $0x28] sm:$0xff]
    %v3893 = vld [vmem:[%s5 + $0x30] sm:$0xff]
    %v3894 = vld [vmem:[%s5 + $0x38] sm:$0xff]
    %v3895 = vld [vmem:[%s5 + $0x40] sm:$0xff]
    %v3896 = vld [vmem:[%s5 + $0x48] sm:$0xff]
    %v3897 = vld [vmem:[%s5 + $0x50] sm:$0xff]
    %v3898 = vld [vmem:[%s5 + $0x58] sm:$0xff]
    %v3899 = vld [vmem:[%s5 + $0x60] sm:$0xff]
    %v3900 = vld [vmem:[%s5 + $0x68] sm:$0xff]
    %v3901 = vld [vmem:[%s5 + $0x70] sm:$0xff]
    %v3902 = vld [vmem:[%s5 + $0x78] sm:$0xff]
    %v3903 = vld [vmem:[%s5 + $0x80] sm:$0xff]
    %v3904 = vld [vmem:[%s5 + $0x88] sm:$0xff]
    %v3905 = vld [vmem:[%s5 + $0x90] sm:$0xff]
    %v3906 = vld [vmem:[%s5 + $0x98] sm:$0xff]
    %v3907 = vld [vmem:[%s5 + $0xa0] sm:$0xff]
    %v3908 = vld [vmem:[%s5 + $0xa8] sm:$0xff]
    %v3909 = vld [vmem:[%s5 + $0xb0] sm:$0xff]
    %v3910 = vld [vmem:[%s5 + $0xb8] sm:$0xff]
    %v3911 = vld [vmem:[%s5 + $0xc0] sm:$0xff]
    %v3912 = vld [vmem:[%s5 + $0xc8] sm:$0xff]
    %v3913 = vld [vmem:[%s5 + $0xd0] sm:$0xff]
    %v3914 = vld [vmem:[%s5 + $0xd8] sm:$0xff]
    %v3915 = vld [vmem:[%s5 + $0xe0] sm:$0xff]
    %v3916 = vld [vmem:[%s5 + $0xe8] sm:$0xff]
    %v3917 = vld [vmem:[%s5 + $0xf0] sm:$0xff]
    %v3918 = vld [vmem:[%s5 + $0xf8] sm:$0xff]
    %v3919 = vld [vmem:[%s5 + $0x100] sm:$0xff]
    %v3920 = vld [vmem:[%s5 + $0x108] sm:$0xff]
    %v3921 = vld [vmem:[%s5 + $0x110] sm:$0xff]
    %v3922 = vld [vmem:[%s5 + $0x118] sm:$0xff]
    %v3923 = vld [vmem:[%s5 + $0x120] sm:$0xff]
    %v3924 = vld [vmem:[%s5 + $0x128] sm:$0xff]
    %v3925 = vld [vmem:[%s5 + $0x130] sm:$0xff]
    %v3926 = vld [vmem:[%s5 + $0x138] sm:$0xff]
    %v3927 = vld [vmem:[%s5 + $0x140] sm:$0xff]
    %v3928 = vld [vmem:[%s5 + $0x148] sm:$0xff]
    %v3929 = vld [vmem:[%s5 + $0x150] sm:$0xff]
    %v3930 = vld [vmem:[%s5 + $0x158] sm:$0xff]
    %v3931 = vld [vmem:[%s5 + $0x160] sm:$0xff]
    %v3932 = vld [vmem:[%s5 + $0x168] sm:$0xff]
    %v3933 = vld [vmem:[%s5 + $0x170] sm:$0xff]
    %v3934 = vld [vmem:[%s5 + $0x178] sm:$0xff]
    %v3935 = vld [vmem:[%s5 + $0x180] sm:$0xff]
    %v3936 = vld [vmem:[%s5 + $0x188] sm:$0xff]
    %v3937 = vld [vmem:[%s5 + $0x190] sm:$0xff]
    %v3938 = vld [vmem:[%s5 + $0x198] sm:$0xff]
    %v3939 = vld [vmem:[%s5 + $0x1a0] sm:$0xff]
    %v3940 = vld [vmem:[%s5 + $0x1a8] sm:$0xff]
    %v3941 = vld [vmem:[%s5 + $0x1b0] sm:$0xff]
    %v3942 = vld [vmem:[%s5 + $0x1b8] sm:$0xff]
    %v3943 = vld [vmem:[%s5 + $0x1c0] sm:$0xff]
    %v3944 = vld [vmem:[%s5 + $0x1c8] sm:$0xff]
    %v3945 = vld [vmem:[%s5 + $0x1d0] sm:$0xff]
    %v3946 = vld [vmem:[%s5 + $0x1d8] sm:$0xff]
    %v3947 = vld [vmem:[%s5 + $0x1e0] sm:$0xff]
    %v3948 = vld [vmem:[%s5 + $0x1e8] sm:$0xff]
    %v3949 = vld [vmem:[%s5 + $0x1f0] sm:$0xff]
    %v3950 = vld [vmem:[%s5 + $0x1f8] sm:$0xff]
    %3951 = vmatprep.subr.mxu0 %v3888
    %3952 = vmatpush1.msra.mxu0 %v3887
    %3953 = vmatprep.subr.mxu0 %v3892
    %3954 = vmatpush1.msra.mxu0 %v3891
    %3955 = vmatprep.subr.mxu0 %v3896
    %3956 = vmatpush1.msra.mxu0 %v3895
    %3957 = vmatprep.subr.mxu0 %v3900
    %3958 = vmatpush1.msra.mxu0 %v3899
    %3959 = vmatprep.subr.mxu0 %v3904
    %3960 = vmatpush1.msra.mxu0 %v3903
    %3961 = vmatprep.subr.mxu0 %v3908
    %3962 = vmatpush1.msra.mxu0 %v3907
    %3963 = vmatprep.subr.mxu0 %v3912
    %3964 = vmatpush1.msra.mxu0 %v3911
    %3965 = vmatprep.subr.mxu0 %v3916
    %3966 = vmatpush1.msra.mxu0 %v3915
    %3967 = vmatprep.subr.mxu0 %v3920
    %3968 = vmatpush1.msra.mxu0 %v3919
    %3969 = vmatprep.subr.mxu0 %v3924
    %3970 = vmatpush1.msra.mxu0 %v3923
    %3971 = vmatprep.subr.mxu0 %v3928
    %3972 = vmatpush1.msra.mxu0 %v3927
    %3973 = vmatprep.subr.mxu0 %v3932
    %3974 = vmatpush1.msra.mxu0 %v3931
    %3975 = vmatprep.subr.mxu0 %v3936
    %3976 = vmatpush1.msra.mxu0 %v3935
    %3977 = vmatprep.subr.mxu0 %v3940
    %3978 = vmatpush1.msra.mxu0 %v3939
    %3979 = vmatprep.subr.mxu0 %v3944
    %3980 = vmatpush1.msra.mxu0 %v3943
    %3981 = vmatprep.subr.mxu0 %v3948
    %3982 = vmatpush1.msra.mxu0 %v3947
    %3983 = vmatprep.subr.mxu0 0.0
    %3984 = vmatpush1.msra.mxu0 0.0
    %3985 = vmatprep.subr.mxu0 0.0
    %3986 = vmatpush1.msra.mxu0 0.0
    %3987 = vmatprep.subr.mxu0 0.0
    %3988 = vmatpush1.msra.mxu0 0.0
    %3989 = vmatprep.subr.mxu0 0.0
    %3990 = vmatpush1.msra.mxu0 0.0
    %3991 = vmatprep.subr.mxu0 0.0
    %3992 = vmatpush1.msra.mxu0 0.0
    %3993 = vmatprep.subr.mxu0 0.0
    %3994 = vmatpush1.msra.mxu0 0.0
    %3995 = vmatprep.subr.mxu0 0.0
    %3996 = vmatpush1.msra.mxu0 0.0
    %3997 = vmatprep.subr.mxu0 0.0
    %3998 = vmatpush1.msra.mxu0 0.0
    %3999 = vmatprep.subr.mxu0 0.0
    %4000 = vmatpush1.msra.mxu0 0.0
    %4001 = vmatprep.subr.mxu0 0.0
    %4002 = vmatpush1.msra.mxu0 0.0
    %4003 = vmatprep.subr.mxu0 0.0
    %4004 = vmatpush1.msra.mxu0 0.0
    %4005 = vmatprep.subr.mxu0 0.0
    %4006 = vmatpush1.msra.mxu0 0.0
    %4007 = vmatprep.subr.mxu0 0.0
    %4008 = vmatpush1.msra.mxu0 0.0
    %4009 = vmatprep.subr.mxu0 0.0
    %4010 = vmatpush1.msra.mxu0 0.0
    %4011 = vmatprep.subr.mxu0 0.0
    %4012 = vmatpush1.msra.mxu0 0.0
    %4013 = vmatprep.subr.mxu0 0.0
    %4014 = vmatpush1.msra.mxu0 0.0
    %4015 = vmatprep.mubr.f32.mxu0 0.0
    %4016 = vmatmul.mubr.f32.gmra.mrb[0].mxu0 %v3886
    %v4017 = vpop.f32.mrb[0].mxu0
    %v4018 = vadd.f32 0.0, %v4017
    %v4019 = vpop.f32.mrb[0].mxu0
    %v4020 = vadd.f32 0.0, %v4019
    %4021 = vdwg.mxu0
    %4022 = vmatprep.subr.mxu0 %v3890
    %4023 = vmatpush1.msra.mxu0 %v3889
    %4024 = vmatprep.subr.mxu0 %v3894
    %4025 = vmatpush1.msra.mxu0 %v3893
    %4026 = vmatprep.subr.mxu0 %v3898
    %4027 = vmatpush1.msra.mxu0 %v3897
    %4028 = vmatprep.subr.mxu0 %v3902
    %4029 = vmatpush1.msra.mxu0 %v3901
    %4030 = vmatprep.subr.mxu0 %v3906
    %4031 = vmatpush1.msra.mxu0 %v3905
    %4032 = vmatprep.subr.mxu0 %v3910
    %4033 = vmatpush1.msra.mxu0 %v3909
    %4034 = vmatprep.subr.mxu0 %v3914
    %4035 = vmatpush1.msra.mxu0 %v3913
    %4036 = vmatprep.subr.mxu0 %v3918
    %4037 = vmatpush1.msra.mxu0 %v3917
    %4038 = vmatprep.subr.mxu0 %v3922
    %4039 = vmatpush1.msra.mxu0 %v3921
    %4040 = vmatprep.subr.mxu0 %v3926
    %4041 = vmatpush1.msra.mxu0 %v3925
    %4042 = vmatprep.subr.mxu0 %v3930
    %4043 = vmatpush1.msra.mxu0 %v3929
    %4044 = vmatprep.subr.mxu0 %v3934
    %4045 = vmatpush1.msra.mxu0 %v3933
    %4046 = vmatprep.subr.mxu0 %v3938
    %4047 = vmatpush1.msra.mxu0 %v3937
    %4048 = vmatprep.subr.mxu0 %v3942
    %4049 = vmatpush1.msra.mxu0 %v3941
    %4050 = vmatprep.subr.mxu0 %v3946
    %4051 = vmatpush1.msra.mxu0 %v3945
    %4052 = vmatprep.subr.mxu0 %v3950
    %4053 = vmatpush1.msra.mxu0 %v3949
    %4054 = vmatprep.subr.mxu0 0.0
    %4055 = vmatpush1.msra.mxu0 0.0
    %4056 = vmatprep.subr.mxu0 0.0
    %4057 = vmatpush1.msra.mxu0 0.0
    %4058 = vmatprep.subr.mxu0 0.0
    %4059 = vmatpush1.msra.mxu0 0.0
    %4060 = vmatprep.subr.mxu0 0.0
    %4061 = vmatpush1.msra.mxu0 0.0
    %4062 = vmatprep.subr.mxu0 0.0
    %4063 = vmatpush1.msra.mxu0 0.0
    %4064 = vmatprep.subr.mxu0 0.0
    %4065 = vmatpush1.msra.mxu0 0.0
    %4066 = vmatprep.subr.mxu0 0.0
    %4067 = vmatpush1.msra.mxu0 0.0
    %4068 = vmatprep.subr.mxu0 0.0
    %4069 = vmatpush1.msra.mxu0 0.0
    %4070 = vmatprep.subr.mxu0 0.0
    %4071 = vmatpush1.msra.mxu0 0.0
    %4072 = vmatprep.subr.mxu0 0.0
    %4073 = vmatpush1.msra.mxu0 0.0
    %4074 = vmatprep.subr.mxu0 0.0
    %4075 = vmatpush1.msra.mxu0 0.0
    %4076 = vmatprep.subr.mxu0 0.0
    %4077 = vmatpush1.msra.mxu0 0.0
    %4078 = vmatprep.subr.mxu0 0.0
    %4079 = vmatpush1.msra.mxu0 0.0
    %4080 = vmatprep.subr.mxu0 0.0
    %4081 = vmatpush1.msra.mxu0 0.0
    %4082 = vmatprep.subr.mxu0 0.0
    %4083 = vmatpush1.msra.mxu0 0.0
    %4084 = vmatprep.subr.mxu0 0.0
    %4085 = vmatpush1.msra.mxu0 0.0
    %4086 = vmatprep.mubr.f32.mxu0 0.0
    %4087 = vmatmul.mubr.f32.gmra.mrb[0].mxu0 %v3886
    %v4088 = vpop.f32.mrb[0].mxu0
    %v4089 = vadd.f32 0.0, %v4088
    %v4090 = vpop.f32.mrb[0].mxu0
    %v4091 = vadd.f32 0.0, %v4090
    %4092 = vdwg.mxu0
    %4093 = vst [vmem:[#allocation4] sm:$0xff] %v4018
    %4094 = vst [vmem:[#allocation4 + $0x8] sm:$0xff] %v4020
    %4095 = vst [vmem:[#allocation4 + $0x10] sm:$0xff] %v4089
    %4096 = vst [vmem:[#allocation4 + $0x18] sm:$0xff] %v4091
  $region61: #{seq2seq_forward.1} parent=0 // pred_fallthru
    _
  %v4097 = vld [vmem:[#allocation4] sm:$0xff]
  %v4098 = vld [vmem:[#allocation4 + $0x8] sm:$0xff]
  %v4099 = vld [vmem:[#allocation4 + $0x10] sm:$0xff]
  %v4100 = vld [vmem:[#allocation4 + $0x18] sm:$0xff]
  %v4101 = vld [vmem:[#allocation2] sm:$0xff]
  %v4102 = vld [vmem:[%s4] sm:$0xff]
  %v4103 = vld [vmem:[%s4 + $0x8] sm:$0xff]
  %v4104 = vld [vmem:[%s4 + $0x10] sm:$0xff]
  %v4105 = vld [vmem:[%s4 + $0x18] sm:$0xff]
  %v4106 = vld [vmem:[%s4 + $0x20] sm:$0xff]
  %v4107 = vld [vmem:[%s4 + $0x28] sm:$0xff]
  %v4108 = vld [vmem:[%s4 + $0x30] sm:$0xff]
  %v4109 = vld [vmem:[%s4 + $0x38] sm:$0xff]
  %v4110 = vld [vmem:[%s4 + $0x40] sm:$0xff]
  %v4111 = vld [vmem:[%s4 + $0x48] sm:$0xff]
  %v4112 = vld [vmem:[%s4 + $0x50] sm:$0xff]
  %v4113 = vld [vmem:[%s4 + $0x58] sm:$0xff]
  %v4114 = vld [vmem:[%s4 + $0x60] sm:$0xff]
  %v4115 = vld [vmem:[%s4 + $0x68] sm:$0xff]
  %v4116 = vld [vmem:[%s4 + $0x70] sm:$0xff]
  %v4117 = vld [vmem:[%s4 + $0x78] sm:$0xff]
  %v4118 = vld [vmem:[%s4 + $0x80] sm:$0xff]
  %v4119 = vld [vmem:[%s4 + $0x88] sm:$0xff]
  %v4120 = vld [vmem:[%s4 + $0x90] sm:$0xff]
  %v4121 = vld [vmem:[%s4 + $0x98] sm:$0xff]
  %v4122 = vld [vmem:[%s4 + $0xa0] sm:$0xff]
  %v4123 = vld [vmem:[%s4 + $0xa8] sm:$0xff]
  %v4124 = vld [vmem:[%s4 + $0xb0] sm:$0xff]
  %v4125 = vld [vmem:[%s4 + $0xb8] sm:$0xff]
  %v4126 = vld [vmem:[%s4 + $0xc0] sm:$0xff]
  %v4127 = vld [vmem:[%s4 + $0xc8] sm:$0xff]
  %v4128 = vld [vmem:[%s4 + $0xd0] sm:$0xff]
  %v4129 = vld [vmem:[%s4 + $0xd8] sm:$0xff]
  %v4130 = vld [vmem:[%s4 + $0xe0] sm:$0xff]
  %v4131 = vld [vmem:[%s4 + $0xe8] sm:$0xff]
  %v4132 = vld [vmem:[%s4 + $0xf0] sm:$0xff]
  %v4133 = vld [vmem:[%s4 + $0xf8] sm:$0xff]
  %v4134 = vld [vmem:[%s4 + $0x100] sm:$0xff]
  %v4135 = vld [vmem:[%s4 + $0x108] sm:$0xff]
  %v4136 = vld [vmem:[%s4 + $0x110] sm:$0xff]
  %v4137 = vld [vmem:[%s4 + $0x118] sm:$0xff]
  %v4138 = vld [vmem:[%s4 + $0x120] sm:$0xff]
  %v4139 = vld [vmem:[%s4 + $0x128] sm:$0xff]
  %v4140 = vld [vmem:[%s4 + $0x130] sm:$0xff]
  %v4141 = vld [vmem:[%s4 + $0x138] sm:$0xff]
  %v4142 = vld [vmem:[%s4 + $0x140] sm:$0xff]
  %v4143 = vld [vmem:[%s4 + $0x148] sm:$0xff]
  %v4144 = vld [vmem:[%s4 + $0x150] sm:$0xff]
  %v4145 = vld [vmem:[%s4 + $0x158] sm:$0xff]
  %v4146 = vld [vmem:[%s4 + $0x160] sm:$0xff]
  %v4147 = vld [vmem:[%s4 + $0x168] sm:$0xff]
  %v4148 = vld [vmem:[%s4 + $0x170] sm:$0xff]
  %v4149 = vld [vmem:[%s4 + $0x178] sm:$0xff]
  %v4150 = vld [vmem:[%s4 + $0x180] sm:$0xff]
  %v4151 = vld [vmem:[%s4 + $0x188] sm:$0xff]
  %v4152 = vld [vmem:[%s4 + $0x190] sm:$0xff]
  %v4153 = vld [vmem:[%s4 + $0x198] sm:$0xff]
  %v4154 = vld [vmem:[%s4 + $0x1a0] sm:$0xff]
  %v4155 = vld [vmem:[%s4 + $0x1a8] sm:$0xff]
  %v4156 = vld [vmem:[%s4 + $0x1b0] sm:$0xff]
  %v4157 = vld [vmem:[%s4 + $0x1b8] sm:$0xff]
  %v4158 = vld [vmem:[%s4 + $0x1c0] sm:$0xff]
  %v4159 = vld [vmem:[%s4 + $0x1c8] sm:$0xff]
  %v4160 = vld [vmem:[%s4 + $0x1d0] sm:$0xff]
  %v4161 = vld [vmem:[%s4 + $0x1d8] sm:$0xff]
  %v4162 = vld [vmem:[%s4 + $0x1e0] sm:$0xff]
  %v4163 = vld [vmem:[%s4 + $0x1e8] sm:$0xff]
  %v4164 = vld [vmem:[%s4 + $0x1f0] sm:$0xff]
  %v4165 = vld [vmem:[%s4 + $0x1f8] sm:$0xff]
  %4166 = vmatprep.subr.mxu0 %v4103
  %4167 = vmatpush1.msra.mxu0 %v4102
  %4168 = vmatprep.subr.mxu0 %v4107
  %4169 = vmatpush1.msra.mxu0 %v4106
  %4170 = vmatprep.subr.mxu0 %v4111
  %4171 = vmatpush1.msra.mxu0 %v4110
  %4172 = vmatprep.subr.mxu0 %v4115
  %4173 = vmatpush1.msra.mxu0 %v4114
  %4174 = vmatprep.subr.mxu0 %v4119
  %4175 = vmatpush1.msra.mxu0 %v4118
  %4176 = vmatprep.subr.mxu0 %v4123
  %4177 = vmatpush1.msra.mxu0 %v4122
  %4178 = vmatprep.subr.mxu0 %v4127
  %4179 = vmatpush1.msra.mxu0 %v4126
  %4180 = vmatprep.subr.mxu0 %v4131
  %4181 = vmatpush1.msra.mxu0 %v4130
  %4182 = vmatprep.subr.mxu0 %v4135
  %4183 = vmatpush1.msra.mxu0 %v4134
  %4184 = vmatprep.subr.mxu0 %v4139
  %4185 = vmatpush1.msra.mxu0 %v4138
  %4186 = vmatprep.subr.mxu0 %v4143
  %4187 = vmatpush1.msra.mxu0 %v4142
  %4188 = vmatprep.subr.mxu0 %v4147
  %4189 = vmatpush1.msra.mxu0 %v4146
  %4190 = vmatprep.subr.mxu0 %v4151
  %4191 = vmatpush1.msra.mxu0 %v4150
  %4192 = vmatprep.subr.mxu0 %v4155
  %4193 = vmatpush1.msra.mxu0 %v4154
  %4194 = vmatprep.subr.mxu0 %v4159
  %4195 = vmatpush1.msra.mxu0 %v4158
  %4196 = vmatprep.subr.mxu0 %v4163
  %4197 = vmatpush1.msra.mxu0 %v4162
  %4198 = vmatprep.subr.mxu0 0.0
  %4199 = vmatpush1.msra.mxu0 0.0
  %4200 = vmatprep.subr.mxu0 0.0
  %4201 = vmatpush1.msra.mxu0 0.0
  %4202 = vmatprep.subr.mxu0 0.0
  %4203 = vmatpush1.msra.mxu0 0.0
  %4204 = vmatprep.subr.mxu0 0.0
  %4205 = vmatpush1.msra.mxu0 0.0
  %4206 = vmatprep.subr.mxu0 0.0
  %4207 = vmatpush1.msra.mxu0 0.0
  %4208 = vmatprep.subr.mxu0 0.0
  %4209 = vmatpush1.msra.mxu0 0.0
  %4210 = vmatprep.subr.mxu0 0.0
  %4211 = vmatpush1.msra.mxu0 0.0
  %4212 = vmatprep.subr.mxu0 0.0
  %4213 = vmatpush1.msra.mxu0 0.0
  %4214 = vmatprep.subr.mxu0 0.0
  %4215 = vmatpush1.msra.mxu0 0.0
  %4216 = vmatprep.subr.mxu0 0.0
  %4217 = vmatpush1.msra.mxu0 0.0
  %4218 = vmatprep.subr.mxu0 0.0
  %4219 = vmatpush1.msra.mxu0 0.0
  %4220 = vmatprep.subr.mxu0 0.0
  %4221 = vmatpush1.msra.mxu0 0.0
  %4222 = vmatprep.subr.mxu0 0.0
  %4223 = vmatpush1.msra.mxu0 0.0
  %4224 = vmatprep.subr.mxu0 0.0
  %4225 = vmatpush1.msra.mxu0 0.0
  %4226 = vmatprep.subr.mxu0 0.0
  %4227 = vmatpush1.msra.mxu0 0.0
  %4228 = vmatprep.subr.mxu0 0.0
  %4229 = vmatpush1.msra.mxu0 0.0
  %4230 = vmatprep.mubr.f32.mxu0 0.0
  %4231 = vmatmul.mubr.f32.gmra.mrb[0].mxu0 %v4101
  %v4232 = vpop.f32.mrb[0].mxu0
  %v4233 = vadd.f32 0.0, %v4232
  %v4234 = vpop.f32.mrb[0].mxu0
  %v4235 = vadd.f32 0.0, %v4234
  %4236 = vdwg.mxu0
  %4237 = vmatprep.subr.mxu0 %v4105
  %4238 = vmatpush1.msra.mxu0 %v4104
  %4239 = vmatprep.subr.mxu0 %v4109
  %4240 = vmatpush1.msra.mxu0 %v4108
  %4241 = vmatprep.subr.mxu0 %v4113
  %4242 = vmatpush1.msra.mxu0 %v4112
  %4243 = vmatprep.subr.mxu0 %v4117
  %4244 = vmatpush1.msra.mxu0 %v4116
  %4245 = vmatprep.subr.mxu0 %v4121
  %4246 = vmatpush1.msra.mxu0 %v4120
  %4247 = vmatprep.subr.mxu0 %v4125
  %4248 = vmatpush1.msra.mxu0 %v4124
  %4249 = vmatprep.subr.mxu0 %v4129
  %4250 = vmatpush1.msra.mxu0 %v4128
  %4251 = vmatprep.subr.mxu0 %v4133
  %4252 = vmatpush1.msra.mxu0 %v4132
  %4253 = vmatprep.subr.mxu0 %v4137
  %4254 = vmatpush1.msra.mxu0 %v4136
  %4255 = vmatprep.subr.mxu0 %v4141
  %4256 = vmatpush1.msra.mxu0 %v4140
  %4257 = vmatprep.subr.mxu0 %v4145
  %4258 = vmatpush1.msra.mxu0 %v4144
  %4259 = vmatprep.subr.mxu0 %v4149
  %4260 = vmatpush1.msra.mxu0 %v4148
  %4261 = vmatprep.subr.mxu0 %v4153
  %4262 = vmatpush1.msra.mxu0 %v4152
  %4263 = vmatprep.subr.mxu0 %v4157
  %4264 = vmatpush1.msra.mxu0 %v4156
  %4265 = vmatprep.subr.mxu0 %v4161
  %4266 = vmatpush1.msra.mxu0 %v4160
  %4267 = vmatprep.subr.mxu0 %v4165
  %4268 = vmatpush1.msra.mxu0 %v4164
  %4269 = vmatprep.subr.mxu0 0.0
  %4270 = vmatpush1.msra.mxu0 0.0
  %4271 = vmatprep.subr.mxu0 0.0
  %4272 = vmatpush1.msra.mxu0 0.0
  %4273 = vmatprep.subr.mxu0 0.0
  %4274 = vmatpush1.msra.mxu0 0.0
  %4275 = vmatprep.subr.mxu0 0.0
  %4276 = vmatpush1.msra.mxu0 0.0
  %4277 = vmatprep.subr.mxu0 0.0
  %4278 = vmatpush1.msra.mxu0 0.0
  %4279 = vmatprep.subr.mxu0 0.0
  %4280 = vmatpush1.msra.mxu0 0.0
  %4281 = vmatprep.subr.mxu0 0.0
  %4282 = vmatpush1.msra.mxu0 0.0
  %4283 = vmatprep.subr.mxu0 0.0
  %4284 = vmatpush1.msra.mxu0 0.0
  %4285 = vmatprep.subr.mxu0 0.0
  %4286 = vmatpush1.msra.mxu0 0.0
  %4287 = vmatprep.subr.mxu0 0.0
  %4288 = vmatpush1.msra.mxu0 0.0
  %4289 = vmatprep.subr.mxu0 0.0
  %4290 = vmatpush1.msra.mxu0 0.0
  %4291 = vmatprep.subr.mxu0 0.0
  %4292 = vmatpush1.msra.mxu0 0.0
  %4293 = vmatprep.subr.mxu0 0.0
  %4294 = vmatpush1.msra.mxu0 0.0
  %4295 = vmatprep.subr.mxu0 0.0
  %4296 = vmatpush1.msra.mxu0 0.0
  %4297 = vmatprep.subr.mxu0 0.0
  %4298 = vmatpush1.msra.mxu0 0.0
  %4299 = vmatprep.subr.mxu0 0.0
  %4300 = vmatpush1.msra.mxu0 0.0
  %4301 = vmatprep.mubr.f32.mxu0 0.0
  %4302 = vmatmul.mubr.f32.gmra.mrb[0].mxu0 %v4101
  %v4303 = vpop.f32.mrb[0].mxu0
  %v4304 = vadd.f32 0.0, %v4303
  %v4305 = vpop.f32.mrb[0].mxu0
  %v4306 = vadd.f32 0.0, %v4305
  %4307 = vdwg.mxu0
  %v4308 = vadd.f32 %v4097, %v4233
  %v4309 = vadd.f32 %v4098, %v4235
  %v4310 = vadd.f32 %v4099, %v4304
  %v4311 = vadd.f32 %v4100, %v4306
  %v4312 = vld [vmem:[#allocation3] sm:$0xff]
  %v4313 = vxor.u32 %v4308, 2147483648
  %v4314 = vmul.f32 %v4313, 1.442695
  %v4315 = vpow.pop %v4314
  %v4316 = vadd.f32 %v4315, 1.0
  %v4317 = vrcp.pop %v4316
  %v4318 = vmul.f32 1.0, %v4317
  %v4319 = vxor.u32 %v4309, 2147483648
  %v4320 = vmul.f32 %v4319, 1.442695
  %v4321 = vpow.pop %v4320
  %v4322 = vadd.f32 %v4321, 1.0
  %v4323 = vrcp.pop %v4322
  %v4324 = vmul.f32 1.0, %v4323
  %v4325 = vtanh.pop %v4310
  %v4326 = vxor.u32 %v4311, 2147483648
  %v4327 = vmul.f32 %v4326, 1.442695
  %v4328 = vpow.pop %v4327
  %v4329 = vadd.f32 %v4328, 1.0
  %v4330 = vrcp.pop %v4329
  %v4331 = vmul.f32 1.0, %v4330
  %v4332 = vmul.f32 %v4324, %v4312
  %v4333 = vmul.f32 %v4318, %v4325
  %v4334 = vadd.f32 %v4332, %v4333
  %v4335 = vtanh.pop %v4334
  %v4336 = vmul.f32 %v4331, %v4335
  %4337 = vst [vmem:[#allocation2] sm:$0xff] %v4336
  %4338 = vst [vmem:[#allocation3] sm:$0xff] %v4334
  %v4339 = vld [vmem:[%s6] sm:$0xff]
  %v4340 = vld [vmem:[%s6 + $0x8] sm:$0xff]
  %v4341 = vld [vmem:[%s6 + $0x10] sm:$0xff]
  %v4342 = vld [vmem:[%s6 + $0x18] sm:$0xff]
  %v4343 = vld [vmem:[%s6 + $0x20] sm:$0xff]
  %v4344 = vld [vmem:[%s6 + $0x28] sm:$0xff]
  %v4345 = vld [vmem:[%s6 + $0x30] sm:$0xff]
  %v4346 = vld [vmem:[%s6 + $0x38] sm:$0xff]
  %v4347 = vld [vmem:[%s6 + $0x40] sm:$0xff]
  %v4348 = vld [vmem:[%s6 + $0x48] sm:$0xff]
  %v4349 = vld [vmem:[%s6 + $0x50] sm:$0xff]
  %v4350 = vld [vmem:[%s6 + $0x58] sm:$0xff]
  %v4351 = vld [vmem:[%s6 + $0x60] sm:$0xff]
  %v4352 = vld [vmem:[%s6 + $0x68] sm:$0xff]
  %v4353 = vld [vmem:[%s6 + $0x70] sm:$0xff]
  %v4354 = vld [vmem:[%s6 + $0x78] sm:$0xff]
  %v4355 = vld [vmem:[%s7] sm:$0x1]
  %v4357 = vlaneseq
  %v4358 = vshrl.u32 %v4357, 7
  %v4359 = vsub.s32 0, %v4358
  %v4360 = vrot.slane %v4355, %v4359
  %4362 = vmatprep.subr.mxu0 0.0
  %4363 = vmatpush1.msra.mxu0 %v4339
  %4364 = vmatprep.subr.mxu0 0.0
  %4365 = vmatpush1.msra.mxu0 %v4340
  %4366 = vmatprep.subr.mxu0 0.0
  %4367 = vmatpush1.msra.mxu0 %v4341
  %4368 = vmatprep.subr.mxu0 0.0
  %4369 = vmatpush1.msra.mxu0 %v4342
  %4370 = vmatprep.subr.mxu0 0.0
  %4371 = vmatpush1.msra.mxu0 %v4343
  %4372 = vmatprep.subr.mxu0 0.0
  %4373 = vmatpush1.msra.mxu0 %v4344
  %4374 = vmatprep.subr.mxu0 0.0
  %4375 = vmatpush1.msra.mxu0 %v4345
  %4376 = vmatprep.subr.mxu0 0.0
  %4377 = vmatpush1.msra.mxu0 %v4346
  %4378 = vmatprep.subr.mxu0 0.0
  %4379 = vmatpush1.msra.mxu0 %v4347
  %4380 = vmatprep.subr.mxu0 0.0
  %4381 = vmatpush1.msra.mxu0 %v4348
  %4382 = vmatprep.subr.mxu0 0.0
  %4383 = vmatpush1.msra.mxu0 %v4349
  %4384 = vmatprep.subr.mxu0 0.0
  %4385 = vmatpush1.msra.mxu0 %v4350
  %4386 = vmatprep.subr.mxu0 0.0
  %4387 = vmatpush1.msra.mxu0 %v4351
  %4388 = vmatprep.subr.mxu0 0.0
  %4389 = vmatpush1.msra.mxu0 %v4352
  %4390 = vmatprep.subr.mxu0 0.0
  %4391 = vmatpush1.msra.mxu0 %v4353
  %4392 = vmatprep.subr.mxu0 0.0
  %4393 = vmatpush1.msra.mxu0 %v4354
  %4394 = vmatprep.subr.mxu0 0.0
  %4395 = vmatpush1.msra.mxu0 0.0
  %4396 = vmatprep.subr.mxu0 0.0
  %4397 = vmatpush1.msra.mxu0 0.0
  %4398 = vmatprep.subr.mxu0 0.0
  %4399 = vmatpush1.msra.mxu0 0.0
  %4400 = vmatprep.subr.mxu0 0.0
  %4401 = vmatpush1.msra.mxu0 0.0
  %4402 = vmatprep.subr.mxu0 0.0
  %4403 = vmatpush1.msra.mxu0 0.0
  %4404 = vmatprep.subr.mxu0 0.0
  %4405 = vmatpush1.msra.mxu0 0.0
  %4406 = vmatprep.subr.mxu0 0.0
  %4407 = vmatpush1.msra.mxu0 0.0
  %4408 = vmatprep.subr.mxu0 0.0
  %4409 = vmatpush1.msra.mxu0 0.0
  %4410 = vmatprep.subr.mxu0 0.0
  %4411 = vmatpush1.msra.mxu0 0.0
  %4412 = vmatprep.subr.mxu0 0.0
  %4413 = vmatpush1.msra.mxu0 0.0
  %4414 = vmatprep.subr.mxu0 0.0
  %4415 = vmatpush1.msra.mxu0 0.0
  %4416 = vmatprep.subr.mxu0 0.0
  %4417 = vmatpush1.msra.mxu0 0.0
  %4418 = vmatprep.subr.mxu0 0.0
  %4419 = vmatpush1.msra.mxu0 0.0
  %4420 = vmatprep.subr.mxu0 0.0
  %4421 = vmatpush1.msra.mxu0 0.0
  %4422 = vmatprep.subr.mxu0 0.0
  %4423 = vmatpush1.msra.mxu0 0.0
  %4424 = vmatprep.subr.mxu0 0.0
  %4425 = vmatpush1.msra.mxu0 0.0
  %4426 = vmatprep.mubr.f32.mxu0 0.0
  %4427 = vmatmul.mubr.f32.gmra.mrb[0].mxu0 %v4336
  %v4428 = vpop.f32.mrb[0].mxu0
  %v4429 = vadd.f32 %v4360, %v4428
  %v4430 = vpop.f32.mrb[0].mxu0
  %4431 = vdwg.mxu0
  %s4432 = scalar_lea.vmem %s8, 32
  %4433 = vst [vmem:[%s4432] sm:$0xff] %v4429
  %s4434 = sld [smem:[#allocation6 + $0x5]]
  %p4435 = scmp.gt.s32.totalorder %s4434, 0
  // Predicated region
  $region62: #{seq2seq_forward.1} parent=0 // pred_check
    %p4436 = pneg %p4435
  $region63: #{seq2seq_forward.1} parent=0 // pred_check_branch
    %4438 = sbr.rel (%p4436) target = $region65
  $region64: #{seq2seq_forward.1} parent=0 // pred_region
    %s4439 = scalar_lea.vmem %s2, 160
    %v4440 = vld [vmem:[%s4439] sm:$0xff]
    %v4441 = vld [vmem:[%s4439 + $0x8] sm:$0xff]
    %v4442 = vld [vmem:[%s4439 + $0x10] sm:$0xff]
    %v4443 = vld [vmem:[%s4439 + $0x18] sm:$0xff]
    %4444 = vst [vmem:[#allocation4] sm:$0xff] %v4440
    %4445 = vst [vmem:[#allocation4 + $0x8] sm:$0xff] %v4441
    %4446 = vst [vmem:[#allocation4 + $0x10] sm:$0xff] %v4442
    %4447 = vst [vmem:[#allocation4 + $0x18] sm:$0xff] %v4443
  $region65: #{seq2seq_forward.1} parent=0 // pred_fallthru
    _
  %p4448 = scmp.eq.s32.totalorder %s4434, 0
  // Predicated region
  $region66: #{seq2seq_forward.1} parent=0 // pred_check
    %p4449 = pneg %p4448
  $region67: #{seq2seq_forward.1} parent=0 // pred_check_branch
    %4451 = sbr.rel (%p4449) target = $region69
  $region68: #{seq2seq_forward.1} parent=0 // pred_region
    %v4452 = vsel %vm1745, %v4429, -1e+30
    %4453 = vmax.xlane.f32.xlu0 %v4452
    %v4454 = vpop.xlane.xlu0 %4453
    %vm4455 = vcmp.eq.f32.partialorder %v4452, %v4454
    %vm4456 = vmand %vm4455, %vm1745
    %v4457 = vsel %vm4456, %v1744, 128
    %v4458 = vand.u32 %v4457, 65535
    %v4459 = vshra.s32 %v4457, 16
    %v4460 = vcvt.s32.f32 %v4458
    %v4461 = vcvt.s32.f32 %v4459
    %4462 = vmin.xlane.f32.xlu0 %v4461
    %v4463 = vpop.xlane.xlu0 %4462
    %vm4464 = vcmp.eq.f32.partialorder %v4461, %v4463
    %v4465 = vsel %vm4464, %v4460, inf
    %4466 = vmin.xlane.f32.xlu0 %v4465
    %v4467 = vpop.xlane.xlu0 %4466
    %v4468 = vcvt.f32.s32 %v4467
    %v4469 = vcvt.f32.s32 %v4463
    %v4470 = vshll.u32 %v4469, 16
    %v4471 = vadd.s32 %v4470, %v4468
    %vm4472 = vcmp.eq.s32.totalorder %v1744, %v4471
    %v4473 = vsel %vm4472, 1, 0
    %v4474 = vcvt.s32.f32 %v4473
    %v4475 = vld [vmem:[%s5] sm:$0xff]
    %v4476 = vld [vmem:[%s5 + $0x8] sm:$0xff]
    %v4477 = vld [vmem:[%s5 + $0x10] sm:$0xff]
    %v4478 = vld [vmem:[%s5 + $0x18] sm:$0xff]
    %v4479 = vld [vmem:[%s5 + $0x20] sm:$0xff]
    %v4480 = vld [vmem:[%s5 + $0x28] sm:$0xff]
    %v4481 = vld [vmem:[%s5 + $0x30] sm:$0xff]
    %v4482 = vld [vmem:[%s5 + $0x38] sm:$0xff]
    %v4483 = vld [vmem:[%s5 + $0x40] sm:$0xff]
    %v4484 = vld [vmem:[%s5 + $0x48] sm:$0xff]
    %v4485 = vld [vmem:[%s5 + $0x50] sm:$0xff]
    %v4486 = vld [vmem:[%s5 + $0x58] sm:$0xff]
    %v4487 = vld [vmem:[%s5 + $0x60] sm:$0xff]
    %v4488 = vld [vmem:[%s5 + $0x68] sm:$0xff]
    %v4489 = vld [vmem:[%s5 + $0x70] sm:$0xff]
    %v4490 = vld [vmem:[%s5 + $0x78] sm:$0xff]
    %v4491 = vld [vmem:[%s5 + $0x80] sm:$0xff]
    %v4492 = vld [vmem:[%s5 + $0x88] sm:$0xff]
    %v4493 = vld [vmem:[%s5 + $0x90] sm:$0xff]
    %v4494 = vld [vmem:[%s5 + $0x98] sm:$0xff]
    %v4495 = vld [vmem:[%s5 + $0xa0] sm:$0xff]
    %v4496 = vld [vmem:[%s5 + $0xa8] sm:$0xff]
    %v4497 = vld [vmem:[%s5 + $0xb0] sm:$0xff]
    %v4498 = vld [vmem:[%s5 + $0xb8] sm:$0xff]
    %v4499 = vld [vmem:[%s5 + $0xc0] sm:$0xff]
    %v4500 = vld [vmem:[%s5 + $0xc8] sm:$0xff]
    %v4501 = vld [vmem:[%s5 + $0xd0] sm:$0xff]
    %v4502 = vld [vmem:[%s5 + $0xd8] sm:$0xff]
    %v4503 = vld [vmem:[%s5 + $0xe0] sm:$0xff]
    %v4504 = vld [vmem:[%s5 + $0xe8] sm:$0xff]
    %v4505 = vld [vmem:[%s5 + $0xf0] sm:$0xff]
    %v4506 = vld [vmem:[%s5 + $0xf8] sm:$0xff]
    %v4507 = vld [vmem:[%s5 + $0x100] sm:$0xff]
    %v4508 = vld [vmem:[%s5 + $0x108] sm:$0xff]
    %v4509 = vld [vmem:[%s5 + $0x110] sm:$0xff]
    %v4510 = vld [vmem:[%s5 + $0x118] sm:$0xff]
    %v4511 = vld [vmem:[%s5 + $0x120] sm:$0xff]
    %v4512 = vld [vmem:[%s5 + $0x128] sm:$0xff]
    %v4513 = vld [vmem:[%s5 + $0x130] sm:$0xff]
    %v4514 = vld [vmem:[%s5 + $0x138] sm:$0xff]
    %v4515 = vld [vmem:[%s5 + $0x140] sm:$0xff]
    %v4516 = vld [vmem:[%s5 + $0x148] sm:$0xff]
    %v4517 = vld [vmem:[%s5 + $0x150] sm:$0xff]
    %v4518 = vld [vmem:[%s5 + $0x158] sm:$0xff]
    %v4519 = vld [vmem:[%s5 + $0x160] sm:$0xff]
    %v4520 = vld [vmem:[%s5 + $0x168] sm:$0xff]
    %v4521 = vld [vmem:[%s5 + $0x170] sm:$0xff]
    %v4522 = vld [vmem:[%s5 + $0x178] sm:$0xff]
    %v4523 = vld [vmem:[%s5 + $0x180] sm:$0xff]
    %v4524 = vld [vmem:[%s5 + $0x188] sm:$0xff]
    %v4525 = vld [vmem:[%s5 + $0x190] sm:$0xff]
    %v4526 = vld [vmem:[%s5 + $0x198] sm:$0xff]
    %v4527 = vld [vmem:[%s5 + $0x1a0] sm:$0xff]
    %v4528 = vld [vmem:[%s5 + $0x1a8] sm:$0xff]
    %v4529 = vld [vmem:[%s5 + $0x1b0] sm:$0xff]
    %v4530 = vld [vmem:[%s5 + $0x1b8] sm:$0xff]
    %v4531 = vld [vmem:[%s5 + $0x1c0] sm:$0xff]
    %v4532 = vld [vmem:[%s5 + $0x1c8] sm:$0xff]
    %v4533 = vld [vmem:[%s5 + $0x1d0] sm:$0xff]
    %v4534 = vld [vmem:[%s5 + $0x1d8] sm:$0xff]
    %v4535 = vld [vmem:[%s5 + $0x1e0] sm:$0xff]
    %v4536 = vld [vmem:[%s5 + $0x1e8] sm:$0xff]
    %v4537 = vld [vmem:[%s5 + $0x1f0] sm:$0xff]
    %v4538 = vld [vmem:[%s5 + $0x1f8] sm:$0xff]
    %4539 = vmatprep.subr.mxu0 %v4476
    %4540 = vmatpush1.msra.mxu0 %v4475
    %4541 = vmatprep.subr.mxu0 %v4480
    %4542 = vmatpush1.msra.mxu0 %v4479
    %4543 = vmatprep.subr.mxu0 %v4484
    %4544 = vmatpush1.msra.mxu0 %v4483
    %4545 = vmatprep.subr.mxu0 %v4488
    %4546 = vmatpush1.msra.mxu0 %v4487
    %4547 = vmatprep.subr.mxu0 %v4492
    %4548 = vmatpush1.msra.mxu0 %v4491
    %4549 = vmatprep.subr.mxu0 %v4496
    %4550 = vmatpush1.msra.mxu0 %v4495
    %4551 = vmatprep.subr.mxu0 %v4500
    %4552 = vmatpush1.msra.mxu0 %v4499
    %4553 = vmatprep.subr.mxu0 %v4504
    %4554 = vmatpush1.msra.mxu0 %v4503
    %4555 = vmatprep.subr.mxu0 %v4508
    %4556 = vmatpush1.msra.mxu0 %v4507
    %4557 = vmatprep.subr.mxu0 %v4512
    %4558 = vmatpush1.msra.mxu0 %v4511
    %4559 = vmatprep.subr.mxu0 %v4516
    %4560 = vmatpush1.msra.mxu0 %v4515
    %4561 = vmatprep.subr.mxu0 %v4520
    %4562 = vmatpush1.msra.mxu0 %v4519
    %4563 = vmatprep.subr.mxu0 %v4524
    %4564 = vmatpush1.msra.mxu0 %v4523
    %4565 = vmatprep.subr.mxu0 %v4528
    %4566 = vmatpush1.msra.mxu0 %v4527
    %4567 = vmatprep.subr.mxu0 %v4532
    %4568 = vmatpush1.msra.mxu0 %v4531
    %4569 = vmatprep.subr.mxu0 %v4536
    %4570 = vmatpush1.msra.mxu0 %v4535
    %4571 = vmatprep.subr.mxu0 0.0
    %4572 = vmatpush1.msra.mxu0 0.0
    %4573 = vmatprep.subr.mxu0 0.0
    %4574 = vmatpush1.msra.mxu0 0.0
    %4575 = vmatprep.subr.mxu0 0.0
    %4576 = vmatpush1.msra.mxu0 0.0
    %4577 = vmatprep.subr.mxu0 0.0
    %4578 = vmatpush1.msra.mxu0 0.0
    %4579 = vmatprep.subr.mxu0 0.0
    %4580 = vmatpush1.msra.mxu0 0.0
    %4581 = vmatprep.subr.mxu0 0.0
    %4582 = vmatpush1.msra.mxu0 0.0
    %4583 = vmatprep.subr.mxu0 0.0
    %4584 = vmatpush1.msra.mxu0 0.0
    %4585 = vmatprep.subr.mxu0 0.0
    %4586 = vmatpush1.msra.mxu0 0.0
    %4587 = vmatprep.subr.mxu0 0.0
    %4588 = vmatpush1.msra.mxu0 0.0
    %4589 = vmatprep.subr.mxu0 0.0
    %4590 = vmatpush1.msra.mxu0 0.0
    %4591 = vmatprep.subr.mxu0 0.0
    %4592 = vmatpush1.msra.mxu0 0.0
    %4593 = vmatprep.subr.mxu0 0.0
    %4594 = vmatpush1.msra.mxu0 0.0
    %4595 = vmatprep.subr.mxu0 0.0
    %4596 = vmatpush1.msra.mxu0 0.0
    %4597 = vmatprep.subr.mxu0 0.0
    %4598 = vmatpush1.msra.mxu0 0.0
    %4599 = vmatprep.subr.mxu0 0.0
    %4600 = vmatpush1.msra.mxu0 0.0
    %4601 = vmatprep.subr.mxu0 0.0
    %4602 = vmatpush1.msra.mxu0 0.0
    %4603 = vmatprep.mubr.f32.mxu0 0.0
    %4604 = vmatmul.mubr.f32.gmra.mrb[0].mxu0 %v4474
    %v4605 = vpop.f32.mrb[0].mxu0
    %v4606 = vadd.f32 0.0, %v4605
    %v4607 = vpop.f32.mrb[0].mxu0
    %v4608 = vadd.f32 0.0, %v4607
    %4609 = vdwg.mxu0
    %4610 = vmatprep.subr.mxu0 %v4478
    %4611 = vmatpush1.msra.mxu0 %v4477
    %4612 = vmatprep.subr.mxu0 %v4482
    %4613 = vmatpush1.msra.mxu0 %v4481
    %4614 = vmatprep.subr.mxu0 %v4486
    %4615 = vmatpush1.msra.mxu0 %v4485
    %4616 = vmatprep.subr.mxu0 %v4490
    %4617 = vmatpush1.msra.mxu0 %v4489
    %4618 = vmatprep.subr.mxu0 %v4494
    %4619 = vmatpush1.msra.mxu0 %v4493
    %4620 = vmatprep.subr.mxu0 %v4498
    %4621 = vmatpush1.msra.mxu0 %v4497
    %4622 = vmatprep.subr.mxu0 %v4502
    %4623 = vmatpush1.msra.mxu0 %v4501
    %4624 = vmatprep.subr.mxu0 %v4506
    %4625 = vmatpush1.msra.mxu0 %v4505
    %4626 = vmatprep.subr.mxu0 %v4510
    %4627 = vmatpush1.msra.mxu0 %v4509
    %4628 = vmatprep.subr.mxu0 %v4514
    %4629 = vmatpush1.msra.mxu0 %v4513
    %4630 = vmatprep.subr.mxu0 %v4518
    %4631 = vmatpush1.msra.mxu0 %v4517
    %4632 = vmatprep.subr.mxu0 %v4522
    %4633 = vmatpush1.msra.mxu0 %v4521
    %4634 = vmatprep.subr.mxu0 %v4526
    %4635 = vmatpush1.msra.mxu0 %v4525
    %4636 = vmatprep.subr.mxu0 %v4530
    %4637 = vmatpush1.msra.mxu0 %v4529
    %4638 = vmatprep.subr.mxu0 %v4534
    %4639 = vmatpush1.msra.mxu0 %v4533
    %4640 = vmatprep.subr.mxu0 %v4538
    %4641 = vmatpush1.msra.mxu0 %v4537
    %4642 = vmatprep.subr.mxu0 0.0
    %4643 = vmatpush1.msra.mxu0 0.0
    %4644 = vmatprep.subr.mxu0 0.0
    %4645 = vmatpush1.msra.mxu0 0.0
    %4646 = vmatprep.subr.mxu0 0.0
    %4647 = vmatpush1.msra.mxu0 0.0
    %4648 = vmatprep.subr.mxu0 0.0
    %4649 = vmatpush1.msra.mxu0 0.0
    %4650 = vmatprep.subr.mxu0 0.0
    %4651 = vmatpush1.msra.mxu0 0.0
    %4652 = vmatprep.subr.mxu0 0.0
    %4653 = vmatpush1.msra.mxu0 0.0
    %4654 = vmatprep.subr.mxu0 0.0
    %4655 = vmatpush1.msra.mxu0 0.0
    %4656 = vmatprep.subr.mxu0 0.0
    %4657 = vmatpush1.msra.mxu0 0.0
    %4658 = vmatprep.subr.mxu0 0.0
    %4659 = vmatpush1.msra.mxu0 0.0
    %4660 = vmatprep.subr.mxu0 0.0
    %4661 = vmatpush1.msra.mxu0 0.0
    %4662 = vmatprep.subr.mxu0 0.0
    %4663 = vmatpush1.msra.mxu0 0.0
    %4664 = vmatprep.subr.mxu0 0.0
    %4665 = vmatpush1.msra.mxu0 0.0
    %4666 = vmatprep.subr.mxu0 0.0
    %4667 = vmatpush1.msra.mxu0 0.0
    %4668 = vmatprep.subr.mxu0 0.0
    %4669 = vmatpush1.msra.mxu0 0.0
    %4670 = vmatprep.subr.mxu0 0.0
    %4671 = vmatpush1.msra.mxu0 0.0
    %4672 = vmatprep.subr.mxu0 0.0
    %4673 = vmatpush1.msra.mxu0 0.0
    %4674 = vmatprep.mubr.f32.mxu0 0.0
    %4675 = vmatmul.mubr.f32.gmra.mrb[0].mxu0 %v4474
    %v4676 = vpop.f32.mrb[0].mxu0
    %v4677 = vadd.f32 0.0, %v4676
    %v4678 = vpop.f32.mrb[0].mxu0
    %v4679 = vadd.f32 0.0, %v4678
    %4680 = vdwg.mxu0
    %4681 = vst [vmem:[#allocation4] sm:$0xff] %v4606
    %4682 = vst [vmem:[#allocation4 + $0x8] sm:$0xff] %v4608
    %4683 = vst [vmem:[#allocation4 + $0x10] sm:$0xff] %v4677
    %4684 = vst [vmem:[#allocation4 + $0x18] sm:$0xff] %v4679
  $region69: #{seq2seq_forward.1} parent=0 // pred_fallthru
    _
  %v4685 = vld [vmem:[#allocation4] sm:$0xff]
  %v4686 = vld [vmem:[#allocation4 + $0x8] sm:$0xff]
  %v4687 = vld [vmem:[#allocation4 + $0x10] sm:$0xff]
  %v4688 = vld [vmem:[#allocation4 + $0x18] sm:$0xff]
  %v4689 = vld [vmem:[#allocation2] sm:$0xff]
  %v4690 = vld [vmem:[%s4] sm:$0xff]
  %v4691 = vld [vmem:[%s4 + $0x8] sm:$0xff]
  %v4692 = vld [vmem:[%s4 + $0x10] sm:$0xff]
  %v4693 = vld [vmem:[%s4 + $0x18] sm:$0xff]
  %v4694 = vld [vmem:[%s4 + $0x20] sm:$0xff]
  %v4695 = vld [vmem:[%s4 + $0x28] sm:$0xff]
  %v4696 = vld [vmem:[%s4 + $0x30] sm:$0xff]
  %v4697 = vld [vmem:[%s4 + $0x38] sm:$0xff]
  %v4698 = vld [vmem:[%s4 + $0x40] sm:$0xff]
  %v4699 = vld [vmem:[%s4 + $0x48] sm:$0xff]
  %v4700 = vld [vmem:[%s4 + $0x50] sm:$0xff]
  %v4701 = vld [vmem:[%s4 + $0x58] sm:$0xff]
  %v4702 = vld [vmem:[%s4 + $0x60] sm:$0xff]
  %v4703 = vld [vmem:[%s4 + $0x68] sm:$0xff]
  %v4704 = vld [vmem:[%s4 + $0x70] sm:$0xff]
  %v4705 = vld [vmem:[%s4 + $0x78] sm:$0xff]
  %v4706 = vld [vmem:[%s4 + $0x80] sm:$0xff]
  %v4707 = vld [vmem:[%s4 + $0x88] sm:$0xff]
  %v4708 = vld [vmem:[%s4 + $0x90] sm:$0xff]
  %v4709 = vld [vmem:[%s4 + $0x98] sm:$0xff]
  %v4710 = vld [vmem:[%s4 + $0xa0] sm:$0xff]
  %v4711 = vld [vmem:[%s4 + $0xa8] sm:$0xff]
  %v4712 = vld [vmem:[%s4 + $0xb0] sm:$0xff]
  %v4713 = vld [vmem:[%s4 + $0xb8] sm:$0xff]
  %v4714 = vld [vmem:[%s4 + $0xc0] sm:$0xff]
  %v4715 = vld [vmem:[%s4 + $0xc8] sm:$0xff]
  %v4716 = vld [vmem:[%s4 + $0xd0] sm:$0xff]
  %v4717 = vld [vmem:[%s4 + $0xd8] sm:$0xff]
  %v4718 = vld [vmem:[%s4 + $0xe0] sm:$0xff]
  %v4719 = vld [vmem:[%s4 + $0xe8] sm:$0xff]
  %v4720 = vld [vmem:[%s4 + $0xf0] sm:$0xff]
  %v4721 = vld [vmem:[%s4 + $0xf8] sm:$0xff]
  %v4722 = vld [vmem:[%s4 + $0x100] sm:$0xff]
  %v4723 = vld [vmem:[%s4 + $0x108] sm:$0xff]
  %v4724 = vld [vmem:[%s4 + $0x110] sm:$0xff]
  %v4725 = vld [vmem:[%s4 + $0x118] sm:$0xff]
  %v4726 = vld [vmem:[%s4 + $0x120] sm:$0xff]
  %v4727 = vld [vmem:[%s4 + $0x128] sm:$0xff]
  %v4728 = vld [vmem:[%s4 + $0x130] sm:$0xff]
  %v4729 = vld [vmem:[%s4 + $0x138] sm:$0xff]
  %v4730 = vld [vmem:[%s4 + $0x140] sm:$0xff]
  %v4731 = vld [vmem:[%s4 + $0x148] sm:$0xff]
  %v4732 = vld [vmem:[%s4 + $0x150] sm:$0xff]
  %v4733 = vld [vmem:[%s4 + $0x158] sm:$0xff]
  %v4734 = vld [vmem:[%s4 + $0x160] sm:$0xff]
  %v4735 = vld [vmem:[%s4 + $0x168] sm:$0xff]
  %v4736 = vld [vmem:[%s4 + $0x170] sm:$0xff]
  %v4737 = vld [vmem:[%s4 + $0x178] sm:$0xff]
  %v4738 = vld [vmem:[%s4 + $0x180] sm:$0xff]
  %v4739 = vld [vmem:[%s4 + $0x188] sm:$0xff]
  %v4740 = vld [vmem:[%s4 + $0x190] sm:$0xff]
  %v4741 = vld [vmem:[%s4 + $0x198] sm:$0xff]
  %v4742 = vld [vmem:[%s4 + $0x1a0] sm:$0xff]
  %v4743 = vld [vmem:[%s4 + $0x1a8] sm:$0xff]
  %v4744 = vld [vmem:[%s4 + $0x1b0] sm:$0xff]
  %v4745 = vld [vmem:[%s4 + $0x1b8] sm:$0xff]
  %v4746 = vld [vmem:[%s4 + $0x1c0] sm:$0xff]
  %v4747 = vld [vmem:[%s4 + $0x1c8] sm:$0xff]
  %v4748 = vld [vmem:[%s4 + $0x1d0] sm:$0xff]
  %v4749 = vld [vmem:[%s4 + $0x1d8] sm:$0xff]
  %v4750 = vld [vmem:[%s4 + $0x1e0] sm:$0xff]
  %v4751 = vld [vmem:[%s4 + $0x1e8] sm:$0xff]
  %v4752 = vld [vmem:[%s4 + $0x1f0] sm:$0xff]
  %v4753 = vld [vmem:[%s4 + $0x1f8] sm:$0xff]
  %4754 = vmatprep.subr.mxu0 %v4691
  %4755 = vmatpush1.msra.mxu0 %v4690
  %4756 = vmatprep.subr.mxu0 %v4695
  %4757 = vmatpush1.msra.mxu0 %v4694
  %4758 = vmatprep.subr.mxu0 %v4699
  %4759 = vmatpush1.msra.mxu0 %v4698
  %4760 = vmatprep.subr.mxu0 %v4703
  %4761 = vmatpush1.msra.mxu0 %v4702
  %4762 = vmatprep.subr.mxu0 %v4707
  %4763 = vmatpush1.msra.mxu0 %v4706
  %4764 = vmatprep.subr.mxu0 %v4711
  %4765 = vmatpush1.msra.mxu0 %v4710
  %4766 = vmatprep.subr.mxu0 %v4715
  %4767 = vmatpush1.msra.mxu0 %v4714
  %4768 = vmatprep.subr.mxu0 %v4719
  %4769 = vmatpush1.msra.mxu0 %v4718
  %4770 = vmatprep.subr.mxu0 %v4723
  %4771 = vmatpush1.msra.mxu0 %v4722
  %4772 = vmatprep.subr.mxu0 %v4727
  %4773 = vmatpush1.msra.mxu0 %v4726
  %4774 = vmatprep.subr.mxu0 %v4731
  %4775 = vmatpush1.msra.mxu0 %v4730
  %4776 = vmatprep.subr.mxu0 %v4735
  %4777 = vmatpush1.msra.mxu0 %v4734
  %4778 = vmatprep.subr.mxu0 %v4739
  %4779 = vmatpush1.msra.mxu0 %v4738
  %4780 = vmatprep.subr.mxu0 %v4743
  %4781 = vmatpush1.msra.mxu0 %v4742
  %4782 = vmatprep.subr.mxu0 %v4747
  %4783 = vmatpush1.msra.mxu0 %v4746
  %4784 = vmatprep.subr.mxu0 %v4751
  %4785 = vmatpush1.msra.mxu0 %v4750
  %4786 = vmatprep.subr.mxu0 0.0
  %4787 = vmatpush1.msra.mxu0 0.0
  %4788 = vmatprep.subr.mxu0 0.0
  %4789 = vmatpush1.msra.mxu0 0.0
  %4790 = vmatprep.subr.mxu0 0.0
  %4791 = vmatpush1.msra.mxu0 0.0
  %4792 = vmatprep.subr.mxu0 0.0
  %4793 = vmatpush1.msra.mxu0 0.0
  %4794 = vmatprep.subr.mxu0 0.0
  %4795 = vmatpush1.msra.mxu0 0.0
  %4796 = vmatprep.subr.mxu0 0.0
  %4797 = vmatpush1.msra.mxu0 0.0
  %4798 = vmatprep.subr.mxu0 0.0
  %4799 = vmatpush1.msra.mxu0 0.0
  %4800 = vmatprep.subr.mxu0 0.0
  %4801 = vmatpush1.msra.mxu0 0.0
  %4802 = vmatprep.subr.mxu0 0.0
  %4803 = vmatpush1.msra.mxu0 0.0
  %4804 = vmatprep.subr.mxu0 0.0
  %4805 = vmatpush1.msra.mxu0 0.0
  %4806 = vmatprep.subr.mxu0 0.0
  %4807 = vmatpush1.msra.mxu0 0.0
  %4808 = vmatprep.subr.mxu0 0.0
  %4809 = vmatpush1.msra.mxu0 0.0
  %4810 = vmatprep.subr.mxu0 0.0
  %4811 = vmatpush1.msra.mxu0 0.0
  %4812 = vmatprep.subr.mxu0 0.0
  %4813 = vmatpush1.msra.mxu0 0.0
  %4814 = vmatprep.subr.mxu0 0.0
  %4815 = vmatpush1.msra.mxu0 0.0
  %4816 = vmatprep.subr.mxu0 0.0
  %4817 = vmatpush1.msra.mxu0 0.0
  %4818 = vmatprep.mubr.f32.mxu0 0.0
  %4819 = vmatmul.mubr.f32.gmra.mrb[0].mxu0 %v4689
  %v4820 = vpop.f32.mrb[0].mxu0
  %v4821 = vadd.f32 0.0, %v4820
  %v4822 = vpop.f32.mrb[0].mxu0
  %v4823 = vadd.f32 0.0, %v4822
  %4824 = vdwg.mxu0
  %4825 = vmatprep.subr.mxu0 %v4693
  %4826 = vmatpush1.msra.mxu0 %v4692
  %4827 = vmatprep.subr.mxu0 %v4697
  %4828 = vmatpush1.msra.mxu0 %v4696
  %4829 = vmatprep.subr.mxu0 %v4701
  %4830 = vmatpush1.msra.mxu0 %v4700
  %4831 = vmatprep.subr.mxu0 %v4705
  %4832 = vmatpush1.msra.mxu0 %v4704
  %4833 = vmatprep.subr.mxu0 %v4709
  %4834 = vmatpush1.msra.mxu0 %v4708
  %4835 = vmatprep.subr.mxu0 %v4713
  %4836 = vmatpush1.msra.mxu0 %v4712
  %4837 = vmatprep.subr.mxu0 %v4717
  %4838 = vmatpush1.msra.mxu0 %v4716
  %4839 = vmatprep.subr.mxu0 %v4721
  %4840 = vmatpush1.msra.mxu0 %v4720
  %4841 = vmatprep.subr.mxu0 %v4725
  %4842 = vmatpush1.msra.mxu0 %v4724
  %4843 = vmatprep.subr.mxu0 %v4729
  %4844 = vmatpush1.msra.mxu0 %v4728
  %4845 = vmatprep.subr.mxu0 %v4733
  %4846 = vmatpush1.msra.mxu0 %v4732
  %4847 = vmatprep.subr.mxu0 %v4737
  %4848 = vmatpush1.msra.mxu0 %v4736
  %4849 = vmatprep.subr.mxu0 %v4741
  %4850 = vmatpush1.msra.mxu0 %v4740
  %4851 = vmatprep.subr.mxu0 %v4745
  %4852 = vmatpush1.msra.mxu0 %v4744
  %4853 = vmatprep.subr.mxu0 %v4749
  %4854 = vmatpush1.msra.mxu0 %v4748
  %4855 = vmatprep.subr.mxu0 %v4753
  %4856 = vmatpush1.msra.mxu0 %v4752
  %4857 = vmatprep.subr.mxu0 0.0
  %4858 = vmatpush1.msra.mxu0 0.0
  %4859 = vmatprep.subr.mxu0 0.0
  %4860 = vmatpush1.msra.mxu0 0.0
  %4861 = vmatprep.subr.mxu0 0.0
  %4862 = vmatpush1.msra.mxu0 0.0
  %4863 = vmatprep.subr.mxu0 0.0
  %4864 = vmatpush1.msra.mxu0 0.0
  %4865 = vmatprep.subr.mxu0 0.0
  %4866 = vmatpush1.msra.mxu0 0.0
  %4867 = vmatprep.subr.mxu0 0.0
  %4868 = vmatpush1.msra.mxu0 0.0
  %4869 = vmatprep.subr.mxu0 0.0
  %4870 = vmatpush1.msra.mxu0 0.0
  %4871 = vmatprep.subr.mxu0 0.0
  %4872 = vmatpush1.msra.mxu0 0.0
  %4873 = vmatprep.subr.mxu0 0.0
  %4874 = vmatpush1.msra.mxu0 0.0
  %4875 = vmatprep.subr.mxu0 0.0
  %4876 = vmatpush1.msra.mxu0 0.0
  %4877 = vmatprep.subr.mxu0 0.0
  %4878 = vmatpush1.msra.mxu0 0.0
  %4879 = vmatprep.subr.mxu0 0.0
  %4880 = vmatpush1.msra.mxu0 0.0
  %4881 = vmatprep.subr.mxu0 0.0
  %4882 = vmatpush1.msra.mxu0 0.0
  %4883 = vmatprep.subr.mxu0 0.0
  %4884 = vmatpush1.msra.mxu0 0.0
  %4885 = vmatprep.subr.mxu0 0.0
  %4886 = vmatpush1.msra.mxu0 0.0
  %4887 = vmatprep.subr.mxu0 0.0
  %4888 = vmatpush1.msra.mxu0 0.0
  %4889 = vmatprep.mubr.f32.mxu0 0.0
  %4890 = vmatmul.mubr.f32.gmra.mrb[0].mxu0 %v4689
  %v4891 = vpop.f32.mrb[0].mxu0
  %v4892 = vadd.f32 0.0, %v4891
  %v4893 = vpop.f32.mrb[0].mxu0
  %v4894 = vadd.f32 0.0, %v4893
  %4895 = vdwg.mxu0
  %v4896 = vadd.f32 %v4685, %v4821
  %v4897 = vadd.f32 %v4686, %v4823
  %v4898 = vadd.f32 %v4687, %v4892
  %v4899 = vadd.f32 %v4688, %v4894
  %v4900 = vld [vmem:[#allocation3] sm:$0xff]
  %v4901 = vxor.u32 %v4896, 2147483648
  %v4902 = vmul.f32 %v4901, 1.442695
  %v4903 = vpow.pop %v4902
  %v4904 = vadd.f32 %v4903, 1.0
  %v4905 = vrcp.pop %v4904
  %v4906 = vmul.f32 1.0, %v4905
  %v4907 = vxor.u32 %v4897, 2147483648
  %v4908 = vmul.f32 %v4907, 1.442695
  %v4909 = vpow.pop %v4908
  %v4910 = vadd.f32 %v4909, 1.0
  %v4911 = vrcp.pop %v4910
  %v4912 = vmul.f32 1.0, %v4911
  %v4913 = vtanh.pop %v4898
  %v4914 = vxor.u32 %v4899, 2147483648
  %v4915 = vmul.f32 %v4914, 1.442695
  %v4916 = vpow.pop %v4915
  %v4917 = vadd.f32 %v4916, 1.0
  %v4918 = vrcp.pop %v4917
  %v4919 = vmul.f32 1.0, %v4918
  %v4920 = vmul.f32 %v4912, %v4900
  %v4921 = vmul.f32 %v4906, %v4913
  %v4922 = vadd.f32 %v4920, %v4921
  %v4923 = vtanh.pop %v4922
  %v4924 = vmul.f32 %v4919, %v4923
  %4925 = vst [vmem:[#allocation2] sm:$0xff] %v4924
  %4926 = vst [vmem:[#allocation3] sm:$0xff] %v4922
  %v4927 = vld [vmem:[%s6] sm:$0xff]
  %v4928 = vld [vmem:[%s6 + $0x8] sm:$0xff]
  %v4929 = vld [vmem:[%s6 + $0x10] sm:$0xff]
  %v4930 = vld [vmem:[%s6 + $0x18] sm:$0xff]
  %v4931 = vld [vmem:[%s6 + $0x20] sm:$0xff]
  %v4932 = vld [vmem:[%s6 + $0x28] sm:$0xff]
  %v4933 = vld [vmem:[%s6 + $0x30] sm:$0xff]
  %v4934 = vld [vmem:[%s6 + $0x38] sm:$0xff]
  %v4935 = vld [vmem:[%s6 + $0x40] sm:$0xff]
  %v4936 = vld [vmem:[%s6 + $0x48] sm:$0xff]
  %v4937 = vld [vmem:[%s6 + $0x50] sm:$0xff]
  %v4938 = vld [vmem:[%s6 + $0x58] sm:$0xff]
  %v4939 = vld [vmem:[%s6 + $0x60] sm:$0xff]
  %v4940 = vld [vmem:[%s6 + $0x68] sm:$0xff]
  %v4941 = vld [vmem:[%s6 + $0x70] sm:$0xff]
  %v4942 = vld [vmem:[%s6 + $0x78] sm:$0xff]
  %v4943 = vld [vmem:[%s7] sm:$0x1]
  %v4945 = vlaneseq
  %v4946 = vshrl.u32 %v4945, 7
  %v4947 = vsub.s32 0, %v4946
  %v4948 = vrot.slane %v4943, %v4947
  %4950 = vmatprep.subr.mxu0 0.0
  %4951 = vmatpush1.msra.mxu0 %v4927
  %4952 = vmatprep.subr.mxu0 0.0
  %4953 = vmatpush1.msra.mxu0 %v4928
  %4954 = vmatprep.subr.mxu0 0.0
  %4955 = vmatpush1.msra.mxu0 %v4929
  %4956 = vmatprep.subr.mxu0 0.0
  %4957 = vmatpush1.msra.mxu0 %v4930
  %4958 = vmatprep.subr.mxu0 0.0
  %4959 = vmatpush1.msra.mxu0 %v4931
  %4960 = vmatprep.subr.mxu0 0.0
  %4961 = vmatpush1.msra.mxu0 %v4932
  %4962 = vmatprep.subr.mxu0 0.0
  %4963 = vmatpush1.msra.mxu0 %v4933
  %4964 = vmatprep.subr.mxu0 0.0
  %4965 = vmatpush1.msra.mxu0 %v4934
  %4966 = vmatprep.subr.mxu0 0.0
  %4967 = vmatpush1.msra.mxu0 %v4935
  %4968 = vmatprep.subr.mxu0 0.0
  %4969 = vmatpush1.msra.mxu0 %v4936
  %4970 = vmatprep.subr.mxu0 0.0
  %4971 = vmatpush1.msra.mxu0 %v4937
  %4972 = vmatprep.subr.mxu0 0.0
  %4973 = vmatpush1.msra.mxu0 %v4938
  %4974 = vmatprep.subr.mxu0 0.0
  %4975 = vmatpush1.msra.mxu0 %v4939
  %4976 = vmatprep.subr.mxu0 0.0
  %4977 = vmatpush1.msra.mxu0 %v4940
  %4978 = vmatprep.subr.mxu0 0.0
  %4979 = vmatpush1.msra.mxu0 %v4941
  %4980 = vmatprep.subr.mxu0 0.0
  %4981 = vmatpush1.msra.mxu0 %v4942
  %4982 = vmatprep.subr.mxu0 0.0
  %4983 = vmatpush1.msra.mxu0 0.0
  %4984 = vmatprep.subr.mxu0 0.0
  %4985 = vmatpush1.msra.mxu0 0.0
  %4986 = vmatprep.subr.mxu0 0.0
  %4987 = vmatpush1.msra.mxu0 0.0
  %4988 = vmatprep.subr.mxu0 0.0
  %4989 = vmatpush1.msra.mxu0 0.0
  %4990 = vmatprep.subr.mxu0 0.0
  %4991 = vmatpush1.msra.mxu0 0.0
  %4992 = vmatprep.subr.mxu0 0.0
  %4993 = vmatpush1.msra.mxu0 0.0
  %4994 = vmatprep.subr.mxu0 0.0
  %4995 = vmatpush1.msra.mxu0 0.0
  %4996 = vmatprep.subr.mxu0 0.0
  %4997 = vmatpush1.msra.mxu0 0.0
  %4998 = vmatprep.subr.mxu0 0.0
  %4999 = vmatpush1.msra.mxu0 0.0
  %5000 = vmatprep.subr.mxu0 0.0
  %5001 = vmatpush1.msra.mxu0 0.0
  %5002 = vmatprep.subr.mxu0 0.0
  %5003 = vmatpush1.msra.mxu0 0.0
  %5004 = vmatprep.subr.mxu0 0.0
  %5005 = vmatpush1.msra.mxu0 0.0
  %5006 = vmatprep.subr.mxu0 0.0
  %5007 = vmatpush1.msra.mxu0 0.0
  %5008 = vmatprep.subr.mxu0 0.0
  %5009 = vmatpush1.msra.mxu0 0.0
  %5010 = vmatprep.subr.mxu0 0.0
  %5011 = vmatpush1.msra.mxu0 0.0
  %5012 = vmatprep.subr.mxu0 0.0
  %5013 = vmatpush1.msra.mxu0 0.0
  %5014 = vmatprep.mubr.f32.mxu0 0.0
  %5015 = vmatmul.mubr.f32.gmra.mrb[0].mxu0 %v4924
  %v5016 = vpop.f32.mrb[0].mxu0
  %v5017 = vadd.f32 %v4948, %v5016
  %v5018 = vpop.f32.mrb[0].mxu0
  %5019 = vdwg.mxu0
  %s5020 = scalar_lea.vmem %s8, 40
  %5021 = vst [vmem:[%s5020] sm:$0xff] %v5017
  %s5022 = sld [smem:[#allocation6 + $0x6]]
  %p5023 = scmp.gt.s32.totalorder %s5022, 0
  // Predicated region
  $region70: #{seq2seq_forward.1} parent=0 // pred_check
    %p5024 = pneg %p5023
  $region71: #{seq2seq_forward.1} parent=0 // pred_check_branch
    %5026 = sbr.rel (%p5024) target = $region73
  $region72: #{seq2seq_forward.1} parent=0 // pred_region
    %s5027 = scalar_lea.vmem %s2, 192
    %v5028 = vld [vmem:[%s5027] sm:$0xff]
    %v5029 = vld [vmem:[%s5027 + $0x8] sm:$0xff]
    %v5030 = vld [vmem:[%s5027 + $0x10] sm:$0xff]
    %v5031 = vld [vmem:[%s5027 + $0x18] sm:$0xff]
    %5032 = vst [vmem:[#allocation4] sm:$0xff] %v5028
    %5033 = vst [vmem:[#allocation4 + $0x8] sm:$0xff] %v5029
    %5034 = vst [vmem:[#allocation4 + $0x10] sm:$0xff] %v5030
    %5035 = vst [vmem:[#allocation4 + $0x18] sm:$0xff] %v5031
  $region73: #{seq2seq_forward.1} parent=0 // pred_fallthru
    _
  %p5036 = scmp.eq.s32.totalorder %s5022, 0
  // Predicated region
  $region74: #{seq2seq_forward.1} parent=0 // pred_check
    %p5037 = pneg %p5036
  $region75: #{seq2seq_forward.1} parent=0 // pred_check_branch
    %5039 = sbr.rel (%p5037) target = $region77
  $region76: #{seq2seq_forward.1} parent=0 // pred_region
    %v5040 = vsel %vm1745, %v5017, -1e+30
    %5041 = vmax.xlane.f32.xlu0 %v5040
    %v5042 = vpop.xlane.xlu0 %5041
    %vm5043 = vcmp.eq.f32.partialorder %v5040, %v5042
    %vm5044 = vmand %vm5043, %vm1745
    %v5045 = vsel %vm5044, %v1744, 128
    %v5046 = vand.u32 %v5045, 65535
    %v5047 = vshra.s32 %v5045, 16
    %v5048 = vcvt.s32.f32 %v5046
    %v5049 = vcvt.s32.f32 %v5047
    %5050 = vmin.xlane.f32.xlu0 %v5049
    %v5051 = vpop.xlane.xlu0 %5050
    %vm5052 = vcmp.eq.f32.partialorder %v5049, %v5051
    %v5053 = vsel %vm5052, %v5048, inf
    %5054 = vmin.xlane.f32.xlu0 %v5053
    %v5055 = vpop.xlane.xlu0 %5054
    %v5056 = vcvt.f32.s32 %v5055
    %v5057 = vcvt.f32.s32 %v5051
    %v5058 = vshll.u32 %v5057, 16
    %v5059 = vadd.s32 %v5058, %v5056
    %vm5060 = vcmp.eq.s32.totalorder %v1744, %v5059
    %v5061 = vsel %vm5060, 1, 0
    %v5062 = vcvt.s32.f32 %v5061
    %v5063 = vld [vmem:[%s5] sm:$0xff]
    %v5064 = vld [vmem:[%s5 + $0x8] sm:$0xff]
    %v5065 = vld [vmem:[%s5 + $0x10] sm:$0xff]
    %v5066 = vld [vmem:[%s5 + $0x18] sm:$0xff]
    %v5067 = vld [vmem:[%s5 + $0x20] sm:$0xff]
    %v5068 = vld [vmem:[%s5 + $0x28] sm:$0xff]
    %v5069 = vld [vmem:[%s5 + $0x30] sm:$0xff]
    %v5070 = vld [vmem:[%s5 + $0x38] sm:$0xff]
    %v5071 = vld [vmem:[%s5 + $0x40] sm:$0xff]
    %v5072 = vld [vmem:[%s5 + $0x48] sm:$0xff]
    %v5073 = vld [vmem:[%s5 + $0x50] sm:$0xff]
    %v5074 = vld [vmem:[%s5 + $0x58] sm:$0xff]
    %v5075 = vld [vmem:[%s5 + $0x60] sm:$0xff]
    %v5076 = vld [vmem:[%s5 + $0x68] sm:$0xff]
    %v5077 = vld [vmem:[%s5 + $0x70] sm:$0xff]
    %v5078 = vld [vmem:[%s5 + $0x78] sm:$0xff]
    %v5079 = vld [vmem:[%s5 + $0x80] sm:$0xff]
    %v5080 = vld [vmem:[%s5 + $0x88] sm:$0xff]
    %v5081 = vld [vmem:[%s5 + $0x90] sm:$0xff]
    %v5082 = vld [vmem:[%s5 + $0x98] sm:$0xff]
    %v5083 = vld [vmem:[%s5 + $0xa0] sm:$0xff]
    %v5084 = vld [vmem:[%s5 + $0xa8] sm:$0xff]
    %v5085 = vld [vmem:[%s5 + $0xb0] sm:$0xff]
    %v5086 = vld [vmem:[%s5 + $0xb8] sm:$0xff]
    %v5087 = vld [vmem:[%s5 + $0xc0] sm:$0xff]
    %v5088 = vld [vmem:[%s5 + $0xc8] sm:$0xff]
    %v5089 = vld [vmem:[%s5 + $0xd0] sm:$0xff]
    %v5090 = vld [vmem:[%s5 + $0xd8] sm:$0xff]
    %v5091 = vld [vmem:[%s5 + $0xe0] sm:$0xff]
    %v5092 = vld [vmem:[%s5 + $0xe8] sm:$0xff]
    %v5093 = vld [vmem:[%s5 + $0xf0] sm:$0xff]
    %v5094 = vld [vmem:[%s5 + $0xf8] sm:$0xff]
    %v5095 = vld [vmem:[%s5 + $0x100] sm:$0xff]
    %v5096 = vld [vmem:[%s5 + $0x108] sm:$0xff]
    %v5097 = vld [vmem:[%s5 + $0x110] sm:$0xff]
    %v5098 = vld [vmem:[%s5 + $0x118] sm:$0xff]
    %v5099 = vld [vmem:[%s5 + $0x120] sm:$0xff]
    %v5100 = vld [vmem:[%s5 + $0x128] sm:$0xff]
    %v5101 = vld [vmem:[%s5 + $0x130] sm:$0xff]
    %v5102 = vld [vmem:[%s5 + $0x138] sm:$0xff]
    %v5103 = vld [vmem:[%s5 + $0x140] sm:$0xff]
    %v5104 = vld [vmem:[%s5 + $0x148] sm:$0xff]
    %v5105 = vld [vmem:[%s5 + $0x150] sm:$0xff]
    %v5106 = vld [vmem:[%s5 + $0x158] sm:$0xff]
    %v5107 = vld [vmem:[%s5 + $0x160] sm:$0xff]
    %v5108 = vld [vmem:[%s5 + $0x168] sm:$0xff]
    %v5109 = vld [vmem:[%s5 + $0x170] sm:$0xff]
    %v5110 = vld [vmem:[%s5 + $0x178] sm:$0xff]
    %v5111 = vld [vmem:[%s5 + $0x180] sm:$0xff]
    %v5112 = vld [vmem:[%s5 + $0x188] sm:$0xff]
    %v5113 = vld [vmem:[%s5 + $0x190] sm:$0xff]
    %v5114 = vld [vmem:[%s5 + $0x198] sm:$0xff]
    %v5115 = vld [vmem:[%s5 + $0x1a0] sm:$0xff]
    %v5116 = vld [vmem:[%s5 + $0x1a8] sm:$0xff]
    %v5117 = vld [vmem:[%s5 + $0x1b0] sm:$0xff]
    %v5118 = vld [vmem:[%s5 + $0x1b8] sm:$0xff]
    %v5119 = vld [vmem:[%s5 + $0x1c0] sm:$0xff]
    %v5120 = vld [vmem:[%s5 + $0x1c8] sm:$0xff]
    %v5121 = vld [vmem:[%s5 + $0x1d0] sm:$0xff]
    %v5122 = vld [vmem:[%s5 + $0x1d8] sm:$0xff]
    %v5123 = vld [vmem:[%s5 + $0x1e0] sm:$0xff]
    %v5124 = vld [vmem:[%s5 + $0x1e8] sm:$0xff]
    %v5125 = vld [vmem:[%s5 + $0x1f0] sm:$0xff]
    %v5126 = vld [vmem:[%s5 + $0x1f8] sm:$0xff]
    %5127 = vmatprep.subr.mxu0 %v5064
    %5128 = vmatpush1.msra.mxu0 %v5063
    %5129 = vmatprep.subr.mxu0 %v5068
    %5130 = vmatpush1.msra.mxu0 %v5067
    %5131 = vmatprep.subr.mxu0 %v5072
    %5132 = vmatpush1.msra.mxu0 %v5071
    %5133 = vmatprep.subr.mxu0 %v5076
    %5134 = vmatpush1.msra.mxu0 %v5075
    %5135 = vmatprep.subr.mxu0 %v5080
    %5136 = vmatpush1.msra.mxu0 %v5079
    %5137 = vmatprep.subr.mxu0 %v5084
    %5138 = vmatpush1.msra.mxu0 %v5083
    %5139 = vmatprep.subr.mxu0 %v5088
    %5140 = vmatpush1.msra.mxu0 %v5087
    %5141 = vmatprep.subr.mxu0 %v5092
    %5142 = vmatpush1.msra.mxu0 %v5091
    %5143 = vmatprep.subr.mxu0 %v5096
    %5144 = vmatpush1.msra.mxu0 %v5095
    %5145 = vmatprep.subr.mxu0 %v5100
    %5146 = vmatpush1.msra.mxu0 %v5099
    %5147 = vmatprep.subr.mxu0 %v5104
    %5148 = vmatpush1.msra.mxu0 %v5103
    %5149 = vmatprep.subr.mxu0 %v5108
    %5150 = vmatpush1.msra.mxu0 %v5107
    %5151 = vmatprep.subr.mxu0 %v5112
    %5152 = vmatpush1.msra.mxu0 %v5111
    %5153 = vmatprep.subr.mxu0 %v5116
    %5154 = vmatpush1.msra.mxu0 %v5115
    %5155 = vmatprep.subr.mxu0 %v5120
    %5156 = vmatpush1.msra.mxu0 %v5119
    %5157 = vmatprep.subr.mxu0 %v5124
    %5158 = vmatpush1.msra.mxu0 %v5123
    %5159 = vmatprep.subr.mxu0 0.0
    %5160 = vmatpush1.msra.mxu0 0.0
    %5161 = vmatprep.subr.mxu0 0.0
    %5162 = vmatpush1.msra.mxu0 0.0
    %5163 = vmatprep.subr.mxu0 0.0
    %5164 = vmatpush1.msra.mxu0 0.0
    %5165 = vmatprep.subr.mxu0 0.0
    %5166 = vmatpush1.msra.mxu0 0.0
    %5167 = vmatprep.subr.mxu0 0.0
    %5168 = vmatpush1.msra.mxu0 0.0
    %5169 = vmatprep.subr.mxu0 0.0
    %5170 = vmatpush1.msra.mxu0 0.0
    %5171 = vmatprep.subr.mxu0 0.0
    %5172 = vmatpush1.msra.mxu0 0.0
    %5173 = vmatprep.subr.mxu0 0.0
    %5174 = vmatpush1.msra.mxu0 0.0
    %5175 = vmatprep.subr.mxu0 0.0
    %5176 = vmatpush1.msra.mxu0 0.0
    %5177 = vmatprep.subr.mxu0 0.0
    %5178 = vmatpush1.msra.mxu0 0.0
    %5179 = vmatprep.subr.mxu0 0.0
    %5180 = vmatpush1.msra.mxu0 0.0
    %5181 = vmatprep.subr.mxu0 0.0
    %5182 = vmatpush1.msra.mxu0 0.0
    %5183 = vmatprep.subr.mxu0 0.0
    %5184 = vmatpush1.msra.mxu0 0.0
    %5185 = vmatprep.subr.mxu0 0.0
    %5186 = vmatpush1.msra.mxu0 0.0
    %5187 = vmatprep.subr.mxu0 0.0
    %5188 = vmatpush1.msra.mxu0 0.0
    %5189 = vmatprep.subr.mxu0 0.0
    %5190 = vmatpush1.msra.mxu0 0.0
    %5191 = vmatprep.mubr.f32.mxu0 0.0
    %5192 = vmatmul.mubr.f32.gmra.mrb[0].mxu0 %v5062
    %v5193 = vpop.f32.mrb[0].mxu0
    %v5194 = vadd.f32 0.0, %v5193
    %v5195 = vpop.f32.mrb[0].mxu0
    %v5196 = vadd.f32 0.0, %v5195
    %5197 = vdwg.mxu0
    %5198 = vmatprep.subr.mxu0 %v5066
    %5199 = vmatpush1.msra.mxu0 %v5065
    %5200 = vmatprep.subr.mxu0 %v5070
    %5201 = vmatpush1.msra.mxu0 %v5069
    %5202 = vmatprep.subr.mxu0 %v5074
    %5203 = vmatpush1.msra.mxu0 %v5073
    %5204 = vmatprep.subr.mxu0 %v5078
    %5205 = vmatpush1.msra.mxu0 %v5077
    %5206 = vmatprep.subr.mxu0 %v5082
    %5207 = vmatpush1.msra.mxu0 %v5081
    %5208 = vmatprep.subr.mxu0 %v5086
    %5209 = vmatpush1.msra.mxu0 %v5085
    %5210 = vmatprep.subr.mxu0 %v5090
    %5211 = vmatpush1.msra.mxu0 %v5089
    %5212 = vmatprep.subr.mxu0 %v5094
    %5213 = vmatpush1.msra.mxu0 %v5093
    %5214 = vmatprep.subr.mxu0 %v5098
    %5215 = vmatpush1.msra.mxu0 %v5097
    %5216 = vmatprep.subr.mxu0 %v5102
    %5217 = vmatpush1.msra.mxu0 %v5101
    %5218 = vmatprep.subr.mxu0 %v5106
    %5219 = vmatpush1.msra.mxu0 %v5105
    %5220 = vmatprep.subr.mxu0 %v5110
    %5221 = vmatpush1.msra.mxu0 %v5109
    %5222 = vmatprep.subr.mxu0 %v5114
    %5223 = vmatpush1.msra.mxu0 %v5113
    %5224 = vmatprep.subr.mxu0 %v5118
    %5225 = vmatpush1.msra.mxu0 %v5117
    %5226 = vmatprep.subr.mxu0 %v5122
    %5227 = vmatpush1.msra.mxu0 %v5121
    %5228 = vmatprep.subr.mxu0 %v5126
    %5229 = vmatpush1.msra.mxu0 %v5125
    %5230 = vmatprep.subr.mxu0 0.0
    %5231 = vmatpush1.msra.mxu0 0.0
    %5232 = vmatprep.subr.mxu0 0.0
    %5233 = vmatpush1.msra.mxu0 0.0
    %5234 = vmatprep.subr.mxu0 0.0
    %5235 = vmatpush1.msra.mxu0 0.0
    %5236 = vmatprep.subr.mxu0 0.0
    %5237 = vmatpush1.msra.mxu0 0.0
    %5238 = vmatprep.subr.mxu0 0.0
    %5239 = vmatpush1.msra.mxu0 0.0
    %5240 = vmatprep.subr.mxu0 0.0
    %5241 = vmatpush1.msra.mxu0 0.0
    %5242 = vmatprep.subr.mxu0 0.0
    %5243 = vmatpush1.msra.mxu0 0.0
    %5244 = vmatprep.subr.mxu0 0.0
    %5245 = vmatpush1.msra.mxu0 0.0
    %5246 = vmatprep.subr.mxu0 0.0
    %5247 = vmatpush1.msra.mxu0 0.0
    %5248 = vmatprep.subr.mxu0 0.0
    %5249 = vmatpush1.msra.mxu0 0.0
    %5250 = vmatprep.subr.mxu0 0.0
    %5251 = vmatpush1.msra.mxu0 0.0
    %5252 = vmatprep.subr.mxu0 0.0
    %5253 = vmatpush1.msra.mxu0 0.0
    %5254 = vmatprep.subr.mxu0 0.0
    %5255 = vmatpush1.msra.mxu0 0.0
    %5256 = vmatprep.subr.mxu0 0.0
    %5257 = vmatpush1.msra.mxu0 0.0
    %5258 = vmatprep.subr.mxu0 0.0
    %5259 = vmatpush1.msra.mxu0 0.0
    %5260 = vmatprep.subr.mxu0 0.0
    %5261 = vmatpush1.msra.mxu0 0.0
    %5262 = vmatprep.mubr.f32.mxu0 0.0
    %5263 = vmatmul.mubr.f32.gmra.mrb[0].mxu0 %v5062
    %v5264 = vpop.f32.mrb[0].mxu0
    %v5265 = vadd.f32 0.0, %v5264
    %v5266 = vpop.f32.mrb[0].mxu0
    %v5267 = vadd.f32 0.0, %v5266
    %5268 = vdwg.mxu0
    %5269 = vst [vmem:[#allocation4] sm:$0xff] %v5194
    %5270 = vst [vmem:[#allocation4 + $0x8] sm:$0xff] %v5196
    %5271 = vst [vmem:[#allocation4 + $0x10] sm:$0xff] %v5265
    %5272 = vst [vmem:[#allocation4 + $0x18] sm:$0xff] %v5267
  $region77: #{seq2seq_forward.1} parent=0 // pred_fallthru
    _
  %v5273 = vld [vmem:[#allocation4] sm:$0xff]
  %v5274 = vld [vmem:[#allocation4 + $0x8] sm:$0xff]
  %v5275 = vld [vmem:[#allocation4 + $0x10] sm:$0xff]
  %v5276 = vld [vmem:[#allocation4 + $0x18] sm:$0xff]
  %v5277 = vld [vmem:[#allocation2] sm:$0xff]
  %v5278 = vld [vmem:[%s4] sm:$0xff]
  %v5279 = vld [vmem:[%s4 + $0x8] sm:$0xff]
  %v5280 = vld [vmem:[%s4 + $0x10] sm:$0xff]
  %v5281 = vld [vmem:[%s4 + $0x18] sm:$0xff]
  %v5282 = vld [vmem:[%s4 + $0x20] sm:$0xff]
  %v5283 = vld [vmem:[%s4 + $0x28] sm:$0xff]
  %v5284 = vld [vmem:[%s4 + $0x30] sm:$0xff]
  %v5285 = vld [vmem:[%s4 + $0x38] sm:$0xff]
  %v5286 = vld [vmem:[%s4 + $0x40] sm:$0xff]
  %v5287 = vld [vmem:[%s4 + $0x48] sm:$0xff]
  %v5288 = vld [vmem:[%s4 + $0x50] sm:$0xff]
  %v5289 = vld [vmem:[%s4 + $0x58] sm:$0xff]
  %v5290 = vld [vmem:[%s4 + $0x60] sm:$0xff]
  %v5291 = vld [vmem:[%s4 + $0x68] sm:$0xff]
  %v5292 = vld [vmem:[%s4 + $0x70] sm:$0xff]
  %v5293 = vld [vmem:[%s4 + $0x78] sm:$0xff]
  %v5294 = vld [vmem:[%s4 + $0x80] sm:$0xff]
  %v5295 = vld [vmem:[%s4 + $0x88] sm:$0xff]
  %v5296 = vld [vmem:[%s4 + $0x90] sm:$0xff]
  %v5297 = vld [vmem:[%s4 + $0x98] sm:$0xff]
  %v5298 = vld [vmem:[%s4 + $0xa0] sm:$0xff]
  %v5299 = vld [vmem:[%s4 + $0xa8] sm:$0xff]
  %v5300 = vld [vmem:[%s4 + $0xb0] sm:$0xff]
  %v5301 = vld [vmem:[%s4 + $0xb8] sm:$0xff]
  %v5302 = vld [vmem:[%s4 + $0xc0] sm:$0xff]
  %v5303 = vld [vmem:[%s4 + $0xc8] sm:$0xff]
  %v5304 = vld [vmem:[%s4 + $0xd0] sm:$0xff]
  %v5305 = vld [vmem:[%s4 + $0xd8] sm:$0xff]
  %v5306 = vld [vmem:[%s4 + $0xe0] sm:$0xff]
  %v5307 = vld [vmem:[%s4 + $0xe8] sm:$0xff]
  %v5308 = vld [vmem:[%s4 + $0xf0] sm:$0xff]
  %v5309 = vld [vmem:[%s4 + $0xf8] sm:$0xff]
  %v5310 = vld [vmem:[%s4 + $0x100] sm:$0xff]
  %v5311 = vld [vmem:[%s4 + $0x108] sm:$0xff]
  %v5312 = vld [vmem:[%s4 + $0x110] sm:$0xff]
  %v5313 = vld [vmem:[%s4 + $0x118] sm:$0xff]
  %v5314 = vld [vmem:[%s4 + $0x120] sm:$0xff]
  %v5315 = vld [vmem:[%s4 + $0x128] sm:$0xff]
  %v5316 = vld [vmem:[%s4 + $0x130] sm:$0xff]
  %v5317 = vld [vmem:[%s4 + $0x138] sm:$0xff]
  %v5318 = vld [vmem:[%s4 + $0x140] sm:$0xff]
  %v5319 = vld [vmem:[%s4 + $0x148] sm:$0xff]
  %v5320 = vld [vmem:[%s4 + $0x150] sm:$0xff]
  %v5321 = vld [vmem:[%s4 + $0x158] sm:$0xff]
  %v5322 = vld [vmem:[%s4 + $0x160] sm:$0xff]
  %v5323 = vld [vmem:[%s4 + $0x168] sm:$0xff]
  %v5324 = vld [vmem:[%s4 + $0x170] sm:$0xff]
  %v5325 = vld [vmem:[%s4 + $0x178] sm:$0xff]
  %v5326 = vld [vmem:[%s4 + $0x180] sm:$0xff]
  %v5327 = vld [vmem:[%s4 + $0x188] sm:$0xff]
  %v5328 = vld [vmem:[%s4 + $0x190] sm:$0xff]
  %v5329 = vld [vmem:[%s4 + $0x198] sm:$0xff]
  %v5330 = vld [vmem:[%s4 + $0x1a0] sm:$0xff]
  %v5331 = vld [vmem:[%s4 + $0x1a8] sm:$0xff]
  %v5332 = vld [vmem:[%s4 + $0x1b0] sm:$0xff]
  %v5333 = vld [vmem:[%s4 + $0x1b8] sm:$0xff]
  %v5334 = vld [vmem:[%s4 + $0x1c0] sm:$0xff]
  %v5335 = vld [vmem:[%s4 + $0x1c8] sm:$0xff]
  %v5336 = vld [vmem:[%s4 + $0x1d0] sm:$0xff]
  %v5337 = vld [vmem:[%s4 + $0x1d8] sm:$0xff]
  %v5338 = vld [vmem:[%s4 + $0x1e0] sm:$0xff]
  %v5339 = vld [vmem:[%s4 + $0x1e8] sm:$0xff]
  %v5340 = vld [vmem:[%s4 + $0x1f0] sm:$0xff]
  %v5341 = vld [vmem:[%s4 + $0x1f8] sm:$0xff]
  %5342 = vmatprep.subr.mxu0 %v5279
  %5343 = vmatpush1.msra.mxu0 %v5278
  %5344 = vmatprep.subr.mxu0 %v5283
  %5345 = vmatpush1.msra.mxu0 %v5282
  %5346 = vmatprep.subr.mxu0 %v5287
  %5347 = vmatpush1.msra.mxu0 %v5286
  %5348 = vmatprep.subr.mxu0 %v5291
  %5349 = vmatpush1.msra.mxu0 %v5290
  %5350 = vmatprep.subr.mxu0 %v5295
  %5351 = vmatpush1.msra.mxu0 %v5294
  %5352 = vmatprep.subr.mxu0 %v5299
  %5353 = vmatpush1.msra.mxu0 %v5298
  %5354 = vmatprep.subr.mxu0 %v5303
  %5355 = vmatpush1.msra.mxu0 %v5302
  %5356 = vmatprep.subr.mxu0 %v5307
  %5357 = vmatpush1.msra.mxu0 %v5306
  %5358 = vmatprep.subr.mxu0 %v5311
  %5359 = vmatpush1.msra.mxu0 %v5310
  %5360 = vmatprep.subr.mxu0 %v5315
  %5361 = vmatpush1.msra.mxu0 %v5314
  %5362 = vmatprep.subr.mxu0 %v5319
  %5363 = vmatpush1.msra.mxu0 %v5318
  %5364 = vmatprep.subr.mxu0 %v5323
  %5365 = vmatpush1.msra.mxu0 %v5322
  %5366 = vmatprep.subr.mxu0 %v5327
  %5367 = vmatpush1.msra.mxu0 %v5326
  %5368 = vmatprep.subr.mxu0 %v5331
  %5369 = vmatpush1.msra.mxu0 %v5330
  %5370 = vmatprep.subr.mxu0 %v5335
  %5371 = vmatpush1.msra.mxu0 %v5334
  %5372 = vmatprep.subr.mxu0 %v5339
  %5373 = vmatpush1.msra.mxu0 %v5338
  %5374 = vmatprep.subr.mxu0 0.0
  %5375 = vmatpush1.msra.mxu0 0.0
  %5376 = vmatprep.subr.mxu0 0.0
  %5377 = vmatpush1.msra.mxu0 0.0
  %5378 = vmatprep.subr.mxu0 0.0
  %5379 = vmatpush1.msra.mxu0 0.0
  %5380 = vmatprep.subr.mxu0 0.0
  %5381 = vmatpush1.msra.mxu0 0.0
  %5382 = vmatprep.subr.mxu0 0.0
  %5383 = vmatpush1.msra.mxu0 0.0
  %5384 = vmatprep.subr.mxu0 0.0
  %5385 = vmatpush1.msra.mxu0 0.0
  %5386 = vmatprep.subr.mxu0 0.0
  %5387 = vmatpush1.msra.mxu0 0.0
  %5388 = vmatprep.subr.mxu0 0.0
  %5389 = vmatpush1.msra.mxu0 0.0
  %5390 = vmatprep.subr.mxu0 0.0
  %5391 = vmatpush1.msra.mxu0 0.0
  %5392 = vmatprep.subr.mxu0 0.0
  %5393 = vmatpush1.msra.mxu0 0.0
  %5394 = vmatprep.subr.mxu0 0.0
  %5395 = vmatpush1.msra.mxu0 0.0
  %5396 = vmatprep.subr.mxu0 0.0
  %5397 = vmatpush1.msra.mxu0 0.0
  %5398 = vmatprep.subr.mxu0 0.0
  %5399 = vmatpush1.msra.mxu0 0.0
  %5400 = vmatprep.subr.mxu0 0.0
  %5401 = vmatpush1.msra.mxu0 0.0
  %5402 = vmatprep.subr.mxu0 0.0
  %5403 = vmatpush1.msra.mxu0 0.0
  %5404 = vmatprep.subr.mxu0 0.0
  %5405 = vmatpush1.msra.mxu0 0.0
  %5406 = vmatprep.mubr.f32.mxu0 0.0
  %5407 = vmatmul.mubr.f32.gmra.mrb[0].mxu0 %v5277
  %v5408 = vpop.f32.mrb[0].mxu0
  %v5409 = vadd.f32 0.0, %v5408
  %v5410 = vpop.f32.mrb[0].mxu0
  %v5411 = vadd.f32 0.0, %v5410
  %5412 = vdwg.mxu0
  %5413 = vmatprep.subr.mxu0 %v5281
  %5414 = vmatpush1.msra.mxu0 %v5280
  %5415 = vmatprep.subr.mxu0 %v5285
  %5416 = vmatpush1.msra.mxu0 %v5284
  %5417 = vmatprep.subr.mxu0 %v5289
  %5418 = vmatpush1.msra.mxu0 %v5288
  %5419 = vmatprep.subr.mxu0 %v5293
  %5420 = vmatpush1.msra.mxu0 %v5292
  %5421 = vmatprep.subr.mxu0 %v5297
  %5422 = vmatpush1.msra.mxu0 %v5296
  %5423 = vmatprep.subr.mxu0 %v5301
  %5424 = vmatpush1.msra.mxu0 %v5300
  %5425 = vmatprep.subr.mxu0 %v5305
  %5426 = vmatpush1.msra.mxu0 %v5304
  %5427 = vmatprep.subr.mxu0 %v5309
  %5428 = vmatpush1.msra.mxu0 %v5308
  %5429 = vmatprep.subr.mxu0 %v5313
  %5430 = vmatpush1.msra.mxu0 %v5312
  %5431 = vmatprep.subr.mxu0 %v5317
  %5432 = vmatpush1.msra.mxu0 %v5316
  %5433 = vmatprep.subr.mxu0 %v5321
  %5434 = vmatpush1.msra.mxu0 %v5320
  %5435 = vmatprep.subr.mxu0 %v5325
  %5436 = vmatpush1.msra.mxu0 %v5324
  %5437 = vmatprep.subr.mxu0 %v5329
  %5438 = vmatpush1.msra.mxu0 %v5328
  %5439 = vmatprep.subr.mxu0 %v5333
  %5440 = vmatpush1.msra.mxu0 %v5332
  %5441 = vmatprep.subr.mxu0 %v5337
  %5442 = vmatpush1.msra.mxu0 %v5336
  %5443 = vmatprep.subr.mxu0 %v5341
  %5444 = vmatpush1.msra.mxu0 %v5340
  %5445 = vmatprep.subr.mxu0 0.0
  %5446 = vmatpush1.msra.mxu0 0.0
  %5447 = vmatprep.subr.mxu0 0.0
  %5448 = vmatpush1.msra.mxu0 0.0
  %5449 = vmatprep.subr.mxu0 0.0
  %5450 = vmatpush1.msra.mxu0 0.0
  %5451 = vmatprep.subr.mxu0 0.0
  %5452 = vmatpush1.msra.mxu0 0.0
  %5453 = vmatprep.subr.mxu0 0.0
  %5454 = vmatpush1.msra.mxu0 0.0
  %5455 = vmatprep.subr.mxu0 0.0
  %5456 = vmatpush1.msra.mxu0 0.0
  %5457 = vmatprep.subr.mxu0 0.0
  %5458 = vmatpush1.msra.mxu0 0.0
  %5459 = vmatprep.subr.mxu0 0.0
  %5460 = vmatpush1.msra.mxu0 0.0
  %5461 = vmatprep.subr.mxu0 0.0
  %5462 = vmatpush1.msra.mxu0 0.0
  %5463 = vmatprep.subr.mxu0 0.0
  %5464 = vmatpush1.msra.mxu0 0.0
  %5465 = vmatprep.subr.mxu0 0.0
  %5466 = vmatpush1.msra.mxu0 0.0
  %5467 = vmatprep.subr.mxu0 0.0
  %5468 = vmatpush1.msra.mxu0 0.0
  %5469 = vmatprep.subr.mxu0 0.0
  %5470 = vmatpush1.msra.mxu0 0.0
  %5471 = vmatprep.subr.mxu0 0.0
  %5472 = vmatpush1.msra.mxu0 0.0
  %5473 = vmatprep.subr.mxu0 0.0
  %5474 = vmatpush1.msra.mxu0 0.0
  %5475 = vmatprep.subr.mxu0 0.0
  %5476 = vmatpush1.msra.mxu0 0.0
  %5477 = vmatprep.mubr.f32.mxu0 0.0
  %5478 = vmatmul.mubr.f32.gmra.mrb[0].mxu0 %v5277
  %v5479 = vpop.f32.mrb[0].mxu0
  %v5480 = vadd.f32 0.0, %v5479
  %v5481 = vpop.f32.mrb[0].mxu0
  %v5482 = vadd.f32 0.0, %v5481
  %5483 = vdwg.mxu0
  %v5484 = vadd.f32 %v5273, %v5409
  %v5485 = vadd.f32 %v5274, %v5411
  %v5486 = vadd.f32 %v5275, %v5480
  %v5487 = vadd.f32 %v5276, %v5482
  %v5488 = vld [vmem:[#allocation3] sm:$0xff]
  %v5489 = vxor.u32 %v5484, 2147483648
  %v5490 = vmul.f32 %v5489, 1.442695
  %v5491 = vpow.pop %v5490
  %v5492 = vadd.f32 %v5491, 1.0
  %v5493 = vrcp.pop %v5492
  %v5494 = vmul.f32 1.0, %v5493
  %v5495 = vxor.u32 %v5485, 2147483648
  %v5496 = vmul.f32 %v5495, 1.442695
  %v5497 = vpow.pop %v5496
  %v5498 = vadd.f32 %v5497, 1.0
  %v5499 = vrcp.pop %v5498
  %v5500 = vmul.f32 1.0, %v5499
  %v5501 = vtanh.pop %v5486
  %v5502 = vxor.u32 %v5487, 2147483648
  %v5503 = vmul.f32 %v5502, 1.442695
  %v5504 = vpow.pop %v5503
  %v5505 = vadd.f32 %v5504, 1.0
  %v5506 = vrcp.pop %v5505
  %v5507 = vmul.f32 1.0, %v5506
  %v5508 = vmul.f32 %v5500, %v5488
  %v5509 = vmul.f32 %v5494, %v5501
  %v5510 = vadd.f32 %v5508, %v5509
  %v5511 = vtanh.pop %v5510
  %v5512 = vmul.f32 %v5507, %v5511
  %5513 = vst [vmem:[#allocation2] sm:$0xff] %v5512
  %5514 = vst [vmem:[#allocation3] sm:$0xff] %v5510
  %v5515 = vld [vmem:[%s6] sm:$0xff]
  %v5516 = vld [vmem:[%s6 + $0x8] sm:$0xff]
  %v5517 = vld [vmem:[%s6 + $0x10] sm:$0xff]
  %v5518 = vld [vmem:[%s6 + $0x18] sm:$0xff]
  %v5519 = vld [vmem:[%s6 + $0x20] sm:$0xff]
  %v5520 = vld [vmem:[%s6 + $0x28] sm:$0xff]
  %v5521 = vld [vmem:[%s6 + $0x30] sm:$0xff]
  %v5522 = vld [vmem:[%s6 + $0x38] sm:$0xff]
  %v5523 = vld [vmem:[%s6 + $0x40] sm:$0xff]
  %v5524 = vld [vmem:[%s6 + $0x48] sm:$0xff]
  %v5525 = vld [vmem:[%s6 + $0x50] sm:$0xff]
  %v5526 = vld [vmem:[%s6 + $0x58] sm:$0xff]
  %v5527 = vld [vmem:[%s6 + $0x60] sm:$0xff]
  %v5528 = vld [vmem:[%s6 + $0x68] sm:$0xff]
  %v5529 = vld [vmem:[%s6 + $0x70] sm:$0xff]
  %v5530 = vld [vmem:[%s6 + $0x78] sm:$0xff]
  %v5531 = vld [vmem:[%s7] sm:$0x1]
  %v5533 = vlaneseq
  %v5534 = vshrl.u32 %v5533, 7
  %v5535 = vsub.s32 0, %v5534
  %v5536 = vrot.slane %v5531, %v5535
  %5538 = vmatprep.subr.mxu0 0.0
  %5539 = vmatpush1.msra.mxu0 %v5515
  %5540 = vmatprep.subr.mxu0 0.0
  %5541 = vmatpush1.msra.mxu0 %v5516
  %5542 = vmatprep.subr.mxu0 0.0
  %5543 = vmatpush1.msra.mxu0 %v5517
  %5544 = vmatprep.subr.mxu0 0.0
  %5545 = vmatpush1.msra.mxu0 %v5518
  %5546 = vmatprep.subr.mxu0 0.0
  %5547 = vmatpush1.msra.mxu0 %v5519
  %5548 = vmatprep.subr.mxu0 0.0
  %5549 = vmatpush1.msra.mxu0 %v5520
  %5550 = vmatprep.subr.mxu0 0.0
  %5551 = vmatpush1.msra.mxu0 %v5521
  %5552 = vmatprep.subr.mxu0 0.0
  %5553 = vmatpush1.msra.mxu0 %v5522
  %5554 = vmatprep.subr.mxu0 0.0
  %5555 = vmatpush1.msra.mxu0 %v5523
  %5556 = vmatprep.subr.mxu0 0.0
  %5557 = vmatpush1.msra.mxu0 %v5524
  %5558 = vmatprep.subr.mxu0 0.0
  %5559 = vmatpush1.msra.mxu0 %v5525
  %5560 = vmatprep.subr.mxu0 0.0
  %5561 = vmatpush1.msra.mxu0 %v5526
  %5562 = vmatprep.subr.mxu0 0.0
  %5563 = vmatpush1.msra.mxu0 %v5527
  %5564 = vmatprep.subr.mxu0 0.0
  %5565 = vmatpush1.msra.mxu0 %v5528
  %5566 = vmatprep.subr.mxu0 0.0
  %5567 = vmatpush1.msra.mxu0 %v5529
  %5568 = vmatprep.subr.mxu0 0.0
  %5569 = vmatpush1.msra.mxu0 %v5530
  %5570 = vmatprep.subr.mxu0 0.0
  %5571 = vmatpush1.msra.mxu0 0.0
  %5572 = vmatprep.subr.mxu0 0.0
  %5573 = vmatpush1.msra.mxu0 0.0
  %5574 = vmatprep.subr.mxu0 0.0
  %5575 = vmatpush1.msra.mxu0 0.0
  %5576 = vmatprep.subr.mxu0 0.0
  %5577 = vmatpush1.msra.mxu0 0.0
  %5578 = vmatprep.subr.mxu0 0.0
  %5579 = vmatpush1.msra.mxu0 0.0
  %5580 = vmatprep.subr.mxu0 0.0
  %5581 = vmatpush1.msra.mxu0 0.0
  %5582 = vmatprep.subr.mxu0 0.0
  %5583 = vmatpush1.msra.mxu0 0.0
  %5584 = vmatprep.subr.mxu0 0.0
  %5585 = vmatpush1.msra.mxu0 0.0
  %5586 = vmatprep.subr.mxu0 0.0
  %5587 = vmatpush1.msra.mxu0 0.0
  %5588 = vmatprep.subr.mxu0 0.0
  %5589 = vmatpush1.msra.mxu0 0.0
  %5590 = vmatprep.subr.mxu0 0.0
  %5591 = vmatpush1.msra.mxu0 0.0
  %5592 = vmatprep.subr.mxu0 0.0
  %5593 = vmatpush1.msra.mxu0 0.0
  %5594 = vmatprep.subr.mxu0 0.0
  %5595 = vmatpush1.msra.mxu0 0.0
  %5596 = vmatprep.subr.mxu0 0.0
  %5597 = vmatpush1.msra.mxu0 0.0
  %5598 = vmatprep.subr.mxu0 0.0
  %5599 = vmatpush1.msra.mxu0 0.0
  %5600 = vmatprep.subr.mxu0 0.0
  %5601 = vmatpush1.msra.mxu0 0.0
  %5602 = vmatprep.mubr.f32.mxu0 0.0
  %5603 = vmatmul.mubr.f32.gmra.mrb[0].mxu0 %v5512
  %v5604 = vpop.f32.mrb[0].mxu0
  %v5605 = vadd.f32 %v5536, %v5604
  %v5606 = vpop.f32.mrb[0].mxu0
  %5607 = vdwg.mxu0
  %s5608 = scalar_lea.vmem %s8, 48
  %5609 = vst [vmem:[%s5608] sm:$0xff] %v5605
  %s5610 = sld [smem:[#allocation6 + $0x7]]
  %p5611 = scmp.gt.s32.totalorder %s5610, 0
  // Predicated region
  $region78: #{seq2seq_forward.1} parent=0 // pred_check
    %p5612 = pneg %p5611
  $region79: #{seq2seq_forward.1} parent=0 // pred_check_branch
    %5614 = sbr.rel (%p5612) target = $region81
  $region80: #{seq2seq_forward.1} parent=0 // pred_region
    %s5615 = scalar_lea.vmem %s2, 224
    %v5616 = vld [vmem:[%s5615] sm:$0xff]
    %v5617 = vld [vmem:[%s5615 + $0x8] sm:$0xff]
    %v5618 = vld [vmem:[%s5615 + $0x10] sm:$0xff]
    %v5619 = vld [vmem:[%s5615 + $0x18] sm:$0xff]
    %5620 = vst [vmem:[#allocation4] sm:$0xff] %v5616
    %5621 = vst [vmem:[#allocation4 + $0x8] sm:$0xff] %v5617
    %5622 = vst [vmem:[#allocation4 + $0x10] sm:$0xff] %v5618
    %5623 = vst [vmem:[#allocation4 + $0x18] sm:$0xff] %v5619
  $region81: #{seq2seq_forward.1} parent=0 // pred_fallthru
    _
  %p5624 = scmp.eq.s32.totalorder %s5610, 0
  // Predicated region
  $region82: #{seq2seq_forward.1} parent=0 // pred_check
    %p5625 = pneg %p5624
  $region83: #{seq2seq_forward.1} parent=0 // pred_check_branch
    %5627 = sbr.rel (%p5625) target = $region85
  $region84: #{seq2seq_forward.1} parent=0 // pred_region
    %v5628 = vsel %vm1745, %v5605, -1e+30
    %5629 = vmax.xlane.f32.xlu0 %v5628
    %v5630 = vpop.xlane.xlu0 %5629
    %vm5631 = vcmp.eq.f32.partialorder %v5628, %v5630
    %vm5632 = vmand %vm5631, %vm1745
    %v5633 = vsel %vm5632, %v1744, 128
    %v5634 = vand.u32 %v5633, 65535
    %v5635 = vshra.s32 %v5633, 16
    %v5636 = vcvt.s32.f32 %v5634
    %v5637 = vcvt.s32.f32 %v5635
    %5638 = vmin.xlane.f32.xlu0 %v5637
    %v5639 = vpop.xlane.xlu0 %5638
    %vm5640 = vcmp.eq.f32.partialorder %v5637, %v5639
    %v5641 = vsel %vm5640, %v5636, inf
    %5642 = vmin.xlane.f32.xlu0 %v5641
    %v5643 = vpop.xlane.xlu0 %5642
    %v5644 = vcvt.f32.s32 %v5643
    %v5645 = vcvt.f32.s32 %v5639
    %v5646 = vshll.u32 %v5645, 16
    %v5647 = vadd.s32 %v5646, %v5644
    %vm5648 = vcmp.eq.s32.totalorder %v1744, %v5647
    %v5649 = vsel %vm5648, 1, 0
    %v5650 = vcvt.s32.f32 %v5649
    %v5651 = vld [vmem:[%s5] sm:$0xff]
    %v5652 = vld [vmem:[%s5 + $0x8] sm:$0xff]
    %v5653 = vld [vmem:[%s5 + $0x10] sm:$0xff]
    %v5654 = vld [vmem:[%s5 + $0x18] sm:$0xff]
    %v5655 = vld [vmem:[%s5 + $0x20] sm:$0xff]
    %v5656 = vld [vmem:[%s5 + $0x28] sm:$0xff]
    %v5657 = vld [vmem:[%s5 + $0x30] sm:$0xff]
    %v5658 = vld [vmem:[%s5 + $0x38] sm:$0xff]
    %v5659 = vld [vmem:[%s5 + $0x40] sm:$0xff]
    %v5660 = vld [vmem:[%s5 + $0x48] sm:$0xff]
    %v5661 = vld [vmem:[%s5 + $0x50] sm:$0xff]
    %v5662 = vld [vmem:[%s5 + $0x58] sm:$0xff]
    %v5663 = vld [vmem:[%s5 + $0x60] sm:$0xff]
    %v5664 = vld [vmem:[%s5 + $0x68] sm:$0xff]
    %v5665 = vld [vmem:[%s5 + $0x70] sm:$0xff]
    %v5666 = vld [vmem:[%s5 + $0x78] sm:$0xff]
    %v5667 = vld [vmem:[%s5 + $0x80] sm:$0xff]
    %v5668 = vld [vmem:[%s5 + $0x88] sm:$0xff]
    %v5669 = vld [vmem:[%s5 + $0x90] sm:$0xff]
    %v5670 = vld [vmem:[%s5 + $0x98] sm:$0xff]
    %v5671 = vld [vmem:[%s5 + $0xa0] sm:$0xff]
    %v5672 = vld [vmem:[%s5 + $0xa8] sm:$0xff]
    %v5673 = vld [vmem:[%s5 + $0xb0] sm:$0xff]
    %v5674 = vld [vmem:[%s5 + $0xb8] sm:$0xff]
    %v5675 = vld [vmem:[%s5 + $0xc0] sm:$0xff]
    %v5676 = vld [vmem:[%s5 + $0xc8] sm:$0xff]
    %v5677 = vld [vmem:[%s5 + $0xd0] sm:$0xff]
    %v5678 = vld [vmem:[%s5 + $0xd8] sm:$0xff]
    %v5679 = vld [vmem:[%s5 + $0xe0] sm:$0xff]
    %v5680 = vld [vmem:[%s5 + $0xe8] sm:$0xff]
    %v5681 = vld [vmem:[%s5 + $0xf0] sm:$0xff]
    %v5682 = vld [vmem:[%s5 + $0xf8] sm:$0xff]
    %v5683 = vld [vmem:[%s5 + $0x100] sm:$0xff]
    %v5684 = vld [vmem:[%s5 + $0x108] sm:$0xff]
    %v5685 = vld [vmem:[%s5 + $0x110] sm:$0xff]
    %v5686 = vld [vmem:[%s5 + $0x118] sm:$0xff]
    %v5687 = vld [vmem:[%s5 + $0x120] sm:$0xff]
    %v5688 = vld [vmem:[%s5 + $0x128] sm:$0xff]
    %v5689 = vld [vmem:[%s5 + $0x130] sm:$0xff]
    %v5690 = vld [vmem:[%s5 + $0x138] sm:$0xff]
    %v5691 = vld [vmem:[%s5 + $0x140] sm:$0xff]
    %v5692 = vld [vmem:[%s5 + $0x148] sm:$0xff]
    %v5693 = vld [vmem:[%s5 + $0x150] sm:$0xff]
    %v5694 = vld [vmem:[%s5 + $0x158] sm:$0xff]
    %v5695 = vld [vmem:[%s5 + $0x160] sm:$0xff]
    %v5696 = vld [vmem:[%s5 + $0x168] sm:$0xff]
    %v5697 = vld [vmem:[%s5 + $0x170] sm:$0xff]
    %v5698 = vld [vmem:[%s5 + $0x178] sm:$0xff]
    %v5699 = vld [vmem:[%s5 + $0x180] sm:$0xff]
    %v5700 = vld [vmem:[%s5 + $0x188] sm:$0xff]
    %v5701 = vld [vmem:[%s5 + $0x190] sm:$0xff]
    %v5702 = vld [vmem:[%s5 + $0x198] sm:$0xff]
    %v5703 = vld [vmem:[%s5 + $0x1a0] sm:$0xff]
    %v5704 = vld [vmem:[%s5 + $0x1a8] sm:$0xff]
    %v5705 = vld [vmem:[%s5 + $0x1b0] sm:$0xff]
    %v5706 = vld [vmem:[%s5 + $0x1b8] sm:$0xff]
    %v5707 = vld [vmem:[%s5 + $0x1c0] sm:$0xff]
    %v5708 = vld [vmem:[%s5 + $0x1c8] sm:$0xff]
    %v5709 = vld [vmem:[%s5 + $0x1d0] sm:$0xff]
    %v5710 = vld [vmem:[%s5 + $0x1d8] sm:$0xff]
    %v5711 = vld [vmem:[%s5 + $0x1e0] sm:$0xff]
    %v5712 = vld [vmem:[%s5 + $0x1e8] sm:$0xff]
    %v5713 = vld [vmem:[%s5 + $0x1f0] sm:$0xff]
    %v5714 = vld [vmem:[%s5 + $0x1f8] sm:$0xff]
    %5715 = vmatprep.subr.mxu0 %v5652
    %5716 = vmatpush1.msra.mxu0 %v5651
    %5717 = vmatprep.subr.mxu0 %v5656
    %5718 = vmatpush1.msra.mxu0 %v5655
    %5719 = vmatprep.subr.mxu0 %v5660
    %5720 = vmatpush1.msra.mxu0 %v5659
    %5721 = vmatprep.subr.mxu0 %v5664
    %5722 = vmatpush1.msra.mxu0 %v5663
    %5723 = vmatprep.subr.mxu0 %v5668
    %5724 = vmatpush1.msra.mxu0 %v5667
    %5725 = vmatprep.subr.mxu0 %v5672
    %5726 = vmatpush1.msra.mxu0 %v5671
    %5727 = vmatprep.subr.mxu0 %v5676
    %5728 = vmatpush1.msra.mxu0 %v5675
    %5729 = vmatprep.subr.mxu0 %v5680
    %5730 = vmatpush1.msra.mxu0 %v5679
    %5731 = vmatprep.subr.mxu0 %v5684
    %5732 = vmatpush1.msra.mxu0 %v5683
    %5733 = vmatprep.subr.mxu0 %v5688
    %5734 = vmatpush1.msra.mxu0 %v5687
    %5735 = vmatprep.subr.mxu0 %v5692
    %5736 = vmatpush1.msra.mxu0 %v5691
    %5737 = vmatprep.subr.mxu0 %v5696
    %5738 = vmatpush1.msra.mxu0 %v5695
    %5739 = vmatprep.subr.mxu0 %v5700
    %5740 = vmatpush1.msra.mxu0 %v5699
    %5741 = vmatprep.subr.mxu0 %v5704
    %5742 = vmatpush1.msra.mxu0 %v5703
    %5743 = vmatprep.subr.mxu0 %v5708
    %5744 = vmatpush1.msra.mxu0 %v5707
    %5745 = vmatprep.subr.mxu0 %v5712
    %5746 = vmatpush1.msra.mxu0 %v5711
    %5747 = vmatprep.subr.mxu0 0.0
    %5748 = vmatpush1.msra.mxu0 0.0
    %5749 = vmatprep.subr.mxu0 0.0
    %5750 = vmatpush1.msra.mxu0 0.0
    %5751 = vmatprep.subr.mxu0 0.0
    %5752 = vmatpush1.msra.mxu0 0.0
    %5753 = vmatprep.subr.mxu0 0.0
    %5754 = vmatpush1.msra.mxu0 0.0
    %5755 = vmatprep.subr.mxu0 0.0
    %5756 = vmatpush1.msra.mxu0 0.0
    %5757 = vmatprep.subr.mxu0 0.0
    %5758 = vmatpush1.msra.mxu0 0.0
    %5759 = vmatprep.subr.mxu0 0.0
    %5760 = vmatpush1.msra.mxu0 0.0
    %5761 = vmatprep.subr.mxu0 0.0
    %5762 = vmatpush1.msra.mxu0 0.0
    %5763 = vmatprep.subr.mxu0 0.0
    %5764 = vmatpush1.msra.mxu0 0.0
    %5765 = vmatprep.subr.mxu0 0.0
    %5766 = vmatpush1.msra.mxu0 0.0
    %5767 = vmatprep.subr.mxu0 0.0
    %5768 = vmatpush1.msra.mxu0 0.0
    %5769 = vmatprep.subr.mxu0 0.0
    %5770 = vmatpush1.msra.mxu0 0.0
    %5771 = vmatprep.subr.mxu0 0.0
    %5772 = vmatpush1.msra.mxu0 0.0
    %5773 = vmatprep.subr.mxu0 0.0
    %5774 = vmatpush1.msra.mxu0 0.0
    %5775 = vmatprep.subr.mxu0 0.0
    %5776 = vmatpush1.msra.mxu0 0.0
    %5777 = vmatprep.subr.mxu0 0.0
    %5778 = vmatpush1.msra.mxu0 0.0
    %5779 = vmatprep.mubr.f32.mxu0 0.0
    %5780 = vmatmul.mubr.f32.gmra.mrb[0].mxu0 %v5650
    %v5781 = vpop.f32.mrb[0].mxu0
    %v5782 = vadd.f32 0.0, %v5781
    %v5783 = vpop.f32.mrb[0].mxu0
    %v5784 = vadd.f32 0.0, %v5783
    %5785 = vdwg.mxu0
    %5786 = vmatprep.subr.mxu0 %v5654
    %5787 = vmatpush1.msra.mxu0 %v5653
    %5788 = vmatprep.subr.mxu0 %v5658
    %5789 = vmatpush1.msra.mxu0 %v5657
    %5790 = vmatprep.subr.mxu0 %v5662
    %5791 = vmatpush1.msra.mxu0 %v5661
    %5792 = vmatprep.subr.mxu0 %v5666
    %5793 = vmatpush1.msra.mxu0 %v5665
    %5794 = vmatprep.subr.mxu0 %v5670
    %5795 = vmatpush1.msra.mxu0 %v5669
    %5796 = vmatprep.subr.mxu0 %v5674
    %5797 = vmatpush1.msra.mxu0 %v5673
    %5798 = vmatprep.subr.mxu0 %v5678
    %5799 = vmatpush1.msra.mxu0 %v5677
    %5800 = vmatprep.subr.mxu0 %v5682
    %5801 = vmatpush1.msra.mxu0 %v5681
    %5802 = vmatprep.subr.mxu0 %v5686
    %5803 = vmatpush1.msra.mxu0 %v5685
    %5804 = vmatprep.subr.mxu0 %v5690
    %5805 = vmatpush1.msra.mxu0 %v5689
    %5806 = vmatprep.subr.mxu0 %v5694
    %5807 = vmatpush1.msra.mxu0 %v5693
    %5808 = vmatprep.subr.mxu0 %v5698
    %5809 = vmatpush1.msra.mxu0 %v5697
    %5810 = vmatprep.subr.mxu0 %v5702
    %5811 = vmatpush1.msra.mxu0 %v5701
    %5812 = vmatprep.subr.mxu0 %v5706
    %5813 = vmatpush1.msra.mxu0 %v5705
    %5814 = vmatprep.subr.mxu0 %v5710
    %5815 = vmatpush1.msra.mxu0 %v5709
    %5816 = vmatprep.subr.mxu0 %v5714
    %5817 = vmatpush1.msra.mxu0 %v5713
    %5818 = vmatprep.subr.mxu0 0.0
    %5819 = vmatpush1.msra.mxu0 0.0
    %5820 = vmatprep.subr.mxu0 0.0
    %5821 = vmatpush1.msra.mxu0 0.0
    %5822 = vmatprep.subr.mxu0 0.0
    %5823 = vmatpush1.msra.mxu0 0.0
    %5824 = vmatprep.subr.mxu0 0.0
    %5825 = vmatpush1.msra.mxu0 0.0
    %5826 = vmatprep.subr.mxu0 0.0
    %5827 = vmatpush1.msra.mxu0 0.0
    %5828 = vmatprep.subr.mxu0 0.0
    %5829 = vmatpush1.msra.mxu0 0.0
    %5830 = vmatprep.subr.mxu0 0.0
    %5831 = vmatpush1.msra.mxu0 0.0
    %5832 = vmatprep.subr.mxu0 0.0
    %5833 = vmatpush1.msra.mxu0 0.0
    %5834 = vmatprep.subr.mxu0 0.0
    %5835 = vmatpush1.msra.mxu0 0.0
    %5836 = vmatprep.subr.mxu0 0.0
    %5837 = vmatpush1.msra.mxu0 0.0
    %5838 = vmatprep.subr.mxu0 0.0
    %5839 = vmatpush1.msra.mxu0 0.0
    %5840 = vmatprep.subr.mxu0 0.0
    %5841 = vmatpush1.msra.mxu0 0.0
    %5842 = vmatprep.subr.mxu0 0.0
    %5843 = vmatpush1.msra.mxu0 0.0
    %5844 = vmatprep.subr.mxu0 0.0
    %5845 = vmatpush1.msra.mxu0 0.0
    %5846 = vmatprep.subr.mxu0 0.0
    %5847 = vmatpush1.msra.mxu0 0.0
    %5848 = vmatprep.subr.mxu0 0.0
    %5849 = vmatpush1.msra.mxu0 0.0
    %5850 = vmatprep.mubr.f32.mxu0 0.0
    %5851 = vmatmul.mubr.f32.gmra.mrb[0].mxu0 %v5650
    %v5852 = vpop.f32.mrb[0].mxu0
    %v5853 = vadd.f32 0.0, %v5852
    %v5854 = vpop.f32.mrb[0].mxu0
    %v5855 = vadd.f32 0.0, %v5854
    %5856 = vdwg.mxu0
    %5857 = vst [vmem:[#allocation4] sm:$0xff] %v5782
    %5858 = vst [vmem:[#allocation4 + $0x8] sm:$0xff] %v5784
    %5859 = vst [vmem:[#allocation4 + $0x10] sm:$0xff] %v5853
    %5860 = vst [vmem:[#allocation4 + $0x18] sm:$0xff] %v5855
  $region85: #{seq2seq_forward.1} parent=0 // pred_fallthru
    _
  // Predicated region
  $region86: #{seq2seq_forward.1} parent=0 // pred_check
    _
  $region87: #{seq2seq_forward.1} parent=0 // pred_check_branch
    %5862 = sbr.rel (0) target = $region89
  $region88: #{seq2seq_forward.1} parent=0 // pred_region
    _
  $region89: #{seq2seq_forward.1} parent=0 // pred_fallthru
    _
  // Predicated region
  $region90: #{seq2seq_forward.1} parent=0 // pred_check
    _
  $region91: #{seq2seq_forward.1} parent=0 // pred_check_branch
    %5864 = sbr.rel (0) target = $region93
  $region92: #{seq2seq_forward.1} parent=0 // pred_region
    _
  $region93: #{seq2seq_forward.1} parent=0 // pred_fallthru
    _

</llo_original>
